<compile_context>
chip_gen: v6e
topology: v6e:2x2x1
jax: 0.10.0
libtpu: 0.0.40
codegen_flags: <defaults>
</compile_context>

<pallas_src>
import functools

import jax
import jax.numpy as jnp
from jax import lax
from jax.experimental import pallas as pl
from jax.experimental.pallas import tpu as pltpu

LANE = 128          # lane width: last dim of every tile
TILE_ROWS = 4096    # sublane rows per grid step -> 2 MiB per f32 input block
NCORES = 2          # split the reduction across TensorCores (v7x megacore)
SMALL_N = 1 << 16   # below this, a fused XLA reduction beats kernel overhead


def _elem_loss(pred, gt, loss_type):
    """Elementwise loss in f32 (shared by kernel, fallback and reference)."""
    d = pred.astype(jnp.float32) - gt.astype(jnp.float32)
    if loss_type == "l1":
        return jnp.abs(d)
    if loss_type == "l2":
        return d * d
    if loss_type == "l1_smooth":           # SmoothL1, beta = 1.0 (torch default)
        ad = jnp.abs(d)
        return jnp.where(ad < 1.0, 0.5 * d * d, ad - 0.5)
    raise ValueError(f"unknown recons_loss: {loss_type}")


def _loss_sum_kernel(pred_ref, gt_ref, out_ref, acc_ref, *,
                     loss_type, rows, block_rows, needs_mask):
    """Per-core partial sum of the elementwise loss over its row range."""
    s = pl.program_id(1)                 # reduction step within this core
    steps = pl.num_programs(1)

    @pl.when(s == 0)
    def _():
        acc_ref[...] = jnp.zeros_like(acc_ref)

    e = _elem_loss(pred_ref[...], gt_ref[...], loss_type)

    if needs_mask:
        # Intended global row-block for this (core, step).  The input
        # index_map clamps out-of-range blocks back in bounds; here we zero
        # out ragged-tail rows and fully-dead trailing steps.
        c = pl.program_id(0)
        rb = c * steps + s
        row0 = rb * block_rows
        row_idx = row0 + lax.broadcasted_iota(jnp.int32, (block_rows, LANE), 0)
        e = jnp.where(row_idx < rows, e, 0.0)

    # Vector accumulator: pure VPU adds every step; the expensive cross-lane
    # work is deferred.
    acc_ref[...] += e

    @pl.when(s == steps - 1)
    def _():
        # One sublane (XLU) reduction per core; cross-lane finish happens on
        # the tiny (ncores, 1, 128) result in the JAX wrapper.
        out_ref[...] = jnp.sum(acc_ref[...], axis=0, keepdims=True
                               ).reshape(1, 1, LANE)


def _mean_loss_pallas(pred, gt, loss_type):
    assert pred.shape == gt.shape
    n = pred.size

    # Tiny inputs (e.g. (B, T, A) action tensors): a fused XLA reduction is
    # strictly faster than pallas_call launch + pipeline overhead.
    if n < SMALL_N:
        return jnp.mean(_elem_loss(pred, gt, loss_type)).astype(pred.dtype)

    # Native dtype, row-major flatten (free, no copy / no astype).
    flat_p = pred.reshape(-1)
    flat_g = gt.reshape(-1)

    rem = n % LANE
    if rem:
        # Rare sub-128-element ragged tail: zero-pad (loss(0,0) == 0 for all
        # three variants; we divide by the TRUE n below).
        pad = LANE - rem
        flat_p = jnp.pad(flat_p, (0, pad))
        flat_g = jnp.pad(flat_g, (0, pad))

    rows = flat_p.size // LANE
    p2 = flat_p.reshape(rows, LANE)
    g2 = flat_g.reshape(rows, LANE)

    block_rows = min(TILE_ROWS, rows)            # full-dim block if small
    num_blocks = pl.cdiv(rows, block_rows)
    ncores = min(NCORES, num_blocks)
    steps = pl.cdiv(num_blocks, ncores)
    # Masking only needed for a ragged last block or dead trailing steps.
    needs_mask = (rows % block_rows != 0) or (num_blocks % ncores != 0)

    def in_map(c, s):
        # Clamp dead trailing steps back in bounds; their contribution is
        # masked to zero inside the kernel.
        return (jnp.minimum(c * steps + s, num_blocks - 1), 0)

    kernel = functools.partial(
        _loss_sum_kernel, loss_type=loss_type, rows=rows,
        block_rows=block_rows, needs_mask=needs_mask)

    partials = pl.pallas_call(
        kernel,
        out_shape=jax.ShapeDtypeStruct((ncores, 1, LANE), jnp.float32),
        grid_spec=pltpu.PrefetchScalarGridSpec(
            num_scalar_prefetch=0,
            grid=(ncores, steps),
            in_specs=[
                pl.BlockSpec((block_rows, LANE), in_map),
                pl.BlockSpec((block_rows, LANE), in_map),
            ],
            out_specs=pl.BlockSpec((1, 1, LANE), lambda c, s: (c, 0, 0)),
            scratch_shapes=[pltpu.VMEM((block_rows, LANE), jnp.float32)],
        ),
        compiler_params=pltpu.CompilerParams(
            dimension_semantics=("parallel", "arbitrary")),
    )(p2, g2)

    total = jnp.sum(partials)
    return (total / jnp.float32(n)).astype(pred.dtype)


class ReConsLossPallas:
    """JAX/Pallas port of ReConsLoss (forward path only)."""

    def __init__(self, recons_loss, pos_dim, rot_state, rot_dim=(3, 4, 5)):
        assert recons_loss in ("l1", "l2", "l1_smooth")
        self.recons_loss = recons_loss
        self.pos_dim = pos_dim
        if rot_state:
            self.rot_dim = tuple(rot_dim)
        # TODO(synk): bce_loss (nn.BCELoss) and forward_joint are unused in
        # forward(); not ported.

    def forward(self, action_pred, action_gt):
        return _mean_loss_pallas(action_pred, action_gt, self.recons_loss)

    __call__ = forward


def _reference(pred, gt, loss_type):
    return jnp.mean(_elem_loss(pred, gt, loss_type))


def _check(name, out, ref, rtol, atol):
    out = jax.block_until_ready(out)
    ref = jax.block_until_ready(ref)
    good = jnp.allclose(jnp.float32(out), jnp.float32(ref), rtol=rtol, atol=atol)
    if not bool(good):
        print(f"MISMATCH [{name}]: kernel={float(out)} ref={float(ref)}")
    return bool(good)


if __name__ == "__main__":
    key = jax.random.PRNGKey(0)
    ks = jax.random.split(key, 8)
    ok = True

    # 1) Small action tensors (batch=2, horizon=8, action_dim=16): fallback path.
    ap_s = jax.random.normal(ks[0], (2, 8, 16), dtype=jnp.float32)
    ag_s = jax.random.normal(ks[1], (2, 8, 16), dtype=jnp.float32)
    for lt in ("l1", "l2", "l1_smooth"):
        mod = ReConsLossPallas(recons_loss=lt, pos_dim=3, rot_state=True)
        ok &= _check(f"small/{lt}", mod(ap_s, ag_s),
                     _reference(ap_s, ag_s, lt), 1e-5, 1e-6)

    # 2) Large f32 batch: multi-block grid, both cores, ragged last block and
    #    a dead trailing step (num_blocks odd) -> exercises the Pallas kernel.
    ap_l = jax.random.normal(ks[2], (4, 3700, 160), dtype=jnp.float32)
    ag_l = jax.random.normal(ks[3], (4, 3700, 160), dtype=jnp.float32)
    for lt in ("l1", "l2", "l1_smooth"):
        mod = ReConsLossPallas(recons_loss=lt, pos_dim=3, rot_state=True)
        ok &= _check(f"large/{lt}", mod(ap_l, ag_l),
                     _reference(ap_l, ag_l, lt), 1e-4, 1e-5)

    # 3) Single-block path (block_rows == rows).
    ap_m = jax.random.normal(ks[4], (3, 1000, 128), dtype=jnp.float32)
    ag_m = jax.random.normal(ks[5], (3, 1000, 128), dtype=jnp.float32)
    mod = ReConsLossPallas(recons_loss="l2", pos_dim=3, rot_state=True)
    ok &= _check("single_block/l2", mod(ap_m, ag_m),
                 _reference(ap_m, ag_m, "l2"), 1e-4, 1e-5)

    # 4) Ragged tail (n % 128 != 0) -> zero-pad path.
    ap_r = jax.random.normal(ks[6], (5, 333, 77), dtype=jnp.float32)
    ag_r = jax.random.normal(ks[7], (5, 333, 77), dtype=jnp.float32)
    mod = ReConsLossPallas(recons_loss="l1", pos_dim=3, rot_state=True)
    ok &= _check("ragged_tail/l1", mod(ap_r, ag_r),
                 _reference(ap_r, ag_r, "l1"), 1e-4, 1e-5)

    # 5) Native bf16 streaming (half the HBM bytes through the kernel).
    ap_b = ap_l.astype(jnp.bfloat16)
    ag_b = ag_l.astype(jnp.bfloat16)
    mod = ReConsLossPallas(recons_loss="l1_smooth", pos_dim=3, rot_state=True)
    ok &= _check("bf16/l1_smooth", mod(ap_b, ag_b),
                 _reference(ap_b, ag_b, "l1_smooth"), 2e-2, 1e-2)

    if ok:
        print("KERNEL_OK")
</pallas_src>

<mosaic_0001>
module attributes {stable_mosaic.version = 11 : i64} {
  func.func @_loss_sum_kernel(%arg0: i32, %arg1: i32, %arg2: memref<4096x128xf32, #tpu.memory_space<vmem>>, %arg3: memref<4096x128xf32, #tpu.memory_space<vmem>>, %arg4: memref<1x1x128xf32, #tpu.memory_space<vmem>>, %arg5: memref<4096x128xf32, #tpu.memory_space<vmem>>) attributes {dimension_semantics = [#tpu.dimension_semantics<parallel>, #tpu.dimension_semantics<arbitrary>], iteration_bounds = array<i64: 2, 3>, scalar_prefetch = 0 : i64, scratch_operands = 1 : i64, tpu.core_type = #tpu.core_type<tc>, window_params = [{transform_indices = @transform_0, window_bounds = array<i64: 4096, 128>}, {transform_indices = @transform_1, window_bounds = array<i64: 4096, 128>}, {transform_indices = @transform_2, window_bounds = array<i64: 1, 1, 128>}]} {
    %c0_i32 = arith.constant 0 : i32
    %0 = arith.cmpi eq, %arg1, %c0_i32 : i32
    %1 = arith.extui %0 : i1 to i32
    %c0_i32_0 = arith.constant 0 : i32
    %2 = arith.cmpi ne, %1, %c0_i32_0 : i32
    scf.if %2 {
      %cst_9 = arith.constant 0.000000e+00 : f32
      %23 = vector.broadcast %cst_9 : f32 to vector<4096x128xf32>
      %c0_10 = arith.constant 0 : index
      %c0_11 = arith.constant 0 : index
      %24 = vector.load %arg5[%c0_10, %c0_11] : memref<4096x128xf32, #tpu.memory_space<vmem>>, vector<4096x128xf32>
      tpu.vector_store %arg5[%c0_10, %c0_11], %23 {strides = array<i32>} : memref<4096x128xf32, #tpu.memory_space<vmem>>, vector<4096x128xf32>,
    } else {
    }
    %c0 = arith.constant 0 : index
    %c0_1 = arith.constant 0 : index
    %3 = vector.load %arg2[%c0, %c0_1] : memref<4096x128xf32, #tpu.memory_space<vmem>>, vector<4096x128xf32>
    %c0_2 = arith.constant 0 : index
    %c0_3 = arith.constant 0 : index
    %4 = vector.load %arg3[%c0_2, %c0_3] : memref<4096x128xf32, #tpu.memory_space<vmem>>, vector<4096x128xf32>
    %5 = arith.subf %3, %4 : vector<4096x128xf32>
    %6 = math.absf %5 : vector<4096x128xf32>
    %c3_i32 = arith.constant 3 : i32
    %7 = arith.muli %arg0, %c3_i32 : i32
    %8 = arith.addi %7, %arg1 : i32
    %c4096_i32 = arith.constant 4096 : i32
    %9 = arith.muli %8, %c4096_i32 : i32
    %10 = tpu.iota {dimensions = array<i32: 0>} : vector<4096x128xi32>
    %11 = vector.broadcast %9 : i32 to vector<4096x128xi32>
    %12 = arith.addi %11, %10 : vector<4096x128xi32>
    %c18500_i32 = arith.constant 18500 : i32
    %13 = vector.broadcast %c18500_i32 : i32 to vector<4096x128xi32>
    %14 = arith.cmpi slt, %12, %13 : vector<4096x128xi32>
    %cst = arith.constant 0.000000e+00 : f32
    %15 = vector.broadcast %cst : f32 to vector<4096x128xf32>
    %16 = arith.select %14, %6, %15 : vector<4096x128xi1>, vector<4096x128xf32>
    %c0_4 = arith.constant 0 : index
    %c0_5 = arith.constant 0 : index
    %17 = vector.load %arg5[%c0_4, %c0_5] : memref<4096x128xf32, #tpu.memory_space<vmem>>, vector<4096x128xf32>
    %18 = arith.addf %17, %16 : vector<4096x128xf32>
    %c0_6 = arith.constant 0 : index
    %c0_7 = arith.constant 0 : index
    %19 = vector.load %arg5[%c0_6, %c0_7] : memref<4096x128xf32, #tpu.memory_space<vmem>>, vector<4096x128xf32>
    tpu.vector_store %arg5[%c0_6, %c0_7], %18 {strides = array<i32>} : memref<4096x128xf32, #tpu.memory_space<vmem>>, vector<4096x128xf32>,
    %c2_i32 = arith.constant 2 : i32
    %20 = arith.cmpi eq, %arg1, %c2_i32 : i32
    %21 = arith.extui %20 : i1 to i32
    %c0_i32_8 = arith.constant 0 : i32
    %22 = arith.cmpi ne, %21, %c0_i32_8 : i32
    scf.if %22 {
      %c0_9 = arith.constant 0 : index
      %c0_10 = arith.constant 0 : index
      %23 = vector.load %arg5[%c0_9, %c0_10] : memref<4096x128xf32, #tpu.memory_space<vmem>>, vector<4096x128xf32>
      %cst_11 = arith.constant dense<0.000000e+00> : vector<128xf32>
      %24 = vector.multi_reduction <add>, %23, %cst_11 [0] : vector<4096x128xf32> to vector<128xf32>
      %25 = vector.shape_cast %24 : vector<128xf32> to vector<1x128xf32>
      %26 = vector.shape_cast %25 : vector<1x128xf32> to vector<1x1x128xf32>
      %c0_12 = arith.constant 0 : index
      %c0_13 = arith.constant 0 : index
      %c0_14 = arith.constant 0 : index
      %27 = vector.load %arg4[%c0_12, %c0_13, %c0_14] : memref<1x1x128xf32, #tpu.memory_space<vmem>>, vector<1x1x128xf32>
      tpu.vector_store %arg4[%c0_12, %c0_13, %c0_14], %26 {strides = array<i32>} : memref<1x1x128xf32, #tpu.memory_space<vmem>>, vector<1x1x128xf32>,
    } else {
    }
    return
  }
  func.func @transform_0(%arg0: i32, %arg1: i32) -> (i32, i32) {
    %c3_i32 = arith.constant 3 : i32
    %0 = arith.muli %arg0, %c3_i32 : i32
    %1 = arith.addi %0, %arg1 : i32
    %c4_i32 = arith.constant 4 : i32
    %2 = arith.minsi %1, %c4_i32 : i32
    %c0_i32 = arith.constant 0 : i32
    %c0_i32_0 = arith.constant 0 : i32
    return %2, %c0_i32 : i32, i32
  }
  func.func @transform_1(%arg0: i32, %arg1: i32) -> (i32, i32) {
    %c3_i32 = arith.constant 3 : i32
    %0 = arith.muli %arg0, %c3_i32 : i32
    %1 = arith.addi %0, %arg1 : i32
    %c4_i32 = arith.constant 4 : i32
    %2 = arith.minsi %1, %c4_i32 : i32
    %c0_i32 = arith.constant 0 : i32
    %c0_i32_0 = arith.constant 0 : i32
    return %2, %c0_i32 : i32, i32
  }
  func.func @transform_2(%arg0: i32, %arg1: i32) -> (i32, i32, i32) {
    %c0_i32 = arith.constant 0 : i32
    %c0_i32_0 = arith.constant 0 : i32
    %c0_i32_1 = arith.constant 0 : i32
    return %arg0, %c0_i32, %c0_i32_0 : i32, i32, i32
  }
}

</mosaic_0001>

<llo_original>
// kernel: tpu_custom_call.1
$region0: #{tpu_custom_call.1}
  #allocation0 [shape = 'u32[]', space=smem, size = 0x4, offset = 0x4, fixed_abs, tag = 'smem constant byte address 0x4 - core index']
  #allocation1 [shape = 'u32[144,128]{1,0:T(1,128)}', space=vmem, size = 0x12000, scoped, tag = 'internal scratch']
  #allocation2 [shape = 'f32[4096,128]{1,0:T(8,128)}', space=vmem, size = 0x200000, scoped, tag = 'scratch operand']
  %s0 = inlined_call_operand.hbm [shape: f32[18500,128], index: 0, kind: input, shape index: {}]
  %s1 = inlined_call_operand.hbm [shape: f32[18500,128], index: 1, kind: input, shape index: {}]
  %s2 = inlined_call_operand.hbm [shape: f32[2,1,128], index: 2, kind: output, shape index: {}]
  %s3 = sld [smem:[#allocation0]]
  $region57: #{tpu_custom_call.1} parent=0
    _
  %s5 = ssub.s32 1, %s3
  %s6 = scalar_select 0, %s5, %s3
  $region1: #{tpu_custom_call.1} parent=0
    #allocation3 [shape = 'u8[4194304]{0}', space=vmem, size = 0x400000, scoped, tag = 'input window, operand 0']
    #allocation4 [shape = 's32[2]{0}', space=sflag, size = 0x8, scoped, tag = 'scoped memory for tpu_custom_call.1']
    #allocation5 [shape = 's32[2]{0}', space=sflag, size = 0x8, scoped, tag = 'scoped memory for tpu_custom_call.1']
    #allocation6 [shape = 'u8[4194304]{0}', space=vmem, size = 0x400000, scoped, tag = 'input window, operand 1']
    #allocation7 [shape = 's32[2]{0}', space=sflag, size = 0x8, scoped, tag = 'scoped memory for tpu_custom_call.1']
    #allocation8 [shape = 'u8[1024]{0}', space=vmem, size = 0x400, scoped, tag = 'output window, operand 0']
    %7 = vsyncpa [#allocation4], 0
    %s8 = scalar_lea.sflag [#allocation4], 1
    %9 = vsyncpa %s8, 0
    %10 = vsyncpa [#allocation7], 0
    %s11 = scalar_lea.sflag [#allocation7], 1
    %12 = vsyncpa %s11, 0
    %13 = vsyncpa [#allocation5], 0
    %s14 = scalar_lea.sflag [#allocation5], 1
    %15 = vsyncpa %s14, 0
    loop: start=0, step=1, limit=8
    $region2: #{tpu_custom_call.1} parent=1 // loop_pre_header
      _
    $region3: #{tpu_custom_call.1} parent=1 // loop_header
      %s17 = sphi 0, %s21
      %p18 = scmp.ge.s32.totalorder %s17, 8
      %s24 = sphi 0, %s36
      %s25 = sphi 0, %s32
      %s26 = sphi 0, %s24
      %s27 = sphi 0, %s25
      %s28 = sphi 0, %s26
      %s29 = sphi 0, %s27
      %s47 = sphi 0, %s49
      %s50 = sphi 0, %s47
      %s51 = sphi 0, %s50
      %s67 = sphi 0, %s51
      %s81 = sphi 0, %s83
      %s84 = sphi 0, %s81
      %s85 = sphi 0, %s84
      %s101 = sphi 0, %s85
      %s107 = sphi 0, %s109
      %s110 = sphi 0, %s107
      %s111 = sphi 0, %s110
      %s127 = sphi 0, %s111
    $region4: #{tpu_custom_call.1} parent=1 // loop_header_branch
      %20 = sbr.rel (%p18) target = $region8
    $region5: #{tpu_custom_call.1} parent=1 // loop_body
      %s22 = ssub.s32 %s17, 1
      %s23 = ssub.s32 %s17, 2
      %s30 = sadd.s32 1, %s25
      %p31 = scmp.ge.s32.totalorder %s30, 3
      %s32 = scalar_select %p31, 0, %s30
      %s33 = sadd.s32 1, %s24
      %s34 = scalar_select %p31, %s33, %s24
      %p35 = scmp.ge.s32.totalorder %s34, 2
      %s36 = scalar_select %p35, 0, %s34
      %s37 = smul.u32 %s24, 3
      %s38 = sadd.s32 %s37, %s25
      %p39 = scmp.lt.s32.totalorder %s38, 4
      %s40 = scalar_select %p39, %s38, 4
      %s41 = smul.u32 %s36, 3
      %s42 = sadd.s32 %s41, %s32
      %p43 = scmp.lt.s32.totalorder %s42, 4
      %s44 = scalar_select %p43, %s42, 4
      %s45 = ssub.s32 %s40, %s44
      %p46 = scmp.eq.s32.totalorder %s45, 0
      %s48 = sadd.s32 %s47, 1
      %s49 = scalar_select %p46, %s47, %s48
      %p52 = pneg %p46
      %p53 = scmp.eq.s32.totalorder %s17, 5
      %p54 = por %p52, %p53
      %p55 = scmp.ne.s32.totalorder %s47, %s50
      %p56 = scmp.eq.s32.totalorder %s17, 0
      %p57 = por %p55, %p56
      %p58 = scmp.ne.s32.totalorder %s47, %s50
      %p59 = scmp.eq.s32.totalorder %s22, 5
      %p60 = por %p58, %p59
      %p61 = scmp.ne.s32.totalorder %s50, %s51
      %p62 = scmp.eq.s32.totalorder %s22, 0
      %p63 = por %p61, %p62
      %p64 = scmp.ne.s32.totalorder %s50, %s51
      %p65 = scmp.eq.s32.totalorder %s23, 5
      %p66 = por %p64, %p65
      %p68 = scmp.ne.s32.totalorder %s51, %s67
      %p69 = scmp.eq.s32.totalorder %s23, 0
      %p70 = por %p68, %p69
      %s71 = smul.u32 %s24, 3
      %s72 = sadd.s32 %s71, %s25
      %p73 = scmp.lt.s32.totalorder %s72, 4
      %s74 = scalar_select %p73, %s72, 4
      %s75 = smul.u32 %s36, 3
      %s76 = sadd.s32 %s75, %s32
      %p77 = scmp.lt.s32.totalorder %s76, 4
      %s78 = scalar_select %p77, %s76, 4
      %s79 = ssub.s32 %s74, %s78
      %p80 = scmp.eq.s32.totalorder %s79, 0
      %s82 = sadd.s32 %s81, 1
      %s83 = scalar_select %p80, %s81, %s82
      %p86 = pneg %p80
      %p87 = scmp.eq.s32.totalorder %s17, 5
      %p88 = por %p86, %p87
      %p89 = scmp.ne.s32.totalorder %s81, %s84
      %p90 = scmp.eq.s32.totalorder %s17, 0
      %p91 = por %p89, %p90
      %p92 = scmp.ne.s32.totalorder %s81, %s84
      %p93 = scmp.eq.s32.totalorder %s22, 5
      %p94 = por %p92, %p93
      %p95 = scmp.ne.s32.totalorder %s84, %s85
      %p96 = scmp.eq.s32.totalorder %s22, 0
      %p97 = por %p95, %p96
      %p98 = scmp.ne.s32.totalorder %s84, %s85
      %p99 = scmp.eq.s32.totalorder %s23, 5
      %p100 = por %p98, %p99
      %p102 = scmp.ne.s32.totalorder %s85, %s101
      %p103 = scmp.eq.s32.totalorder %s23, 0
      %p104 = por %p102, %p103
      %s105 = ssub.s32 %s24, %s36
      %p106 = scmp.eq.s32.totalorder %s105, 0
      %s108 = sadd.s32 %s107, 1
      %s109 = scalar_select %p106, %s107, %s108
      %p112 = pneg %p106
      %p113 = scmp.eq.s32.totalorder %s17, 5
      %p114 = por %p112, %p113
      %p115 = scmp.ne.s32.totalorder %s107, %s110
      %p116 = scmp.eq.s32.totalorder %s17, 0
      %p117 = por %p115, %p116
      %p118 = scmp.ne.s32.totalorder %s107, %s110
      %p119 = scmp.eq.s32.totalorder %s22, 5
      %p120 = por %p118, %p119
      %p121 = scmp.ne.s32.totalorder %s110, %s111
      %p122 = scmp.eq.s32.totalorder %s22, 0
      %p123 = por %p121, %p122
      %p124 = scmp.ne.s32.totalorder %s110, %s111
      %p125 = scmp.eq.s32.totalorder %s23, 5
      %p126 = por %p124, %p125
      %p128 = scmp.ne.s32.totalorder %s111, %s127
      %p129 = scmp.eq.s32.totalorder %s23, 0
      %p130 = por %p128, %p129
      %p131 = scmp.le.s32.totalorder 1, %s17
      %p132 = scmp.lt.s32.totalorder %s17, 7
      %p133 = pnand %p131, %p132
      %p134 = pneg %p133
      // Predicated region
      $region9: #{tpu_custom_call.1} parent=5 // pred_check
        _
      $region10: #{tpu_custom_call.1} parent=5 // pred_check_branch
        %136 = sbr.rel (%p133) target = $region12
      $region11: #{tpu_custom_call.1} parent=5 // pred_region
        %s137 = ssub.s32 %s17, 1
      $region12: #{tpu_custom_call.1} parent=5 // pred_fallthru
        _
      %p138 = scmp.lt.s32.totalorder %s17, 6
      // Predicated region
      $region13: #{tpu_custom_call.1} parent=5 // pred_check
        %p139 = pneg %p138
      $region14: #{tpu_custom_call.1} parent=5 // pred_check_branch
        %141 = sbr.rel (%p139) target = $region16
      $region15: #{tpu_custom_call.1} parent=5 // pred_region
        // Predicated region
        $region17: #{tpu_custom_call.1} parent=15 // pred_check
          %p142 = pneg %p57
        $region18: #{tpu_custom_call.1} parent=15 // pred_check_branch
          %144 = sbr.rel (%p142) target = $region20
        $region19: #{tpu_custom_call.1} parent=15 // pred_region
          %s145 = sand.u32 %s47, 1
          %s146 = scalar_lea.sflag [#allocation4], %s145
          %s147 = sand.u32 %s47, 1
          %s148 = smul.addr %s147, 4096
          %s149 = scalar_lea.vmem [#allocation3], %s148
          %s150 = smul.u32 %s24, 3
          %s151 = sadd.s32 %s150, %s25
          %p152 = scmp.lt.s32.totalorder %s151, 4
          %s153 = scalar_select %p152, %s151, 4
          %s154 = smul.u32 512, %s153
          %s155 = ssub.s32 2313, %s154
          %p156 = scmp.lt.s32.totalorder %s155, 512
          %s157 = scalar_select %p156, %s155, 512
          %s158 = smul.u32 128, %s157
          %s160 = ssub.s32 65536, %s158
          %161 = vsyncadd %s146, %s160
          %p162 = scmp.ne.s32.totalorder 0, %s158
          %s163 = smul.addr %s154, 128
          %s164 = scalar_lea.hbm %s0, %s163
          %s165 = smul.u32 8, %s157
          %s166 = sshll.u32 %s149, 4
          %s167 = int_to_ptr.vmem [resolvable:$true] %s166
          %s168 = sshll.u32 %s165, 4
          %172 = dma.hbm_to_vmem [thread:$0]  (%p162), %s164, %s168, %s167, %s146, 128, 128, 8
        $region20: #{tpu_custom_call.1} parent=15 // pred_fallthru
          _
        // Predicated region
        $region21: #{tpu_custom_call.1} parent=15 // pred_check
          %p173 = pneg %p91
        $region22: #{tpu_custom_call.1} parent=15 // pred_check_branch
          %175 = sbr.rel (%p173) target = $region24
        $region23: #{tpu_custom_call.1} parent=15 // pred_region
          %s176 = sand.u32 %s81, 1
          %s177 = scalar_lea.sflag [#allocation7], %s176
          %s178 = sand.u32 %s81, 1
          %s179 = smul.addr %s178, 4096
          %s180 = scalar_lea.vmem [#allocation6], %s179
          %s181 = smul.u32 %s24, 3
          %s182 = sadd.s32 %s181, %s25
          %p183 = scmp.lt.s32.totalorder %s182, 4
          %s184 = scalar_select %p183, %s182, 4
          %s185 = smul.u32 512, %s184
          %s186 = ssub.s32 2313, %s185
          %p187 = scmp.lt.s32.totalorder %s186, 512
          %s188 = scalar_select %p187, %s186, 512
          %s189 = smul.u32 128, %s188
          %s191 = ssub.s32 65536, %s189
          %192 = vsyncadd %s177, %s191
          %p193 = scmp.ne.s32.totalorder 0, %s189
          %s194 = smul.addr %s185, 128
          %s195 = scalar_lea.hbm %s1, %s194
          %s196 = smul.u32 8, %s188
          %s197 = sshll.u32 %s180, 4
          %s198 = int_to_ptr.vmem [resolvable:$true] %s197
          %s199 = sshll.u32 %s196, 4
          %203 = dma.hbm_to_vmem [thread:$0]  (%p193), %s195, %s199, %s198, %s177, 128, 128, 8
        $region24: #{tpu_custom_call.1} parent=15 // pred_fallthru
          _
      $region16: #{tpu_custom_call.1} parent=5 // pred_fallthru
        _
      %p204 = scmp.le.s32.totalorder 1, %s17
      %p205 = scmp.lt.s32.totalorder %s17, 7
      %p206 = pnand %p204, %p205
      %p207 = pneg %p206
      // Predicated region
      $region25: #{tpu_custom_call.1} parent=5 // pred_check
        _
      $region26: #{tpu_custom_call.1} parent=5 // pred_check_branch
        %209 = sbr.rel (%p206) target = $region28
      $region27: #{tpu_custom_call.1} parent=5 // pred_region
        %s210 = ssub.s32 %s17, 1
        %s211 = sand.u32 %s50, 1
        %s212 = scalar_lea.sflag [#allocation4], %s211
        %s213 = sand.u32 %s50, 1
        %s214 = smul.addr %s213, 4096
        %s215 = scalar_lea.vmem [#allocation3], %s214
        // Predicated region
        $region29: #{tpu_custom_call.1} parent=27 // pred_check
          %p216 = pneg %p63
        $region30: #{tpu_custom_call.1} parent=27 // pred_check_branch
          %218 = sbr.rel (%p216) target = $region32
        $region31: #{tpu_custom_call.1} parent=27 // pred_region
          %219 = dma.done %s212, 65536
        $region32: #{tpu_custom_call.1} parent=27 // pred_fallthru
          _
        %s220 = sand.u32 %s84, 1
        %s221 = scalar_lea.sflag [#allocation7], %s220
        %s222 = sand.u32 %s84, 1
        %s223 = smul.addr %s222, 4096
        %s224 = scalar_lea.vmem [#allocation6], %s223
        // Predicated region
        $region33: #{tpu_custom_call.1} parent=27 // pred_check
          %p225 = pneg %p97
        $region34: #{tpu_custom_call.1} parent=27 // pred_check_branch
          %227 = sbr.rel (%p225) target = $region36
        $region35: #{tpu_custom_call.1} parent=27 // pred_region
          %228 = dma.done %s221, 65536
        $region36: #{tpu_custom_call.1} parent=27 // pred_fallthru
          _
        %s229 = sand.u32 %s50, 1
        %s230 = scalar_lea.sflag [#allocation4], %s229
        %s231 = sand.u32 %s50, 1
        %s232 = smul.addr %s231, 4096
        %s233 = scalar_lea.vmem [#allocation3], %s232
        %p234 = pneg %p63
        %p235 = pneg %p60
        %s236 = sand.u32 %s84, 1
        %s237 = scalar_lea.sflag [#allocation7], %s236
        %s238 = sand.u32 %s84, 1
        %s239 = smul.addr %s238, 4096
        %s240 = scalar_lea.vmem [#allocation6], %s239
        %p241 = pneg %p97
        %p242 = pneg %p94
        %p243 = pneg %p123
        %p244 = pneg %p120
        %s245 = sand.u32 %s110, 1
        %s246 = scalar_lea.sflag [#allocation5], %s245
        %s247 = sand.u32 %s110, 1
        %s248 = scalar_lea.vmem [#allocation8], %s247
        %s249 = smul.u32 %s26, 3
        %s250 = sadd.s32 %s249, %s27
        %p251 = scmp.lt.s32.totalorder %s250, 4
        %s252 = scalar_select %p251, %s250, 4
        %s253 = smul.u32 512, %s252
        %s254 = ssub.s32 2313, %s253
        %p255 = scmp.lt.s32.totalorder %s254, 512
        %s256 = scalar_select %p255, %s254, 512
        %s257 = smul.u32 128, %s256
        %s258 = smul.u32 %s26, 3
        %s259 = sadd.s32 %s258, %s27
        %p260 = scmp.lt.s32.totalorder %s259, 4
        %s261 = scalar_select %p260, %s259, 4
        %s262 = smul.u32 512, %s261
        %s263 = ssub.s32 2313, %s262
        %p264 = scmp.lt.s32.totalorder %s263, 512
        %s265 = scalar_select %p264, %s263, 512
        %s266 = smul.u32 128, %s265
        %p267 = scmp.eq.s32.totalorder %s27, 0
        // Predicated region
        $region37: #{tpu_custom_call.1} parent=27 // pred_check
          %p268 = pneg %p267
        $region38: #{tpu_custom_call.1} parent=27 // pred_check_branch
          %270 = sbr.rel (%p268) target = $region40
        $region39: #{tpu_custom_call.1} parent=27 // pred_region
          %271 = vst [vmem:[#allocation2] sm:$0xff] 0.0
          %272 = vst [vmem:[#allocation2 + $0x8] sm:$0xff] 0.0
          %273 = vst [vmem:[#allocation2 + $0x10] sm:$0xff] 0.0
          %274 = vst [vmem:[#allocation2 + $0x18] sm:$0xff] 0.0
          %275 = vst [vmem:[#allocation2 + $0x20] sm:$0xff] 0.0
          %276 = vst [vmem:[#allocation2 + $0x28] sm:$0xff] 0.0
          %277 = vst [vmem:[#allocation2 + $0x30] sm:$0xff] 0.0
          %278 = vst [vmem:[#allocation2 + $0x38] sm:$0xff] 0.0
          %279 = vst [vmem:[#allocation2 + $0x40] sm:$0xff] 0.0
          %280 = vst [vmem:[#allocation2 + $0x48] sm:$0xff] 0.0
          %281 = vst [vmem:[#allocation2 + $0x50] sm:$0xff] 0.0
          %282 = vst [vmem:[#allocation2 + $0x58] sm:$0xff] 0.0
          %283 = vst [vmem:[#allocation2 + $0x60] sm:$0xff] 0.0
          %284 = vst [vmem:[#allocation2 + $0x68] sm:$0xff] 0.0
          %285 = vst [vmem:[#allocation2 + $0x70] sm:$0xff] 0.0
          %286 = vst [vmem:[#allocation2 + $0x78] sm:$0xff] 0.0
          %287 = vst [vmem:[#allocation2 + $0x80] sm:$0xff] 0.0
          %288 = vst [vmem:[#allocation2 + $0x88] sm:$0xff] 0.0
          %289 = vst [vmem:[#allocation2 + $0x90] sm:$0xff] 0.0
          %290 = vst [vmem:[#allocation2 + $0x98] sm:$0xff] 0.0
          %291 = vst [vmem:[#allocation2 + $0xa0] sm:$0xff] 0.0
          %292 = vst [vmem:[#allocation2 + $0xa8] sm:$0xff] 0.0
          %293 = vst [vmem:[#allocation2 + $0xb0] sm:$0xff] 0.0
          %294 = vst [vmem:[#allocation2 + $0xb8] sm:$0xff] 0.0
          %295 = vst [vmem:[#allocation2 + $0xc0] sm:$0xff] 0.0
          %296 = vst [vmem:[#allocation2 + $0xc8] sm:$0xff] 0.0
          %297 = vst [vmem:[#allocation2 + $0xd0] sm:$0xff] 0.0
          %298 = vst [vmem:[#allocation2 + $0xd8] sm:$0xff] 0.0
          %299 = vst [vmem:[#allocation2 + $0xe0] sm:$0xff] 0.0
          %300 = vst [vmem:[#allocation2 + $0xe8] sm:$0xff] 0.0
          %301 = vst [vmem:[#allocation2 + $0xf0] sm:$0xff] 0.0
          %302 = vst [vmem:[#allocation2 + $0xf8] sm:$0xff] 0.0
          %303 = vst [vmem:[#allocation2 + $0x100] sm:$0xff] 0.0
          %304 = vst [vmem:[#allocation2 + $0x108] sm:$0xff] 0.0
          %305 = vst [vmem:[#allocation2 + $0x110] sm:$0xff] 0.0
          %306 = vst [vmem:[#allocation2 + $0x118] sm:$0xff] 0.0
          %307 = vst [vmem:[#allocation2 + $0x120] sm:$0xff] 0.0
          %308 = vst [vmem:[#allocation2 + $0x128] sm:$0xff] 0.0
          %309 = vst [vmem:[#allocation2 + $0x130] sm:$0xff] 0.0
          %310 = vst [vmem:[#allocation2 + $0x138] sm:$0xff] 0.0
          %311 = vst [vmem:[#allocation2 + $0x140] sm:$0xff] 0.0
          %312 = vst [vmem:[#allocation2 + $0x148] sm:$0xff] 0.0
          %313 = vst [vmem:[#allocation2 + $0x150] sm:$0xff] 0.0
          %314 = vst [vmem:[#allocation2 + $0x158] sm:$0xff] 0.0
          %315 = vst [vmem:[#allocation2 + $0x160] sm:$0xff] 0.0
          %316 = vst [vmem:[#allocation2 + $0x168] sm:$0xff] 0.0
          %317 = vst [vmem:[#allocation2 + $0x170] sm:$0xff] 0.0
          %318 = vst [vmem:[#allocation2 + $0x178] sm:$0xff] 0.0
          %319 = vst [vmem:[#allocation2 + $0x180] sm:$0xff] 0.0
          %320 = vst [vmem:[#allocation2 + $0x188] sm:$0xff] 0.0
          %321 = vst [vmem:[#allocation2 + $0x190] sm:$0xff] 0.0
          %322 = vst [vmem:[#allocation2 + $0x198] sm:$0xff] 0.0
          %323 = vst [vmem:[#allocation2 + $0x1a0] sm:$0xff] 0.0
          %324 = vst [vmem:[#allocation2 + $0x1a8] sm:$0xff] 0.0
          %325 = vst [vmem:[#allocation2 + $0x1b0] sm:$0xff] 0.0
          %326 = vst [vmem:[#allocation2 + $0x1b8] sm:$0xff] 0.0
          %327 = vst [vmem:[#allocation2 + $0x1c0] sm:$0xff] 0.0
          %328 = vst [vmem:[#allocation2 + $0x1c8] sm:$0xff] 0.0
          %329 = vst [vmem:[#allocation2 + $0x1d0] sm:$0xff] 0.0
          %330 = vst [vmem:[#allocation2 + $0x1d8] sm:$0xff] 0.0
          %331 = vst [vmem:[#allocation2 + $0x1e0] sm:$0xff] 0.0
          %332 = vst [vmem:[#allocation2 + $0x1e8] sm:$0xff] 0.0
          %333 = vst [vmem:[#allocation2 + $0x1f0] sm:$0xff] 0.0
          %334 = vst [vmem:[#allocation2 + $0x1f8] sm:$0xff] 0.0
          %335 = vst [vmem:[#allocation2 + $0x200] sm:$0xff] 0.0
          %336 = vst [vmem:[#allocation2 + $0x208] sm:$0xff] 0.0
          %337 = vst [vmem:[#allocation2 + $0x210] sm:$0xff] 0.0
          %338 = vst [vmem:[#allocation2 + $0x218] sm:$0xff] 0.0
          %339 = vst [vmem:[#allocation2 + $0x220] sm:$0xff] 0.0
          %340 = vst [vmem:[#allocation2 + $0x228] sm:$0xff] 0.0
          %341 = vst [vmem:[#allocation2 + $0x230] sm:$0xff] 0.0
          %342 = vst [vmem:[#allocation2 + $0x238] sm:$0xff] 0.0
          %343 = vst [vmem:[#allocation2 + $0x240] sm:$0xff] 0.0
          %344 = vst [vmem:[#allocation2 + $0x248] sm:$0xff] 0.0
          %345 = vst [vmem:[#allocation2 + $0x250] sm:$0xff] 0.0
          %346 = vst [vmem:[#allocation2 + $0x258] sm:$0xff] 0.0
          %347 = vst [vmem:[#allocation2 + $0x260] sm:$0xff] 0.0
          %348 = vst [vmem:[#allocation2 + $0x268] sm:$0xff] 0.0
          %349 = vst [vmem:[#allocation2 + $0x270] sm:$0xff] 0.0
          %350 = vst [vmem:[#allocation2 + $0x278] sm:$0xff] 0.0
          %351 = vst [vmem:[#allocation2 + $0x280] sm:$0xff] 0.0
          %352 = vst [vmem:[#allocation2 + $0x288] sm:$0xff] 0.0
          %353 = vst [vmem:[#allocation2 + $0x290] sm:$0xff] 0.0
          %354 = vst [vmem:[#allocation2 + $0x298] sm:$0xff] 0.0
          %355 = vst [vmem:[#allocation2 + $0x2a0] sm:$0xff] 0.0
          %356 = vst [vmem:[#allocation2 + $0x2a8] sm:$0xff] 0.0
          %357 = vst [vmem:[#allocation2 + $0x2b0] sm:$0xff] 0.0
          %358 = vst [vmem:[#allocation2 + $0x2b8] sm:$0xff] 0.0
          %359 = vst [vmem:[#allocation2 + $0x2c0] sm:$0xff] 0.0
          %360 = vst [vmem:[#allocation2 + $0x2c8] sm:$0xff] 0.0
          %361 = vst [vmem:[#allocation2 + $0x2d0] sm:$0xff] 0.0
          %362 = vst [vmem:[#allocation2 + $0x2d8] sm:$0xff] 0.0
          %363 = vst [vmem:[#allocation2 + $0x2e0] sm:$0xff] 0.0
          %364 = vst [vmem:[#allocation2 + $0x2e8] sm:$0xff] 0.0
          %365 = vst [vmem:[#allocation2 + $0x2f0] sm:$0xff] 0.0
          %366 = vst [vmem:[#allocation2 + $0x2f8] sm:$0xff] 0.0
          %367 = vst [vmem:[#allocation2 + $0x300] sm:$0xff] 0.0
          %368 = vst [vmem:[#allocation2 + $0x308] sm:$0xff] 0.0
          %369 = vst [vmem:[#allocation2 + $0x310] sm:$0xff] 0.0
          %370 = vst [vmem:[#allocation2 + $0x318] sm:$0xff] 0.0
          %371 = vst [vmem:[#allocation2 + $0x320] sm:$0xff] 0.0
          %372 = vst [vmem:[#allocation2 + $0x328] sm:$0xff] 0.0
          %373 = vst [vmem:[#allocation2 + $0x330] sm:$0xff] 0.0
          %374 = vst [vmem:[#allocation2 + $0x338] sm:$0xff] 0.0
          %375 = vst [vmem:[#allocation2 + $0x340] sm:$0xff] 0.0
          %376 = vst [vmem:[#allocation2 + $0x348] sm:$0xff] 0.0
          %377 = vst [vmem:[#allocation2 + $0x350] sm:$0xff] 0.0
          %378 = vst [vmem:[#allocation2 + $0x358] sm:$0xff] 0.0
          %379 = vst [vmem:[#allocation2 + $0x360] sm:$0xff] 0.0
          %380 = vst [vmem:[#allocation2 + $0x368] sm:$0xff] 0.0
          %381 = vst [vmem:[#allocation2 + $0x370] sm:$0xff] 0.0
          %382 = vst [vmem:[#allocation2 + $0x378] sm:$0xff] 0.0
          %383 = vst [vmem:[#allocation2 + $0x380] sm:$0xff] 0.0
          %384 = vst [vmem:[#allocation2 + $0x388] sm:$0xff] 0.0
          %385 = vst [vmem:[#allocation2 + $0x390] sm:$0xff] 0.0
          %386 = vst [vmem:[#allocation2 + $0x398] sm:$0xff] 0.0
          %387 = vst [vmem:[#allocation2 + $0x3a0] sm:$0xff] 0.0
          %388 = vst [vmem:[#allocation2 + $0x3a8] sm:$0xff] 0.0
          %389 = vst [vmem:[#allocation2 + $0x3b0] sm:$0xff] 0.0
          %390 = vst [vmem:[#allocation2 + $0x3b8] sm:$0xff] 0.0
          %391 = vst [vmem:[#allocation2 + $0x3c0] sm:$0xff] 0.0
          %392 = vst [vmem:[#allocation2 + $0x3c8] sm:$0xff] 0.0
          %393 = vst [vmem:[#allocation2 + $0x3d0] sm:$0xff] 0.0
          %394 = vst [vmem:[#allocation2 + $0x3d8] sm:$0xff] 0.0
          %395 = vst [vmem:[#allocation2 + $0x3e0] sm:$0xff] 0.0
          %396 = vst [vmem:[#allocation2 + $0x3e8] sm:$0xff] 0.0
          %397 = vst [vmem:[#allocation2 + $0x3f0] sm:$0xff] 0.0
          %398 = vst [vmem:[#allocation2 + $0x3f8] sm:$0xff] 0.0
          %399 = vst [vmem:[#allocation2 + $0x400] sm:$0xff] 0.0
          %400 = vst [vmem:[#allocation2 + $0x408] sm:$0xff] 0.0
          %401 = vst [vmem:[#allocation2 + $0x410] sm:$0xff] 0.0
          %402 = vst [vmem:[#allocation2 + $0x418] sm:$0xff] 0.0
          %403 = vst [vmem:[#allocation2 + $0x420] sm:$0xff] 0.0
          %404 = vst [vmem:[#allocation2 + $0x428] sm:$0xff] 0.0
          %405 = vst [vmem:[#allocation2 + $0x430] sm:$0xff] 0.0
          %406 = vst [vmem:[#allocation2 + $0x438] sm:$0xff] 0.0
          %407 = vst [vmem:[#allocation2 + $0x440] sm:$0xff] 0.0
          %408 = vst [vmem:[#allocation2 + $0x448] sm:$0xff] 0.0
          %409 = vst [vmem:[#allocation2 + $0x450] sm:$0xff] 0.0
          %410 = vst [vmem:[#allocation2 + $0x458] sm:$0xff] 0.0
          %411 = vst [vmem:[#allocation2 + $0x460] sm:$0xff] 0.0
          %412 = vst [vmem:[#allocation2 + $0x468] sm:$0xff] 0.0
          %413 = vst [vmem:[#allocation2 + $0x470] sm:$0xff] 0.0
          %414 = vst [vmem:[#allocation2 + $0x478] sm:$0xff] 0.0
          %415 = vst [vmem:[#allocation2 + $0x480] sm:$0xff] 0.0
          %416 = vst [vmem:[#allocation2 + $0x488] sm:$0xff] 0.0
          %417 = vst [vmem:[#allocation2 + $0x490] sm:$0xff] 0.0
          %418 = vst [vmem:[#allocation2 + $0x498] sm:$0xff] 0.0
          %419 = vst [vmem:[#allocation2 + $0x4a0] sm:$0xff] 0.0
          %420 = vst [vmem:[#allocation2 + $0x4a8] sm:$0xff] 0.0
          %421 = vst [vmem:[#allocation2 + $0x4b0] sm:$0xff] 0.0
          %422 = vst [vmem:[#allocation2 + $0x4b8] sm:$0xff] 0.0
          %423 = vst [vmem:[#allocation2 + $0x4c0] sm:$0xff] 0.0
          %424 = vst [vmem:[#allocation2 + $0x4c8] sm:$0xff] 0.0
          %425 = vst [vmem:[#allocation2 + $0x4d0] sm:$0xff] 0.0
          %426 = vst [vmem:[#allocation2 + $0x4d8] sm:$0xff] 0.0
          %427 = vst [vmem:[#allocation2 + $0x4e0] sm:$0xff] 0.0
          %428 = vst [vmem:[#allocation2 + $0x4e8] sm:$0xff] 0.0
          %429 = vst [vmem:[#allocation2 + $0x4f0] sm:$0xff] 0.0
          %430 = vst [vmem:[#allocation2 + $0x4f8] sm:$0xff] 0.0
          %431 = vst [vmem:[#allocation2 + $0x500] sm:$0xff] 0.0
          %432 = vst [vmem:[#allocation2 + $0x508] sm:$0xff] 0.0
          %433 = vst [vmem:[#allocation2 + $0x510] sm:$0xff] 0.0
          %434 = vst [vmem:[#allocation2 + $0x518] sm:$0xff] 0.0
          %435 = vst [vmem:[#allocation2 + $0x520] sm:$0xff] 0.0
          %436 = vst [vmem:[#allocation2 + $0x528] sm:$0xff] 0.0
          %437 = vst [vmem:[#allocation2 + $0x530] sm:$0xff] 0.0
          %438 = vst [vmem:[#allocation2 + $0x538] sm:$0xff] 0.0
          %439 = vst [vmem:[#allocation2 + $0x540] sm:$0xff] 0.0
          %440 = vst [vmem:[#allocation2 + $0x548] sm:$0xff] 0.0
          %441 = vst [vmem:[#allocation2 + $0x550] sm:$0xff] 0.0
          %442 = vst [vmem:[#allocation2 + $0x558] sm:$0xff] 0.0
          %443 = vst [vmem:[#allocation2 + $0x560] sm:$0xff] 0.0
          %444 = vst [vmem:[#allocation2 + $0x568] sm:$0xff] 0.0
          %445 = vst [vmem:[#allocation2 + $0x570] sm:$0xff] 0.0
          %446 = vst [vmem:[#allocation2 + $0x578] sm:$0xff] 0.0
          %447 = vst [vmem:[#allocation2 + $0x580] sm:$0xff] 0.0
          %448 = vst [vmem:[#allocation2 + $0x588] sm:$0xff] 0.0
          %449 = vst [vmem:[#allocation2 + $0x590] sm:$0xff] 0.0
          %450 = vst [vmem:[#allocation2 + $0x598] sm:$0xff] 0.0
          %451 = vst [vmem:[#allocation2 + $0x5a0] sm:$0xff] 0.0
          %452 = vst [vmem:[#allocation2 + $0x5a8] sm:$0xff] 0.0
          %453 = vst [vmem:[#allocation2 + $0x5b0] sm:$0xff] 0.0
          %454 = vst [vmem:[#allocation2 + $0x5b8] sm:$0xff] 0.0
          %455 = vst [vmem:[#allocation2 + $0x5c0] sm:$0xff] 0.0
          %456 = vst [vmem:[#allocation2 + $0x5c8] sm:$0xff] 0.0
          %457 = vst [vmem:[#allocation2 + $0x5d0] sm:$0xff] 0.0
          %458 = vst [vmem:[#allocation2 + $0x5d8] sm:$0xff] 0.0
          %459 = vst [vmem:[#allocation2 + $0x5e0] sm:$0xff] 0.0
          %460 = vst [vmem:[#allocation2 + $0x5e8] sm:$0xff] 0.0
          %461 = vst [vmem:[#allocation2 + $0x5f0] sm:$0xff] 0.0
          %462 = vst [vmem:[#allocation2 + $0x5f8] sm:$0xff] 0.0
          %463 = vst [vmem:[#allocation2 + $0x600] sm:$0xff] 0.0
          %464 = vst [vmem:[#allocation2 + $0x608] sm:$0xff] 0.0
          %465 = vst [vmem:[#allocation2 + $0x610] sm:$0xff] 0.0
          %466 = vst [vmem:[#allocation2 + $0x618] sm:$0xff] 0.0
          %467 = vst [vmem:[#allocation2 + $0x620] sm:$0xff] 0.0
          %468 = vst [vmem:[#allocation2 + $0x628] sm:$0xff] 0.0
          %469 = vst [vmem:[#allocation2 + $0x630] sm:$0xff] 0.0
          %470 = vst [vmem:[#allocation2 + $0x638] sm:$0xff] 0.0
          %471 = vst [vmem:[#allocation2 + $0x640] sm:$0xff] 0.0
          %472 = vst [vmem:[#allocation2 + $0x648] sm:$0xff] 0.0
          %473 = vst [vmem:[#allocation2 + $0x650] sm:$0xff] 0.0
          %474 = vst [vmem:[#allocation2 + $0x658] sm:$0xff] 0.0
          %475 = vst [vmem:[#allocation2 + $0x660] sm:$0xff] 0.0
          %476 = vst [vmem:[#allocation2 + $0x668] sm:$0xff] 0.0
          %477 = vst [vmem:[#allocation2 + $0x670] sm:$0xff] 0.0
          %478 = vst [vmem:[#allocation2 + $0x678] sm:$0xff] 0.0
          %479 = vst [vmem:[#allocation2 + $0x680] sm:$0xff] 0.0
          %480 = vst [vmem:[#allocation2 + $0x688] sm:$0xff] 0.0
          %481 = vst [vmem:[#allocation2 + $0x690] sm:$0xff] 0.0
          %482 = vst [vmem:[#allocation2 + $0x698] sm:$0xff] 0.0
          %483 = vst [vmem:[#allocation2 + $0x6a0] sm:$0xff] 0.0
          %484 = vst [vmem:[#allocation2 + $0x6a8] sm:$0xff] 0.0
          %485 = vst [vmem:[#allocation2 + $0x6b0] sm:$0xff] 0.0
          %486 = vst [vmem:[#allocation2 + $0x6b8] sm:$0xff] 0.0
          %487 = vst [vmem:[#allocation2 + $0x6c0] sm:$0xff] 0.0
          %488 = vst [vmem:[#allocation2 + $0x6c8] sm:$0xff] 0.0
          %489 = vst [vmem:[#allocation2 + $0x6d0] sm:$0xff] 0.0
          %490 = vst [vmem:[#allocation2 + $0x6d8] sm:$0xff] 0.0
          %491 = vst [vmem:[#allocation2 + $0x6e0] sm:$0xff] 0.0
          %492 = vst [vmem:[#allocation2 + $0x6e8] sm:$0xff] 0.0
          %493 = vst [vmem:[#allocation2 + $0x6f0] sm:$0xff] 0.0
          %494 = vst [vmem:[#allocation2 + $0x6f8] sm:$0xff] 0.0
          %495 = vst [vmem:[#allocation2 + $0x700] sm:$0xff] 0.0
          %496 = vst [vmem:[#allocation2 + $0x708] sm:$0xff] 0.0
          %497 = vst [vmem:[#allocation2 + $0x710] sm:$0xff] 0.0
          %498 = vst [vmem:[#allocation2 + $0x718] sm:$0xff] 0.0
          %499 = vst [vmem:[#allocation2 + $0x720] sm:$0xff] 0.0
          %500 = vst [vmem:[#allocation2 + $0x728] sm:$0xff] 0.0
          %501 = vst [vmem:[#allocation2 + $0x730] sm:$0xff] 0.0
          %502 = vst [vmem:[#allocation2 + $0x738] sm:$0xff] 0.0
          %503 = vst [vmem:[#allocation2 + $0x740] sm:$0xff] 0.0
          %504 = vst [vmem:[#allocation2 + $0x748] sm:$0xff] 0.0
          %505 = vst [vmem:[#allocation2 + $0x750] sm:$0xff] 0.0
          %506 = vst [vmem:[#allocation2 + $0x758] sm:$0xff] 0.0
          %507 = vst [vmem:[#allocation2 + $0x760] sm:$0xff] 0.0
          %508 = vst [vmem:[#allocation2 + $0x768] sm:$0xff] 0.0
          %509 = vst [vmem:[#allocation2 + $0x770] sm:$0xff] 0.0
          %510 = vst [vmem:[#allocation2 + $0x778] sm:$0xff] 0.0
          %511 = vst [vmem:[#allocation2 + $0x780] sm:$0xff] 0.0
          %512 = vst [vmem:[#allocation2 + $0x788] sm:$0xff] 0.0
          %513 = vst [vmem:[#allocation2 + $0x790] sm:$0xff] 0.0
          %514 = vst [vmem:[#allocation2 + $0x798] sm:$0xff] 0.0
          %515 = vst [vmem:[#allocation2 + $0x7a0] sm:$0xff] 0.0
          %516 = vst [vmem:[#allocation2 + $0x7a8] sm:$0xff] 0.0
          %517 = vst [vmem:[#allocation2 + $0x7b0] sm:$0xff] 0.0
          %518 = vst [vmem:[#allocation2 + $0x7b8] sm:$0xff] 0.0
          %519 = vst [vmem:[#allocation2 + $0x7c0] sm:$0xff] 0.0
          %520 = vst [vmem:[#allocation2 + $0x7c8] sm:$0xff] 0.0
          %521 = vst [vmem:[#allocation2 + $0x7d0] sm:$0xff] 0.0
          %522 = vst [vmem:[#allocation2 + $0x7d8] sm:$0xff] 0.0
          %523 = vst [vmem:[#allocation2 + $0x7e0] sm:$0xff] 0.0
          %524 = vst [vmem:[#allocation2 + $0x7e8] sm:$0xff] 0.0
          %525 = vst [vmem:[#allocation2 + $0x7f0] sm:$0xff] 0.0
          %526 = vst [vmem:[#allocation2 + $0x7f8] sm:$0xff] 0.0
          %527 = vst [vmem:[#allocation2 + $0x800] sm:$0xff] 0.0
          %528 = vst [vmem:[#allocation2 + $0x808] sm:$0xff] 0.0
          %529 = vst [vmem:[#allocation2 + $0x810] sm:$0xff] 0.0
          %530 = vst [vmem:[#allocation2 + $0x818] sm:$0xff] 0.0
          %531 = vst [vmem:[#allocation2 + $0x820] sm:$0xff] 0.0
          %532 = vst [vmem:[#allocation2 + $0x828] sm:$0xff] 0.0
          %533 = vst [vmem:[#allocation2 + $0x830] sm:$0xff] 0.0
          %534 = vst [vmem:[#allocation2 + $0x838] sm:$0xff] 0.0
          %535 = vst [vmem:[#allocation2 + $0x840] sm:$0xff] 0.0
          %536 = vst [vmem:[#allocation2 + $0x848] sm:$0xff] 0.0
          %537 = vst [vmem:[#allocation2 + $0x850] sm:$0xff] 0.0
          %538 = vst [vmem:[#allocation2 + $0x858] sm:$0xff] 0.0
          %539 = vst [vmem:[#allocation2 + $0x860] sm:$0xff] 0.0
          %540 = vst [vmem:[#allocation2 + $0x868] sm:$0xff] 0.0
          %541 = vst [vmem:[#allocation2 + $0x870] sm:$0xff] 0.0
          %542 = vst [vmem:[#allocation2 + $0x878] sm:$0xff] 0.0
          %543 = vst [vmem:[#allocation2 + $0x880] sm:$0xff] 0.0
          %544 = vst [vmem:[#allocation2 + $0x888] sm:$0xff] 0.0
          %545 = vst [vmem:[#allocation2 + $0x890] sm:$0xff] 0.0
          %546 = vst [vmem:[#allocation2 + $0x898] sm:$0xff] 0.0
          %547 = vst [vmem:[#allocation2 + $0x8a0] sm:$0xff] 0.0
          %548 = vst [vmem:[#allocation2 + $0x8a8] sm:$0xff] 0.0
          %549 = vst [vmem:[#allocation2 + $0x8b0] sm:$0xff] 0.0
          %550 = vst [vmem:[#allocation2 + $0x8b8] sm:$0xff] 0.0
          %551 = vst [vmem:[#allocation2 + $0x8c0] sm:$0xff] 0.0
          %552 = vst [vmem:[#allocation2 + $0x8c8] sm:$0xff] 0.0
          %553 = vst [vmem:[#allocation2 + $0x8d0] sm:$0xff] 0.0
          %554 = vst [vmem:[#allocation2 + $0x8d8] sm:$0xff] 0.0
          %555 = vst [vmem:[#allocation2 + $0x8e0] sm:$0xff] 0.0
          %556 = vst [vmem:[#allocation2 + $0x8e8] sm:$0xff] 0.0
          %557 = vst [vmem:[#allocation2 + $0x8f0] sm:$0xff] 0.0
          %558 = vst [vmem:[#allocation2 + $0x8f8] sm:$0xff] 0.0
          %559 = vst [vmem:[#allocation2 + $0x900] sm:$0xff] 0.0
          %560 = vst [vmem:[#allocation2 + $0x908] sm:$0xff] 0.0
          %561 = vst [vmem:[#allocation2 + $0x910] sm:$0xff] 0.0
          %562 = vst [vmem:[#allocation2 + $0x918] sm:$0xff] 0.0
          %563 = vst [vmem:[#allocation2 + $0x920] sm:$0xff] 0.0
          %564 = vst [vmem:[#allocation2 + $0x928] sm:$0xff] 0.0
          %565 = vst [vmem:[#allocation2 + $0x930] sm:$0xff] 0.0
          %566 = vst [vmem:[#allocation2 + $0x938] sm:$0xff] 0.0
          %567 = vst [vmem:[#allocation2 + $0x940] sm:$0xff] 0.0
          %568 = vst [vmem:[#allocation2 + $0x948] sm:$0xff] 0.0
          %569 = vst [vmem:[#allocation2 + $0x950] sm:$0xff] 0.0
          %570 = vst [vmem:[#allocation2 + $0x958] sm:$0xff] 0.0
          %571 = vst [vmem:[#allocation2 + $0x960] sm:$0xff] 0.0
          %572 = vst [vmem:[#allocation2 + $0x968] sm:$0xff] 0.0
          %573 = vst [vmem:[#allocation2 + $0x970] sm:$0xff] 0.0
          %574 = vst [vmem:[#allocation2 + $0x978] sm:$0xff] 0.0
          %575 = vst [vmem:[#allocation2 + $0x980] sm:$0xff] 0.0
          %576 = vst [vmem:[#allocation2 + $0x988] sm:$0xff] 0.0
          %577 = vst [vmem:[#allocation2 + $0x990] sm:$0xff] 0.0
          %578 = vst [vmem:[#allocation2 + $0x998] sm:$0xff] 0.0
          %579 = vst [vmem:[#allocation2 + $0x9a0] sm:$0xff] 0.0
          %580 = vst [vmem:[#allocation2 + $0x9a8] sm:$0xff] 0.0
          %581 = vst [vmem:[#allocation2 + $0x9b0] sm:$0xff] 0.0
          %582 = vst [vmem:[#allocation2 + $0x9b8] sm:$0xff] 0.0
          %583 = vst [vmem:[#allocation2 + $0x9c0] sm:$0xff] 0.0
          %584 = vst [vmem:[#allocation2 + $0x9c8] sm:$0xff] 0.0
          %585 = vst [vmem:[#allocation2 + $0x9d0] sm:$0xff] 0.0
          %586 = vst [vmem:[#allocation2 + $0x9d8] sm:$0xff] 0.0
          %587 = vst [vmem:[#allocation2 + $0x9e0] sm:$0xff] 0.0
          %588 = vst [vmem:[#allocation2 + $0x9e8] sm:$0xff] 0.0
          %589 = vst [vmem:[#allocation2 + $0x9f0] sm:$0xff] 0.0
          %590 = vst [vmem:[#allocation2 + $0x9f8] sm:$0xff] 0.0
          %591 = vst [vmem:[#allocation2 + $0xa00] sm:$0xff] 0.0
          %592 = vst [vmem:[#allocation2 + $0xa08] sm:$0xff] 0.0
          %593 = vst [vmem:[#allocation2 + $0xa10] sm:$0xff] 0.0
          %594 = vst [vmem:[#allocation2 + $0xa18] sm:$0xff] 0.0
          %595 = vst [vmem:[#allocation2 + $0xa20] sm:$0xff] 0.0
          %596 = vst [vmem:[#allocation2 + $0xa28] sm:$0xff] 0.0
          %597 = vst [vmem:[#allocation2 + $0xa30] sm:$0xff] 0.0
          %598 = vst [vmem:[#allocation2 + $0xa38] sm:$0xff] 0.0
          %599 = vst [vmem:[#allocation2 + $0xa40] sm:$0xff] 0.0
          %600 = vst [vmem:[#allocation2 + $0xa48] sm:$0xff] 0.0
          %601 = vst [vmem:[#allocation2 + $0xa50] sm:$0xff] 0.0
          %602 = vst [vmem:[#allocation2 + $0xa58] sm:$0xff] 0.0
          %603 = vst [vmem:[#allocation2 + $0xa60] sm:$0xff] 0.0
          %604 = vst [vmem:[#allocation2 + $0xa68] sm:$0xff] 0.0
          %605 = vst [vmem:[#allocation2 + $0xa70] sm:$0xff] 0.0
          %606 = vst [vmem:[#allocation2 + $0xa78] sm:$0xff] 0.0
          %607 = vst [vmem:[#allocation2 + $0xa80] sm:$0xff] 0.0
          %608 = vst [vmem:[#allocation2 + $0xa88] sm:$0xff] 0.0
          %609 = vst [vmem:[#allocation2 + $0xa90] sm:$0xff] 0.0
          %610 = vst [vmem:[#allocation2 + $0xa98] sm:$0xff] 0.0
          %611 = vst [vmem:[#allocation2 + $0xaa0] sm:$0xff] 0.0
          %612 = vst [vmem:[#allocation2 + $0xaa8] sm:$0xff] 0.0
          %613 = vst [vmem:[#allocation2 + $0xab0] sm:$0xff] 0.0
          %614 = vst [vmem:[#allocation2 + $0xab8] sm:$0xff] 0.0
          %615 = vst [vmem:[#allocation2 + $0xac0] sm:$0xff] 0.0
          %616 = vst [vmem:[#allocation2 + $0xac8] sm:$0xff] 0.0
          %617 = vst [vmem:[#allocation2 + $0xad0] sm:$0xff] 0.0
          %618 = vst [vmem:[#allocation2 + $0xad8] sm:$0xff] 0.0
          %619 = vst [vmem:[#allocation2 + $0xae0] sm:$0xff] 0.0
          %620 = vst [vmem:[#allocation2 + $0xae8] sm:$0xff] 0.0
          %621 = vst [vmem:[#allocation2 + $0xaf0] sm:$0xff] 0.0
          %622 = vst [vmem:[#allocation2 + $0xaf8] sm:$0xff] 0.0
          %623 = vst [vmem:[#allocation2 + $0xb00] sm:$0xff] 0.0
          %624 = vst [vmem:[#allocation2 + $0xb08] sm:$0xff] 0.0
          %625 = vst [vmem:[#allocation2 + $0xb10] sm:$0xff] 0.0
          %626 = vst [vmem:[#allocation2 + $0xb18] sm:$0xff] 0.0
          %627 = vst [vmem:[#allocation2 + $0xb20] sm:$0xff] 0.0
          %628 = vst [vmem:[#allocation2 + $0xb28] sm:$0xff] 0.0
          %629 = vst [vmem:[#allocation2 + $0xb30] sm:$0xff] 0.0
          %630 = vst [vmem:[#allocation2 + $0xb38] sm:$0xff] 0.0
          %631 = vst [vmem:[#allocation2 + $0xb40] sm:$0xff] 0.0
          %632 = vst [vmem:[#allocation2 + $0xb48] sm:$0xff] 0.0
          %633 = vst [vmem:[#allocation2 + $0xb50] sm:$0xff] 0.0
          %634 = vst [vmem:[#allocation2 + $0xb58] sm:$0xff] 0.0
          %635 = vst [vmem:[#allocation2 + $0xb60] sm:$0xff] 0.0
          %636 = vst [vmem:[#allocation2 + $0xb68] sm:$0xff] 0.0
          %637 = vst [vmem:[#allocation2 + $0xb70] sm:$0xff] 0.0
          %638 = vst [vmem:[#allocation2 + $0xb78] sm:$0xff] 0.0
          %639 = vst [vmem:[#allocation2 + $0xb80] sm:$0xff] 0.0
          %640 = vst [vmem:[#allocation2 + $0xb88] sm:$0xff] 0.0
          %641 = vst [vmem:[#allocation2 + $0xb90] sm:$0xff] 0.0
          %642 = vst [vmem:[#allocation2 + $0xb98] sm:$0xff] 0.0
          %643 = vst [vmem:[#allocation2 + $0xba0] sm:$0xff] 0.0
          %644 = vst [vmem:[#allocation2 + $0xba8] sm:$0xff] 0.0
          %645 = vst [vmem:[#allocation2 + $0xbb0] sm:$0xff] 0.0
          %646 = vst [vmem:[#allocation2 + $0xbb8] sm:$0xff] 0.0
          %647 = vst [vmem:[#allocation2 + $0xbc0] sm:$0xff] 0.0
          %648 = vst [vmem:[#allocation2 + $0xbc8] sm:$0xff] 0.0
          %649 = vst [vmem:[#allocation2 + $0xbd0] sm:$0xff] 0.0
          %650 = vst [vmem:[#allocation2 + $0xbd8] sm:$0xff] 0.0
          %651 = vst [vmem:[#allocation2 + $0xbe0] sm:$0xff] 0.0
          %652 = vst [vmem:[#allocation2 + $0xbe8] sm:$0xff] 0.0
          %653 = vst [vmem:[#allocation2 + $0xbf0] sm:$0xff] 0.0
          %654 = vst [vmem:[#allocation2 + $0xbf8] sm:$0xff] 0.0
          %655 = vst [vmem:[#allocation2 + $0xc00] sm:$0xff] 0.0
          %656 = vst [vmem:[#allocation2 + $0xc08] sm:$0xff] 0.0
          %657 = vst [vmem:[#allocation2 + $0xc10] sm:$0xff] 0.0
          %658 = vst [vmem:[#allocation2 + $0xc18] sm:$0xff] 0.0
          %659 = vst [vmem:[#allocation2 + $0xc20] sm:$0xff] 0.0
          %660 = vst [vmem:[#allocation2 + $0xc28] sm:$0xff] 0.0
          %661 = vst [vmem:[#allocation2 + $0xc30] sm:$0xff] 0.0
          %662 = vst [vmem:[#allocation2 + $0xc38] sm:$0xff] 0.0
          %663 = vst [vmem:[#allocation2 + $0xc40] sm:$0xff] 0.0
          %664 = vst [vmem:[#allocation2 + $0xc48] sm:$0xff] 0.0
          %665 = vst [vmem:[#allocation2 + $0xc50] sm:$0xff] 0.0
          %666 = vst [vmem:[#allocation2 + $0xc58] sm:$0xff] 0.0
          %667 = vst [vmem:[#allocation2 + $0xc60] sm:$0xff] 0.0
          %668 = vst [vmem:[#allocation2 + $0xc68] sm:$0xff] 0.0
          %669 = vst [vmem:[#allocation2 + $0xc70] sm:$0xff] 0.0
          %670 = vst [vmem:[#allocation2 + $0xc78] sm:$0xff] 0.0
          %671 = vst [vmem:[#allocation2 + $0xc80] sm:$0xff] 0.0
          %672 = vst [vmem:[#allocation2 + $0xc88] sm:$0xff] 0.0
          %673 = vst [vmem:[#allocation2 + $0xc90] sm:$0xff] 0.0
          %674 = vst [vmem:[#allocation2 + $0xc98] sm:$0xff] 0.0
          %675 = vst [vmem:[#allocation2 + $0xca0] sm:$0xff] 0.0
          %676 = vst [vmem:[#allocation2 + $0xca8] sm:$0xff] 0.0
          %677 = vst [vmem:[#allocation2 + $0xcb0] sm:$0xff] 0.0
          %678 = vst [vmem:[#allocation2 + $0xcb8] sm:$0xff] 0.0
          %679 = vst [vmem:[#allocation2 + $0xcc0] sm:$0xff] 0.0
          %680 = vst [vmem:[#allocation2 + $0xcc8] sm:$0xff] 0.0
          %681 = vst [vmem:[#allocation2 + $0xcd0] sm:$0xff] 0.0
          %682 = vst [vmem:[#allocation2 + $0xcd8] sm:$0xff] 0.0
          %683 = vst [vmem:[#allocation2 + $0xce0] sm:$0xff] 0.0
          %684 = vst [vmem:[#allocation2 + $0xce8] sm:$0xff] 0.0
          %685 = vst [vmem:[#allocation2 + $0xcf0] sm:$0xff] 0.0
          %686 = vst [vmem:[#allocation2 + $0xcf8] sm:$0xff] 0.0
          %687 = vst [vmem:[#allocation2 + $0xd00] sm:$0xff] 0.0
          %688 = vst [vmem:[#allocation2 + $0xd08] sm:$0xff] 0.0
          %689 = vst [vmem:[#allocation2 + $0xd10] sm:$0xff] 0.0
          %690 = vst [vmem:[#allocation2 + $0xd18] sm:$0xff] 0.0
          %691 = vst [vmem:[#allocation2 + $0xd20] sm:$0xff] 0.0
          %692 = vst [vmem:[#allocation2 + $0xd28] sm:$0xff] 0.0
          %693 = vst [vmem:[#allocation2 + $0xd30] sm:$0xff] 0.0
          %694 = vst [vmem:[#allocation2 + $0xd38] sm:$0xff] 0.0
          %695 = vst [vmem:[#allocation2 + $0xd40] sm:$0xff] 0.0
          %696 = vst [vmem:[#allocation2 + $0xd48] sm:$0xff] 0.0
          %697 = vst [vmem:[#allocation2 + $0xd50] sm:$0xff] 0.0
          %698 = vst [vmem:[#allocation2 + $0xd58] sm:$0xff] 0.0
          %699 = vst [vmem:[#allocation2 + $0xd60] sm:$0xff] 0.0
          %700 = vst [vmem:[#allocation2 + $0xd68] sm:$0xff] 0.0
          %701 = vst [vmem:[#allocation2 + $0xd70] sm:$0xff] 0.0
          %702 = vst [vmem:[#allocation2 + $0xd78] sm:$0xff] 0.0
          %703 = vst [vmem:[#allocation2 + $0xd80] sm:$0xff] 0.0
          %704 = vst [vmem:[#allocation2 + $0xd88] sm:$0xff] 0.0
          %705 = vst [vmem:[#allocation2 + $0xd90] sm:$0xff] 0.0
          %706 = vst [vmem:[#allocation2 + $0xd98] sm:$0xff] 0.0
          %707 = vst [vmem:[#allocation2 + $0xda0] sm:$0xff] 0.0
          %708 = vst [vmem:[#allocation2 + $0xda8] sm:$0xff] 0.0
          %709 = vst [vmem:[#allocation2 + $0xdb0] sm:$0xff] 0.0
          %710 = vst [vmem:[#allocation2 + $0xdb8] sm:$0xff] 0.0
          %711 = vst [vmem:[#allocation2 + $0xdc0] sm:$0xff] 0.0
          %712 = vst [vmem:[#allocation2 + $0xdc8] sm:$0xff] 0.0
          %713 = vst [vmem:[#allocation2 + $0xdd0] sm:$0xff] 0.0
          %714 = vst [vmem:[#allocation2 + $0xdd8] sm:$0xff] 0.0
          %715 = vst [vmem:[#allocation2 + $0xde0] sm:$0xff] 0.0
          %716 = vst [vmem:[#allocation2 + $0xde8] sm:$0xff] 0.0
          %717 = vst [vmem:[#allocation2 + $0xdf0] sm:$0xff] 0.0
          %718 = vst [vmem:[#allocation2 + $0xdf8] sm:$0xff] 0.0
          %719 = vst [vmem:[#allocation2 + $0xe00] sm:$0xff] 0.0
          %720 = vst [vmem:[#allocation2 + $0xe08] sm:$0xff] 0.0
          %721 = vst [vmem:[#allocation2 + $0xe10] sm:$0xff] 0.0
          %722 = vst [vmem:[#allocation2 + $0xe18] sm:$0xff] 0.0
          %723 = vst [vmem:[#allocation2 + $0xe20] sm:$0xff] 0.0
          %724 = vst [vmem:[#allocation2 + $0xe28] sm:$0xff] 0.0
          %725 = vst [vmem:[#allocation2 + $0xe30] sm:$0xff] 0.0
          %726 = vst [vmem:[#allocation2 + $0xe38] sm:$0xff] 0.0
          %727 = vst [vmem:[#allocation2 + $0xe40] sm:$0xff] 0.0
          %728 = vst [vmem:[#allocation2 + $0xe48] sm:$0xff] 0.0
          %729 = vst [vmem:[#allocation2 + $0xe50] sm:$0xff] 0.0
          %730 = vst [vmem:[#allocation2 + $0xe58] sm:$0xff] 0.0
          %731 = vst [vmem:[#allocation2 + $0xe60] sm:$0xff] 0.0
          %732 = vst [vmem:[#allocation2 + $0xe68] sm:$0xff] 0.0
          %733 = vst [vmem:[#allocation2 + $0xe70] sm:$0xff] 0.0
          %734 = vst [vmem:[#allocation2 + $0xe78] sm:$0xff] 0.0
          %735 = vst [vmem:[#allocation2 + $0xe80] sm:$0xff] 0.0
          %736 = vst [vmem:[#allocation2 + $0xe88] sm:$0xff] 0.0
          %737 = vst [vmem:[#allocation2 + $0xe90] sm:$0xff] 0.0
          %738 = vst [vmem:[#allocation2 + $0xe98] sm:$0xff] 0.0
          %739 = vst [vmem:[#allocation2 + $0xea0] sm:$0xff] 0.0
          %740 = vst [vmem:[#allocation2 + $0xea8] sm:$0xff] 0.0
          %741 = vst [vmem:[#allocation2 + $0xeb0] sm:$0xff] 0.0
          %742 = vst [vmem:[#allocation2 + $0xeb8] sm:$0xff] 0.0
          %743 = vst [vmem:[#allocation2 + $0xec0] sm:$0xff] 0.0
          %744 = vst [vmem:[#allocation2 + $0xec8] sm:$0xff] 0.0
          %745 = vst [vmem:[#allocation2 + $0xed0] sm:$0xff] 0.0
          %746 = vst [vmem:[#allocation2 + $0xed8] sm:$0xff] 0.0
          %747 = vst [vmem:[#allocation2 + $0xee0] sm:$0xff] 0.0
          %748 = vst [vmem:[#allocation2 + $0xee8] sm:$0xff] 0.0
          %749 = vst [vmem:[#allocation2 + $0xef0] sm:$0xff] 0.0
          %750 = vst [vmem:[#allocation2 + $0xef8] sm:$0xff] 0.0
          %751 = vst [vmem:[#allocation2 + $0xf00] sm:$0xff] 0.0
          %752 = vst [vmem:[#allocation2 + $0xf08] sm:$0xff] 0.0
          %753 = vst [vmem:[#allocation2 + $0xf10] sm:$0xff] 0.0
          %754 = vst [vmem:[#allocation2 + $0xf18] sm:$0xff] 0.0
          %755 = vst [vmem:[#allocation2 + $0xf20] sm:$0xff] 0.0
          %756 = vst [vmem:[#allocation2 + $0xf28] sm:$0xff] 0.0
          %757 = vst [vmem:[#allocation2 + $0xf30] sm:$0xff] 0.0
          %758 = vst [vmem:[#allocation2 + $0xf38] sm:$0xff] 0.0
          %759 = vst [vmem:[#allocation2 + $0xf40] sm:$0xff] 0.0
          %760 = vst [vmem:[#allocation2 + $0xf48] sm:$0xff] 0.0
          %761 = vst [vmem:[#allocation2 + $0xf50] sm:$0xff] 0.0
          %762 = vst [vmem:[#allocation2 + $0xf58] sm:$0xff] 0.0
          %763 = vst [vmem:[#allocation2 + $0xf60] sm:$0xff] 0.0
          %764 = vst [vmem:[#allocation2 + $0xf68] sm:$0xff] 0.0
          %765 = vst [vmem:[#allocation2 + $0xf70] sm:$0xff] 0.0
          %766 = vst [vmem:[#allocation2 + $0xf78] sm:$0xff] 0.0
          %767 = vst [vmem:[#allocation2 + $0xf80] sm:$0xff] 0.0
          %768 = vst [vmem:[#allocation2 + $0xf88] sm:$0xff] 0.0
          %769 = vst [vmem:[#allocation2 + $0xf90] sm:$0xff] 0.0
          %770 = vst [vmem:[#allocation2 + $0xf98] sm:$0xff] 0.0
          %771 = vst [vmem:[#allocation2 + $0xfa0] sm:$0xff] 0.0
          %772 = vst [vmem:[#allocation2 + $0xfa8] sm:$0xff] 0.0
          %773 = vst [vmem:[#allocation2 + $0xfb0] sm:$0xff] 0.0
          %774 = vst [vmem:[#allocation2 + $0xfb8] sm:$0xff] 0.0
          %775 = vst [vmem:[#allocation2 + $0xfc0] sm:$0xff] 0.0
          %776 = vst [vmem:[#allocation2 + $0xfc8] sm:$0xff] 0.0
          %777 = vst [vmem:[#allocation2 + $0xfd0] sm:$0xff] 0.0
          %778 = vst [vmem:[#allocation2 + $0xfd8] sm:$0xff] 0.0
          %779 = vst [vmem:[#allocation2 + $0xfe0] sm:$0xff] 0.0
          %780 = vst [vmem:[#allocation2 + $0xfe8] sm:$0xff] 0.0
          %781 = vst [vmem:[#allocation2 + $0xff0] sm:$0xff] 0.0
          %782 = vst [vmem:[#allocation2 + $0xff8] sm:$0xff] 0.0
        $region40: #{tpu_custom_call.1} parent=27 // pred_fallthru
          _
        %v783 = vld [vmem:[%s215] sm:$0xff]
        %v784 = vld [vmem:[%s215 + $0x8] sm:$0xff]
        %v785 = vld [vmem:[%s215 + $0x10] sm:$0xff]
        %v786 = vld [vmem:[%s215 + $0x18] sm:$0xff]
        %v787 = vld [vmem:[%s215 + $0x20] sm:$0xff]
        %v788 = vld [vmem:[%s215 + $0x28] sm:$0xff]
        %v789 = vld [vmem:[%s215 + $0x30] sm:$0xff]
        %v790 = vld [vmem:[%s215 + $0x38] sm:$0xff]
        %v791 = vld [vmem:[%s215 + $0x40] sm:$0xff]
        %v792 = vld [vmem:[%s215 + $0x48] sm:$0xff]
        %v793 = vld [vmem:[%s215 + $0x50] sm:$0xff]
        %v794 = vld [vmem:[%s215 + $0x58] sm:$0xff]
        %v795 = vld [vmem:[%s215 + $0x60] sm:$0xff]
        %v796 = vld [vmem:[%s215 + $0x68] sm:$0xff]
        %v797 = vld [vmem:[%s215 + $0x70] sm:$0xff]
        %v798 = vld [vmem:[%s215 + $0x78] sm:$0xff]
        %v799 = vld [vmem:[%s215 + $0x80] sm:$0xff]
        %v800 = vld [vmem:[%s215 + $0x88] sm:$0xff]
        %v801 = vld [vmem:[%s215 + $0x90] sm:$0xff]
        %v802 = vld [vmem:[%s215 + $0x98] sm:$0xff]
        %v803 = vld [vmem:[%s215 + $0xa0] sm:$0xff]
        %v804 = vld [vmem:[%s215 + $0xa8] sm:$0xff]
        %v805 = vld [vmem:[%s215 + $0xb0] sm:$0xff]
        %v806 = vld [vmem:[%s215 + $0xb8] sm:$0xff]
        %v807 = vld [vmem:[%s215 + $0xc0] sm:$0xff]
        %v808 = vld [vmem:[%s215 + $0xc8] sm:$0xff]
        %v809 = vld [vmem:[%s215 + $0xd0] sm:$0xff]
        %v810 = vld [vmem:[%s215 + $0xd8] sm:$0xff]
        %v811 = vld [vmem:[%s215 + $0xe0] sm:$0xff]
        %v812 = vld [vmem:[%s215 + $0xe8] sm:$0xff]
        %v813 = vld [vmem:[%s215 + $0xf0] sm:$0xff]
        %v814 = vld [vmem:[%s215 + $0xf8] sm:$0xff]
        %v815 = vld [vmem:[%s215 + $0x100] sm:$0xff]
        %v816 = vld [vmem:[%s215 + $0x108] sm:$0xff]
        %v817 = vld [vmem:[%s215 + $0x110] sm:$0xff]
        %v818 = vld [vmem:[%s215 + $0x118] sm:$0xff]
        %v819 = vld [vmem:[%s215 + $0x120] sm:$0xff]
        %v820 = vld [vmem:[%s215 + $0x128] sm:$0xff]
        %v821 = vld [vmem:[%s215 + $0x130] sm:$0xff]
        %v822 = vld [vmem:[%s215 + $0x138] sm:$0xff]
        %v823 = vld [vmem:[%s215 + $0x140] sm:$0xff]
        %v824 = vld [vmem:[%s215 + $0x148] sm:$0xff]
        %v825 = vld [vmem:[%s215 + $0x150] sm:$0xff]
        %v826 = vld [vmem:[%s215 + $0x158] sm:$0xff]
        %v827 = vld [vmem:[%s215 + $0x160] sm:$0xff]
        %v828 = vld [vmem:[%s215 + $0x168] sm:$0xff]
        %v829 = vld [vmem:[%s215 + $0x170] sm:$0xff]
        %v830 = vld [vmem:[%s215 + $0x178] sm:$0xff]
        %v831 = vld [vmem:[%s215 + $0x180] sm:$0xff]
        %v832 = vld [vmem:[%s215 + $0x188] sm:$0xff]
        %v833 = vld [vmem:[%s215 + $0x190] sm:$0xff]
        %v834 = vld [vmem:[%s215 + $0x198] sm:$0xff]
        %v835 = vld [vmem:[%s215 + $0x1a0] sm:$0xff]
        %v836 = vld [vmem:[%s215 + $0x1a8] sm:$0xff]
        %v837 = vld [vmem:[%s215 + $0x1b0] sm:$0xff]
        %v838 = vld [vmem:[%s215 + $0x1b8] sm:$0xff]
        %v839 = vld [vmem:[%s215 + $0x1c0] sm:$0xff]
        %v840 = vld [vmem:[%s215 + $0x1c8] sm:$0xff]
        %v841 = vld [vmem:[%s215 + $0x1d0] sm:$0xff]
        %v842 = vld [vmem:[%s215 + $0x1d8] sm:$0xff]
        %v843 = vld [vmem:[%s215 + $0x1e0] sm:$0xff]
        %v844 = vld [vmem:[%s215 + $0x1e8] sm:$0xff]
        %v845 = vld [vmem:[%s215 + $0x1f0] sm:$0xff]
        %v846 = vld [vmem:[%s215 + $0x1f8] sm:$0xff]
        %v847 = vld [vmem:[%s215 + $0x200] sm:$0xff]
        %v848 = vld [vmem:[%s215 + $0x208] sm:$0xff]
        %v849 = vld [vmem:[%s215 + $0x210] sm:$0xff]
        %v850 = vld [vmem:[%s215 + $0x218] sm:$0xff]
        %v851 = vld [vmem:[%s215 + $0x220] sm:$0xff]
        %v852 = vld [vmem:[%s215 + $0x228] sm:$0xff]
        %v853 = vld [vmem:[%s215 + $0x230] sm:$0xff]
        %v854 = vld [vmem:[%s215 + $0x238] sm:$0xff]
        %v855 = vld [vmem:[%s215 + $0x240] sm:$0xff]
        %v856 = vld [vmem:[%s215 + $0x248] sm:$0xff]
        %v857 = vld [vmem:[%s215 + $0x250] sm:$0xff]
        %v858 = vld [vmem:[%s215 + $0x258] sm:$0xff]
        %v859 = vld [vmem:[%s215 + $0x260] sm:$0xff]
        %v860 = vld [vmem:[%s215 + $0x268] sm:$0xff]
        %v861 = vld [vmem:[%s215 + $0x270] sm:$0xff]
        %v862 = vld [vmem:[%s215 + $0x278] sm:$0xff]
        %v863 = vld [vmem:[%s215 + $0x280] sm:$0xff]
        %v864 = vld [vmem:[%s215 + $0x288] sm:$0xff]
        %v865 = vld [vmem:[%s215 + $0x290] sm:$0xff]
        %v866 = vld [vmem:[%s215 + $0x298] sm:$0xff]
        %v867 = vld [vmem:[%s215 + $0x2a0] sm:$0xff]
        %v868 = vld [vmem:[%s215 + $0x2a8] sm:$0xff]
        %v869 = vld [vmem:[%s215 + $0x2b0] sm:$0xff]
        %v870 = vld [vmem:[%s215 + $0x2b8] sm:$0xff]
        %v871 = vld [vmem:[%s215 + $0x2c0] sm:$0xff]
        %v872 = vld [vmem:[%s215 + $0x2c8] sm:$0xff]
        %v873 = vld [vmem:[%s215 + $0x2d0] sm:$0xff]
        %v874 = vld [vmem:[%s215 + $0x2d8] sm:$0xff]
        %v875 = vld [vmem:[%s215 + $0x2e0] sm:$0xff]
        %v876 = vld [vmem:[%s215 + $0x2e8] sm:$0xff]
        %v877 = vld [vmem:[%s215 + $0x2f0] sm:$0xff]
        %v878 = vld [vmem:[%s215 + $0x2f8] sm:$0xff]
        %v879 = vld [vmem:[%s215 + $0x300] sm:$0xff]
        %v880 = vld [vmem:[%s215 + $0x308] sm:$0xff]
        %v881 = vld [vmem:[%s215 + $0x310] sm:$0xff]
        %v882 = vld [vmem:[%s215 + $0x318] sm:$0xff]
        %v883 = vld [vmem:[%s215 + $0x320] sm:$0xff]
        %v884 = vld [vmem:[%s215 + $0x328] sm:$0xff]
        %v885 = vld [vmem:[%s215 + $0x330] sm:$0xff]
        %v886 = vld [vmem:[%s215 + $0x338] sm:$0xff]
        %v887 = vld [vmem:[%s215 + $0x340] sm:$0xff]
        %v888 = vld [vmem:[%s215 + $0x348] sm:$0xff]
        %v889 = vld [vmem:[%s215 + $0x350] sm:$0xff]
        %v890 = vld [vmem:[%s215 + $0x358] sm:$0xff]
        %v891 = vld [vmem:[%s215 + $0x360] sm:$0xff]
        %v892 = vld [vmem:[%s215 + $0x368] sm:$0xff]
        %v893 = vld [vmem:[%s215 + $0x370] sm:$0xff]
        %v894 = vld [vmem:[%s215 + $0x378] sm:$0xff]
        %v895 = vld [vmem:[%s215 + $0x380] sm:$0xff]
        %v896 = vld [vmem:[%s215 + $0x388] sm:$0xff]
        %v897 = vld [vmem:[%s215 + $0x390] sm:$0xff]
        %v898 = vld [vmem:[%s215 + $0x398] sm:$0xff]
        %v899 = vld [vmem:[%s215 + $0x3a0] sm:$0xff]
        %v900 = vld [vmem:[%s215 + $0x3a8] sm:$0xff]
        %v901 = vld [vmem:[%s215 + $0x3b0] sm:$0xff]
        %v902 = vld [vmem:[%s215 + $0x3b8] sm:$0xff]
        %v903 = vld [vmem:[%s215 + $0x3c0] sm:$0xff]
        %v904 = vld [vmem:[%s215 + $0x3c8] sm:$0xff]
        %v905 = vld [vmem:[%s215 + $0x3d0] sm:$0xff]
        %v906 = vld [vmem:[%s215 + $0x3d8] sm:$0xff]
        %v907 = vld [vmem:[%s215 + $0x3e0] sm:$0xff]
        %v908 = vld [vmem:[%s215 + $0x3e8] sm:$0xff]
        %v909 = vld [vmem:[%s215 + $0x3f0] sm:$0xff]
        %v910 = vld [vmem:[%s215 + $0x3f8] sm:$0xff]
        %v911 = vld [vmem:[%s215 + $0x400] sm:$0xff]
        %v912 = vld [vmem:[%s215 + $0x408] sm:$0xff]
        %v913 = vld [vmem:[%s215 + $0x410] sm:$0xff]
        %v914 = vld [vmem:[%s215 + $0x418] sm:$0xff]
        %v915 = vld [vmem:[%s215 + $0x420] sm:$0xff]
        %v916 = vld [vmem:[%s215 + $0x428] sm:$0xff]
        %v917 = vld [vmem:[%s215 + $0x430] sm:$0xff]
        %v918 = vld [vmem:[%s215 + $0x438] sm:$0xff]
        %v919 = vld [vmem:[%s215 + $0x440] sm:$0xff]
        %v920 = vld [vmem:[%s215 + $0x448] sm:$0xff]
        %v921 = vld [vmem:[%s215 + $0x450] sm:$0xff]
        %v922 = vld [vmem:[%s215 + $0x458] sm:$0xff]
        %v923 = vld [vmem:[%s215 + $0x460] sm:$0xff]
        %v924 = vld [vmem:[%s215 + $0x468] sm:$0xff]
        %v925 = vld [vmem:[%s215 + $0x470] sm:$0xff]
        %v926 = vld [vmem:[%s215 + $0x478] sm:$0xff]
        %v927 = vld [vmem:[%s215 + $0x480] sm:$0xff]
        %v928 = vld [vmem:[%s215 + $0x488] sm:$0xff]
        %v929 = vld [vmem:[%s215 + $0x490] sm:$0xff]
        %v930 = vld [vmem:[%s215 + $0x498] sm:$0xff]
        %v931 = vld [vmem:[%s215 + $0x4a0] sm:$0xff]
        %v932 = vld [vmem:[%s215 + $0x4a8] sm:$0xff]
        %v933 = vld [vmem:[%s215 + $0x4b0] sm:$0xff]
        %v934 = vld [vmem:[%s215 + $0x4b8] sm:$0xff]
        %v935 = vld [vmem:[%s215 + $0x4c0] sm:$0xff]
        %v936 = vld [vmem:[%s215 + $0x4c8] sm:$0xff]
        %v937 = vld [vmem:[%s215 + $0x4d0] sm:$0xff]
        %v938 = vld [vmem:[%s215 + $0x4d8] sm:$0xff]
        %v939 = vld [vmem:[%s215 + $0x4e0] sm:$0xff]
        %v940 = vld [vmem:[%s215 + $0x4e8] sm:$0xff]
        %v941 = vld [vmem:[%s215 + $0x4f0] sm:$0xff]
        %v942 = vld [vmem:[%s215 + $0x4f8] sm:$0xff]
        %v943 = vld [vmem:[%s215 + $0x500] sm:$0xff]
        %v944 = vld [vmem:[%s215 + $0x508] sm:$0xff]
        %v945 = vld [vmem:[%s215 + $0x510] sm:$0xff]
        %v946 = vld [vmem:[%s215 + $0x518] sm:$0xff]
        %v947 = vld [vmem:[%s215 + $0x520] sm:$0xff]
        %v948 = vld [vmem:[%s215 + $0x528] sm:$0xff]
        %v949 = vld [vmem:[%s215 + $0x530] sm:$0xff]
        %v950 = vld [vmem:[%s215 + $0x538] sm:$0xff]
        %v951 = vld [vmem:[%s215 + $0x540] sm:$0xff]
        %v952 = vld [vmem:[%s215 + $0x548] sm:$0xff]
        %v953 = vld [vmem:[%s215 + $0x550] sm:$0xff]
        %v954 = vld [vmem:[%s215 + $0x558] sm:$0xff]
        %v955 = vld [vmem:[%s215 + $0x560] sm:$0xff]
        %v956 = vld [vmem:[%s215 + $0x568] sm:$0xff]
        %v957 = vld [vmem:[%s215 + $0x570] sm:$0xff]
        %v958 = vld [vmem:[%s215 + $0x578] sm:$0xff]
        %v959 = vld [vmem:[%s215 + $0x580] sm:$0xff]
        %v960 = vld [vmem:[%s215 + $0x588] sm:$0xff]
        %v961 = vld [vmem:[%s215 + $0x590] sm:$0xff]
        %v962 = vld [vmem:[%s215 + $0x598] sm:$0xff]
        %v963 = vld [vmem:[%s215 + $0x5a0] sm:$0xff]
        %v964 = vld [vmem:[%s215 + $0x5a8] sm:$0xff]
        %v965 = vld [vmem:[%s215 + $0x5b0] sm:$0xff]
        %v966 = vld [vmem:[%s215 + $0x5b8] sm:$0xff]
        %v967 = vld [vmem:[%s215 + $0x5c0] sm:$0xff]
        %v968 = vld [vmem:[%s215 + $0x5c8] sm:$0xff]
        %v969 = vld [vmem:[%s215 + $0x5d0] sm:$0xff]
        %v970 = vld [vmem:[%s215 + $0x5d8] sm:$0xff]
        %v971 = vld [vmem:[%s215 + $0x5e0] sm:$0xff]
        %v972 = vld [vmem:[%s215 + $0x5e8] sm:$0xff]
        %v973 = vld [vmem:[%s215 + $0x5f0] sm:$0xff]
        %v974 = vld [vmem:[%s215 + $0x5f8] sm:$0xff]
        %v975 = vld [vmem:[%s215 + $0x600] sm:$0xff]
        %v976 = vld [vmem:[%s215 + $0x608] sm:$0xff]
        %v977 = vld [vmem:[%s215 + $0x610] sm:$0xff]
        %v978 = vld [vmem:[%s215 + $0x618] sm:$0xff]
        %v979 = vld [vmem:[%s215 + $0x620] sm:$0xff]
        %v980 = vld [vmem:[%s215 + $0x628] sm:$0xff]
        %v981 = vld [vmem:[%s215 + $0x630] sm:$0xff]
        %v982 = vld [vmem:[%s215 + $0x638] sm:$0xff]
        %v983 = vld [vmem:[%s215 + $0x640] sm:$0xff]
        %v984 = vld [vmem:[%s215 + $0x648] sm:$0xff]
        %v985 = vld [vmem:[%s215 + $0x650] sm:$0xff]
        %v986 = vld [vmem:[%s215 + $0x658] sm:$0xff]
        %v987 = vld [vmem:[%s215 + $0x660] sm:$0xff]
        %v988 = vld [vmem:[%s215 + $0x668] sm:$0xff]
        %v989 = vld [vmem:[%s215 + $0x670] sm:$0xff]
        %v990 = vld [vmem:[%s215 + $0x678] sm:$0xff]
        %v991 = vld [vmem:[%s215 + $0x680] sm:$0xff]
        %v992 = vld [vmem:[%s215 + $0x688] sm:$0xff]
        %v993 = vld [vmem:[%s215 + $0x690] sm:$0xff]
        %v994 = vld [vmem:[%s215 + $0x698] sm:$0xff]
        %v995 = vld [vmem:[%s215 + $0x6a0] sm:$0xff]
        %v996 = vld [vmem:[%s215 + $0x6a8] sm:$0xff]
        %v997 = vld [vmem:[%s215 + $0x6b0] sm:$0xff]
        %v998 = vld [vmem:[%s215 + $0x6b8] sm:$0xff]
        %v999 = vld [vmem:[%s215 + $0x6c0] sm:$0xff]
        %v1000 = vld [vmem:[%s215 + $0x6c8] sm:$0xff]
        %v1001 = vld [vmem:[%s215 + $0x6d0] sm:$0xff]
        %v1002 = vld [vmem:[%s215 + $0x6d8] sm:$0xff]
        %v1003 = vld [vmem:[%s215 + $0x6e0] sm:$0xff]
        %v1004 = vld [vmem:[%s215 + $0x6e8] sm:$0xff]
        %v1005 = vld [vmem:[%s215 + $0x6f0] sm:$0xff]
        %v1006 = vld [vmem:[%s215 + $0x6f8] sm:$0xff]
        %v1007 = vld [vmem:[%s215 + $0x700] sm:$0xff]
        %v1008 = vld [vmem:[%s215 + $0x708] sm:$0xff]
        %v1009 = vld [vmem:[%s215 + $0x710] sm:$0xff]
        %v1010 = vld [vmem:[%s215 + $0x718] sm:$0xff]
        %v1011 = vld [vmem:[%s215 + $0x720] sm:$0xff]
        %v1012 = vld [vmem:[%s215 + $0x728] sm:$0xff]
        %v1013 = vld [vmem:[%s215 + $0x730] sm:$0xff]
        %v1014 = vld [vmem:[%s215 + $0x738] sm:$0xff]
        %v1015 = vld [vmem:[%s215 + $0x740] sm:$0xff]
        %v1016 = vld [vmem:[%s215 + $0x748] sm:$0xff]
        %v1017 = vld [vmem:[%s215 + $0x750] sm:$0xff]
        %v1018 = vld [vmem:[%s215 + $0x758] sm:$0xff]
        %v1019 = vld [vmem:[%s215 + $0x760] sm:$0xff]
        %v1020 = vld [vmem:[%s215 + $0x768] sm:$0xff]
        %v1021 = vld [vmem:[%s215 + $0x770] sm:$0xff]
        %v1022 = vld [vmem:[%s215 + $0x778] sm:$0xff]
        %v1023 = vld [vmem:[%s215 + $0x780] sm:$0xff]
        %v1024 = vld [vmem:[%s215 + $0x788] sm:$0xff]
        %v1025 = vld [vmem:[%s215 + $0x790] sm:$0xff]
        %v1026 = vld [vmem:[%s215 + $0x798] sm:$0xff]
        %v1027 = vld [vmem:[%s215 + $0x7a0] sm:$0xff]
        %v1028 = vld [vmem:[%s215 + $0x7a8] sm:$0xff]
        %v1029 = vld [vmem:[%s215 + $0x7b0] sm:$0xff]
        %v1030 = vld [vmem:[%s215 + $0x7b8] sm:$0xff]
        %v1031 = vld [vmem:[%s215 + $0x7c0] sm:$0xff]
        %v1032 = vld [vmem:[%s215 + $0x7c8] sm:$0xff]
        %v1033 = vld [vmem:[%s215 + $0x7d0] sm:$0xff]
        %v1034 = vld [vmem:[%s215 + $0x7d8] sm:$0xff]
        %v1035 = vld [vmem:[%s215 + $0x7e0] sm:$0xff]
        %v1036 = vld [vmem:[%s215 + $0x7e8] sm:$0xff]
        %v1037 = vld [vmem:[%s215 + $0x7f0] sm:$0xff]
        %v1038 = vld [vmem:[%s215 + $0x7f8] sm:$0xff]
        %v1039 = vld [vmem:[%s215 + $0x800] sm:$0xff]
        %v1040 = vld [vmem:[%s215 + $0x808] sm:$0xff]
        %v1041 = vld [vmem:[%s215 + $0x810] sm:$0xff]
        %v1042 = vld [vmem:[%s215 + $0x818] sm:$0xff]
        %v1043 = vld [vmem:[%s215 + $0x820] sm:$0xff]
        %v1044 = vld [vmem:[%s215 + $0x828] sm:$0xff]
        %v1045 = vld [vmem:[%s215 + $0x830] sm:$0xff]
        %v1046 = vld [vmem:[%s215 + $0x838] sm:$0xff]
        %v1047 = vld [vmem:[%s215 + $0x840] sm:$0xff]
        %v1048 = vld [vmem:[%s215 + $0x848] sm:$0xff]
        %v1049 = vld [vmem:[%s215 + $0x850] sm:$0xff]
        %v1050 = vld [vmem:[%s215 + $0x858] sm:$0xff]
        %v1051 = vld [vmem:[%s215 + $0x860] sm:$0xff]
        %v1052 = vld [vmem:[%s215 + $0x868] sm:$0xff]
        %v1053 = vld [vmem:[%s215 + $0x870] sm:$0xff]
        %v1054 = vld [vmem:[%s215 + $0x878] sm:$0xff]
        %v1055 = vld [vmem:[%s215 + $0x880] sm:$0xff]
        %v1056 = vld [vmem:[%s215 + $0x888] sm:$0xff]
        %v1057 = vld [vmem:[%s215 + $0x890] sm:$0xff]
        %v1058 = vld [vmem:[%s215 + $0x898] sm:$0xff]
        %v1059 = vld [vmem:[%s215 + $0x8a0] sm:$0xff]
        %v1060 = vld [vmem:[%s215 + $0x8a8] sm:$0xff]
        %v1061 = vld [vmem:[%s215 + $0x8b0] sm:$0xff]
        %v1062 = vld [vmem:[%s215 + $0x8b8] sm:$0xff]
        %v1063 = vld [vmem:[%s215 + $0x8c0] sm:$0xff]
        %v1064 = vld [vmem:[%s215 + $0x8c8] sm:$0xff]
        %v1065 = vld [vmem:[%s215 + $0x8d0] sm:$0xff]
        %v1066 = vld [vmem:[%s215 + $0x8d8] sm:$0xff]
        %v1067 = vld [vmem:[%s215 + $0x8e0] sm:$0xff]
        %v1068 = vld [vmem:[%s215 + $0x8e8] sm:$0xff]
        %v1069 = vld [vmem:[%s215 + $0x8f0] sm:$0xff]
        %v1070 = vld [vmem:[%s215 + $0x8f8] sm:$0xff]
        %v1071 = vld [vmem:[%s215 + $0x900] sm:$0xff]
        %v1072 = vld [vmem:[%s215 + $0x908] sm:$0xff]
        %v1073 = vld [vmem:[%s215 + $0x910] sm:$0xff]
        %v1074 = vld [vmem:[%s215 + $0x918] sm:$0xff]
        %v1075 = vld [vmem:[%s215 + $0x920] sm:$0xff]
        %v1076 = vld [vmem:[%s215 + $0x928] sm:$0xff]
        %v1077 = vld [vmem:[%s215 + $0x930] sm:$0xff]
        %v1078 = vld [vmem:[%s215 + $0x938] sm:$0xff]
        %v1079 = vld [vmem:[%s215 + $0x940] sm:$0xff]
        %v1080 = vld [vmem:[%s215 + $0x948] sm:$0xff]
        %v1081 = vld [vmem:[%s215 + $0x950] sm:$0xff]
        %v1082 = vld [vmem:[%s215 + $0x958] sm:$0xff]
        %v1083 = vld [vmem:[%s215 + $0x960] sm:$0xff]
        %v1084 = vld [vmem:[%s215 + $0x968] sm:$0xff]
        %v1085 = vld [vmem:[%s215 + $0x970] sm:$0xff]
        %v1086 = vld [vmem:[%s215 + $0x978] sm:$0xff]
        %v1087 = vld [vmem:[%s215 + $0x980] sm:$0xff]
        %v1088 = vld [vmem:[%s215 + $0x988] sm:$0xff]
        %v1089 = vld [vmem:[%s215 + $0x990] sm:$0xff]
        %v1090 = vld [vmem:[%s215 + $0x998] sm:$0xff]
        %v1091 = vld [vmem:[%s215 + $0x9a0] sm:$0xff]
        %v1092 = vld [vmem:[%s215 + $0x9a8] sm:$0xff]
        %v1093 = vld [vmem:[%s215 + $0x9b0] sm:$0xff]
        %v1094 = vld [vmem:[%s215 + $0x9b8] sm:$0xff]
        %v1095 = vld [vmem:[%s215 + $0x9c0] sm:$0xff]
        %v1096 = vld [vmem:[%s215 + $0x9c8] sm:$0xff]
        %v1097 = vld [vmem:[%s215 + $0x9d0] sm:$0xff]
        %v1098 = vld [vmem:[%s215 + $0x9d8] sm:$0xff]
        %v1099 = vld [vmem:[%s215 + $0x9e0] sm:$0xff]
        %v1100 = vld [vmem:[%s215 + $0x9e8] sm:$0xff]
        %v1101 = vld [vmem:[%s215 + $0x9f0] sm:$0xff]
        %v1102 = vld [vmem:[%s215 + $0x9f8] sm:$0xff]
        %v1103 = vld [vmem:[%s215 + $0xa00] sm:$0xff]
        %v1104 = vld [vmem:[%s215 + $0xa08] sm:$0xff]
        %v1105 = vld [vmem:[%s215 + $0xa10] sm:$0xff]
        %v1106 = vld [vmem:[%s215 + $0xa18] sm:$0xff]
        %v1107 = vld [vmem:[%s215 + $0xa20] sm:$0xff]
        %v1108 = vld [vmem:[%s215 + $0xa28] sm:$0xff]
        %v1109 = vld [vmem:[%s215 + $0xa30] sm:$0xff]
        %v1110 = vld [vmem:[%s215 + $0xa38] sm:$0xff]
        %v1111 = vld [vmem:[%s215 + $0xa40] sm:$0xff]
        %v1112 = vld [vmem:[%s215 + $0xa48] sm:$0xff]
        %v1113 = vld [vmem:[%s215 + $0xa50] sm:$0xff]
        %v1114 = vld [vmem:[%s215 + $0xa58] sm:$0xff]
        %v1115 = vld [vmem:[%s215 + $0xa60] sm:$0xff]
        %v1116 = vld [vmem:[%s215 + $0xa68] sm:$0xff]
        %v1117 = vld [vmem:[%s215 + $0xa70] sm:$0xff]
        %v1118 = vld [vmem:[%s215 + $0xa78] sm:$0xff]
        %v1119 = vld [vmem:[%s215 + $0xa80] sm:$0xff]
        %v1120 = vld [vmem:[%s215 + $0xa88] sm:$0xff]
        %v1121 = vld [vmem:[%s215 + $0xa90] sm:$0xff]
        %v1122 = vld [vmem:[%s215 + $0xa98] sm:$0xff]
        %v1123 = vld [vmem:[%s215 + $0xaa0] sm:$0xff]
        %v1124 = vld [vmem:[%s215 + $0xaa8] sm:$0xff]
        %v1125 = vld [vmem:[%s215 + $0xab0] sm:$0xff]
        %v1126 = vld [vmem:[%s215 + $0xab8] sm:$0xff]
        %v1127 = vld [vmem:[%s215 + $0xac0] sm:$0xff]
        %v1128 = vld [vmem:[%s215 + $0xac8] sm:$0xff]
        %v1129 = vld [vmem:[%s215 + $0xad0] sm:$0xff]
        %v1130 = vld [vmem:[%s215 + $0xad8] sm:$0xff]
        %v1131 = vld [vmem:[%s215 + $0xae0] sm:$0xff]
        %v1132 = vld [vmem:[%s215 + $0xae8] sm:$0xff]
        %v1133 = vld [vmem:[%s215 + $0xaf0] sm:$0xff]
        %v1134 = vld [vmem:[%s215 + $0xaf8] sm:$0xff]
        %v1135 = vld [vmem:[%s215 + $0xb00] sm:$0xff]
        %v1136 = vld [vmem:[%s215 + $0xb08] sm:$0xff]
        %v1137 = vld [vmem:[%s215 + $0xb10] sm:$0xff]
        %v1138 = vld [vmem:[%s215 + $0xb18] sm:$0xff]
        %v1139 = vld [vmem:[%s215 + $0xb20] sm:$0xff]
        %v1140 = vld [vmem:[%s215 + $0xb28] sm:$0xff]
        %v1141 = vld [vmem:[%s215 + $0xb30] sm:$0xff]
        %v1142 = vld [vmem:[%s215 + $0xb38] sm:$0xff]
        %v1143 = vld [vmem:[%s215 + $0xb40] sm:$0xff]
        %v1144 = vld [vmem:[%s215 + $0xb48] sm:$0xff]
        %v1145 = vld [vmem:[%s215 + $0xb50] sm:$0xff]
        %v1146 = vld [vmem:[%s215 + $0xb58] sm:$0xff]
        %v1147 = vld [vmem:[%s215 + $0xb60] sm:$0xff]
        %v1148 = vld [vmem:[%s215 + $0xb68] sm:$0xff]
        %v1149 = vld [vmem:[%s215 + $0xb70] sm:$0xff]
        %v1150 = vld [vmem:[%s215 + $0xb78] sm:$0xff]
        %v1151 = vld [vmem:[%s215 + $0xb80] sm:$0xff]
        %v1152 = vld [vmem:[%s215 + $0xb88] sm:$0xff]
        %v1153 = vld [vmem:[%s215 + $0xb90] sm:$0xff]
        %v1154 = vld [vmem:[%s215 + $0xb98] sm:$0xff]
        %v1155 = vld [vmem:[%s215 + $0xba0] sm:$0xff]
        %v1156 = vld [vmem:[%s215 + $0xba8] sm:$0xff]
        %v1157 = vld [vmem:[%s215 + $0xbb0] sm:$0xff]
        %v1158 = vld [vmem:[%s215 + $0xbb8] sm:$0xff]
        %v1159 = vld [vmem:[%s215 + $0xbc0] sm:$0xff]
        %v1160 = vld [vmem:[%s215 + $0xbc8] sm:$0xff]
        %v1161 = vld [vmem:[%s215 + $0xbd0] sm:$0xff]
        %v1162 = vld [vmem:[%s215 + $0xbd8] sm:$0xff]
        %v1163 = vld [vmem:[%s215 + $0xbe0] sm:$0xff]
        %v1164 = vld [vmem:[%s215 + $0xbe8] sm:$0xff]
        %v1165 = vld [vmem:[%s215 + $0xbf0] sm:$0xff]
        %v1166 = vld [vmem:[%s215 + $0xbf8] sm:$0xff]
        %v1167 = vld [vmem:[%s215 + $0xc00] sm:$0xff]
        %v1168 = vld [vmem:[%s215 + $0xc08] sm:$0xff]
        %v1169 = vld [vmem:[%s215 + $0xc10] sm:$0xff]
        %v1170 = vld [vmem:[%s215 + $0xc18] sm:$0xff]
        %v1171 = vld [vmem:[%s215 + $0xc20] sm:$0xff]
        %v1172 = vld [vmem:[%s215 + $0xc28] sm:$0xff]
        %v1173 = vld [vmem:[%s215 + $0xc30] sm:$0xff]
        %v1174 = vld [vmem:[%s215 + $0xc38] sm:$0xff]
        %v1175 = vld [vmem:[%s215 + $0xc40] sm:$0xff]
        %v1176 = vld [vmem:[%s215 + $0xc48] sm:$0xff]
        %v1177 = vld [vmem:[%s215 + $0xc50] sm:$0xff]
        %v1178 = vld [vmem:[%s215 + $0xc58] sm:$0xff]
        %v1179 = vld [vmem:[%s215 + $0xc60] sm:$0xff]
        %v1180 = vld [vmem:[%s215 + $0xc68] sm:$0xff]
        %v1181 = vld [vmem:[%s215 + $0xc70] sm:$0xff]
        %v1182 = vld [vmem:[%s215 + $0xc78] sm:$0xff]
        %v1183 = vld [vmem:[%s215 + $0xc80] sm:$0xff]
        %v1184 = vld [vmem:[%s215 + $0xc88] sm:$0xff]
        %v1185 = vld [vmem:[%s215 + $0xc90] sm:$0xff]
        %v1186 = vld [vmem:[%s215 + $0xc98] sm:$0xff]
        %v1187 = vld [vmem:[%s215 + $0xca0] sm:$0xff]
        %v1188 = vld [vmem:[%s215 + $0xca8] sm:$0xff]
        %v1189 = vld [vmem:[%s215 + $0xcb0] sm:$0xff]
        %v1190 = vld [vmem:[%s215 + $0xcb8] sm:$0xff]
        %v1191 = vld [vmem:[%s215 + $0xcc0] sm:$0xff]
        %v1192 = vld [vmem:[%s215 + $0xcc8] sm:$0xff]
        %v1193 = vld [vmem:[%s215 + $0xcd0] sm:$0xff]
        %v1194 = vld [vmem:[%s215 + $0xcd8] sm:$0xff]
        %v1195 = vld [vmem:[%s215 + $0xce0] sm:$0xff]
        %v1196 = vld [vmem:[%s215 + $0xce8] sm:$0xff]
        %v1197 = vld [vmem:[%s215 + $0xcf0] sm:$0xff]
        %v1198 = vld [vmem:[%s215 + $0xcf8] sm:$0xff]
        %v1199 = vld [vmem:[%s215 + $0xd00] sm:$0xff]
        %v1200 = vld [vmem:[%s215 + $0xd08] sm:$0xff]
        %v1201 = vld [vmem:[%s215 + $0xd10] sm:$0xff]
        %v1202 = vld [vmem:[%s215 + $0xd18] sm:$0xff]
        %v1203 = vld [vmem:[%s215 + $0xd20] sm:$0xff]
        %v1204 = vld [vmem:[%s215 + $0xd28] sm:$0xff]
        %v1205 = vld [vmem:[%s215 + $0xd30] sm:$0xff]
        %v1206 = vld [vmem:[%s215 + $0xd38] sm:$0xff]
        %v1207 = vld [vmem:[%s215 + $0xd40] sm:$0xff]
        %v1208 = vld [vmem:[%s215 + $0xd48] sm:$0xff]
        %v1209 = vld [vmem:[%s215 + $0xd50] sm:$0xff]
        %v1210 = vld [vmem:[%s215 + $0xd58] sm:$0xff]
        %v1211 = vld [vmem:[%s215 + $0xd60] sm:$0xff]
        %v1212 = vld [vmem:[%s215 + $0xd68] sm:$0xff]
        %v1213 = vld [vmem:[%s215 + $0xd70] sm:$0xff]
        %v1214 = vld [vmem:[%s215 + $0xd78] sm:$0xff]
        %v1215 = vld [vmem:[%s215 + $0xd80] sm:$0xff]
        %v1216 = vld [vmem:[%s215 + $0xd88] sm:$0xff]
        %v1217 = vld [vmem:[%s215 + $0xd90] sm:$0xff]
        %v1218 = vld [vmem:[%s215 + $0xd98] sm:$0xff]
        %v1219 = vld [vmem:[%s215 + $0xda0] sm:$0xff]
        %v1220 = vld [vmem:[%s215 + $0xda8] sm:$0xff]
        %v1221 = vld [vmem:[%s215 + $0xdb0] sm:$0xff]
        %v1222 = vld [vmem:[%s215 + $0xdb8] sm:$0xff]
        %v1223 = vld [vmem:[%s215 + $0xdc0] sm:$0xff]
        %v1224 = vld [vmem:[%s215 + $0xdc8] sm:$0xff]
        %v1225 = vld [vmem:[%s215 + $0xdd0] sm:$0xff]
        %v1226 = vld [vmem:[%s215 + $0xdd8] sm:$0xff]
        %v1227 = vld [vmem:[%s215 + $0xde0] sm:$0xff]
        %v1228 = vld [vmem:[%s215 + $0xde8] sm:$0xff]
        %v1229 = vld [vmem:[%s215 + $0xdf0] sm:$0xff]
        %v1230 = vld [vmem:[%s215 + $0xdf8] sm:$0xff]
        %v1231 = vld [vmem:[%s215 + $0xe00] sm:$0xff]
        %v1232 = vld [vmem:[%s215 + $0xe08] sm:$0xff]
        %v1233 = vld [vmem:[%s215 + $0xe10] sm:$0xff]
        %v1234 = vld [vmem:[%s215 + $0xe18] sm:$0xff]
        %v1235 = vld [vmem:[%s215 + $0xe20] sm:$0xff]
        %v1236 = vld [vmem:[%s215 + $0xe28] sm:$0xff]
        %v1237 = vld [vmem:[%s215 + $0xe30] sm:$0xff]
        %v1238 = vld [vmem:[%s215 + $0xe38] sm:$0xff]
        %v1239 = vld [vmem:[%s215 + $0xe40] sm:$0xff]
        %v1240 = vld [vmem:[%s215 + $0xe48] sm:$0xff]
        %v1241 = vld [vmem:[%s215 + $0xe50] sm:$0xff]
        %v1242 = vld [vmem:[%s215 + $0xe58] sm:$0xff]
        %v1243 = vld [vmem:[%s215 + $0xe60] sm:$0xff]
        %v1244 = vld [vmem:[%s215 + $0xe68] sm:$0xff]
        %v1245 = vld [vmem:[%s215 + $0xe70] sm:$0xff]
        %v1246 = vld [vmem:[%s215 + $0xe78] sm:$0xff]
        %v1247 = vld [vmem:[%s215 + $0xe80] sm:$0xff]
        %v1248 = vld [vmem:[%s215 + $0xe88] sm:$0xff]
        %v1249 = vld [vmem:[%s215 + $0xe90] sm:$0xff]
        %v1250 = vld [vmem:[%s215 + $0xe98] sm:$0xff]
        %v1251 = vld [vmem:[%s215 + $0xea0] sm:$0xff]
        %v1252 = vld [vmem:[%s215 + $0xea8] sm:$0xff]
        %v1253 = vld [vmem:[%s215 + $0xeb0] sm:$0xff]
        %v1254 = vld [vmem:[%s215 + $0xeb8] sm:$0xff]
        %v1255 = vld [vmem:[%s215 + $0xec0] sm:$0xff]
        %v1256 = vld [vmem:[%s215 + $0xec8] sm:$0xff]
        %v1257 = vld [vmem:[%s215 + $0xed0] sm:$0xff]
        %v1258 = vld [vmem:[%s215 + $0xed8] sm:$0xff]
        %v1259 = vld [vmem:[%s215 + $0xee0] sm:$0xff]
        %v1260 = vld [vmem:[%s215 + $0xee8] sm:$0xff]
        %v1261 = vld [vmem:[%s215 + $0xef0] sm:$0xff]
        %v1262 = vld [vmem:[%s215 + $0xef8] sm:$0xff]
        %v1263 = vld [vmem:[%s215 + $0xf00] sm:$0xff]
        %v1264 = vld [vmem:[%s215 + $0xf08] sm:$0xff]
        %v1265 = vld [vmem:[%s215 + $0xf10] sm:$0xff]
        %v1266 = vld [vmem:[%s215 + $0xf18] sm:$0xff]
        %v1267 = vld [vmem:[%s215 + $0xf20] sm:$0xff]
        %v1268 = vld [vmem:[%s215 + $0xf28] sm:$0xff]
        %v1269 = vld [vmem:[%s215 + $0xf30] sm:$0xff]
        %v1270 = vld [vmem:[%s215 + $0xf38] sm:$0xff]
        %v1271 = vld [vmem:[%s215 + $0xf40] sm:$0xff]
        %v1272 = vld [vmem:[%s215 + $0xf48] sm:$0xff]
        %v1273 = vld [vmem:[%s215 + $0xf50] sm:$0xff]
        %v1274 = vld [vmem:[%s215 + $0xf58] sm:$0xff]
        %v1275 = vld [vmem:[%s215 + $0xf60] sm:$0xff]
        %v1276 = vld [vmem:[%s215 + $0xf68] sm:$0xff]
        %v1277 = vld [vmem:[%s215 + $0xf70] sm:$0xff]
        %v1278 = vld [vmem:[%s215 + $0xf78] sm:$0xff]
        %v1279 = vld [vmem:[%s215 + $0xf80] sm:$0xff]
        %v1280 = vld [vmem:[%s215 + $0xf88] sm:$0xff]
        %v1281 = vld [vmem:[%s215 + $0xf90] sm:$0xff]
        %v1282 = vld [vmem:[%s215 + $0xf98] sm:$0xff]
        %v1283 = vld [vmem:[%s215 + $0xfa0] sm:$0xff]
        %v1284 = vld [vmem:[%s215 + $0xfa8] sm:$0xff]
        %v1285 = vld [vmem:[%s215 + $0xfb0] sm:$0xff]
        %v1286 = vld [vmem:[%s215 + $0xfb8] sm:$0xff]
        %v1287 = vld [vmem:[%s215 + $0xfc0] sm:$0xff]
        %v1288 = vld [vmem:[%s215 + $0xfc8] sm:$0xff]
        %v1289 = vld [vmem:[%s215 + $0xfd0] sm:$0xff]
        %v1290 = vld [vmem:[%s215 + $0xfd8] sm:$0xff]
        %v1291 = vld [vmem:[%s215 + $0xfe0] sm:$0xff]
        %v1292 = vld [vmem:[%s215 + $0xfe8] sm:$0xff]
        %v1293 = vld [vmem:[%s215 + $0xff0] sm:$0xff]
        %v1294 = vld [vmem:[%s215 + $0xff8] sm:$0xff]
        %v1295 = vld [vmem:[%s224] sm:$0xff]
        %v1296 = vld [vmem:[%s224 + $0x8] sm:$0xff]
        %v1297 = vld [vmem:[%s224 + $0x10] sm:$0xff]
        %v1298 = vld [vmem:[%s224 + $0x18] sm:$0xff]
        %v1299 = vld [vmem:[%s224 + $0x20] sm:$0xff]
        %v1300 = vld [vmem:[%s224 + $0x28] sm:$0xff]
        %v1301 = vld [vmem:[%s224 + $0x30] sm:$0xff]
        %v1302 = vld [vmem:[%s224 + $0x38] sm:$0xff]
        %v1303 = vld [vmem:[%s224 + $0x40] sm:$0xff]
        %v1304 = vld [vmem:[%s224 + $0x48] sm:$0xff]
        %v1305 = vld [vmem:[%s224 + $0x50] sm:$0xff]
        %v1306 = vld [vmem:[%s224 + $0x58] sm:$0xff]
        %v1307 = vld [vmem:[%s224 + $0x60] sm:$0xff]
        %v1308 = vld [vmem:[%s224 + $0x68] sm:$0xff]
        %v1309 = vld [vmem:[%s224 + $0x70] sm:$0xff]
        %v1310 = vld [vmem:[%s224 + $0x78] sm:$0xff]
        %v1311 = vld [vmem:[%s224 + $0x80] sm:$0xff]
        %v1312 = vld [vmem:[%s224 + $0x88] sm:$0xff]
        %v1313 = vld [vmem:[%s224 + $0x90] sm:$0xff]
        %v1314 = vld [vmem:[%s224 + $0x98] sm:$0xff]
        %v1315 = vld [vmem:[%s224 + $0xa0] sm:$0xff]
        %v1316 = vld [vmem:[%s224 + $0xa8] sm:$0xff]
        %v1317 = vld [vmem:[%s224 + $0xb0] sm:$0xff]
        %v1318 = vld [vmem:[%s224 + $0xb8] sm:$0xff]
        %v1319 = vld [vmem:[%s224 + $0xc0] sm:$0xff]
        %v1320 = vld [vmem:[%s224 + $0xc8] sm:$0xff]
        %v1321 = vld [vmem:[%s224 + $0xd0] sm:$0xff]
        %v1322 = vld [vmem:[%s224 + $0xd8] sm:$0xff]
        %v1323 = vld [vmem:[%s224 + $0xe0] sm:$0xff]
        %v1324 = vld [vmem:[%s224 + $0xe8] sm:$0xff]
        %v1325 = vld [vmem:[%s224 + $0xf0] sm:$0xff]
        %v1326 = vld [vmem:[%s224 + $0xf8] sm:$0xff]
        %v1327 = vld [vmem:[%s224 + $0x100] sm:$0xff]
        %v1328 = vld [vmem:[%s224 + $0x108] sm:$0xff]
        %v1329 = vld [vmem:[%s224 + $0x110] sm:$0xff]
        %v1330 = vld [vmem:[%s224 + $0x118] sm:$0xff]
        %v1331 = vld [vmem:[%s224 + $0x120] sm:$0xff]
        %v1332 = vld [vmem:[%s224 + $0x128] sm:$0xff]
        %v1333 = vld [vmem:[%s224 + $0x130] sm:$0xff]
        %v1334 = vld [vmem:[%s224 + $0x138] sm:$0xff]
        %v1335 = vld [vmem:[%s224 + $0x140] sm:$0xff]
        %v1336 = vld [vmem:[%s224 + $0x148] sm:$0xff]
        %v1337 = vld [vmem:[%s224 + $0x150] sm:$0xff]
        %v1338 = vld [vmem:[%s224 + $0x158] sm:$0xff]
        %v1339 = vld [vmem:[%s224 + $0x160] sm:$0xff]
        %v1340 = vld [vmem:[%s224 + $0x168] sm:$0xff]
        %v1341 = vld [vmem:[%s224 + $0x170] sm:$0xff]
        %v1342 = vld [vmem:[%s224 + $0x178] sm:$0xff]
        %v1343 = vld [vmem:[%s224 + $0x180] sm:$0xff]
        %v1344 = vld [vmem:[%s224 + $0x188] sm:$0xff]
        %v1345 = vld [vmem:[%s224 + $0x190] sm:$0xff]
        %v1346 = vld [vmem:[%s224 + $0x198] sm:$0xff]
        %v1347 = vld [vmem:[%s224 + $0x1a0] sm:$0xff]
        %v1348 = vld [vmem:[%s224 + $0x1a8] sm:$0xff]
        %v1349 = vld [vmem:[%s224 + $0x1b0] sm:$0xff]
        %v1350 = vld [vmem:[%s224 + $0x1b8] sm:$0xff]
        %v1351 = vld [vmem:[%s224 + $0x1c0] sm:$0xff]
        %v1352 = vld [vmem:[%s224 + $0x1c8] sm:$0xff]
        %v1353 = vld [vmem:[%s224 + $0x1d0] sm:$0xff]
        %v1354 = vld [vmem:[%s224 + $0x1d8] sm:$0xff]
        %v1355 = vld [vmem:[%s224 + $0x1e0] sm:$0xff]
        %v1356 = vld [vmem:[%s224 + $0x1e8] sm:$0xff]
        %v1357 = vld [vmem:[%s224 + $0x1f0] sm:$0xff]
        %v1358 = vld [vmem:[%s224 + $0x1f8] sm:$0xff]
        %v1359 = vld [vmem:[%s224 + $0x200] sm:$0xff]
        %v1360 = vld [vmem:[%s224 + $0x208] sm:$0xff]
        %v1361 = vld [vmem:[%s224 + $0x210] sm:$0xff]
        %v1362 = vld [vmem:[%s224 + $0x218] sm:$0xff]
        %v1363 = vld [vmem:[%s224 + $0x220] sm:$0xff]
        %v1364 = vld [vmem:[%s224 + $0x228] sm:$0xff]
        %v1365 = vld [vmem:[%s224 + $0x230] sm:$0xff]
        %v1366 = vld [vmem:[%s224 + $0x238] sm:$0xff]
        %v1367 = vld [vmem:[%s224 + $0x240] sm:$0xff]
        %v1368 = vld [vmem:[%s224 + $0x248] sm:$0xff]
        %v1369 = vld [vmem:[%s224 + $0x250] sm:$0xff]
        %v1370 = vld [vmem:[%s224 + $0x258] sm:$0xff]
        %v1371 = vld [vmem:[%s224 + $0x260] sm:$0xff]
        %v1372 = vld [vmem:[%s224 + $0x268] sm:$0xff]
        %v1373 = vld [vmem:[%s224 + $0x270] sm:$0xff]
        %v1374 = vld [vmem:[%s224 + $0x278] sm:$0xff]
        %v1375 = vld [vmem:[%s224 + $0x280] sm:$0xff]
        %v1376 = vld [vmem:[%s224 + $0x288] sm:$0xff]
        %v1377 = vld [vmem:[%s224 + $0x290] sm:$0xff]
        %v1378 = vld [vmem:[%s224 + $0x298] sm:$0xff]
        %v1379 = vld [vmem:[%s224 + $0x2a0] sm:$0xff]
        %v1380 = vld [vmem:[%s224 + $0x2a8] sm:$0xff]
        %v1381 = vld [vmem:[%s224 + $0x2b0] sm:$0xff]
        %v1382 = vld [vmem:[%s224 + $0x2b8] sm:$0xff]
        %v1383 = vld [vmem:[%s224 + $0x2c0] sm:$0xff]
        %v1384 = vld [vmem:[%s224 + $0x2c8] sm:$0xff]
        %v1385 = vld [vmem:[%s224 + $0x2d0] sm:$0xff]
        %v1386 = vld [vmem:[%s224 + $0x2d8] sm:$0xff]
        %v1387 = vld [vmem:[%s224 + $0x2e0] sm:$0xff]
        %v1388 = vld [vmem:[%s224 + $0x2e8] sm:$0xff]
        %v1389 = vld [vmem:[%s224 + $0x2f0] sm:$0xff]
        %v1390 = vld [vmem:[%s224 + $0x2f8] sm:$0xff]
        %v1391 = vld [vmem:[%s224 + $0x300] sm:$0xff]
        %v1392 = vld [vmem:[%s224 + $0x308] sm:$0xff]
        %v1393 = vld [vmem:[%s224 + $0x310] sm:$0xff]
        %v1394 = vld [vmem:[%s224 + $0x318] sm:$0xff]
        %v1395 = vld [vmem:[%s224 + $0x320] sm:$0xff]
        %v1396 = vld [vmem:[%s224 + $0x328] sm:$0xff]
        %v1397 = vld [vmem:[%s224 + $0x330] sm:$0xff]
        %v1398 = vld [vmem:[%s224 + $0x338] sm:$0xff]
        %v1399 = vld [vmem:[%s224 + $0x340] sm:$0xff]
        %v1400 = vld [vmem:[%s224 + $0x348] sm:$0xff]
        %v1401 = vld [vmem:[%s224 + $0x350] sm:$0xff]
        %v1402 = vld [vmem:[%s224 + $0x358] sm:$0xff]
        %v1403 = vld [vmem:[%s224 + $0x360] sm:$0xff]
        %v1404 = vld [vmem:[%s224 + $0x368] sm:$0xff]
        %v1405 = vld [vmem:[%s224 + $0x370] sm:$0xff]
        %v1406 = vld [vmem:[%s224 + $0x378] sm:$0xff]
        %v1407 = vld [vmem:[%s224 + $0x380] sm:$0xff]
        %v1408 = vld [vmem:[%s224 + $0x388] sm:$0xff]
        %v1409 = vld [vmem:[%s224 + $0x390] sm:$0xff]
        %v1410 = vld [vmem:[%s224 + $0x398] sm:$0xff]
        %v1411 = vld [vmem:[%s224 + $0x3a0] sm:$0xff]
        %v1412 = vld [vmem:[%s224 + $0x3a8] sm:$0xff]
        %v1413 = vld [vmem:[%s224 + $0x3b0] sm:$0xff]
        %v1414 = vld [vmem:[%s224 + $0x3b8] sm:$0xff]
        %v1415 = vld [vmem:[%s224 + $0x3c0] sm:$0xff]
        %v1416 = vld [vmem:[%s224 + $0x3c8] sm:$0xff]
        %v1417 = vld [vmem:[%s224 + $0x3d0] sm:$0xff]
        %v1418 = vld [vmem:[%s224 + $0x3d8] sm:$0xff]
        %v1419 = vld [vmem:[%s224 + $0x3e0] sm:$0xff]
        %v1420 = vld [vmem:[%s224 + $0x3e8] sm:$0xff]
        %v1421 = vld [vmem:[%s224 + $0x3f0] sm:$0xff]
        %v1422 = vld [vmem:[%s224 + $0x3f8] sm:$0xff]
        %v1423 = vld [vmem:[%s224 + $0x400] sm:$0xff]
        %v1424 = vld [vmem:[%s224 + $0x408] sm:$0xff]
        %v1425 = vld [vmem:[%s224 + $0x410] sm:$0xff]
        %v1426 = vld [vmem:[%s224 + $0x418] sm:$0xff]
        %v1427 = vld [vmem:[%s224 + $0x420] sm:$0xff]
        %v1428 = vld [vmem:[%s224 + $0x428] sm:$0xff]
        %v1429 = vld [vmem:[%s224 + $0x430] sm:$0xff]
        %v1430 = vld [vmem:[%s224 + $0x438] sm:$0xff]
        %v1431 = vld [vmem:[%s224 + $0x440] sm:$0xff]
        %v1432 = vld [vmem:[%s224 + $0x448] sm:$0xff]
        %v1433 = vld [vmem:[%s224 + $0x450] sm:$0xff]
        %v1434 = vld [vmem:[%s224 + $0x458] sm:$0xff]
        %v1435 = vld [vmem:[%s224 + $0x460] sm:$0xff]
        %v1436 = vld [vmem:[%s224 + $0x468] sm:$0xff]
        %v1437 = vld [vmem:[%s224 + $0x470] sm:$0xff]
        %v1438 = vld [vmem:[%s224 + $0x478] sm:$0xff]
        %v1439 = vld [vmem:[%s224 + $0x480] sm:$0xff]
        %v1440 = vld [vmem:[%s224 + $0x488] sm:$0xff]
        %v1441 = vld [vmem:[%s224 + $0x490] sm:$0xff]
        %v1442 = vld [vmem:[%s224 + $0x498] sm:$0xff]
        %v1443 = vld [vmem:[%s224 + $0x4a0] sm:$0xff]
        %v1444 = vld [vmem:[%s224 + $0x4a8] sm:$0xff]
        %v1445 = vld [vmem:[%s224 + $0x4b0] sm:$0xff]
        %v1446 = vld [vmem:[%s224 + $0x4b8] sm:$0xff]
        %v1447 = vld [vmem:[%s224 + $0x4c0] sm:$0xff]
        %v1448 = vld [vmem:[%s224 + $0x4c8] sm:$0xff]
        %v1449 = vld [vmem:[%s224 + $0x4d0] sm:$0xff]
        %v1450 = vld [vmem:[%s224 + $0x4d8] sm:$0xff]
        %v1451 = vld [vmem:[%s224 + $0x4e0] sm:$0xff]
        %v1452 = vld [vmem:[%s224 + $0x4e8] sm:$0xff]
        %v1453 = vld [vmem:[%s224 + $0x4f0] sm:$0xff]
        %v1454 = vld [vmem:[%s224 + $0x4f8] sm:$0xff]
        %v1455 = vld [vmem:[%s224 + $0x500] sm:$0xff]
        %v1456 = vld [vmem:[%s224 + $0x508] sm:$0xff]
        %v1457 = vld [vmem:[%s224 + $0x510] sm:$0xff]
        %v1458 = vld [vmem:[%s224 + $0x518] sm:$0xff]
        %v1459 = vld [vmem:[%s224 + $0x520] sm:$0xff]
        %v1460 = vld [vmem:[%s224 + $0x528] sm:$0xff]
        %v1461 = vld [vmem:[%s224 + $0x530] sm:$0xff]
        %v1462 = vld [vmem:[%s224 + $0x538] sm:$0xff]
        %v1463 = vld [vmem:[%s224 + $0x540] sm:$0xff]
        %v1464 = vld [vmem:[%s224 + $0x548] sm:$0xff]
        %v1465 = vld [vmem:[%s224 + $0x550] sm:$0xff]
        %v1466 = vld [vmem:[%s224 + $0x558] sm:$0xff]
        %v1467 = vld [vmem:[%s224 + $0x560] sm:$0xff]
        %v1468 = vld [vmem:[%s224 + $0x568] sm:$0xff]
        %v1469 = vld [vmem:[%s224 + $0x570] sm:$0xff]
        %v1470 = vld [vmem:[%s224 + $0x578] sm:$0xff]
        %v1471 = vld [vmem:[%s224 + $0x580] sm:$0xff]
        %v1472 = vld [vmem:[%s224 + $0x588] sm:$0xff]
        %v1473 = vld [vmem:[%s224 + $0x590] sm:$0xff]
        %v1474 = vld [vmem:[%s224 + $0x598] sm:$0xff]
        %v1475 = vld [vmem:[%s224 + $0x5a0] sm:$0xff]
        %v1476 = vld [vmem:[%s224 + $0x5a8] sm:$0xff]
        %v1477 = vld [vmem:[%s224 + $0x5b0] sm:$0xff]
        %v1478 = vld [vmem:[%s224 + $0x5b8] sm:$0xff]
        %v1479 = vld [vmem:[%s224 + $0x5c0] sm:$0xff]
        %v1480 = vld [vmem:[%s224 + $0x5c8] sm:$0xff]
        %v1481 = vld [vmem:[%s224 + $0x5d0] sm:$0xff]
        %v1482 = vld [vmem:[%s224 + $0x5d8] sm:$0xff]
        %v1483 = vld [vmem:[%s224 + $0x5e0] sm:$0xff]
        %v1484 = vld [vmem:[%s224 + $0x5e8] sm:$0xff]
        %v1485 = vld [vmem:[%s224 + $0x5f0] sm:$0xff]
        %v1486 = vld [vmem:[%s224 + $0x5f8] sm:$0xff]
        %v1487 = vld [vmem:[%s224 + $0x600] sm:$0xff]
        %v1488 = vld [vmem:[%s224 + $0x608] sm:$0xff]
        %v1489 = vld [vmem:[%s224 + $0x610] sm:$0xff]
        %v1490 = vld [vmem:[%s224 + $0x618] sm:$0xff]
        %v1491 = vld [vmem:[%s224 + $0x620] sm:$0xff]
        %v1492 = vld [vmem:[%s224 + $0x628] sm:$0xff]
        %v1493 = vld [vmem:[%s224 + $0x630] sm:$0xff]
        %v1494 = vld [vmem:[%s224 + $0x638] sm:$0xff]
        %v1495 = vld [vmem:[%s224 + $0x640] sm:$0xff]
        %v1496 = vld [vmem:[%s224 + $0x648] sm:$0xff]
        %v1497 = vld [vmem:[%s224 + $0x650] sm:$0xff]
        %v1498 = vld [vmem:[%s224 + $0x658] sm:$0xff]
        %v1499 = vld [vmem:[%s224 + $0x660] sm:$0xff]
        %v1500 = vld [vmem:[%s224 + $0x668] sm:$0xff]
        %v1501 = vld [vmem:[%s224 + $0x670] sm:$0xff]
        %v1502 = vld [vmem:[%s224 + $0x678] sm:$0xff]
        %v1503 = vld [vmem:[%s224 + $0x680] sm:$0xff]
        %v1504 = vld [vmem:[%s224 + $0x688] sm:$0xff]
        %v1505 = vld [vmem:[%s224 + $0x690] sm:$0xff]
        %v1506 = vld [vmem:[%s224 + $0x698] sm:$0xff]
        %v1507 = vld [vmem:[%s224 + $0x6a0] sm:$0xff]
        %v1508 = vld [vmem:[%s224 + $0x6a8] sm:$0xff]
        %v1509 = vld [vmem:[%s224 + $0x6b0] sm:$0xff]
        %v1510 = vld [vmem:[%s224 + $0x6b8] sm:$0xff]
        %v1511 = vld [vmem:[%s224 + $0x6c0] sm:$0xff]
        %v1512 = vld [vmem:[%s224 + $0x6c8] sm:$0xff]
        %v1513 = vld [vmem:[%s224 + $0x6d0] sm:$0xff]
        %v1514 = vld [vmem:[%s224 + $0x6d8] sm:$0xff]
        %v1515 = vld [vmem:[%s224 + $0x6e0] sm:$0xff]
        %v1516 = vld [vmem:[%s224 + $0x6e8] sm:$0xff]
        %v1517 = vld [vmem:[%s224 + $0x6f0] sm:$0xff]
        %v1518 = vld [vmem:[%s224 + $0x6f8] sm:$0xff]
        %v1519 = vld [vmem:[%s224 + $0x700] sm:$0xff]
        %v1520 = vld [vmem:[%s224 + $0x708] sm:$0xff]
        %v1521 = vld [vmem:[%s224 + $0x710] sm:$0xff]
        %v1522 = vld [vmem:[%s224 + $0x718] sm:$0xff]
        %v1523 = vld [vmem:[%s224 + $0x720] sm:$0xff]
        %v1524 = vld [vmem:[%s224 + $0x728] sm:$0xff]
        %v1525 = vld [vmem:[%s224 + $0x730] sm:$0xff]
        %v1526 = vld [vmem:[%s224 + $0x738] sm:$0xff]
        %v1527 = vld [vmem:[%s224 + $0x740] sm:$0xff]
        %v1528 = vld [vmem:[%s224 + $0x748] sm:$0xff]
        %v1529 = vld [vmem:[%s224 + $0x750] sm:$0xff]
        %v1530 = vld [vmem:[%s224 + $0x758] sm:$0xff]
        %v1531 = vld [vmem:[%s224 + $0x760] sm:$0xff]
        %v1532 = vld [vmem:[%s224 + $0x768] sm:$0xff]
        %v1533 = vld [vmem:[%s224 + $0x770] sm:$0xff]
        %v1534 = vld [vmem:[%s224 + $0x778] sm:$0xff]
        %v1535 = vld [vmem:[%s224 + $0x780] sm:$0xff]
        %v1536 = vld [vmem:[%s224 + $0x788] sm:$0xff]
        %v1537 = vld [vmem:[%s224 + $0x790] sm:$0xff]
        %v1538 = vld [vmem:[%s224 + $0x798] sm:$0xff]
        %v1539 = vld [vmem:[%s224 + $0x7a0] sm:$0xff]
        %v1540 = vld [vmem:[%s224 + $0x7a8] sm:$0xff]
        %v1541 = vld [vmem:[%s224 + $0x7b0] sm:$0xff]
        %v1542 = vld [vmem:[%s224 + $0x7b8] sm:$0xff]
        %v1543 = vld [vmem:[%s224 + $0x7c0] sm:$0xff]
        %v1544 = vld [vmem:[%s224 + $0x7c8] sm:$0xff]
        %v1545 = vld [vmem:[%s224 + $0x7d0] sm:$0xff]
        %v1546 = vld [vmem:[%s224 + $0x7d8] sm:$0xff]
        %v1547 = vld [vmem:[%s224 + $0x7e0] sm:$0xff]
        %v1548 = vld [vmem:[%s224 + $0x7e8] sm:$0xff]
        %v1549 = vld [vmem:[%s224 + $0x7f0] sm:$0xff]
        %v1550 = vld [vmem:[%s224 + $0x7f8] sm:$0xff]
        %v1551 = vld [vmem:[%s224 + $0x800] sm:$0xff]
        %v1552 = vld [vmem:[%s224 + $0x808] sm:$0xff]
        %v1553 = vld [vmem:[%s224 + $0x810] sm:$0xff]
        %v1554 = vld [vmem:[%s224 + $0x818] sm:$0xff]
        %v1555 = vld [vmem:[%s224 + $0x820] sm:$0xff]
        %v1556 = vld [vmem:[%s224 + $0x828] sm:$0xff]
        %v1557 = vld [vmem:[%s224 + $0x830] sm:$0xff]
        %v1558 = vld [vmem:[%s224 + $0x838] sm:$0xff]
        %v1559 = vld [vmem:[%s224 + $0x840] sm:$0xff]
        %v1560 = vld [vmem:[%s224 + $0x848] sm:$0xff]
        %v1561 = vld [vmem:[%s224 + $0x850] sm:$0xff]
        %v1562 = vld [vmem:[%s224 + $0x858] sm:$0xff]
        %v1563 = vld [vmem:[%s224 + $0x860] sm:$0xff]
        %v1564 = vld [vmem:[%s224 + $0x868] sm:$0xff]
        %v1565 = vld [vmem:[%s224 + $0x870] sm:$0xff]
        %v1566 = vld [vmem:[%s224 + $0x878] sm:$0xff]
        %v1567 = vld [vmem:[%s224 + $0x880] sm:$0xff]
        %v1568 = vld [vmem:[%s224 + $0x888] sm:$0xff]
        %v1569 = vld [vmem:[%s224 + $0x890] sm:$0xff]
        %v1570 = vld [vmem:[%s224 + $0x898] sm:$0xff]
        %v1571 = vld [vmem:[%s224 + $0x8a0] sm:$0xff]
        %v1572 = vld [vmem:[%s224 + $0x8a8] sm:$0xff]
        %v1573 = vld [vmem:[%s224 + $0x8b0] sm:$0xff]
        %v1574 = vld [vmem:[%s224 + $0x8b8] sm:$0xff]
        %v1575 = vld [vmem:[%s224 + $0x8c0] sm:$0xff]
        %v1576 = vld [vmem:[%s224 + $0x8c8] sm:$0xff]
        %v1577 = vld [vmem:[%s224 + $0x8d0] sm:$0xff]
        %v1578 = vld [vmem:[%s224 + $0x8d8] sm:$0xff]
        %v1579 = vld [vmem:[%s224 + $0x8e0] sm:$0xff]
        %v1580 = vld [vmem:[%s224 + $0x8e8] sm:$0xff]
        %v1581 = vld [vmem:[%s224 + $0x8f0] sm:$0xff]
        %v1582 = vld [vmem:[%s224 + $0x8f8] sm:$0xff]
        %v1583 = vld [vmem:[%s224 + $0x900] sm:$0xff]
        %v1584 = vld [vmem:[%s224 + $0x908] sm:$0xff]
        %v1585 = vld [vmem:[%s224 + $0x910] sm:$0xff]
        %v1586 = vld [vmem:[%s224 + $0x918] sm:$0xff]
        %v1587 = vld [vmem:[%s224 + $0x920] sm:$0xff]
        %v1588 = vld [vmem:[%s224 + $0x928] sm:$0xff]
        %v1589 = vld [vmem:[%s224 + $0x930] sm:$0xff]
        %v1590 = vld [vmem:[%s224 + $0x938] sm:$0xff]
        %v1591 = vld [vmem:[%s224 + $0x940] sm:$0xff]
        %v1592 = vld [vmem:[%s224 + $0x948] sm:$0xff]
        %v1593 = vld [vmem:[%s224 + $0x950] sm:$0xff]
        %v1594 = vld [vmem:[%s224 + $0x958] sm:$0xff]
        %v1595 = vld [vmem:[%s224 + $0x960] sm:$0xff]
        %v1596 = vld [vmem:[%s224 + $0x968] sm:$0xff]
        %v1597 = vld [vmem:[%s224 + $0x970] sm:$0xff]
        %v1598 = vld [vmem:[%s224 + $0x978] sm:$0xff]
        %v1599 = vld [vmem:[%s224 + $0x980] sm:$0xff]
        %v1600 = vld [vmem:[%s224 + $0x988] sm:$0xff]
        %v1601 = vld [vmem:[%s224 + $0x990] sm:$0xff]
        %v1602 = vld [vmem:[%s224 + $0x998] sm:$0xff]
        %v1603 = vld [vmem:[%s224 + $0x9a0] sm:$0xff]
        %v1604 = vld [vmem:[%s224 + $0x9a8] sm:$0xff]
        %v1605 = vld [vmem:[%s224 + $0x9b0] sm:$0xff]
        %v1606 = vld [vmem:[%s224 + $0x9b8] sm:$0xff]
        %v1607 = vld [vmem:[%s224 + $0x9c0] sm:$0xff]
        %v1608 = vld [vmem:[%s224 + $0x9c8] sm:$0xff]
        %v1609 = vld [vmem:[%s224 + $0x9d0] sm:$0xff]
        %v1610 = vld [vmem:[%s224 + $0x9d8] sm:$0xff]
        %v1611 = vld [vmem:[%s224 + $0x9e0] sm:$0xff]
        %v1612 = vld [vmem:[%s224 + $0x9e8] sm:$0xff]
        %v1613 = vld [vmem:[%s224 + $0x9f0] sm:$0xff]
        %v1614 = vld [vmem:[%s224 + $0x9f8] sm:$0xff]
        %v1615 = vld [vmem:[%s224 + $0xa00] sm:$0xff]
        %v1616 = vld [vmem:[%s224 + $0xa08] sm:$0xff]
        %v1617 = vld [vmem:[%s224 + $0xa10] sm:$0xff]
        %v1618 = vld [vmem:[%s224 + $0xa18] sm:$0xff]
        %v1619 = vld [vmem:[%s224 + $0xa20] sm:$0xff]
        %v1620 = vld [vmem:[%s224 + $0xa28] sm:$0xff]
        %v1621 = vld [vmem:[%s224 + $0xa30] sm:$0xff]
        %v1622 = vld [vmem:[%s224 + $0xa38] sm:$0xff]
        %v1623 = vld [vmem:[%s224 + $0xa40] sm:$0xff]
        %v1624 = vld [vmem:[%s224 + $0xa48] sm:$0xff]
        %v1625 = vld [vmem:[%s224 + $0xa50] sm:$0xff]
        %v1626 = vld [vmem:[%s224 + $0xa58] sm:$0xff]
        %v1627 = vld [vmem:[%s224 + $0xa60] sm:$0xff]
        %v1628 = vld [vmem:[%s224 + $0xa68] sm:$0xff]
        %v1629 = vld [vmem:[%s224 + $0xa70] sm:$0xff]
        %v1630 = vld [vmem:[%s224 + $0xa78] sm:$0xff]
        %v1631 = vld [vmem:[%s224 + $0xa80] sm:$0xff]
        %v1632 = vld [vmem:[%s224 + $0xa88] sm:$0xff]
        %v1633 = vld [vmem:[%s224 + $0xa90] sm:$0xff]
        %v1634 = vld [vmem:[%s224 + $0xa98] sm:$0xff]
        %v1635 = vld [vmem:[%s224 + $0xaa0] sm:$0xff]
        %v1636 = vld [vmem:[%s224 + $0xaa8] sm:$0xff]
        %v1637 = vld [vmem:[%s224 + $0xab0] sm:$0xff]
        %v1638 = vld [vmem:[%s224 + $0xab8] sm:$0xff]
        %v1639 = vld [vmem:[%s224 + $0xac0] sm:$0xff]
        %v1640 = vld [vmem:[%s224 + $0xac8] sm:$0xff]
        %v1641 = vld [vmem:[%s224 + $0xad0] sm:$0xff]
        %v1642 = vld [vmem:[%s224 + $0xad8] sm:$0xff]
        %v1643 = vld [vmem:[%s224 + $0xae0] sm:$0xff]
        %v1644 = vld [vmem:[%s224 + $0xae8] sm:$0xff]
        %v1645 = vld [vmem:[%s224 + $0xaf0] sm:$0xff]
        %v1646 = vld [vmem:[%s224 + $0xaf8] sm:$0xff]
        %v1647 = vld [vmem:[%s224 + $0xb00] sm:$0xff]
        %v1648 = vld [vmem:[%s224 + $0xb08] sm:$0xff]
        %v1649 = vld [vmem:[%s224 + $0xb10] sm:$0xff]
        %v1650 = vld [vmem:[%s224 + $0xb18] sm:$0xff]
        %v1651 = vld [vmem:[%s224 + $0xb20] sm:$0xff]
        %v1652 = vld [vmem:[%s224 + $0xb28] sm:$0xff]
        %v1653 = vld [vmem:[%s224 + $0xb30] sm:$0xff]
        %v1654 = vld [vmem:[%s224 + $0xb38] sm:$0xff]
        %v1655 = vld [vmem:[%s224 + $0xb40] sm:$0xff]
        %v1656 = vld [vmem:[%s224 + $0xb48] sm:$0xff]
        %v1657 = vld [vmem:[%s224 + $0xb50] sm:$0xff]
        %v1658 = vld [vmem:[%s224 + $0xb58] sm:$0xff]
        %v1659 = vld [vmem:[%s224 + $0xb60] sm:$0xff]
        %v1660 = vld [vmem:[%s224 + $0xb68] sm:$0xff]
        %v1661 = vld [vmem:[%s224 + $0xb70] sm:$0xff]
        %v1662 = vld [vmem:[%s224 + $0xb78] sm:$0xff]
        %v1663 = vld [vmem:[%s224 + $0xb80] sm:$0xff]
        %v1664 = vld [vmem:[%s224 + $0xb88] sm:$0xff]
        %v1665 = vld [vmem:[%s224 + $0xb90] sm:$0xff]
        %v1666 = vld [vmem:[%s224 + $0xb98] sm:$0xff]
        %v1667 = vld [vmem:[%s224 + $0xba0] sm:$0xff]
        %v1668 = vld [vmem:[%s224 + $0xba8] sm:$0xff]
        %v1669 = vld [vmem:[%s224 + $0xbb0] sm:$0xff]
        %v1670 = vld [vmem:[%s224 + $0xbb8] sm:$0xff]
        %v1671 = vld [vmem:[%s224 + $0xbc0] sm:$0xff]
        %v1672 = vld [vmem:[%s224 + $0xbc8] sm:$0xff]
        %v1673 = vld [vmem:[%s224 + $0xbd0] sm:$0xff]
        %v1674 = vld [vmem:[%s224 + $0xbd8] sm:$0xff]
        %v1675 = vld [vmem:[%s224 + $0xbe0] sm:$0xff]
        %v1676 = vld [vmem:[%s224 + $0xbe8] sm:$0xff]
        %v1677 = vld [vmem:[%s224 + $0xbf0] sm:$0xff]
        %v1678 = vld [vmem:[%s224 + $0xbf8] sm:$0xff]
        %v1679 = vld [vmem:[%s224 + $0xc00] sm:$0xff]
        %v1680 = vld [vmem:[%s224 + $0xc08] sm:$0xff]
        %v1681 = vld [vmem:[%s224 + $0xc10] sm:$0xff]
        %v1682 = vld [vmem:[%s224 + $0xc18] sm:$0xff]
        %v1683 = vld [vmem:[%s224 + $0xc20] sm:$0xff]
        %v1684 = vld [vmem:[%s224 + $0xc28] sm:$0xff]
        %v1685 = vld [vmem:[%s224 + $0xc30] sm:$0xff]
        %v1686 = vld [vmem:[%s224 + $0xc38] sm:$0xff]
        %v1687 = vld [vmem:[%s224 + $0xc40] sm:$0xff]
        %v1688 = vld [vmem:[%s224 + $0xc48] sm:$0xff]
        %v1689 = vld [vmem:[%s224 + $0xc50] sm:$0xff]
        %v1690 = vld [vmem:[%s224 + $0xc58] sm:$0xff]
        %v1691 = vld [vmem:[%s224 + $0xc60] sm:$0xff]
        %v1692 = vld [vmem:[%s224 + $0xc68] sm:$0xff]
        %v1693 = vld [vmem:[%s224 + $0xc70] sm:$0xff]
        %v1694 = vld [vmem:[%s224 + $0xc78] sm:$0xff]
        %v1695 = vld [vmem:[%s224 + $0xc80] sm:$0xff]
        %v1696 = vld [vmem:[%s224 + $0xc88] sm:$0xff]
        %v1697 = vld [vmem:[%s224 + $0xc90] sm:$0xff]
        %v1698 = vld [vmem:[%s224 + $0xc98] sm:$0xff]
        %v1699 = vld [vmem:[%s224 + $0xca0] sm:$0xff]
        %v1700 = vld [vmem:[%s224 + $0xca8] sm:$0xff]
        %v1701 = vld [vmem:[%s224 + $0xcb0] sm:$0xff]
        %v1702 = vld [vmem:[%s224 + $0xcb8] sm:$0xff]
        %v1703 = vld [vmem:[%s224 + $0xcc0] sm:$0xff]
        %v1704 = vld [vmem:[%s224 + $0xcc8] sm:$0xff]
        %v1705 = vld [vmem:[%s224 + $0xcd0] sm:$0xff]
        %v1706 = vld [vmem:[%s224 + $0xcd8] sm:$0xff]
        %v1707 = vld [vmem:[%s224 + $0xce0] sm:$0xff]
        %v1708 = vld [vmem:[%s224 + $0xce8] sm:$0xff]
        %v1709 = vld [vmem:[%s224 + $0xcf0] sm:$0xff]
        %v1710 = vld [vmem:[%s224 + $0xcf8] sm:$0xff]
        %v1711 = vld [vmem:[%s224 + $0xd00] sm:$0xff]
        %v1712 = vld [vmem:[%s224 + $0xd08] sm:$0xff]
        %v1713 = vld [vmem:[%s224 + $0xd10] sm:$0xff]
        %v1714 = vld [vmem:[%s224 + $0xd18] sm:$0xff]
        %v1715 = vld [vmem:[%s224 + $0xd20] sm:$0xff]
        %v1716 = vld [vmem:[%s224 + $0xd28] sm:$0xff]
        %v1717 = vld [vmem:[%s224 + $0xd30] sm:$0xff]
        %v1718 = vld [vmem:[%s224 + $0xd38] sm:$0xff]
        %v1719 = vld [vmem:[%s224 + $0xd40] sm:$0xff]
        %v1720 = vld [vmem:[%s224 + $0xd48] sm:$0xff]
        %v1721 = vld [vmem:[%s224 + $0xd50] sm:$0xff]
        %v1722 = vld [vmem:[%s224 + $0xd58] sm:$0xff]
        %v1723 = vld [vmem:[%s224 + $0xd60] sm:$0xff]
        %v1724 = vld [vmem:[%s224 + $0xd68] sm:$0xff]
        %v1725 = vld [vmem:[%s224 + $0xd70] sm:$0xff]
        %v1726 = vld [vmem:[%s224 + $0xd78] sm:$0xff]
        %v1727 = vld [vmem:[%s224 + $0xd80] sm:$0xff]
        %v1728 = vld [vmem:[%s224 + $0xd88] sm:$0xff]
        %v1729 = vld [vmem:[%s224 + $0xd90] sm:$0xff]
        %v1730 = vld [vmem:[%s224 + $0xd98] sm:$0xff]
        %v1731 = vld [vmem:[%s224 + $0xda0] sm:$0xff]
        %v1732 = vld [vmem:[%s224 + $0xda8] sm:$0xff]
        %v1733 = vld [vmem:[%s224 + $0xdb0] sm:$0xff]
        %v1734 = vld [vmem:[%s224 + $0xdb8] sm:$0xff]
        %v1735 = vld [vmem:[%s224 + $0xdc0] sm:$0xff]
        %v1736 = vld [vmem:[%s224 + $0xdc8] sm:$0xff]
        %v1737 = vld [vmem:[%s224 + $0xdd0] sm:$0xff]
        %v1738 = vld [vmem:[%s224 + $0xdd8] sm:$0xff]
        %v1739 = vld [vmem:[%s224 + $0xde0] sm:$0xff]
        %v1740 = vld [vmem:[%s224 + $0xde8] sm:$0xff]
        %v1741 = vld [vmem:[%s224 + $0xdf0] sm:$0xff]
        %v1742 = vld [vmem:[%s224 + $0xdf8] sm:$0xff]
        %v1743 = vld [vmem:[%s224 + $0xe00] sm:$0xff]
        %v1744 = vld [vmem:[%s224 + $0xe08] sm:$0xff]
        %v1745 = vld [vmem:[%s224 + $0xe10] sm:$0xff]
        %v1746 = vld [vmem:[%s224 + $0xe18] sm:$0xff]
        %v1747 = vld [vmem:[%s224 + $0xe20] sm:$0xff]
        %v1748 = vld [vmem:[%s224 + $0xe28] sm:$0xff]
        %v1749 = vld [vmem:[%s224 + $0xe30] sm:$0xff]
        %v1750 = vld [vmem:[%s224 + $0xe38] sm:$0xff]
        %v1751 = vld [vmem:[%s224 + $0xe40] sm:$0xff]
        %v1752 = vld [vmem:[%s224 + $0xe48] sm:$0xff]
        %v1753 = vld [vmem:[%s224 + $0xe50] sm:$0xff]
        %v1754 = vld [vmem:[%s224 + $0xe58] sm:$0xff]
        %v1755 = vld [vmem:[%s224 + $0xe60] sm:$0xff]
        %v1756 = vld [vmem:[%s224 + $0xe68] sm:$0xff]
        %v1757 = vld [vmem:[%s224 + $0xe70] sm:$0xff]
        %v1758 = vld [vmem:[%s224 + $0xe78] sm:$0xff]
        %v1759 = vld [vmem:[%s224 + $0xe80] sm:$0xff]
        %v1760 = vld [vmem:[%s224 + $0xe88] sm:$0xff]
        %v1761 = vld [vmem:[%s224 + $0xe90] sm:$0xff]
        %v1762 = vld [vmem:[%s224 + $0xe98] sm:$0xff]
        %v1763 = vld [vmem:[%s224 + $0xea0] sm:$0xff]
        %v1764 = vld [vmem:[%s224 + $0xea8] sm:$0xff]
        %v1765 = vld [vmem:[%s224 + $0xeb0] sm:$0xff]
        %v1766 = vld [vmem:[%s224 + $0xeb8] sm:$0xff]
        %v1767 = vld [vmem:[%s224 + $0xec0] sm:$0xff]
        %v1768 = vld [vmem:[%s224 + $0xec8] sm:$0xff]
        %v1769 = vld [vmem:[%s224 + $0xed0] sm:$0xff]
        %v1770 = vld [vmem:[%s224 + $0xed8] sm:$0xff]
        %v1771 = vld [vmem:[%s224 + $0xee0] sm:$0xff]
        %v1772 = vld [vmem:[%s224 + $0xee8] sm:$0xff]
        %v1773 = vld [vmem:[%s224 + $0xef0] sm:$0xff]
        %v1774 = vld [vmem:[%s224 + $0xef8] sm:$0xff]
        %v1775 = vld [vmem:[%s224 + $0xf00] sm:$0xff]
        %v1776 = vld [vmem:[%s224 + $0xf08] sm:$0xff]
        %v1777 = vld [vmem:[%s224 + $0xf10] sm:$0xff]
        %v1778 = vld [vmem:[%s224 + $0xf18] sm:$0xff]
        %v1779 = vld [vmem:[%s224 + $0xf20] sm:$0xff]
        %v1780 = vld [vmem:[%s224 + $0xf28] sm:$0xff]
        %v1781 = vld [vmem:[%s224 + $0xf30] sm:$0xff]
        %v1782 = vld [vmem:[%s224 + $0xf38] sm:$0xff]
        %v1783 = vld [vmem:[%s224 + $0xf40] sm:$0xff]
        %v1784 = vld [vmem:[%s224 + $0xf48] sm:$0xff]
        %v1785 = vld [vmem:[%s224 + $0xf50] sm:$0xff]
        %v1786 = vld [vmem:[%s224 + $0xf58] sm:$0xff]
        %v1787 = vld [vmem:[%s224 + $0xf60] sm:$0xff]
        %v1788 = vld [vmem:[%s224 + $0xf68] sm:$0xff]
        %v1789 = vld [vmem:[%s224 + $0xf70] sm:$0xff]
        %v1790 = vld [vmem:[%s224 + $0xf78] sm:$0xff]
        %v1791 = vld [vmem:[%s224 + $0xf80] sm:$0xff]
        %v1792 = vld [vmem:[%s224 + $0xf88] sm:$0xff]
        %v1793 = vld [vmem:[%s224 + $0xf90] sm:$0xff]
        %v1794 = vld [vmem:[%s224 + $0xf98] sm:$0xff]
        %v1795 = vld [vmem:[%s224 + $0xfa0] sm:$0xff]
        %v1796 = vld [vmem:[%s224 + $0xfa8] sm:$0xff]
        %v1797 = vld [vmem:[%s224 + $0xfb0] sm:$0xff]
        %v1798 = vld [vmem:[%s224 + $0xfb8] sm:$0xff]
        %v1799 = vld [vmem:[%s224 + $0xfc0] sm:$0xff]
        %v1800 = vld [vmem:[%s224 + $0xfc8] sm:$0xff]
        %v1801 = vld [vmem:[%s224 + $0xfd0] sm:$0xff]
        %v1802 = vld [vmem:[%s224 + $0xfd8] sm:$0xff]
        %v1803 = vld [vmem:[%s224 + $0xfe0] sm:$0xff]
        %v1804 = vld [vmem:[%s224 + $0xfe8] sm:$0xff]
        %v1805 = vld [vmem:[%s224 + $0xff0] sm:$0xff]
        %v1806 = vld [vmem:[%s224 + $0xff8] sm:$0xff]
        %v1807 = vsub.f32 %v783, %v1295
        %v1808 = vsub.f32 %v784, %v1296
        %v1809 = vsub.f32 %v785, %v1297
        %v1810 = vsub.f32 %v786, %v1298
        %v1811 = vsub.f32 %v787, %v1299
        %v1812 = vsub.f32 %v788, %v1300
        %v1813 = vsub.f32 %v789, %v1301
        %v1814 = vsub.f32 %v790, %v1302
        %v1815 = vsub.f32 %v791, %v1303
        %v1816 = vsub.f32 %v792, %v1304
        %v1817 = vsub.f32 %v793, %v1305
        %v1818 = vsub.f32 %v794, %v1306
        %v1819 = vsub.f32 %v795, %v1307
        %v1820 = vsub.f32 %v796, %v1308
        %v1821 = vsub.f32 %v797, %v1309
        %v1822 = vsub.f32 %v798, %v1310
        %v1823 = vsub.f32 %v799, %v1311
        %v1824 = vsub.f32 %v800, %v1312
        %v1825 = vsub.f32 %v801, %v1313
        %v1826 = vsub.f32 %v802, %v1314
        %v1827 = vsub.f32 %v803, %v1315
        %v1828 = vsub.f32 %v804, %v1316
        %v1829 = vsub.f32 %v805, %v1317
        %v1830 = vsub.f32 %v806, %v1318
        %v1831 = vsub.f32 %v807, %v1319
        %v1832 = vsub.f32 %v808, %v1320
        %v1833 = vsub.f32 %v809, %v1321
        %v1834 = vsub.f32 %v810, %v1322
        %v1835 = vsub.f32 %v811, %v1323
        %v1836 = vsub.f32 %v812, %v1324
        %v1837 = vsub.f32 %v813, %v1325
        %v1838 = vsub.f32 %v814, %v1326
        %v1839 = vsub.f32 %v815, %v1327
        %v1840 = vsub.f32 %v816, %v1328
        %v1841 = vsub.f32 %v817, %v1329
        %v1842 = vsub.f32 %v818, %v1330
        %v1843 = vsub.f32 %v819, %v1331
        %v1844 = vsub.f32 %v820, %v1332
        %v1845 = vsub.f32 %v821, %v1333
        %v1846 = vsub.f32 %v822, %v1334
        %v1847 = vsub.f32 %v823, %v1335
        %v1848 = vsub.f32 %v824, %v1336
        %v1849 = vsub.f32 %v825, %v1337
        %v1850 = vsub.f32 %v826, %v1338
        %v1851 = vsub.f32 %v827, %v1339
        %v1852 = vsub.f32 %v828, %v1340
        %v1853 = vsub.f32 %v829, %v1341
        %v1854 = vsub.f32 %v830, %v1342
        %v1855 = vsub.f32 %v831, %v1343
        %v1856 = vsub.f32 %v832, %v1344
        %v1857 = vsub.f32 %v833, %v1345
        %v1858 = vsub.f32 %v834, %v1346
        %v1859 = vsub.f32 %v835, %v1347
        %v1860 = vsub.f32 %v836, %v1348
        %v1861 = vsub.f32 %v837, %v1349
        %v1862 = vsub.f32 %v838, %v1350
        %v1863 = vsub.f32 %v839, %v1351
        %v1864 = vsub.f32 %v840, %v1352
        %v1865 = vsub.f32 %v841, %v1353
        %v1866 = vsub.f32 %v842, %v1354
        %v1867 = vsub.f32 %v843, %v1355
        %v1868 = vsub.f32 %v844, %v1356
        %v1869 = vsub.f32 %v845, %v1357
        %v1870 = vsub.f32 %v846, %v1358
        %v1871 = vsub.f32 %v847, %v1359
        %v1872 = vsub.f32 %v848, %v1360
        %v1873 = vsub.f32 %v849, %v1361
        %v1874 = vsub.f32 %v850, %v1362
        %v1875 = vsub.f32 %v851, %v1363
        %v1876 = vsub.f32 %v852, %v1364
        %v1877 = vsub.f32 %v853, %v1365
        %v1878 = vsub.f32 %v854, %v1366
        %v1879 = vsub.f32 %v855, %v1367
        %v1880 = vsub.f32 %v856, %v1368
        %v1881 = vsub.f32 %v857, %v1369
        %v1882 = vsub.f32 %v858, %v1370
        %v1883 = vsub.f32 %v859, %v1371
        %v1884 = vsub.f32 %v860, %v1372
        %v1885 = vsub.f32 %v861, %v1373
        %v1886 = vsub.f32 %v862, %v1374
        %v1887 = vsub.f32 %v863, %v1375
        %v1888 = vsub.f32 %v864, %v1376
        %v1889 = vsub.f32 %v865, %v1377
        %v1890 = vsub.f32 %v866, %v1378
        %v1891 = vsub.f32 %v867, %v1379
        %v1892 = vsub.f32 %v868, %v1380
        %v1893 = vsub.f32 %v869, %v1381
        %v1894 = vsub.f32 %v870, %v1382
        %v1895 = vsub.f32 %v871, %v1383
        %v1896 = vsub.f32 %v872, %v1384
        %v1897 = vsub.f32 %v873, %v1385
        %v1898 = vsub.f32 %v874, %v1386
        %v1899 = vsub.f32 %v875, %v1387
        %v1900 = vsub.f32 %v876, %v1388
        %v1901 = vsub.f32 %v877, %v1389
        %v1902 = vsub.f32 %v878, %v1390
        %v1903 = vsub.f32 %v879, %v1391
        %v1904 = vsub.f32 %v880, %v1392
        %v1905 = vsub.f32 %v881, %v1393
        %v1906 = vsub.f32 %v882, %v1394
        %v1907 = vsub.f32 %v883, %v1395
        %v1908 = vsub.f32 %v884, %v1396
        %v1909 = vsub.f32 %v885, %v1397
        %v1910 = vsub.f32 %v886, %v1398
        %v1911 = vsub.f32 %v887, %v1399
        %v1912 = vsub.f32 %v888, %v1400
        %v1913 = vsub.f32 %v889, %v1401
        %v1914 = vsub.f32 %v890, %v1402
        %v1915 = vsub.f32 %v891, %v1403
        %v1916 = vsub.f32 %v892, %v1404
        %v1917 = vsub.f32 %v893, %v1405
        %v1918 = vsub.f32 %v894, %v1406
        %v1919 = vsub.f32 %v895, %v1407
        %v1920 = vsub.f32 %v896, %v1408
        %v1921 = vsub.f32 %v897, %v1409
        %v1922 = vsub.f32 %v898, %v1410
        %v1923 = vsub.f32 %v899, %v1411
        %v1924 = vsub.f32 %v900, %v1412
        %v1925 = vsub.f32 %v901, %v1413
        %v1926 = vsub.f32 %v902, %v1414
        %v1927 = vsub.f32 %v903, %v1415
        %v1928 = vsub.f32 %v904, %v1416
        %v1929 = vsub.f32 %v905, %v1417
        %v1930 = vsub.f32 %v906, %v1418
        %v1931 = vsub.f32 %v907, %v1419
        %v1932 = vsub.f32 %v908, %v1420
        %v1933 = vsub.f32 %v909, %v1421
        %v1934 = vsub.f32 %v910, %v1422
        %v1935 = vsub.f32 %v911, %v1423
        %v1936 = vsub.f32 %v912, %v1424
        %v1937 = vsub.f32 %v913, %v1425
        %v1938 = vsub.f32 %v914, %v1426
        %v1939 = vsub.f32 %v915, %v1427
        %v1940 = vsub.f32 %v916, %v1428
        %v1941 = vsub.f32 %v917, %v1429
        %v1942 = vsub.f32 %v918, %v1430
        %v1943 = vsub.f32 %v919, %v1431
        %v1944 = vsub.f32 %v920, %v1432
        %v1945 = vsub.f32 %v921, %v1433
        %v1946 = vsub.f32 %v922, %v1434
        %v1947 = vsub.f32 %v923, %v1435
        %v1948 = vsub.f32 %v924, %v1436
        %v1949 = vsub.f32 %v925, %v1437
        %v1950 = vsub.f32 %v926, %v1438
        %v1951 = vsub.f32 %v927, %v1439
        %v1952 = vsub.f32 %v928, %v1440
        %v1953 = vsub.f32 %v929, %v1441
        %v1954 = vsub.f32 %v930, %v1442
        %v1955 = vsub.f32 %v931, %v1443
        %v1956 = vsub.f32 %v932, %v1444
        %v1957 = vsub.f32 %v933, %v1445
        %v1958 = vsub.f32 %v934, %v1446
        %v1959 = vsub.f32 %v935, %v1447
        %v1960 = vsub.f32 %v936, %v1448
        %v1961 = vsub.f32 %v937, %v1449
        %v1962 = vsub.f32 %v938, %v1450
        %v1963 = vsub.f32 %v939, %v1451
        %v1964 = vsub.f32 %v940, %v1452
        %v1965 = vsub.f32 %v941, %v1453
        %v1966 = vsub.f32 %v942, %v1454
        %v1967 = vsub.f32 %v943, %v1455
        %v1968 = vsub.f32 %v944, %v1456
        %v1969 = vsub.f32 %v945, %v1457
        %v1970 = vsub.f32 %v946, %v1458
        %v1971 = vsub.f32 %v947, %v1459
        %v1972 = vsub.f32 %v948, %v1460
        %v1973 = vsub.f32 %v949, %v1461
        %v1974 = vsub.f32 %v950, %v1462
        %v1975 = vsub.f32 %v951, %v1463
        %v1976 = vsub.f32 %v952, %v1464
        %v1977 = vsub.f32 %v953, %v1465
        %v1978 = vsub.f32 %v954, %v1466
        %v1979 = vsub.f32 %v955, %v1467
        %v1980 = vsub.f32 %v956, %v1468
        %v1981 = vsub.f32 %v957, %v1469
        %v1982 = vsub.f32 %v958, %v1470
        %v1983 = vsub.f32 %v959, %v1471
        %v1984 = vsub.f32 %v960, %v1472
        %v1985 = vsub.f32 %v961, %v1473
        %v1986 = vsub.f32 %v962, %v1474
        %v1987 = vsub.f32 %v963, %v1475
        %v1988 = vsub.f32 %v964, %v1476
        %v1989 = vsub.f32 %v965, %v1477
        %v1990 = vsub.f32 %v966, %v1478
        %v1991 = vsub.f32 %v967, %v1479
        %v1992 = vsub.f32 %v968, %v1480
        %v1993 = vsub.f32 %v969, %v1481
        %v1994 = vsub.f32 %v970, %v1482
        %v1995 = vsub.f32 %v971, %v1483
        %v1996 = vsub.f32 %v972, %v1484
        %v1997 = vsub.f32 %v973, %v1485
        %v1998 = vsub.f32 %v974, %v1486
        %v1999 = vsub.f32 %v975, %v1487
        %v2000 = vsub.f32 %v976, %v1488
        %v2001 = vsub.f32 %v977, %v1489
        %v2002 = vsub.f32 %v978, %v1490
        %v2003 = vsub.f32 %v979, %v1491
        %v2004 = vsub.f32 %v980, %v1492
        %v2005 = vsub.f32 %v981, %v1493
        %v2006 = vsub.f32 %v982, %v1494
        %v2007 = vsub.f32 %v983, %v1495
        %v2008 = vsub.f32 %v984, %v1496
        %v2009 = vsub.f32 %v985, %v1497
        %v2010 = vsub.f32 %v986, %v1498
        %v2011 = vsub.f32 %v987, %v1499
        %v2012 = vsub.f32 %v988, %v1500
        %v2013 = vsub.f32 %v989, %v1501
        %v2014 = vsub.f32 %v990, %v1502
        %v2015 = vsub.f32 %v991, %v1503
        %v2016 = vsub.f32 %v992, %v1504
        %v2017 = vsub.f32 %v993, %v1505
        %v2018 = vsub.f32 %v994, %v1506
        %v2019 = vsub.f32 %v995, %v1507
        %v2020 = vsub.f32 %v996, %v1508
        %v2021 = vsub.f32 %v997, %v1509
        %v2022 = vsub.f32 %v998, %v1510
        %v2023 = vsub.f32 %v999, %v1511
        %v2024 = vsub.f32 %v1000, %v1512
        %v2025 = vsub.f32 %v1001, %v1513
        %v2026 = vsub.f32 %v1002, %v1514
        %v2027 = vsub.f32 %v1003, %v1515
        %v2028 = vsub.f32 %v1004, %v1516
        %v2029 = vsub.f32 %v1005, %v1517
        %v2030 = vsub.f32 %v1006, %v1518
        %v2031 = vsub.f32 %v1007, %v1519
        %v2032 = vsub.f32 %v1008, %v1520
        %v2033 = vsub.f32 %v1009, %v1521
        %v2034 = vsub.f32 %v1010, %v1522
        %v2035 = vsub.f32 %v1011, %v1523
        %v2036 = vsub.f32 %v1012, %v1524
        %v2037 = vsub.f32 %v1013, %v1525
        %v2038 = vsub.f32 %v1014, %v1526
        %v2039 = vsub.f32 %v1015, %v1527
        %v2040 = vsub.f32 %v1016, %v1528
        %v2041 = vsub.f32 %v1017, %v1529
        %v2042 = vsub.f32 %v1018, %v1530
        %v2043 = vsub.f32 %v1019, %v1531
        %v2044 = vsub.f32 %v1020, %v1532
        %v2045 = vsub.f32 %v1021, %v1533
        %v2046 = vsub.f32 %v1022, %v1534
        %v2047 = vsub.f32 %v1023, %v1535
        %v2048 = vsub.f32 %v1024, %v1536
        %v2049 = vsub.f32 %v1025, %v1537
        %v2050 = vsub.f32 %v1026, %v1538
        %v2051 = vsub.f32 %v1027, %v1539
        %v2052 = vsub.f32 %v1028, %v1540
        %v2053 = vsub.f32 %v1029, %v1541
        %v2054 = vsub.f32 %v1030, %v1542
        %v2055 = vsub.f32 %v1031, %v1543
        %v2056 = vsub.f32 %v1032, %v1544
        %v2057 = vsub.f32 %v1033, %v1545
        %v2058 = vsub.f32 %v1034, %v1546
        %v2059 = vsub.f32 %v1035, %v1547
        %v2060 = vsub.f32 %v1036, %v1548
        %v2061 = vsub.f32 %v1037, %v1549
        %v2062 = vsub.f32 %v1038, %v1550
        %v2063 = vsub.f32 %v1039, %v1551
        %v2064 = vsub.f32 %v1040, %v1552
        %v2065 = vsub.f32 %v1041, %v1553
        %v2066 = vsub.f32 %v1042, %v1554
        %v2067 = vsub.f32 %v1043, %v1555
        %v2068 = vsub.f32 %v1044, %v1556
        %v2069 = vsub.f32 %v1045, %v1557
        %v2070 = vsub.f32 %v1046, %v1558
        %v2071 = vsub.f32 %v1047, %v1559
        %v2072 = vsub.f32 %v1048, %v1560
        %v2073 = vsub.f32 %v1049, %v1561
        %v2074 = vsub.f32 %v1050, %v1562
        %v2075 = vsub.f32 %v1051, %v1563
        %v2076 = vsub.f32 %v1052, %v1564
        %v2077 = vsub.f32 %v1053, %v1565
        %v2078 = vsub.f32 %v1054, %v1566
        %v2079 = vsub.f32 %v1055, %v1567
        %v2080 = vsub.f32 %v1056, %v1568
        %v2081 = vsub.f32 %v1057, %v1569
        %v2082 = vsub.f32 %v1058, %v1570
        %v2083 = vsub.f32 %v1059, %v1571
        %v2084 = vsub.f32 %v1060, %v1572
        %v2085 = vsub.f32 %v1061, %v1573
        %v2086 = vsub.f32 %v1062, %v1574
        %v2087 = vsub.f32 %v1063, %v1575
        %v2088 = vsub.f32 %v1064, %v1576
        %v2089 = vsub.f32 %v1065, %v1577
        %v2090 = vsub.f32 %v1066, %v1578
        %v2091 = vsub.f32 %v1067, %v1579
        %v2092 = vsub.f32 %v1068, %v1580
        %v2093 = vsub.f32 %v1069, %v1581
        %v2094 = vsub.f32 %v1070, %v1582
        %v2095 = vsub.f32 %v1071, %v1583
        %v2096 = vsub.f32 %v1072, %v1584
        %v2097 = vsub.f32 %v1073, %v1585
        %v2098 = vsub.f32 %v1074, %v1586
        %v2099 = vsub.f32 %v1075, %v1587
        %v2100 = vsub.f32 %v1076, %v1588
        %v2101 = vsub.f32 %v1077, %v1589
        %v2102 = vsub.f32 %v1078, %v1590
        %v2103 = vsub.f32 %v1079, %v1591
        %v2104 = vsub.f32 %v1080, %v1592
        %v2105 = vsub.f32 %v1081, %v1593
        %v2106 = vsub.f32 %v1082, %v1594
        %v2107 = vsub.f32 %v1083, %v1595
        %v2108 = vsub.f32 %v1084, %v1596
        %v2109 = vsub.f32 %v1085, %v1597
        %v2110 = vsub.f32 %v1086, %v1598
        %v2111 = vsub.f32 %v1087, %v1599
        %v2112 = vsub.f32 %v1088, %v1600
        %v2113 = vsub.f32 %v1089, %v1601
        %v2114 = vsub.f32 %v1090, %v1602
        %v2115 = vsub.f32 %v1091, %v1603
        %v2116 = vsub.f32 %v1092, %v1604
        %v2117 = vsub.f32 %v1093, %v1605
        %v2118 = vsub.f32 %v1094, %v1606
        %v2119 = vsub.f32 %v1095, %v1607
        %v2120 = vsub.f32 %v1096, %v1608
        %v2121 = vsub.f32 %v1097, %v1609
        %v2122 = vsub.f32 %v1098, %v1610
        %v2123 = vsub.f32 %v1099, %v1611
        %v2124 = vsub.f32 %v1100, %v1612
        %v2125 = vsub.f32 %v1101, %v1613
        %v2126 = vsub.f32 %v1102, %v1614
        %v2127 = vsub.f32 %v1103, %v1615
        %v2128 = vsub.f32 %v1104, %v1616
        %v2129 = vsub.f32 %v1105, %v1617
        %v2130 = vsub.f32 %v1106, %v1618
        %v2131 = vsub.f32 %v1107, %v1619
        %v2132 = vsub.f32 %v1108, %v1620
        %v2133 = vsub.f32 %v1109, %v1621
        %v2134 = vsub.f32 %v1110, %v1622
        %v2135 = vsub.f32 %v1111, %v1623
        %v2136 = vsub.f32 %v1112, %v1624
        %v2137 = vsub.f32 %v1113, %v1625
        %v2138 = vsub.f32 %v1114, %v1626
        %v2139 = vsub.f32 %v1115, %v1627
        %v2140 = vsub.f32 %v1116, %v1628
        %v2141 = vsub.f32 %v1117, %v1629
        %v2142 = vsub.f32 %v1118, %v1630
        %v2143 = vsub.f32 %v1119, %v1631
        %v2144 = vsub.f32 %v1120, %v1632
        %v2145 = vsub.f32 %v1121, %v1633
        %v2146 = vsub.f32 %v1122, %v1634
        %v2147 = vsub.f32 %v1123, %v1635
        %v2148 = vsub.f32 %v1124, %v1636
        %v2149 = vsub.f32 %v1125, %v1637
        %v2150 = vsub.f32 %v1126, %v1638
        %v2151 = vsub.f32 %v1127, %v1639
        %v2152 = vsub.f32 %v1128, %v1640
        %v2153 = vsub.f32 %v1129, %v1641
        %v2154 = vsub.f32 %v1130, %v1642
        %v2155 = vsub.f32 %v1131, %v1643
        %v2156 = vsub.f32 %v1132, %v1644
        %v2157 = vsub.f32 %v1133, %v1645
        %v2158 = vsub.f32 %v1134, %v1646
        %v2159 = vsub.f32 %v1135, %v1647
        %v2160 = vsub.f32 %v1136, %v1648
        %v2161 = vsub.f32 %v1137, %v1649
        %v2162 = vsub.f32 %v1138, %v1650
        %v2163 = vsub.f32 %v1139, %v1651
        %v2164 = vsub.f32 %v1140, %v1652
        %v2165 = vsub.f32 %v1141, %v1653
        %v2166 = vsub.f32 %v1142, %v1654
        %v2167 = vsub.f32 %v1143, %v1655
        %v2168 = vsub.f32 %v1144, %v1656
        %v2169 = vsub.f32 %v1145, %v1657
        %v2170 = vsub.f32 %v1146, %v1658
        %v2171 = vsub.f32 %v1147, %v1659
        %v2172 = vsub.f32 %v1148, %v1660
        %v2173 = vsub.f32 %v1149, %v1661
        %v2174 = vsub.f32 %v1150, %v1662
        %v2175 = vsub.f32 %v1151, %v1663
        %v2176 = vsub.f32 %v1152, %v1664
        %v2177 = vsub.f32 %v1153, %v1665
        %v2178 = vsub.f32 %v1154, %v1666
        %v2179 = vsub.f32 %v1155, %v1667
        %v2180 = vsub.f32 %v1156, %v1668
        %v2181 = vsub.f32 %v1157, %v1669
        %v2182 = vsub.f32 %v1158, %v1670
        %v2183 = vsub.f32 %v1159, %v1671
        %v2184 = vsub.f32 %v1160, %v1672
        %v2185 = vsub.f32 %v1161, %v1673
        %v2186 = vsub.f32 %v1162, %v1674
        %v2187 = vsub.f32 %v1163, %v1675
        %v2188 = vsub.f32 %v1164, %v1676
        %v2189 = vsub.f32 %v1165, %v1677
        %v2190 = vsub.f32 %v1166, %v1678
        %v2191 = vsub.f32 %v1167, %v1679
        %v2192 = vsub.f32 %v1168, %v1680
        %v2193 = vsub.f32 %v1169, %v1681
        %v2194 = vsub.f32 %v1170, %v1682
        %v2195 = vsub.f32 %v1171, %v1683
        %v2196 = vsub.f32 %v1172, %v1684
        %v2197 = vsub.f32 %v1173, %v1685
        %v2198 = vsub.f32 %v1174, %v1686
        %v2199 = vsub.f32 %v1175, %v1687
        %v2200 = vsub.f32 %v1176, %v1688
        %v2201 = vsub.f32 %v1177, %v1689
        %v2202 = vsub.f32 %v1178, %v1690
        %v2203 = vsub.f32 %v1179, %v1691
        %v2204 = vsub.f32 %v1180, %v1692
        %v2205 = vsub.f32 %v1181, %v1693
        %v2206 = vsub.f32 %v1182, %v1694
        %v2207 = vsub.f32 %v1183, %v1695
        %v2208 = vsub.f32 %v1184, %v1696
        %v2209 = vsub.f32 %v1185, %v1697
        %v2210 = vsub.f32 %v1186, %v1698
        %v2211 = vsub.f32 %v1187, %v1699
        %v2212 = vsub.f32 %v1188, %v1700
        %v2213 = vsub.f32 %v1189, %v1701
        %v2214 = vsub.f32 %v1190, %v1702
        %v2215 = vsub.f32 %v1191, %v1703
        %v2216 = vsub.f32 %v1192, %v1704
        %v2217 = vsub.f32 %v1193, %v1705
        %v2218 = vsub.f32 %v1194, %v1706
        %v2219 = vsub.f32 %v1195, %v1707
        %v2220 = vsub.f32 %v1196, %v1708
        %v2221 = vsub.f32 %v1197, %v1709
        %v2222 = vsub.f32 %v1198, %v1710
        %v2223 = vsub.f32 %v1199, %v1711
        %v2224 = vsub.f32 %v1200, %v1712
        %v2225 = vsub.f32 %v1201, %v1713
        %v2226 = vsub.f32 %v1202, %v1714
        %v2227 = vsub.f32 %v1203, %v1715
        %v2228 = vsub.f32 %v1204, %v1716
        %v2229 = vsub.f32 %v1205, %v1717
        %v2230 = vsub.f32 %v1206, %v1718
        %v2231 = vsub.f32 %v1207, %v1719
        %v2232 = vsub.f32 %v1208, %v1720
        %v2233 = vsub.f32 %v1209, %v1721
        %v2234 = vsub.f32 %v1210, %v1722
        %v2235 = vsub.f32 %v1211, %v1723
        %v2236 = vsub.f32 %v1212, %v1724
        %v2237 = vsub.f32 %v1213, %v1725
        %v2238 = vsub.f32 %v1214, %v1726
        %v2239 = vsub.f32 %v1215, %v1727
        %v2240 = vsub.f32 %v1216, %v1728
        %v2241 = vsub.f32 %v1217, %v1729
        %v2242 = vsub.f32 %v1218, %v1730
        %v2243 = vsub.f32 %v1219, %v1731
        %v2244 = vsub.f32 %v1220, %v1732
        %v2245 = vsub.f32 %v1221, %v1733
        %v2246 = vsub.f32 %v1222, %v1734
        %v2247 = vsub.f32 %v1223, %v1735
        %v2248 = vsub.f32 %v1224, %v1736
        %v2249 = vsub.f32 %v1225, %v1737
        %v2250 = vsub.f32 %v1226, %v1738
        %v2251 = vsub.f32 %v1227, %v1739
        %v2252 = vsub.f32 %v1228, %v1740
        %v2253 = vsub.f32 %v1229, %v1741
        %v2254 = vsub.f32 %v1230, %v1742
        %v2255 = vsub.f32 %v1231, %v1743
        %v2256 = vsub.f32 %v1232, %v1744
        %v2257 = vsub.f32 %v1233, %v1745
        %v2258 = vsub.f32 %v1234, %v1746
        %v2259 = vsub.f32 %v1235, %v1747
        %v2260 = vsub.f32 %v1236, %v1748
        %v2261 = vsub.f32 %v1237, %v1749
        %v2262 = vsub.f32 %v1238, %v1750
        %v2263 = vsub.f32 %v1239, %v1751
        %v2264 = vsub.f32 %v1240, %v1752
        %v2265 = vsub.f32 %v1241, %v1753
        %v2266 = vsub.f32 %v1242, %v1754
        %v2267 = vsub.f32 %v1243, %v1755
        %v2268 = vsub.f32 %v1244, %v1756
        %v2269 = vsub.f32 %v1245, %v1757
        %v2270 = vsub.f32 %v1246, %v1758
        %v2271 = vsub.f32 %v1247, %v1759
        %v2272 = vsub.f32 %v1248, %v1760
        %v2273 = vsub.f32 %v1249, %v1761
        %v2274 = vsub.f32 %v1250, %v1762
        %v2275 = vsub.f32 %v1251, %v1763
        %v2276 = vsub.f32 %v1252, %v1764
        %v2277 = vsub.f32 %v1253, %v1765
        %v2278 = vsub.f32 %v1254, %v1766
        %v2279 = vsub.f32 %v1255, %v1767
        %v2280 = vsub.f32 %v1256, %v1768
        %v2281 = vsub.f32 %v1257, %v1769
        %v2282 = vsub.f32 %v1258, %v1770
        %v2283 = vsub.f32 %v1259, %v1771
        %v2284 = vsub.f32 %v1260, %v1772
        %v2285 = vsub.f32 %v1261, %v1773
        %v2286 = vsub.f32 %v1262, %v1774
        %v2287 = vsub.f32 %v1263, %v1775
        %v2288 = vsub.f32 %v1264, %v1776
        %v2289 = vsub.f32 %v1265, %v1777
        %v2290 = vsub.f32 %v1266, %v1778
        %v2291 = vsub.f32 %v1267, %v1779
        %v2292 = vsub.f32 %v1268, %v1780
        %v2293 = vsub.f32 %v1269, %v1781
        %v2294 = vsub.f32 %v1270, %v1782
        %v2295 = vsub.f32 %v1271, %v1783
        %v2296 = vsub.f32 %v1272, %v1784
        %v2297 = vsub.f32 %v1273, %v1785
        %v2298 = vsub.f32 %v1274, %v1786
        %v2299 = vsub.f32 %v1275, %v1787
        %v2300 = vsub.f32 %v1276, %v1788
        %v2301 = vsub.f32 %v1277, %v1789
        %v2302 = vsub.f32 %v1278, %v1790
        %v2303 = vsub.f32 %v1279, %v1791
        %v2304 = vsub.f32 %v1280, %v1792
        %v2305 = vsub.f32 %v1281, %v1793
        %v2306 = vsub.f32 %v1282, %v1794
        %v2307 = vsub.f32 %v1283, %v1795
        %v2308 = vsub.f32 %v1284, %v1796
        %v2309 = vsub.f32 %v1285, %v1797
        %v2310 = vsub.f32 %v1286, %v1798
        %v2311 = vsub.f32 %v1287, %v1799
        %v2312 = vsub.f32 %v1288, %v1800
        %v2313 = vsub.f32 %v1289, %v1801
        %v2314 = vsub.f32 %v1290, %v1802
        %v2315 = vsub.f32 %v1291, %v1803
        %v2316 = vsub.f32 %v1292, %v1804
        %v2317 = vsub.f32 %v1293, %v1805
        %v2318 = vsub.f32 %v1294, %v1806
        %v2319 = vand.u32 2147483647, %v1807
        %v2320 = vand.u32 2147483647, %v1808
        %v2321 = vand.u32 2147483647, %v1809
        %v2322 = vand.u32 2147483647, %v1810
        %v2323 = vand.u32 2147483647, %v1811
        %v2324 = vand.u32 2147483647, %v1812
        %v2325 = vand.u32 2147483647, %v1813
        %v2326 = vand.u32 2147483647, %v1814
        %v2327 = vand.u32 2147483647, %v1815
        %v2328 = vand.u32 2147483647, %v1816
        %v2329 = vand.u32 2147483647, %v1817
        %v2330 = vand.u32 2147483647, %v1818
        %v2331 = vand.u32 2147483647, %v1819
        %v2332 = vand.u32 2147483647, %v1820
        %v2333 = vand.u32 2147483647, %v1821
        %v2334 = vand.u32 2147483647, %v1822
        %v2335 = vand.u32 2147483647, %v1823
        %v2336 = vand.u32 2147483647, %v1824
        %v2337 = vand.u32 2147483647, %v1825
        %v2338 = vand.u32 2147483647, %v1826
        %v2339 = vand.u32 2147483647, %v1827
        %v2340 = vand.u32 2147483647, %v1828
        %v2341 = vand.u32 2147483647, %v1829
        %v2342 = vand.u32 2147483647, %v1830
        %v2343 = vand.u32 2147483647, %v1831
        %v2344 = vand.u32 2147483647, %v1832
        %v2345 = vand.u32 2147483647, %v1833
        %v2346 = vand.u32 2147483647, %v1834
        %v2347 = vand.u32 2147483647, %v1835
        %v2348 = vand.u32 2147483647, %v1836
        %v2349 = vand.u32 2147483647, %v1837
        %v2350 = vand.u32 2147483647, %v1838
        %v2351 = vand.u32 2147483647, %v1839
        %v2352 = vand.u32 2147483647, %v1840
        %v2353 = vand.u32 2147483647, %v1841
        %v2354 = vand.u32 2147483647, %v1842
        %v2355 = vand.u32 2147483647, %v1843
        %v2356 = vand.u32 2147483647, %v1844
        %v2357 = vand.u32 2147483647, %v1845
        %v2358 = vand.u32 2147483647, %v1846
        %v2359 = vand.u32 2147483647, %v1847
        %v2360 = vand.u32 2147483647, %v1848
        %v2361 = vand.u32 2147483647, %v1849
        %v2362 = vand.u32 2147483647, %v1850
        %v2363 = vand.u32 2147483647, %v1851
        %v2364 = vand.u32 2147483647, %v1852
        %v2365 = vand.u32 2147483647, %v1853
        %v2366 = vand.u32 2147483647, %v1854
        %v2367 = vand.u32 2147483647, %v1855
        %v2368 = vand.u32 2147483647, %v1856
        %v2369 = vand.u32 2147483647, %v1857
        %v2370 = vand.u32 2147483647, %v1858
        %v2371 = vand.u32 2147483647, %v1859
        %v2372 = vand.u32 2147483647, %v1860
        %v2373 = vand.u32 2147483647, %v1861
        %v2374 = vand.u32 2147483647, %v1862
        %v2375 = vand.u32 2147483647, %v1863
        %v2376 = vand.u32 2147483647, %v1864
        %v2377 = vand.u32 2147483647, %v1865
        %v2378 = vand.u32 2147483647, %v1866
        %v2379 = vand.u32 2147483647, %v1867
        %v2380 = vand.u32 2147483647, %v1868
        %v2381 = vand.u32 2147483647, %v1869
        %v2382 = vand.u32 2147483647, %v1870
        %v2383 = vand.u32 2147483647, %v1871
        %v2384 = vand.u32 2147483647, %v1872
        %v2385 = vand.u32 2147483647, %v1873
        %v2386 = vand.u32 2147483647, %v1874
        %v2387 = vand.u32 2147483647, %v1875
        %v2388 = vand.u32 2147483647, %v1876
        %v2389 = vand.u32 2147483647, %v1877
        %v2390 = vand.u32 2147483647, %v1878
        %v2391 = vand.u32 2147483647, %v1879
        %v2392 = vand.u32 2147483647, %v1880
        %v2393 = vand.u32 2147483647, %v1881
        %v2394 = vand.u32 2147483647, %v1882
        %v2395 = vand.u32 2147483647, %v1883
        %v2396 = vand.u32 2147483647, %v1884
        %v2397 = vand.u32 2147483647, %v1885
        %v2398 = vand.u32 2147483647, %v1886
        %v2399 = vand.u32 2147483647, %v1887
        %v2400 = vand.u32 2147483647, %v1888
        %v2401 = vand.u32 2147483647, %v1889
        %v2402 = vand.u32 2147483647, %v1890
        %v2403 = vand.u32 2147483647, %v1891
        %v2404 = vand.u32 2147483647, %v1892
        %v2405 = vand.u32 2147483647, %v1893
        %v2406 = vand.u32 2147483647, %v1894
        %v2407 = vand.u32 2147483647, %v1895
        %v2408 = vand.u32 2147483647, %v1896
        %v2409 = vand.u32 2147483647, %v1897
        %v2410 = vand.u32 2147483647, %v1898
        %v2411 = vand.u32 2147483647, %v1899
        %v2412 = vand.u32 2147483647, %v1900
        %v2413 = vand.u32 2147483647, %v1901
        %v2414 = vand.u32 2147483647, %v1902
        %v2415 = vand.u32 2147483647, %v1903
        %v2416 = vand.u32 2147483647, %v1904
        %v2417 = vand.u32 2147483647, %v1905
        %v2418 = vand.u32 2147483647, %v1906
        %v2419 = vand.u32 2147483647, %v1907
        %v2420 = vand.u32 2147483647, %v1908
        %v2421 = vand.u32 2147483647, %v1909
        %v2422 = vand.u32 2147483647, %v1910
        %v2423 = vand.u32 2147483647, %v1911
        %v2424 = vand.u32 2147483647, %v1912
        %v2425 = vand.u32 2147483647, %v1913
        %v2426 = vand.u32 2147483647, %v1914
        %v2427 = vand.u32 2147483647, %v1915
        %v2428 = vand.u32 2147483647, %v1916
        %v2429 = vand.u32 2147483647, %v1917
        %v2430 = vand.u32 2147483647, %v1918
        %v2431 = vand.u32 2147483647, %v1919
        %v2432 = vand.u32 2147483647, %v1920
        %v2433 = vand.u32 2147483647, %v1921
        %v2434 = vand.u32 2147483647, %v1922
        %v2435 = vand.u32 2147483647, %v1923
        %v2436 = vand.u32 2147483647, %v1924
        %v2437 = vand.u32 2147483647, %v1925
        %v2438 = vand.u32 2147483647, %v1926
        %v2439 = vand.u32 2147483647, %v1927
        %v2440 = vand.u32 2147483647, %v1928
        %v2441 = vand.u32 2147483647, %v1929
        %v2442 = vand.u32 2147483647, %v1930
        %v2443 = vand.u32 2147483647, %v1931
        %v2444 = vand.u32 2147483647, %v1932
        %v2445 = vand.u32 2147483647, %v1933
        %v2446 = vand.u32 2147483647, %v1934
        %v2447 = vand.u32 2147483647, %v1935
        %v2448 = vand.u32 2147483647, %v1936
        %v2449 = vand.u32 2147483647, %v1937
        %v2450 = vand.u32 2147483647, %v1938
        %v2451 = vand.u32 2147483647, %v1939
        %v2452 = vand.u32 2147483647, %v1940
        %v2453 = vand.u32 2147483647, %v1941
        %v2454 = vand.u32 2147483647, %v1942
        %v2455 = vand.u32 2147483647, %v1943
        %v2456 = vand.u32 2147483647, %v1944
        %v2457 = vand.u32 2147483647, %v1945
        %v2458 = vand.u32 2147483647, %v1946
        %v2459 = vand.u32 2147483647, %v1947
        %v2460 = vand.u32 2147483647, %v1948
        %v2461 = vand.u32 2147483647, %v1949
        %v2462 = vand.u32 2147483647, %v1950
        %v2463 = vand.u32 2147483647, %v1951
        %v2464 = vand.u32 2147483647, %v1952
        %v2465 = vand.u32 2147483647, %v1953
        %v2466 = vand.u32 2147483647, %v1954
        %v2467 = vand.u32 2147483647, %v1955
        %v2468 = vand.u32 2147483647, %v1956
        %v2469 = vand.u32 2147483647, %v1957
        %v2470 = vand.u32 2147483647, %v1958
        %v2471 = vand.u32 2147483647, %v1959
        %v2472 = vand.u32 2147483647, %v1960
        %v2473 = vand.u32 2147483647, %v1961
        %v2474 = vand.u32 2147483647, %v1962
        %v2475 = vand.u32 2147483647, %v1963
        %v2476 = vand.u32 2147483647, %v1964
        %v2477 = vand.u32 2147483647, %v1965
        %v2478 = vand.u32 2147483647, %v1966
        %v2479 = vand.u32 2147483647, %v1967
        %v2480 = vand.u32 2147483647, %v1968
        %v2481 = vand.u32 2147483647, %v1969
        %v2482 = vand.u32 2147483647, %v1970
        %v2483 = vand.u32 2147483647, %v1971
        %v2484 = vand.u32 2147483647, %v1972
        %v2485 = vand.u32 2147483647, %v1973
        %v2486 = vand.u32 2147483647, %v1974
        %v2487 = vand.u32 2147483647, %v1975
        %v2488 = vand.u32 2147483647, %v1976
        %v2489 = vand.u32 2147483647, %v1977
        %v2490 = vand.u32 2147483647, %v1978
        %v2491 = vand.u32 2147483647, %v1979
        %v2492 = vand.u32 2147483647, %v1980
        %v2493 = vand.u32 2147483647, %v1981
        %v2494 = vand.u32 2147483647, %v1982
        %v2495 = vand.u32 2147483647, %v1983
        %v2496 = vand.u32 2147483647, %v1984
        %v2497 = vand.u32 2147483647, %v1985
        %v2498 = vand.u32 2147483647, %v1986
        %v2499 = vand.u32 2147483647, %v1987
        %v2500 = vand.u32 2147483647, %v1988
        %v2501 = vand.u32 2147483647, %v1989
        %v2502 = vand.u32 2147483647, %v1990
        %v2503 = vand.u32 2147483647, %v1991
        %v2504 = vand.u32 2147483647, %v1992
        %v2505 = vand.u32 2147483647, %v1993
        %v2506 = vand.u32 2147483647, %v1994
        %v2507 = vand.u32 2147483647, %v1995
        %v2508 = vand.u32 2147483647, %v1996
        %v2509 = vand.u32 2147483647, %v1997
        %v2510 = vand.u32 2147483647, %v1998
        %v2511 = vand.u32 2147483647, %v1999
        %v2512 = vand.u32 2147483647, %v2000
        %v2513 = vand.u32 2147483647, %v2001
        %v2514 = vand.u32 2147483647, %v2002
        %v2515 = vand.u32 2147483647, %v2003
        %v2516 = vand.u32 2147483647, %v2004
        %v2517 = vand.u32 2147483647, %v2005
        %v2518 = vand.u32 2147483647, %v2006
        %v2519 = vand.u32 2147483647, %v2007
        %v2520 = vand.u32 2147483647, %v2008
        %v2521 = vand.u32 2147483647, %v2009
        %v2522 = vand.u32 2147483647, %v2010
        %v2523 = vand.u32 2147483647, %v2011
        %v2524 = vand.u32 2147483647, %v2012
        %v2525 = vand.u32 2147483647, %v2013
        %v2526 = vand.u32 2147483647, %v2014
        %v2527 = vand.u32 2147483647, %v2015
        %v2528 = vand.u32 2147483647, %v2016
        %v2529 = vand.u32 2147483647, %v2017
        %v2530 = vand.u32 2147483647, %v2018
        %v2531 = vand.u32 2147483647, %v2019
        %v2532 = vand.u32 2147483647, %v2020
        %v2533 = vand.u32 2147483647, %v2021
        %v2534 = vand.u32 2147483647, %v2022
        %v2535 = vand.u32 2147483647, %v2023
        %v2536 = vand.u32 2147483647, %v2024
        %v2537 = vand.u32 2147483647, %v2025
        %v2538 = vand.u32 2147483647, %v2026
        %v2539 = vand.u32 2147483647, %v2027
        %v2540 = vand.u32 2147483647, %v2028
        %v2541 = vand.u32 2147483647, %v2029
        %v2542 = vand.u32 2147483647, %v2030
        %v2543 = vand.u32 2147483647, %v2031
        %v2544 = vand.u32 2147483647, %v2032
        %v2545 = vand.u32 2147483647, %v2033
        %v2546 = vand.u32 2147483647, %v2034
        %v2547 = vand.u32 2147483647, %v2035
        %v2548 = vand.u32 2147483647, %v2036
        %v2549 = vand.u32 2147483647, %v2037
        %v2550 = vand.u32 2147483647, %v2038
        %v2551 = vand.u32 2147483647, %v2039
        %v2552 = vand.u32 2147483647, %v2040
        %v2553 = vand.u32 2147483647, %v2041
        %v2554 = vand.u32 2147483647, %v2042
        %v2555 = vand.u32 2147483647, %v2043
        %v2556 = vand.u32 2147483647, %v2044
        %v2557 = vand.u32 2147483647, %v2045
        %v2558 = vand.u32 2147483647, %v2046
        %v2559 = vand.u32 2147483647, %v2047
        %v2560 = vand.u32 2147483647, %v2048
        %v2561 = vand.u32 2147483647, %v2049
        %v2562 = vand.u32 2147483647, %v2050
        %v2563 = vand.u32 2147483647, %v2051
        %v2564 = vand.u32 2147483647, %v2052
        %v2565 = vand.u32 2147483647, %v2053
        %v2566 = vand.u32 2147483647, %v2054
        %v2567 = vand.u32 2147483647, %v2055
        %v2568 = vand.u32 2147483647, %v2056
        %v2569 = vand.u32 2147483647, %v2057
        %v2570 = vand.u32 2147483647, %v2058
        %v2571 = vand.u32 2147483647, %v2059
        %v2572 = vand.u32 2147483647, %v2060
        %v2573 = vand.u32 2147483647, %v2061
        %v2574 = vand.u32 2147483647, %v2062
        %v2575 = vand.u32 2147483647, %v2063
        %v2576 = vand.u32 2147483647, %v2064
        %v2577 = vand.u32 2147483647, %v2065
        %v2578 = vand.u32 2147483647, %v2066
        %v2579 = vand.u32 2147483647, %v2067
        %v2580 = vand.u32 2147483647, %v2068
        %v2581 = vand.u32 2147483647, %v2069
        %v2582 = vand.u32 2147483647, %v2070
        %v2583 = vand.u32 2147483647, %v2071
        %v2584 = vand.u32 2147483647, %v2072
        %v2585 = vand.u32 2147483647, %v2073
        %v2586 = vand.u32 2147483647, %v2074
        %v2587 = vand.u32 2147483647, %v2075
        %v2588 = vand.u32 2147483647, %v2076
        %v2589 = vand.u32 2147483647, %v2077
        %v2590 = vand.u32 2147483647, %v2078
        %v2591 = vand.u32 2147483647, %v2079
        %v2592 = vand.u32 2147483647, %v2080
        %v2593 = vand.u32 2147483647, %v2081
        %v2594 = vand.u32 2147483647, %v2082
        %v2595 = vand.u32 2147483647, %v2083
        %v2596 = vand.u32 2147483647, %v2084
        %v2597 = vand.u32 2147483647, %v2085
        %v2598 = vand.u32 2147483647, %v2086
        %v2599 = vand.u32 2147483647, %v2087
        %v2600 = vand.u32 2147483647, %v2088
        %v2601 = vand.u32 2147483647, %v2089
        %v2602 = vand.u32 2147483647, %v2090
        %v2603 = vand.u32 2147483647, %v2091
        %v2604 = vand.u32 2147483647, %v2092
        %v2605 = vand.u32 2147483647, %v2093
        %v2606 = vand.u32 2147483647, %v2094
        %v2607 = vand.u32 2147483647, %v2095
        %v2608 = vand.u32 2147483647, %v2096
        %v2609 = vand.u32 2147483647, %v2097
        %v2610 = vand.u32 2147483647, %v2098
        %v2611 = vand.u32 2147483647, %v2099
        %v2612 = vand.u32 2147483647, %v2100
        %v2613 = vand.u32 2147483647, %v2101
        %v2614 = vand.u32 2147483647, %v2102
        %v2615 = vand.u32 2147483647, %v2103
        %v2616 = vand.u32 2147483647, %v2104
        %v2617 = vand.u32 2147483647, %v2105
        %v2618 = vand.u32 2147483647, %v2106
        %v2619 = vand.u32 2147483647, %v2107
        %v2620 = vand.u32 2147483647, %v2108
        %v2621 = vand.u32 2147483647, %v2109
        %v2622 = vand.u32 2147483647, %v2110
        %v2623 = vand.u32 2147483647, %v2111
        %v2624 = vand.u32 2147483647, %v2112
        %v2625 = vand.u32 2147483647, %v2113
        %v2626 = vand.u32 2147483647, %v2114
        %v2627 = vand.u32 2147483647, %v2115
        %v2628 = vand.u32 2147483647, %v2116
        %v2629 = vand.u32 2147483647, %v2117
        %v2630 = vand.u32 2147483647, %v2118
        %v2631 = vand.u32 2147483647, %v2119
        %v2632 = vand.u32 2147483647, %v2120
        %v2633 = vand.u32 2147483647, %v2121
        %v2634 = vand.u32 2147483647, %v2122
        %v2635 = vand.u32 2147483647, %v2123
        %v2636 = vand.u32 2147483647, %v2124
        %v2637 = vand.u32 2147483647, %v2125
        %v2638 = vand.u32 2147483647, %v2126
        %v2639 = vand.u32 2147483647, %v2127
        %v2640 = vand.u32 2147483647, %v2128
        %v2641 = vand.u32 2147483647, %v2129
        %v2642 = vand.u32 2147483647, %v2130
        %v2643 = vand.u32 2147483647, %v2131
        %v2644 = vand.u32 2147483647, %v2132
        %v2645 = vand.u32 2147483647, %v2133
        %v2646 = vand.u32 2147483647, %v2134
        %v2647 = vand.u32 2147483647, %v2135
        %v2648 = vand.u32 2147483647, %v2136
        %v2649 = vand.u32 2147483647, %v2137
        %v2650 = vand.u32 2147483647, %v2138
        %v2651 = vand.u32 2147483647, %v2139
        %v2652 = vand.u32 2147483647, %v2140
        %v2653 = vand.u32 2147483647, %v2141
        %v2654 = vand.u32 2147483647, %v2142
        %v2655 = vand.u32 2147483647, %v2143
        %v2656 = vand.u32 2147483647, %v2144
        %v2657 = vand.u32 2147483647, %v2145
        %v2658 = vand.u32 2147483647, %v2146
        %v2659 = vand.u32 2147483647, %v2147
        %v2660 = vand.u32 2147483647, %v2148
        %v2661 = vand.u32 2147483647, %v2149
        %v2662 = vand.u32 2147483647, %v2150
        %v2663 = vand.u32 2147483647, %v2151
        %v2664 = vand.u32 2147483647, %v2152
        %v2665 = vand.u32 2147483647, %v2153
        %v2666 = vand.u32 2147483647, %v2154
        %v2667 = vand.u32 2147483647, %v2155
        %v2668 = vand.u32 2147483647, %v2156
        %v2669 = vand.u32 2147483647, %v2157
        %v2670 = vand.u32 2147483647, %v2158
        %v2671 = vand.u32 2147483647, %v2159
        %v2672 = vand.u32 2147483647, %v2160
        %v2673 = vand.u32 2147483647, %v2161
        %v2674 = vand.u32 2147483647, %v2162
        %v2675 = vand.u32 2147483647, %v2163
        %v2676 = vand.u32 2147483647, %v2164
        %v2677 = vand.u32 2147483647, %v2165
        %v2678 = vand.u32 2147483647, %v2166
        %v2679 = vand.u32 2147483647, %v2167
        %v2680 = vand.u32 2147483647, %v2168
        %v2681 = vand.u32 2147483647, %v2169
        %v2682 = vand.u32 2147483647, %v2170
        %v2683 = vand.u32 2147483647, %v2171
        %v2684 = vand.u32 2147483647, %v2172
        %v2685 = vand.u32 2147483647, %v2173
        %v2686 = vand.u32 2147483647, %v2174
        %v2687 = vand.u32 2147483647, %v2175
        %v2688 = vand.u32 2147483647, %v2176
        %v2689 = vand.u32 2147483647, %v2177
        %v2690 = vand.u32 2147483647, %v2178
        %v2691 = vand.u32 2147483647, %v2179
        %v2692 = vand.u32 2147483647, %v2180
        %v2693 = vand.u32 2147483647, %v2181
        %v2694 = vand.u32 2147483647, %v2182
        %v2695 = vand.u32 2147483647, %v2183
        %v2696 = vand.u32 2147483647, %v2184
        %v2697 = vand.u32 2147483647, %v2185
        %v2698 = vand.u32 2147483647, %v2186
        %v2699 = vand.u32 2147483647, %v2187
        %v2700 = vand.u32 2147483647, %v2188
        %v2701 = vand.u32 2147483647, %v2189
        %v2702 = vand.u32 2147483647, %v2190
        %v2703 = vand.u32 2147483647, %v2191
        %v2704 = vand.u32 2147483647, %v2192
        %v2705 = vand.u32 2147483647, %v2193
        %v2706 = vand.u32 2147483647, %v2194
        %v2707 = vand.u32 2147483647, %v2195
        %v2708 = vand.u32 2147483647, %v2196
        %v2709 = vand.u32 2147483647, %v2197
        %v2710 = vand.u32 2147483647, %v2198
        %v2711 = vand.u32 2147483647, %v2199
        %v2712 = vand.u32 2147483647, %v2200
        %v2713 = vand.u32 2147483647, %v2201
        %v2714 = vand.u32 2147483647, %v2202
        %v2715 = vand.u32 2147483647, %v2203
        %v2716 = vand.u32 2147483647, %v2204
        %v2717 = vand.u32 2147483647, %v2205
        %v2718 = vand.u32 2147483647, %v2206
        %v2719 = vand.u32 2147483647, %v2207
        %v2720 = vand.u32 2147483647, %v2208
        %v2721 = vand.u32 2147483647, %v2209
        %v2722 = vand.u32 2147483647, %v2210
        %v2723 = vand.u32 2147483647, %v2211
        %v2724 = vand.u32 2147483647, %v2212
        %v2725 = vand.u32 2147483647, %v2213
        %v2726 = vand.u32 2147483647, %v2214
        %v2727 = vand.u32 2147483647, %v2215
        %v2728 = vand.u32 2147483647, %v2216
        %v2729 = vand.u32 2147483647, %v2217
        %v2730 = vand.u32 2147483647, %v2218
        %v2731 = vand.u32 2147483647, %v2219
        %v2732 = vand.u32 2147483647, %v2220
        %v2733 = vand.u32 2147483647, %v2221
        %v2734 = vand.u32 2147483647, %v2222
        %v2735 = vand.u32 2147483647, %v2223
        %v2736 = vand.u32 2147483647, %v2224
        %v2737 = vand.u32 2147483647, %v2225
        %v2738 = vand.u32 2147483647, %v2226
        %v2739 = vand.u32 2147483647, %v2227
        %v2740 = vand.u32 2147483647, %v2228
        %v2741 = vand.u32 2147483647, %v2229
        %v2742 = vand.u32 2147483647, %v2230
        %v2743 = vand.u32 2147483647, %v2231
        %v2744 = vand.u32 2147483647, %v2232
        %v2745 = vand.u32 2147483647, %v2233
        %v2746 = vand.u32 2147483647, %v2234
        %v2747 = vand.u32 2147483647, %v2235
        %v2748 = vand.u32 2147483647, %v2236
        %v2749 = vand.u32 2147483647, %v2237
        %v2750 = vand.u32 2147483647, %v2238
        %v2751 = vand.u32 2147483647, %v2239
        %v2752 = vand.u32 2147483647, %v2240
        %v2753 = vand.u32 2147483647, %v2241
        %v2754 = vand.u32 2147483647, %v2242
        %v2755 = vand.u32 2147483647, %v2243
        %v2756 = vand.u32 2147483647, %v2244
        %v2757 = vand.u32 2147483647, %v2245
        %v2758 = vand.u32 2147483647, %v2246
        %v2759 = vand.u32 2147483647, %v2247
        %v2760 = vand.u32 2147483647, %v2248
        %v2761 = vand.u32 2147483647, %v2249
        %v2762 = vand.u32 2147483647, %v2250
        %v2763 = vand.u32 2147483647, %v2251
        %v2764 = vand.u32 2147483647, %v2252
        %v2765 = vand.u32 2147483647, %v2253
        %v2766 = vand.u32 2147483647, %v2254
        %v2767 = vand.u32 2147483647, %v2255
        %v2768 = vand.u32 2147483647, %v2256
        %v2769 = vand.u32 2147483647, %v2257
        %v2770 = vand.u32 2147483647, %v2258
        %v2771 = vand.u32 2147483647, %v2259
        %v2772 = vand.u32 2147483647, %v2260
        %v2773 = vand.u32 2147483647, %v2261
        %v2774 = vand.u32 2147483647, %v2262
        %v2775 = vand.u32 2147483647, %v2263
        %v2776 = vand.u32 2147483647, %v2264
        %v2777 = vand.u32 2147483647, %v2265
        %v2778 = vand.u32 2147483647, %v2266
        %v2779 = vand.u32 2147483647, %v2267
        %v2780 = vand.u32 2147483647, %v2268
        %v2781 = vand.u32 2147483647, %v2269
        %v2782 = vand.u32 2147483647, %v2270
        %v2783 = vand.u32 2147483647, %v2271
        %v2784 = vand.u32 2147483647, %v2272
        %v2785 = vand.u32 2147483647, %v2273
        %v2786 = vand.u32 2147483647, %v2274
        %v2787 = vand.u32 2147483647, %v2275
        %v2788 = vand.u32 2147483647, %v2276
        %v2789 = vand.u32 2147483647, %v2277
        %v2790 = vand.u32 2147483647, %v2278
        %v2791 = vand.u32 2147483647, %v2279
        %v2792 = vand.u32 2147483647, %v2280
        %v2793 = vand.u32 2147483647, %v2281
        %v2794 = vand.u32 2147483647, %v2282
        %v2795 = vand.u32 2147483647, %v2283
        %v2796 = vand.u32 2147483647, %v2284
        %v2797 = vand.u32 2147483647, %v2285
        %v2798 = vand.u32 2147483647, %v2286
        %v2799 = vand.u32 2147483647, %v2287
        %v2800 = vand.u32 2147483647, %v2288
        %v2801 = vand.u32 2147483647, %v2289
        %v2802 = vand.u32 2147483647, %v2290
        %v2803 = vand.u32 2147483647, %v2291
        %v2804 = vand.u32 2147483647, %v2292
        %v2805 = vand.u32 2147483647, %v2293
        %v2806 = vand.u32 2147483647, %v2294
        %v2807 = vand.u32 2147483647, %v2295
        %v2808 = vand.u32 2147483647, %v2296
        %v2809 = vand.u32 2147483647, %v2297
        %v2810 = vand.u32 2147483647, %v2298
        %v2811 = vand.u32 2147483647, %v2299
        %v2812 = vand.u32 2147483647, %v2300
        %v2813 = vand.u32 2147483647, %v2301
        %v2814 = vand.u32 2147483647, %v2302
        %v2815 = vand.u32 2147483647, %v2303
        %v2816 = vand.u32 2147483647, %v2304
        %v2817 = vand.u32 2147483647, %v2305
        %v2818 = vand.u32 2147483647, %v2306
        %v2819 = vand.u32 2147483647, %v2307
        %v2820 = vand.u32 2147483647, %v2308
        %v2821 = vand.u32 2147483647, %v2309
        %v2822 = vand.u32 2147483647, %v2310
        %v2823 = vand.u32 2147483647, %v2311
        %v2824 = vand.u32 2147483647, %v2312
        %v2825 = vand.u32 2147483647, %v2313
        %v2826 = vand.u32 2147483647, %v2314
        %v2827 = vand.u32 2147483647, %v2315
        %v2828 = vand.u32 2147483647, %v2316
        %v2829 = vand.u32 2147483647, %v2317
        %v2830 = vand.u32 2147483647, %v2318
        %s2831 = smul.u32 %s26, 3
        %s2832 = sadd.s32 %s2831, %s27
        %s2833 = smul.u32 %s2832, 4096
        %v2834 = vlaneseq
        %v2835 = vshrl.u32 %v2834, 7
        %v2836 = vadd.s32 %v2835, 8
        %v2837 = vadd.s32 %v2835, 16
        %v2838 = vadd.s32 %v2835, 24
        %v2839 = vadd.s32 %v2835, 32
        %v2840 = vadd.s32 %v2835, 40
        %v2841 = vadd.s32 %v2835, 48
        %v2842 = vadd.s32 %v2835, 56
        %v2843 = vadd.s32 %v2835, 64
        %v2844 = vadd.s32 %v2835, 72
        %v2845 = vadd.s32 %v2835, 80
        %v2846 = vadd.s32 %v2835, 88
        %v2847 = vadd.s32 %v2835, 96
        %v2848 = vadd.s32 %v2835, 104
        %v2849 = vadd.s32 %v2835, 112
        %v2850 = vadd.s32 %v2835, 120
        %v2851 = vadd.s32 %v2835, 128
        %v2852 = vadd.s32 %v2835, 136
        %v2853 = vadd.s32 %v2835, 144
        %v2854 = vadd.s32 %v2835, 152
        %v2855 = vadd.s32 %v2835, 160
        %v2856 = vadd.s32 %v2835, 168
        %v2857 = vadd.s32 %v2835, 176
        %v2858 = vadd.s32 %v2835, 184
        %v2859 = vadd.s32 %v2835, 192
        %v2860 = vadd.s32 %v2835, 200
        %v2861 = vadd.s32 %v2835, 208
        %v2862 = vadd.s32 %v2835, 216
        %v2863 = vadd.s32 %v2835, 224
        %v2864 = vadd.s32 %v2835, 232
        %v2865 = vadd.s32 %v2835, 240
        %v2866 = vadd.s32 %v2835, 248
        %v2867 = vadd.s32 %v2835, 256
        %v2868 = vadd.s32 %v2835, 264
        %v2869 = vadd.s32 %v2835, 272
        %v2870 = vadd.s32 %v2835, 280
        %v2871 = vadd.s32 %v2835, 288
        %v2872 = vadd.s32 %v2835, 296
        %v2873 = vadd.s32 %v2835, 304
        %v2874 = vadd.s32 %v2835, 312
        %v2875 = vadd.s32 %v2835, 320
        %v2876 = vadd.s32 %v2835, 328
        %v2877 = vadd.s32 %v2835, 336
        %v2878 = vadd.s32 %v2835, 344
        %v2879 = vadd.s32 %v2835, 352
        %v2880 = vadd.s32 %v2835, 360
        %v2881 = vadd.s32 %v2835, 368
        %v2882 = vadd.s32 %v2835, 376
        %v2883 = vadd.s32 %v2835, 384
        %v2884 = vadd.s32 %v2835, 392
        %v2885 = vadd.s32 %v2835, 400
        %v2886 = vadd.s32 %v2835, 408
        %v2887 = vadd.s32 %v2835, 416
        %v2888 = vadd.s32 %v2835, 424
        %v2889 = vadd.s32 %v2835, 432
        %v2890 = vadd.s32 %v2835, 440
        %v2891 = vadd.s32 %v2835, 448
        %v2892 = vadd.s32 %v2835, 456
        %v2893 = vadd.s32 %v2835, 464
        %v2894 = vadd.s32 %v2835, 472
        %v2895 = vadd.s32 %v2835, 480
        %v2896 = vadd.s32 %v2835, 488
        %v2897 = vadd.s32 %v2835, 496
        %v2898 = vadd.s32 %v2835, 504
        %v2899 = vadd.s32 %v2835, 512
        %v2900 = vadd.s32 %v2835, 520
        %v2901 = vadd.s32 %v2835, 528
        %v2902 = vadd.s32 %v2835, 536
        %v2903 = vadd.s32 %v2835, 544
        %v2904 = vadd.s32 %v2835, 552
        %v2905 = vadd.s32 %v2835, 560
        %v2906 = vadd.s32 %v2835, 568
        %v2907 = vadd.s32 %v2835, 576
        %v2908 = vadd.s32 %v2835, 584
        %v2909 = vadd.s32 %v2835, 592
        %v2910 = vadd.s32 %v2835, 600
        %v2911 = vadd.s32 %v2835, 608
        %v2912 = vadd.s32 %v2835, 616
        %v2913 = vadd.s32 %v2835, 624
        %v2914 = vadd.s32 %v2835, 632
        %v2915 = vadd.s32 %v2835, 640
        %v2916 = vadd.s32 %v2835, 648
        %v2917 = vadd.s32 %v2835, 656
        %v2918 = vadd.s32 %v2835, 664
        %v2919 = vadd.s32 %v2835, 672
        %v2920 = vadd.s32 %v2835, 680
        %v2921 = vadd.s32 %v2835, 688
        %v2922 = vadd.s32 %v2835, 696
        %v2923 = vadd.s32 %v2835, 704
        %v2924 = vadd.s32 %v2835, 712
        %v2925 = vadd.s32 %v2835, 720
        %v2926 = vadd.s32 %v2835, 728
        %v2927 = vadd.s32 %v2835, 736
        %v2928 = vadd.s32 %v2835, 744
        %v2929 = vadd.s32 %v2835, 752
        %v2930 = vadd.s32 %v2835, 760
        %v2931 = vadd.s32 %v2835, 768
        %v2932 = vadd.s32 %v2835, 776
        %v2933 = vadd.s32 %v2835, 784
        %v2934 = vadd.s32 %v2835, 792
        %v2935 = vadd.s32 %v2835, 800
        %v2936 = vadd.s32 %v2835, 808
        %v2937 = vadd.s32 %v2835, 816
        %v2938 = vadd.s32 %v2835, 824
        %v2939 = vadd.s32 %v2835, 832
        %v2940 = vadd.s32 %v2835, 840
        %v2941 = vadd.s32 %v2835, 848
        %v2942 = vadd.s32 %v2835, 856
        %v2943 = vadd.s32 %v2835, 864
        %v2944 = vadd.s32 %v2835, 872
        %v2945 = vadd.s32 %v2835, 880
        %v2946 = vadd.s32 %v2835, 888
        %v2947 = vadd.s32 %v2835, 896
        %v2948 = vadd.s32 %v2835, 904
        %v2949 = vadd.s32 %v2835, 912
        %v2950 = vadd.s32 %v2835, 920
        %v2951 = vadd.s32 %v2835, 928
        %v2952 = vadd.s32 %v2835, 936
        %v2953 = vadd.s32 %v2835, 944
        %v2954 = vadd.s32 %v2835, 952
        %v2955 = vadd.s32 %v2835, 960
        %v2956 = vadd.s32 %v2835, 968
        %v2957 = vadd.s32 %v2835, 976
        %v2958 = vadd.s32 %v2835, 984
        %v2959 = vadd.s32 %v2835, 992
        %v2960 = vadd.s32 %v2835, 1000
        %v2961 = vadd.s32 %v2835, 1008
        %v2962 = vadd.s32 %v2835, 1016
        %v2963 = vadd.s32 %v2835, 1024
        %v2964 = vadd.s32 %v2835, 1032
        %v2965 = vadd.s32 %v2835, 1040
        %v2966 = vadd.s32 %v2835, 1048
        %v2967 = vadd.s32 %v2835, 1056
        %v2968 = vadd.s32 %v2835, 1064
        %v2969 = vadd.s32 %v2835, 1072
        %v2970 = vadd.s32 %v2835, 1080
        %v2971 = vadd.s32 %v2835, 1088
        %v2972 = vadd.s32 %v2835, 1096
        %v2973 = vadd.s32 %v2835, 1104
        %v2974 = vadd.s32 %v2835, 1112
        %v2975 = vadd.s32 %v2835, 1120
        %v2976 = vadd.s32 %v2835, 1128
        %v2977 = vadd.s32 %v2835, 1136
        %v2978 = vadd.s32 %v2835, 1144
        %v2979 = vadd.s32 %v2835, 1152
        %v2980 = vadd.s32 %v2835, 1160
        %v2981 = vadd.s32 %v2835, 1168
        %v2982 = vadd.s32 %v2835, 1176
        %v2983 = vadd.s32 %v2835, 1184
        %v2984 = vadd.s32 %v2835, 1192
        %v2985 = vadd.s32 %v2835, 1200
        %v2986 = vadd.s32 %v2835, 1208
        %v2987 = vadd.s32 %v2835, 1216
        %v2988 = vadd.s32 %v2835, 1224
        %v2989 = vadd.s32 %v2835, 1232
        %v2990 = vadd.s32 %v2835, 1240
        %v2991 = vadd.s32 %v2835, 1248
        %v2992 = vadd.s32 %v2835, 1256
        %v2993 = vadd.s32 %v2835, 1264
        %v2994 = vadd.s32 %v2835, 1272
        %v2995 = vadd.s32 %v2835, 1280
        %v2996 = vadd.s32 %v2835, 1288
        %v2997 = vadd.s32 %v2835, 1296
        %v2998 = vadd.s32 %v2835, 1304
        %v2999 = vadd.s32 %v2835, 1312
        %v3000 = vadd.s32 %v2835, 1320
        %v3001 = vadd.s32 %v2835, 1328
        %v3002 = vadd.s32 %v2835, 1336
        %v3003 = vadd.s32 %v2835, 1344
        %v3004 = vadd.s32 %v2835, 1352
        %v3005 = vadd.s32 %v2835, 1360
        %v3006 = vadd.s32 %v2835, 1368
        %v3007 = vadd.s32 %v2835, 1376
        %v3008 = vadd.s32 %v2835, 1384
        %v3009 = vadd.s32 %v2835, 1392
        %v3010 = vadd.s32 %v2835, 1400
        %v3011 = vadd.s32 %v2835, 1408
        %v3012 = vadd.s32 %v2835, 1416
        %v3013 = vadd.s32 %v2835, 1424
        %v3014 = vadd.s32 %v2835, 1432
        %v3015 = vadd.s32 %v2835, 1440
        %v3016 = vadd.s32 %v2835, 1448
        %v3017 = vadd.s32 %v2835, 1456
        %v3018 = vadd.s32 %v2835, 1464
        %v3019 = vadd.s32 %v2835, 1472
        %v3020 = vadd.s32 %v2835, 1480
        %v3021 = vadd.s32 %v2835, 1488
        %v3022 = vadd.s32 %v2835, 1496
        %v3023 = vadd.s32 %v2835, 1504
        %v3024 = vadd.s32 %v2835, 1512
        %v3025 = vadd.s32 %v2835, 1520
        %v3026 = vadd.s32 %v2835, 1528
        %v3027 = vadd.s32 %v2835, 1536
        %v3028 = vadd.s32 %v2835, 1544
        %v3029 = vadd.s32 %v2835, 1552
        %v3030 = vadd.s32 %v2835, 1560
        %v3031 = vadd.s32 %v2835, 1568
        %v3032 = vadd.s32 %v2835, 1576
        %v3033 = vadd.s32 %v2835, 1584
        %v3034 = vadd.s32 %v2835, 1592
        %v3035 = vadd.s32 %v2835, 1600
        %v3036 = vadd.s32 %v2835, 1608
        %v3037 = vadd.s32 %v2835, 1616
        %v3038 = vadd.s32 %v2835, 1624
        %v3039 = vadd.s32 %v2835, 1632
        %v3040 = vadd.s32 %v2835, 1640
        %v3041 = vadd.s32 %v2835, 1648
        %v3042 = vadd.s32 %v2835, 1656
        %v3043 = vadd.s32 %v2835, 1664
        %v3044 = vadd.s32 %v2835, 1672
        %v3045 = vadd.s32 %v2835, 1680
        %v3046 = vadd.s32 %v2835, 1688
        %v3047 = vadd.s32 %v2835, 1696
        %v3048 = vadd.s32 %v2835, 1704
        %v3049 = vadd.s32 %v2835, 1712
        %v3050 = vadd.s32 %v2835, 1720
        %v3051 = vadd.s32 %v2835, 1728
        %v3052 = vadd.s32 %v2835, 1736
        %v3053 = vadd.s32 %v2835, 1744
        %v3054 = vadd.s32 %v2835, 1752
        %v3055 = vadd.s32 %v2835, 1760
        %v3056 = vadd.s32 %v2835, 1768
        %v3057 = vadd.s32 %v2835, 1776
        %v3058 = vadd.s32 %v2835, 1784
        %v3059 = vadd.s32 %v2835, 1792
        %v3060 = vadd.s32 %v2835, 1800
        %v3061 = vadd.s32 %v2835, 1808
        %v3062 = vadd.s32 %v2835, 1816
        %v3063 = vadd.s32 %v2835, 1824
        %v3064 = vadd.s32 %v2835, 1832
        %v3065 = vadd.s32 %v2835, 1840
        %v3066 = vadd.s32 %v2835, 1848
        %v3067 = vadd.s32 %v2835, 1856
        %v3068 = vadd.s32 %v2835, 1864
        %v3069 = vadd.s32 %v2835, 1872
        %v3070 = vadd.s32 %v2835, 1880
        %v3071 = vadd.s32 %v2835, 1888
        %v3072 = vadd.s32 %v2835, 1896
        %v3073 = vadd.s32 %v2835, 1904
        %v3074 = vadd.s32 %v2835, 1912
        %v3075 = vadd.s32 %v2835, 1920
        %v3076 = vadd.s32 %v2835, 1928
        %v3077 = vadd.s32 %v2835, 1936
        %v3078 = vadd.s32 %v2835, 1944
        %v3079 = vadd.s32 %v2835, 1952
        %v3080 = vadd.s32 %v2835, 1960
        %v3081 = vadd.s32 %v2835, 1968
        %v3082 = vadd.s32 %v2835, 1976
        %v3083 = vadd.s32 %v2835, 1984
        %v3084 = vadd.s32 %v2835, 1992
        %v3085 = vadd.s32 %v2835, 2000
        %v3086 = vadd.s32 %v2835, 2008
        %v3087 = vadd.s32 %v2835, 2016
        %v3088 = vadd.s32 %v2835, 2024
        %v3089 = vadd.s32 %v2835, 2032
        %v3090 = vadd.s32 %v2835, 2040
        %v3091 = vadd.s32 %v2835, 2048
        %v3092 = vadd.s32 %v2835, 2056
        %v3093 = vadd.s32 %v2835, 2064
        %v3094 = vadd.s32 %v2835, 2072
        %v3095 = vadd.s32 %v2835, 2080
        %v3096 = vadd.s32 %v2835, 2088
        %v3097 = vadd.s32 %v2835, 2096
        %v3098 = vadd.s32 %v2835, 2104
        %v3099 = vadd.s32 %v2835, 2112
        %v3100 = vadd.s32 %v2835, 2120
        %v3101 = vadd.s32 %v2835, 2128
        %v3102 = vadd.s32 %v2835, 2136
        %v3103 = vadd.s32 %v2835, 2144
        %v3104 = vadd.s32 %v2835, 2152
        %v3105 = vadd.s32 %v2835, 2160
        %v3106 = vadd.s32 %v2835, 2168
        %v3107 = vadd.s32 %v2835, 2176
        %v3108 = vadd.s32 %v2835, 2184
        %v3109 = vadd.s32 %v2835, 2192
        %v3110 = vadd.s32 %v2835, 2200
        %v3111 = vadd.s32 %v2835, 2208
        %v3112 = vadd.s32 %v2835, 2216
        %v3113 = vadd.s32 %v2835, 2224
        %v3114 = vadd.s32 %v2835, 2232
        %v3115 = vadd.s32 %v2835, 2240
        %v3116 = vadd.s32 %v2835, 2248
        %v3117 = vadd.s32 %v2835, 2256
        %v3118 = vadd.s32 %v2835, 2264
        %v3119 = vadd.s32 %v2835, 2272
        %v3120 = vadd.s32 %v2835, 2280
        %v3121 = vadd.s32 %v2835, 2288
        %v3122 = vadd.s32 %v2835, 2296
        %v3123 = vadd.s32 %v2835, 2304
        %v3124 = vadd.s32 %v2835, 2312
        %v3125 = vadd.s32 %v2835, 2320
        %v3126 = vadd.s32 %v2835, 2328
        %v3127 = vadd.s32 %v2835, 2336
        %v3128 = vadd.s32 %v2835, 2344
        %v3129 = vadd.s32 %v2835, 2352
        %v3130 = vadd.s32 %v2835, 2360
        %v3131 = vadd.s32 %v2835, 2368
        %v3132 = vadd.s32 %v2835, 2376
        %v3133 = vadd.s32 %v2835, 2384
        %v3134 = vadd.s32 %v2835, 2392
        %v3135 = vadd.s32 %v2835, 2400
        %v3136 = vadd.s32 %v2835, 2408
        %v3137 = vadd.s32 %v2835, 2416
        %v3138 = vadd.s32 %v2835, 2424
        %v3139 = vadd.s32 %v2835, 2432
        %v3140 = vadd.s32 %v2835, 2440
        %v3141 = vadd.s32 %v2835, 2448
        %v3142 = vadd.s32 %v2835, 2456
        %v3143 = vadd.s32 %v2835, 2464
        %v3144 = vadd.s32 %v2835, 2472
        %v3145 = vadd.s32 %v2835, 2480
        %v3146 = vadd.s32 %v2835, 2488
        %v3147 = vadd.s32 %v2835, 2496
        %v3148 = vadd.s32 %v2835, 2504
        %v3149 = vadd.s32 %v2835, 2512
        %v3150 = vadd.s32 %v2835, 2520
        %v3151 = vadd.s32 %v2835, 2528
        %v3152 = vadd.s32 %v2835, 2536
        %v3153 = vadd.s32 %v2835, 2544
        %v3154 = vadd.s32 %v2835, 2552
        %v3155 = vadd.s32 %v2835, 2560
        %v3156 = vadd.s32 %v2835, 2568
        %v3157 = vadd.s32 %v2835, 2576
        %v3158 = vadd.s32 %v2835, 2584
        %v3159 = vadd.s32 %v2835, 2592
        %v3160 = vadd.s32 %v2835, 2600
        %v3161 = vadd.s32 %v2835, 2608
        %v3162 = vadd.s32 %v2835, 2616
        %v3163 = vadd.s32 %v2835, 2624
        %v3164 = vadd.s32 %v2835, 2632
        %v3165 = vadd.s32 %v2835, 2640
        %v3166 = vadd.s32 %v2835, 2648
        %v3167 = vadd.s32 %v2835, 2656
        %v3168 = vadd.s32 %v2835, 2664
        %v3169 = vadd.s32 %v2835, 2672
        %v3170 = vadd.s32 %v2835, 2680
        %v3171 = vadd.s32 %v2835, 2688
        %v3172 = vadd.s32 %v2835, 2696
        %v3173 = vadd.s32 %v2835, 2704
        %v3174 = vadd.s32 %v2835, 2712
        %v3175 = vadd.s32 %v2835, 2720
        %v3176 = vadd.s32 %v2835, 2728
        %v3177 = vadd.s32 %v2835, 2736
        %v3178 = vadd.s32 %v2835, 2744
        %v3179 = vadd.s32 %v2835, 2752
        %v3180 = vadd.s32 %v2835, 2760
        %v3181 = vadd.s32 %v2835, 2768
        %v3182 = vadd.s32 %v2835, 2776
        %v3183 = vadd.s32 %v2835, 2784
        %v3184 = vadd.s32 %v2835, 2792
        %v3185 = vadd.s32 %v2835, 2800
        %v3186 = vadd.s32 %v2835, 2808
        %v3187 = vadd.s32 %v2835, 2816
        %v3188 = vadd.s32 %v2835, 2824
        %v3189 = vadd.s32 %v2835, 2832
        %v3190 = vadd.s32 %v2835, 2840
        %v3191 = vadd.s32 %v2835, 2848
        %v3192 = vadd.s32 %v2835, 2856
        %v3193 = vadd.s32 %v2835, 2864
        %v3194 = vadd.s32 %v2835, 2872
        %v3195 = vadd.s32 %v2835, 2880
        %v3196 = vadd.s32 %v2835, 2888
        %v3197 = vadd.s32 %v2835, 2896
        %v3198 = vadd.s32 %v2835, 2904
        %v3199 = vadd.s32 %v2835, 2912
        %v3200 = vadd.s32 %v2835, 2920
        %v3201 = vadd.s32 %v2835, 2928
        %v3202 = vadd.s32 %v2835, 2936
        %v3203 = vadd.s32 %v2835, 2944
        %v3204 = vadd.s32 %v2835, 2952
        %v3205 = vadd.s32 %v2835, 2960
        %v3206 = vadd.s32 %v2835, 2968
        %v3207 = vadd.s32 %v2835, 2976
        %v3208 = vadd.s32 %v2835, 2984
        %v3209 = vadd.s32 %v2835, 2992
        %v3210 = vadd.s32 %v2835, 3000
        %v3211 = vadd.s32 %v2835, 3008
        %v3212 = vadd.s32 %v2835, 3016
        %v3213 = vadd.s32 %v2835, 3024
        %v3214 = vadd.s32 %v2835, 3032
        %v3215 = vadd.s32 %v2835, 3040
        %v3216 = vadd.s32 %v2835, 3048
        %v3217 = vadd.s32 %v2835, 3056
        %v3218 = vadd.s32 %v2835, 3064
        %v3219 = vadd.s32 %v2835, 3072
        %v3220 = vadd.s32 %v2835, 3080
        %v3221 = vadd.s32 %v2835, 3088
        %v3222 = vadd.s32 %v2835, 3096
        %v3223 = vadd.s32 %v2835, 3104
        %v3224 = vadd.s32 %v2835, 3112
        %v3225 = vadd.s32 %v2835, 3120
        %v3226 = vadd.s32 %v2835, 3128
        %v3227 = vadd.s32 %v2835, 3136
        %v3228 = vadd.s32 %v2835, 3144
        %v3229 = vadd.s32 %v2835, 3152
        %v3230 = vadd.s32 %v2835, 3160
        %v3231 = vadd.s32 %v2835, 3168
        %v3232 = vadd.s32 %v2835, 3176
        %v3233 = vadd.s32 %v2835, 3184
        %v3234 = vadd.s32 %v2835, 3192
        %v3235 = vadd.s32 %v2835, 3200
        %v3236 = vadd.s32 %v2835, 3208
        %v3237 = vadd.s32 %v2835, 3216
        %v3238 = vadd.s32 %v2835, 3224
        %v3239 = vadd.s32 %v2835, 3232
        %v3240 = vadd.s32 %v2835, 3240
        %v3241 = vadd.s32 %v2835, 3248
        %v3242 = vadd.s32 %v2835, 3256
        %v3243 = vadd.s32 %v2835, 3264
        %v3244 = vadd.s32 %v2835, 3272
        %v3245 = vadd.s32 %v2835, 3280
        %v3246 = vadd.s32 %v2835, 3288
        %v3247 = vadd.s32 %v2835, 3296
        %v3248 = vadd.s32 %v2835, 3304
        %v3249 = vadd.s32 %v2835, 3312
        %v3250 = vadd.s32 %v2835, 3320
        %v3251 = vadd.s32 %v2835, 3328
        %v3252 = vadd.s32 %v2835, 3336
        %v3253 = vadd.s32 %v2835, 3344
        %v3254 = vadd.s32 %v2835, 3352
        %v3255 = vadd.s32 %v2835, 3360
        %v3256 = vadd.s32 %v2835, 3368
        %v3257 = vadd.s32 %v2835, 3376
        %v3258 = vadd.s32 %v2835, 3384
        %v3259 = vadd.s32 %v2835, 3392
        %v3260 = vadd.s32 %v2835, 3400
        %v3261 = vadd.s32 %v2835, 3408
        %v3262 = vadd.s32 %v2835, 3416
        %v3263 = vadd.s32 %v2835, 3424
        %v3264 = vadd.s32 %v2835, 3432
        %v3265 = vadd.s32 %v2835, 3440
        %v3266 = vadd.s32 %v2835, 3448
        %v3267 = vadd.s32 %v2835, 3456
        %v3268 = vadd.s32 %v2835, 3464
        %v3269 = vadd.s32 %v2835, 3472
        %v3270 = vadd.s32 %v2835, 3480
        %v3271 = vadd.s32 %v2835, 3488
        %v3272 = vadd.s32 %v2835, 3496
        %v3273 = vadd.s32 %v2835, 3504
        %v3274 = vadd.s32 %v2835, 3512
        %v3275 = vadd.s32 %v2835, 3520
        %v3276 = vadd.s32 %v2835, 3528
        %v3277 = vadd.s32 %v2835, 3536
        %v3278 = vadd.s32 %v2835, 3544
        %v3279 = vadd.s32 %v2835, 3552
        %v3280 = vadd.s32 %v2835, 3560
        %v3281 = vadd.s32 %v2835, 3568
        %v3282 = vadd.s32 %v2835, 3576
        %v3283 = vadd.s32 %v2835, 3584
        %v3284 = vadd.s32 %v2835, 3592
        %v3285 = vadd.s32 %v2835, 3600
        %v3286 = vadd.s32 %v2835, 3608
        %v3287 = vadd.s32 %v2835, 3616
        %v3288 = vadd.s32 %v2835, 3624
        %v3289 = vadd.s32 %v2835, 3632
        %v3290 = vadd.s32 %v2835, 3640
        %v3291 = vadd.s32 %v2835, 3648
        %v3292 = vadd.s32 %v2835, 3656
        %v3293 = vadd.s32 %v2835, 3664
        %v3294 = vadd.s32 %v2835, 3672
        %v3295 = vadd.s32 %v2835, 3680
        %v3296 = vadd.s32 %v2835, 3688
        %v3297 = vadd.s32 %v2835, 3696
        %v3298 = vadd.s32 %v2835, 3704
        %v3299 = vadd.s32 %v2835, 3712
        %v3300 = vadd.s32 %v2835, 3720
        %v3301 = vadd.s32 %v2835, 3728
        %v3302 = vadd.s32 %v2835, 3736
        %v3303 = vadd.s32 %v2835, 3744
        %v3304 = vadd.s32 %v2835, 3752
        %v3305 = vadd.s32 %v2835, 3760
        %v3306 = vadd.s32 %v2835, 3768
        %v3307 = vadd.s32 %v2835, 3776
        %v3308 = vadd.s32 %v2835, 3784
        %v3309 = vadd.s32 %v2835, 3792
        %v3310 = vadd.s32 %v2835, 3800
        %v3311 = vadd.s32 %v2835, 3808
        %v3312 = vadd.s32 %v2835, 3816
        %v3313 = vadd.s32 %v2835, 3824
        %v3314 = vadd.s32 %v2835, 3832
        %v3315 = vadd.s32 %v2835, 3840
        %v3316 = vadd.s32 %v2835, 3848
        %v3317 = vadd.s32 %v2835, 3856
        %v3318 = vadd.s32 %v2835, 3864
        %v3319 = vadd.s32 %v2835, 3872
        %v3320 = vadd.s32 %v2835, 3880
        %v3321 = vadd.s32 %v2835, 3888
        %v3322 = vadd.s32 %v2835, 3896
        %v3323 = vadd.s32 %v2835, 3904
        %v3324 = vadd.s32 %v2835, 3912
        %v3325 = vadd.s32 %v2835, 3920
        %v3326 = vadd.s32 %v2835, 3928
        %v3327 = vadd.s32 %v2835, 3936
        %v3328 = vadd.s32 %v2835, 3944
        %v3329 = vadd.s32 %v2835, 3952
        %v3330 = vadd.s32 %v2835, 3960
        %v3331 = vadd.s32 %v2835, 3968
        %v3332 = vadd.s32 %v2835, 3976
        %v3333 = vadd.s32 %v2835, 3984
        %v3334 = vadd.s32 %v2835, 3992
        %v3335 = vadd.s32 %v2835, 4000
        %v3336 = vadd.s32 %v2835, 4008
        %v3337 = vadd.s32 %v2835, 4016
        %v3338 = vadd.s32 %v2835, 4024
        %v3339 = vadd.s32 %v2835, 4032
        %v3340 = vadd.s32 %v2835, 4040
        %v3341 = vadd.s32 %v2835, 4048
        %v3342 = vadd.s32 %v2835, 4056
        %v3343 = vadd.s32 %v2835, 4064
        %v3344 = vadd.s32 %v2835, 4072
        %v3345 = vadd.s32 %v2835, 4080
        %v3346 = vadd.s32 %v2835, 4088
        %v3347 = vstv %s2833
        %v3348 = vadd.s32 %v3347, %v2835
        %v3349 = vadd.s32 %v3347, %v2836
        %v3350 = vadd.s32 %v3347, %v2837
        %v3351 = vadd.s32 %v3347, %v2838
        %v3352 = vadd.s32 %v3347, %v2839
        %v3353 = vadd.s32 %v3347, %v2840
        %v3354 = vadd.s32 %v3347, %v2841
        %v3355 = vadd.s32 %v3347, %v2842
        %v3356 = vadd.s32 %v3347, %v2843
        %v3357 = vadd.s32 %v3347, %v2844
        %v3358 = vadd.s32 %v3347, %v2845
        %v3359 = vadd.s32 %v3347, %v2846
        %v3360 = vadd.s32 %v3347, %v2847
        %v3361 = vadd.s32 %v3347, %v2848
        %v3362 = vadd.s32 %v3347, %v2849
        %v3363 = vadd.s32 %v3347, %v2850
        %v3364 = vadd.s32 %v3347, %v2851
        %v3365 = vadd.s32 %v3347, %v2852
        %v3366 = vadd.s32 %v3347, %v2853
        %v3367 = vadd.s32 %v3347, %v2854
        %v3368 = vadd.s32 %v3347, %v2855
        %v3369 = vadd.s32 %v3347, %v2856
        %v3370 = vadd.s32 %v3347, %v2857
        %v3371 = vadd.s32 %v3347, %v2858
        %v3372 = vadd.s32 %v3347, %v2859
        %v3373 = vadd.s32 %v3347, %v2860
        %v3374 = vadd.s32 %v3347, %v2861
        %v3375 = vadd.s32 %v3347, %v2862
        %v3376 = vadd.s32 %v3347, %v2863
        %v3377 = vadd.s32 %v3347, %v2864
        %v3378 = vadd.s32 %v3347, %v2865
        %v3379 = vadd.s32 %v3347, %v2866
        %v3380 = vadd.s32 %v3347, %v2867
        %v3381 = vadd.s32 %v3347, %v2868
        %v3382 = vadd.s32 %v3347, %v2869
        %v3383 = vadd.s32 %v3347, %v2870
        %v3384 = vadd.s32 %v3347, %v2871
        %v3385 = vadd.s32 %v3347, %v2872
        %v3386 = vadd.s32 %v3347, %v2873
        %v3387 = vadd.s32 %v3347, %v2874
        %v3388 = vadd.s32 %v3347, %v2875
        %v3389 = vadd.s32 %v3347, %v2876
        %v3390 = vadd.s32 %v3347, %v2877
        %v3391 = vadd.s32 %v3347, %v2878
        %v3392 = vadd.s32 %v3347, %v2879
        %v3393 = vadd.s32 %v3347, %v2880
        %v3394 = vadd.s32 %v3347, %v2881
        %v3395 = vadd.s32 %v3347, %v2882
        %v3396 = vadd.s32 %v3347, %v2883
        %v3397 = vadd.s32 %v3347, %v2884
        %v3398 = vadd.s32 %v3347, %v2885
        %v3399 = vadd.s32 %v3347, %v2886
        %v3400 = vadd.s32 %v3347, %v2887
        %v3401 = vadd.s32 %v3347, %v2888
        %v3402 = vadd.s32 %v3347, %v2889
        %v3403 = vadd.s32 %v3347, %v2890
        %v3404 = vadd.s32 %v3347, %v2891
        %v3405 = vadd.s32 %v3347, %v2892
        %v3406 = vadd.s32 %v3347, %v2893
        %v3407 = vadd.s32 %v3347, %v2894
        %v3408 = vadd.s32 %v3347, %v2895
        %v3409 = vadd.s32 %v3347, %v2896
        %v3410 = vadd.s32 %v3347, %v2897
        %v3411 = vadd.s32 %v3347, %v2898
        %v3412 = vadd.s32 %v3347, %v2899
        %v3413 = vadd.s32 %v3347, %v2900
        %v3414 = vadd.s32 %v3347, %v2901
        %v3415 = vadd.s32 %v3347, %v2902
        %v3416 = vadd.s32 %v3347, %v2903
        %v3417 = vadd.s32 %v3347, %v2904
        %v3418 = vadd.s32 %v3347, %v2905
        %v3419 = vadd.s32 %v3347, %v2906
        %v3420 = vadd.s32 %v3347, %v2907
        %v3421 = vadd.s32 %v3347, %v2908
        %v3422 = vadd.s32 %v3347, %v2909
        %v3423 = vadd.s32 %v3347, %v2910
        %v3424 = vadd.s32 %v3347, %v2911
        %v3425 = vadd.s32 %v3347, %v2912
        %v3426 = vadd.s32 %v3347, %v2913
        %v3427 = vadd.s32 %v3347, %v2914
        %v3428 = vadd.s32 %v3347, %v2915
        %v3429 = vadd.s32 %v3347, %v2916
        %v3430 = vadd.s32 %v3347, %v2917
        %v3431 = vadd.s32 %v3347, %v2918
        %v3432 = vadd.s32 %v3347, %v2919
        %v3433 = vadd.s32 %v3347, %v2920
        %v3434 = vadd.s32 %v3347, %v2921
        %v3435 = vadd.s32 %v3347, %v2922
        %v3436 = vadd.s32 %v3347, %v2923
        %v3437 = vadd.s32 %v3347, %v2924
        %v3438 = vadd.s32 %v3347, %v2925
        %v3439 = vadd.s32 %v3347, %v2926
        %v3440 = vadd.s32 %v3347, %v2927
        %v3441 = vadd.s32 %v3347, %v2928
        %v3442 = vadd.s32 %v3347, %v2929
        %v3443 = vadd.s32 %v3347, %v2930
        %v3444 = vadd.s32 %v3347, %v2931
        %v3445 = vadd.s32 %v3347, %v2932
        %v3446 = vadd.s32 %v3347, %v2933
        %v3447 = vadd.s32 %v3347, %v2934
        %v3448 = vadd.s32 %v3347, %v2935
        %v3449 = vadd.s32 %v3347, %v2936
        %v3450 = vadd.s32 %v3347, %v2937
        %v3451 = vadd.s32 %v3347, %v2938
        %v3452 = vadd.s32 %v3347, %v2939
        %v3453 = vadd.s32 %v3347, %v2940
        %v3454 = vadd.s32 %v3347, %v2941
        %v3455 = vadd.s32 %v3347, %v2942
        %v3456 = vadd.s32 %v3347, %v2943
        %v3457 = vadd.s32 %v3347, %v2944
        %v3458 = vadd.s32 %v3347, %v2945
        %v3459 = vadd.s32 %v3347, %v2946
        %v3460 = vadd.s32 %v3347, %v2947
        %v3461 = vadd.s32 %v3347, %v2948
        %v3462 = vadd.s32 %v3347, %v2949
        %v3463 = vadd.s32 %v3347, %v2950
        %v3464 = vadd.s32 %v3347, %v2951
        %v3465 = vadd.s32 %v3347, %v2952
        %v3466 = vadd.s32 %v3347, %v2953
        %v3467 = vadd.s32 %v3347, %v2954
        %v3468 = vadd.s32 %v3347, %v2955
        %v3469 = vadd.s32 %v3347, %v2956
        %v3470 = vadd.s32 %v3347, %v2957
        %v3471 = vadd.s32 %v3347, %v2958
        %v3472 = vadd.s32 %v3347, %v2959
        %v3473 = vadd.s32 %v3347, %v2960
        %v3474 = vadd.s32 %v3347, %v2961
        %v3475 = vadd.s32 %v3347, %v2962
        %v3476 = vadd.s32 %v3347, %v2963
        %v3477 = vadd.s32 %v3347, %v2964
        %v3478 = vadd.s32 %v3347, %v2965
        %v3479 = vadd.s32 %v3347, %v2966
        %v3480 = vadd.s32 %v3347, %v2967
        %v3481 = vadd.s32 %v3347, %v2968
        %v3482 = vadd.s32 %v3347, %v2969
        %v3483 = vadd.s32 %v3347, %v2970
        %v3484 = vadd.s32 %v3347, %v2971
        %v3485 = vadd.s32 %v3347, %v2972
        %v3486 = vadd.s32 %v3347, %v2973
        %v3487 = vadd.s32 %v3347, %v2974
        %v3488 = vadd.s32 %v3347, %v2975
        %v3489 = vadd.s32 %v3347, %v2976
        %v3490 = vadd.s32 %v3347, %v2977
        %v3491 = vadd.s32 %v3347, %v2978
        %v3492 = vadd.s32 %v3347, %v2979
        %v3493 = vadd.s32 %v3347, %v2980
        %v3494 = vadd.s32 %v3347, %v2981
        %v3495 = vadd.s32 %v3347, %v2982
        %v3496 = vadd.s32 %v3347, %v2983
        %v3497 = vadd.s32 %v3347, %v2984
        %v3498 = vadd.s32 %v3347, %v2985
        %v3499 = vadd.s32 %v3347, %v2986
        %v3500 = vadd.s32 %v3347, %v2987
        %v3501 = vadd.s32 %v3347, %v2988
        %v3502 = vadd.s32 %v3347, %v2989
        %v3503 = vadd.s32 %v3347, %v2990
        %v3504 = vadd.s32 %v3347, %v2991
        %v3505 = vadd.s32 %v3347, %v2992
        %v3506 = vadd.s32 %v3347, %v2993
        %v3507 = vadd.s32 %v3347, %v2994
        %v3508 = vadd.s32 %v3347, %v2995
        %v3509 = vadd.s32 %v3347, %v2996
        %v3510 = vadd.s32 %v3347, %v2997
        %v3511 = vadd.s32 %v3347, %v2998
        %v3512 = vadd.s32 %v3347, %v2999
        %v3513 = vadd.s32 %v3347, %v3000
        %v3514 = vadd.s32 %v3347, %v3001
        %v3515 = vadd.s32 %v3347, %v3002
        %v3516 = vadd.s32 %v3347, %v3003
        %v3517 = vadd.s32 %v3347, %v3004
        %v3518 = vadd.s32 %v3347, %v3005
        %v3519 = vadd.s32 %v3347, %v3006
        %v3520 = vadd.s32 %v3347, %v3007
        %v3521 = vadd.s32 %v3347, %v3008
        %v3522 = vadd.s32 %v3347, %v3009
        %v3523 = vadd.s32 %v3347, %v3010
        %v3524 = vadd.s32 %v3347, %v3011
        %v3525 = vadd.s32 %v3347, %v3012
        %v3526 = vadd.s32 %v3347, %v3013
        %v3527 = vadd.s32 %v3347, %v3014
        %v3528 = vadd.s32 %v3347, %v3015
        %v3529 = vadd.s32 %v3347, %v3016
        %v3530 = vadd.s32 %v3347, %v3017
        %v3531 = vadd.s32 %v3347, %v3018
        %v3532 = vadd.s32 %v3347, %v3019
        %v3533 = vadd.s32 %v3347, %v3020
        %v3534 = vadd.s32 %v3347, %v3021
        %v3535 = vadd.s32 %v3347, %v3022
        %v3536 = vadd.s32 %v3347, %v3023
        %v3537 = vadd.s32 %v3347, %v3024
        %v3538 = vadd.s32 %v3347, %v3025
        %v3539 = vadd.s32 %v3347, %v3026
        %v3540 = vadd.s32 %v3347, %v3027
        %v3541 = vadd.s32 %v3347, %v3028
        %v3542 = vadd.s32 %v3347, %v3029
        %v3543 = vadd.s32 %v3347, %v3030
        %v3544 = vadd.s32 %v3347, %v3031
        %v3545 = vadd.s32 %v3347, %v3032
        %v3546 = vadd.s32 %v3347, %v3033
        %v3547 = vadd.s32 %v3347, %v3034
        %v3548 = vadd.s32 %v3347, %v3035
        %v3549 = vadd.s32 %v3347, %v3036
        %v3550 = vadd.s32 %v3347, %v3037
        %v3551 = vadd.s32 %v3347, %v3038
        %v3552 = vadd.s32 %v3347, %v3039
        %v3553 = vadd.s32 %v3347, %v3040
        %v3554 = vadd.s32 %v3347, %v3041
        %v3555 = vadd.s32 %v3347, %v3042
        %v3556 = vadd.s32 %v3347, %v3043
        %v3557 = vadd.s32 %v3347, %v3044
        %v3558 = vadd.s32 %v3347, %v3045
        %v3559 = vadd.s32 %v3347, %v3046
        %v3560 = vadd.s32 %v3347, %v3047
        %v3561 = vadd.s32 %v3347, %v3048
        %v3562 = vadd.s32 %v3347, %v3049
        %v3563 = vadd.s32 %v3347, %v3050
        %v3564 = vadd.s32 %v3347, %v3051
        %v3565 = vadd.s32 %v3347, %v3052
        %v3566 = vadd.s32 %v3347, %v3053
        %v3567 = vadd.s32 %v3347, %v3054
        %v3568 = vadd.s32 %v3347, %v3055
        %v3569 = vadd.s32 %v3347, %v3056
        %v3570 = vadd.s32 %v3347, %v3057
        %v3571 = vadd.s32 %v3347, %v3058
        %v3572 = vadd.s32 %v3347, %v3059
        %v3573 = vadd.s32 %v3347, %v3060
        %v3574 = vadd.s32 %v3347, %v3061
        %v3575 = vadd.s32 %v3347, %v3062
        %v3576 = vadd.s32 %v3347, %v3063
        %v3577 = vadd.s32 %v3347, %v3064
        %v3578 = vadd.s32 %v3347, %v3065
        %v3579 = vadd.s32 %v3347, %v3066
        %v3580 = vadd.s32 %v3347, %v3067
        %v3581 = vadd.s32 %v3347, %v3068
        %v3582 = vadd.s32 %v3347, %v3069
        %v3583 = vadd.s32 %v3347, %v3070
        %v3584 = vadd.s32 %v3347, %v3071
        %v3585 = vadd.s32 %v3347, %v3072
        %v3586 = vadd.s32 %v3347, %v3073
        %v3587 = vadd.s32 %v3347, %v3074
        %v3588 = vadd.s32 %v3347, %v3075
        %v3589 = vadd.s32 %v3347, %v3076
        %v3590 = vadd.s32 %v3347, %v3077
        %v3591 = vadd.s32 %v3347, %v3078
        %v3592 = vadd.s32 %v3347, %v3079
        %v3593 = vadd.s32 %v3347, %v3080
        %v3594 = vadd.s32 %v3347, %v3081
        %v3595 = vadd.s32 %v3347, %v3082
        %v3596 = vadd.s32 %v3347, %v3083
        %v3597 = vadd.s32 %v3347, %v3084
        %v3598 = vadd.s32 %v3347, %v3085
        %v3599 = vadd.s32 %v3347, %v3086
        %v3600 = vadd.s32 %v3347, %v3087
        %v3601 = vadd.s32 %v3347, %v3088
        %v3602 = vadd.s32 %v3347, %v3089
        %v3603 = vadd.s32 %v3347, %v3090
        %v3604 = vadd.s32 %v3347, %v3091
        %v3605 = vadd.s32 %v3347, %v3092
        %v3606 = vadd.s32 %v3347, %v3093
        %v3607 = vadd.s32 %v3347, %v3094
        %v3608 = vadd.s32 %v3347, %v3095
        %v3609 = vadd.s32 %v3347, %v3096
        %v3610 = vadd.s32 %v3347, %v3097
        %v3611 = vadd.s32 %v3347, %v3098
        %v3612 = vadd.s32 %v3347, %v3099
        %v3613 = vadd.s32 %v3347, %v3100
        %v3614 = vadd.s32 %v3347, %v3101
        %v3615 = vadd.s32 %v3347, %v3102
        %v3616 = vadd.s32 %v3347, %v3103
        %v3617 = vadd.s32 %v3347, %v3104
        %v3618 = vadd.s32 %v3347, %v3105
        %v3619 = vadd.s32 %v3347, %v3106
        %v3620 = vadd.s32 %v3347, %v3107
        %v3621 = vadd.s32 %v3347, %v3108
        %v3622 = vadd.s32 %v3347, %v3109
        %v3623 = vadd.s32 %v3347, %v3110
        %v3624 = vadd.s32 %v3347, %v3111
        %v3625 = vadd.s32 %v3347, %v3112
        %v3626 = vadd.s32 %v3347, %v3113
        %v3627 = vadd.s32 %v3347, %v3114
        %v3628 = vadd.s32 %v3347, %v3115
        %v3629 = vadd.s32 %v3347, %v3116
        %v3630 = vadd.s32 %v3347, %v3117
        %v3631 = vadd.s32 %v3347, %v3118
        %v3632 = vadd.s32 %v3347, %v3119
        %v3633 = vadd.s32 %v3347, %v3120
        %v3634 = vadd.s32 %v3347, %v3121
        %v3635 = vadd.s32 %v3347, %v3122
        %v3636 = vadd.s32 %v3347, %v3123
        %v3637 = vadd.s32 %v3347, %v3124
        %v3638 = vadd.s32 %v3347, %v3125
        %v3639 = vadd.s32 %v3347, %v3126
        %v3640 = vadd.s32 %v3347, %v3127
        %v3641 = vadd.s32 %v3347, %v3128
        %v3642 = vadd.s32 %v3347, %v3129
        %v3643 = vadd.s32 %v3347, %v3130
        %v3644 = vadd.s32 %v3347, %v3131
        %v3645 = vadd.s32 %v3347, %v3132
        %v3646 = vadd.s32 %v3347, %v3133
        %v3647 = vadd.s32 %v3347, %v3134
        %v3648 = vadd.s32 %v3347, %v3135
        %v3649 = vadd.s32 %v3347, %v3136
        %v3650 = vadd.s32 %v3347, %v3137
        %v3651 = vadd.s32 %v3347, %v3138
        %v3652 = vadd.s32 %v3347, %v3139
        %v3653 = vadd.s32 %v3347, %v3140
        %v3654 = vadd.s32 %v3347, %v3141
        %v3655 = vadd.s32 %v3347, %v3142
        %v3656 = vadd.s32 %v3347, %v3143
        %v3657 = vadd.s32 %v3347, %v3144
        %v3658 = vadd.s32 %v3347, %v3145
        %v3659 = vadd.s32 %v3347, %v3146
        %v3660 = vadd.s32 %v3347, %v3147
        %v3661 = vadd.s32 %v3347, %v3148
        %v3662 = vadd.s32 %v3347, %v3149
        %v3663 = vadd.s32 %v3347, %v3150
        %v3664 = vadd.s32 %v3347, %v3151
        %v3665 = vadd.s32 %v3347, %v3152
        %v3666 = vadd.s32 %v3347, %v3153
        %v3667 = vadd.s32 %v3347, %v3154
        %v3668 = vadd.s32 %v3347, %v3155
        %v3669 = vadd.s32 %v3347, %v3156
        %v3670 = vadd.s32 %v3347, %v3157
        %v3671 = vadd.s32 %v3347, %v3158
        %v3672 = vadd.s32 %v3347, %v3159
        %v3673 = vadd.s32 %v3347, %v3160
        %v3674 = vadd.s32 %v3347, %v3161
        %v3675 = vadd.s32 %v3347, %v3162
        %v3676 = vadd.s32 %v3347, %v3163
        %v3677 = vadd.s32 %v3347, %v3164
        %v3678 = vadd.s32 %v3347, %v3165
        %v3679 = vadd.s32 %v3347, %v3166
        %v3680 = vadd.s32 %v3347, %v3167
        %v3681 = vadd.s32 %v3347, %v3168
        %v3682 = vadd.s32 %v3347, %v3169
        %v3683 = vadd.s32 %v3347, %v3170
        %v3684 = vadd.s32 %v3347, %v3171
        %v3685 = vadd.s32 %v3347, %v3172
        %v3686 = vadd.s32 %v3347, %v3173
        %v3687 = vadd.s32 %v3347, %v3174
        %v3688 = vadd.s32 %v3347, %v3175
        %v3689 = vadd.s32 %v3347, %v3176
        %v3690 = vadd.s32 %v3347, %v3177
        %v3691 = vadd.s32 %v3347, %v3178
        %v3692 = vadd.s32 %v3347, %v3179
        %v3693 = vadd.s32 %v3347, %v3180
        %v3694 = vadd.s32 %v3347, %v3181
        %v3695 = vadd.s32 %v3347, %v3182
        %v3696 = vadd.s32 %v3347, %v3183
        %v3697 = vadd.s32 %v3347, %v3184
        %v3698 = vadd.s32 %v3347, %v3185
        %v3699 = vadd.s32 %v3347, %v3186
        %v3700 = vadd.s32 %v3347, %v3187
        %v3701 = vadd.s32 %v3347, %v3188
        %v3702 = vadd.s32 %v3347, %v3189
        %v3703 = vadd.s32 %v3347, %v3190
        %v3704 = vadd.s32 %v3347, %v3191
        %v3705 = vadd.s32 %v3347, %v3192
        %v3706 = vadd.s32 %v3347, %v3193
        %v3707 = vadd.s32 %v3347, %v3194
        %v3708 = vadd.s32 %v3347, %v3195
        %v3709 = vadd.s32 %v3347, %v3196
        %v3710 = vadd.s32 %v3347, %v3197
        %v3711 = vadd.s32 %v3347, %v3198
        %v3712 = vadd.s32 %v3347, %v3199
        %v3713 = vadd.s32 %v3347, %v3200
        %v3714 = vadd.s32 %v3347, %v3201
        %v3715 = vadd.s32 %v3347, %v3202
        %v3716 = vadd.s32 %v3347, %v3203
        %v3717 = vadd.s32 %v3347, %v3204
        %v3718 = vadd.s32 %v3347, %v3205
        %v3719 = vadd.s32 %v3347, %v3206
        %v3720 = vadd.s32 %v3347, %v3207
        %v3721 = vadd.s32 %v3347, %v3208
        %v3722 = vadd.s32 %v3347, %v3209
        %v3723 = vadd.s32 %v3347, %v3210
        %v3724 = vadd.s32 %v3347, %v3211
        %v3725 = vadd.s32 %v3347, %v3212
        %v3726 = vadd.s32 %v3347, %v3213
        %v3727 = vadd.s32 %v3347, %v3214
        %v3728 = vadd.s32 %v3347, %v3215
        %v3729 = vadd.s32 %v3347, %v3216
        %v3730 = vadd.s32 %v3347, %v3217
        %v3731 = vadd.s32 %v3347, %v3218
        %v3732 = vadd.s32 %v3347, %v3219
        %v3733 = vadd.s32 %v3347, %v3220
        %v3734 = vadd.s32 %v3347, %v3221
        %v3735 = vadd.s32 %v3347, %v3222
        %v3736 = vadd.s32 %v3347, %v3223
        %v3737 = vadd.s32 %v3347, %v3224
        %v3738 = vadd.s32 %v3347, %v3225
        %v3739 = vadd.s32 %v3347, %v3226
        %v3740 = vadd.s32 %v3347, %v3227
        %v3741 = vadd.s32 %v3347, %v3228
        %v3742 = vadd.s32 %v3347, %v3229
        %v3743 = vadd.s32 %v3347, %v3230
        %v3744 = vadd.s32 %v3347, %v3231
        %v3745 = vadd.s32 %v3347, %v3232
        %v3746 = vadd.s32 %v3347, %v3233
        %v3747 = vadd.s32 %v3347, %v3234
        %v3748 = vadd.s32 %v3347, %v3235
        %v3749 = vadd.s32 %v3347, %v3236
        %v3750 = vadd.s32 %v3347, %v3237
        %v3751 = vadd.s32 %v3347, %v3238
        %v3752 = vadd.s32 %v3347, %v3239
        %v3753 = vadd.s32 %v3347, %v3240
        %v3754 = vadd.s32 %v3347, %v3241
        %v3755 = vadd.s32 %v3347, %v3242
        %v3756 = vadd.s32 %v3347, %v3243
        %v3757 = vadd.s32 %v3347, %v3244
        %v3758 = vadd.s32 %v3347, %v3245
        %v3759 = vadd.s32 %v3347, %v3246
        %v3760 = vadd.s32 %v3347, %v3247
        %v3761 = vadd.s32 %v3347, %v3248
        %v3762 = vadd.s32 %v3347, %v3249
        %v3763 = vadd.s32 %v3347, %v3250
        %v3764 = vadd.s32 %v3347, %v3251
        %v3765 = vadd.s32 %v3347, %v3252
        %v3766 = vadd.s32 %v3347, %v3253
        %v3767 = vadd.s32 %v3347, %v3254
        %v3768 = vadd.s32 %v3347, %v3255
        %v3769 = vadd.s32 %v3347, %v3256
        %v3770 = vadd.s32 %v3347, %v3257
        %v3771 = vadd.s32 %v3347, %v3258
        %v3772 = vadd.s32 %v3347, %v3259
        %v3773 = vadd.s32 %v3347, %v3260
        %v3774 = vadd.s32 %v3347, %v3261
        %v3775 = vadd.s32 %v3347, %v3262
        %v3776 = vadd.s32 %v3347, %v3263
        %v3777 = vadd.s32 %v3347, %v3264
        %v3778 = vadd.s32 %v3347, %v3265
        %v3779 = vadd.s32 %v3347, %v3266
        %v3780 = vadd.s32 %v3347, %v3267
        %v3781 = vadd.s32 %v3347, %v3268
        %v3782 = vadd.s32 %v3347, %v3269
        %v3783 = vadd.s32 %v3347, %v3270
        %v3784 = vadd.s32 %v3347, %v3271
        %v3785 = vadd.s32 %v3347, %v3272
        %v3786 = vadd.s32 %v3347, %v3273
        %v3787 = vadd.s32 %v3347, %v3274
        %v3788 = vadd.s32 %v3347, %v3275
        %v3789 = vadd.s32 %v3347, %v3276
        %v3790 = vadd.s32 %v3347, %v3277
        %v3791 = vadd.s32 %v3347, %v3278
        %v3792 = vadd.s32 %v3347, %v3279
        %v3793 = vadd.s32 %v3347, %v3280
        %v3794 = vadd.s32 %v3347, %v3281
        %v3795 = vadd.s32 %v3347, %v3282
        %v3796 = vadd.s32 %v3347, %v3283
        %v3797 = vadd.s32 %v3347, %v3284
        %v3798 = vadd.s32 %v3347, %v3285
        %v3799 = vadd.s32 %v3347, %v3286
        %v3800 = vadd.s32 %v3347, %v3287
        %v3801 = vadd.s32 %v3347, %v3288
        %v3802 = vadd.s32 %v3347, %v3289
        %v3803 = vadd.s32 %v3347, %v3290
        %v3804 = vadd.s32 %v3347, %v3291
        %v3805 = vadd.s32 %v3347, %v3292
        %v3806 = vadd.s32 %v3347, %v3293
        %v3807 = vadd.s32 %v3347, %v3294
        %v3808 = vadd.s32 %v3347, %v3295
        %v3809 = vadd.s32 %v3347, %v3296
        %v3810 = vadd.s32 %v3347, %v3297
        %v3811 = vadd.s32 %v3347, %v3298
        %v3812 = vadd.s32 %v3347, %v3299
        %v3813 = vadd.s32 %v3347, %v3300
        %v3814 = vadd.s32 %v3347, %v3301
        %v3815 = vadd.s32 %v3347, %v3302
        %v3816 = vadd.s32 %v3347, %v3303
        %v3817 = vadd.s32 %v3347, %v3304
        %v3818 = vadd.s32 %v3347, %v3305
        %v3819 = vadd.s32 %v3347, %v3306
        %v3820 = vadd.s32 %v3347, %v3307
        %v3821 = vadd.s32 %v3347, %v3308
        %v3822 = vadd.s32 %v3347, %v3309
        %v3823 = vadd.s32 %v3347, %v3310
        %v3824 = vadd.s32 %v3347, %v3311
        %v3825 = vadd.s32 %v3347, %v3312
        %v3826 = vadd.s32 %v3347, %v3313
        %v3827 = vadd.s32 %v3347, %v3314
        %v3828 = vadd.s32 %v3347, %v3315
        %v3829 = vadd.s32 %v3347, %v3316
        %v3830 = vadd.s32 %v3347, %v3317
        %v3831 = vadd.s32 %v3347, %v3318
        %v3832 = vadd.s32 %v3347, %v3319
        %v3833 = vadd.s32 %v3347, %v3320
        %v3834 = vadd.s32 %v3347, %v3321
        %v3835 = vadd.s32 %v3347, %v3322
        %v3836 = vadd.s32 %v3347, %v3323
        %v3837 = vadd.s32 %v3347, %v3324
        %v3838 = vadd.s32 %v3347, %v3325
        %v3839 = vadd.s32 %v3347, %v3326
        %v3840 = vadd.s32 %v3347, %v3327
        %v3841 = vadd.s32 %v3347, %v3328
        %v3842 = vadd.s32 %v3347, %v3329
        %v3843 = vadd.s32 %v3347, %v3330
        %v3844 = vadd.s32 %v3347, %v3331
        %v3845 = vadd.s32 %v3347, %v3332
        %v3846 = vadd.s32 %v3347, %v3333
        %v3847 = vadd.s32 %v3347, %v3334
        %v3848 = vadd.s32 %v3347, %v3335
        %v3849 = vadd.s32 %v3347, %v3336
        %v3850 = vadd.s32 %v3347, %v3337
        %v3851 = vadd.s32 %v3347, %v3338
        %v3852 = vadd.s32 %v3347, %v3339
        %v3853 = vadd.s32 %v3347, %v3340
        %v3854 = vadd.s32 %v3347, %v3341
        %v3855 = vadd.s32 %v3347, %v3342
        %v3856 = vadd.s32 %v3347, %v3343
        %v3857 = vadd.s32 %v3347, %v3344
        %v3858 = vadd.s32 %v3347, %v3345
        %v3859 = vadd.s32 %v3347, %v3346
        %vm3860 = vcmp.lt.s32.totalorder %v3348, 18500
        %vm3861 = vcmp.lt.s32.totalorder %v3349, 18500
        %vm3862 = vcmp.lt.s32.totalorder %v3350, 18500
        %vm3863 = vcmp.lt.s32.totalorder %v3351, 18500
        %vm3864 = vcmp.lt.s32.totalorder %v3352, 18500
        %vm3865 = vcmp.lt.s32.totalorder %v3353, 18500
        %vm3866 = vcmp.lt.s32.totalorder %v3354, 18500
        %vm3867 = vcmp.lt.s32.totalorder %v3355, 18500
        %vm3868 = vcmp.lt.s32.totalorder %v3356, 18500
        %vm3869 = vcmp.lt.s32.totalorder %v3357, 18500
        %vm3870 = vcmp.lt.s32.totalorder %v3358, 18500
        %vm3871 = vcmp.lt.s32.totalorder %v3359, 18500
        %vm3872 = vcmp.lt.s32.totalorder %v3360, 18500
        %vm3873 = vcmp.lt.s32.totalorder %v3361, 18500
        %vm3874 = vcmp.lt.s32.totalorder %v3362, 18500
        %vm3875 = vcmp.lt.s32.totalorder %v3363, 18500
        %vm3876 = vcmp.lt.s32.totalorder %v3364, 18500
        %vm3877 = vcmp.lt.s32.totalorder %v3365, 18500
        %vm3878 = vcmp.lt.s32.totalorder %v3366, 18500
        %vm3879 = vcmp.lt.s32.totalorder %v3367, 18500
        %vm3880 = vcmp.lt.s32.totalorder %v3368, 18500
        %vm3881 = vcmp.lt.s32.totalorder %v3369, 18500
        %vm3882 = vcmp.lt.s32.totalorder %v3370, 18500
        %vm3883 = vcmp.lt.s32.totalorder %v3371, 18500
        %vm3884 = vcmp.lt.s32.totalorder %v3372, 18500
        %vm3885 = vcmp.lt.s32.totalorder %v3373, 18500
        %vm3886 = vcmp.lt.s32.totalorder %v3374, 18500
        %vm3887 = vcmp.lt.s32.totalorder %v3375, 18500
        %vm3888 = vcmp.lt.s32.totalorder %v3376, 18500
        %vm3889 = vcmp.lt.s32.totalorder %v3377, 18500
        %vm3890 = vcmp.lt.s32.totalorder %v3378, 18500
        %vm3891 = vcmp.lt.s32.totalorder %v3379, 18500
        %vm3892 = vcmp.lt.s32.totalorder %v3380, 18500
        %vm3893 = vcmp.lt.s32.totalorder %v3381, 18500
        %vm3894 = vcmp.lt.s32.totalorder %v3382, 18500
        %vm3895 = vcmp.lt.s32.totalorder %v3383, 18500
        %vm3896 = vcmp.lt.s32.totalorder %v3384, 18500
        %vm3897 = vcmp.lt.s32.totalorder %v3385, 18500
        %vm3898 = vcmp.lt.s32.totalorder %v3386, 18500
        %vm3899 = vcmp.lt.s32.totalorder %v3387, 18500
        %vm3900 = vcmp.lt.s32.totalorder %v3388, 18500
        %vm3901 = vcmp.lt.s32.totalorder %v3389, 18500
        %vm3902 = vcmp.lt.s32.totalorder %v3390, 18500
        %vm3903 = vcmp.lt.s32.totalorder %v3391, 18500
        %vm3904 = vcmp.lt.s32.totalorder %v3392, 18500
        %vm3905 = vcmp.lt.s32.totalorder %v3393, 18500
        %vm3906 = vcmp.lt.s32.totalorder %v3394, 18500
        %vm3907 = vcmp.lt.s32.totalorder %v3395, 18500
        %vm3908 = vcmp.lt.s32.totalorder %v3396, 18500
        %vm3909 = vcmp.lt.s32.totalorder %v3397, 18500
        %vm3910 = vcmp.lt.s32.totalorder %v3398, 18500
        %vm3911 = vcmp.lt.s32.totalorder %v3399, 18500
        %vm3912 = vcmp.lt.s32.totalorder %v3400, 18500
        %vm3913 = vcmp.lt.s32.totalorder %v3401, 18500
        %vm3914 = vcmp.lt.s32.totalorder %v3402, 18500
        %vm3915 = vcmp.lt.s32.totalorder %v3403, 18500
        %vm3916 = vcmp.lt.s32.totalorder %v3404, 18500
        %vm3917 = vcmp.lt.s32.totalorder %v3405, 18500
        %vm3918 = vcmp.lt.s32.totalorder %v3406, 18500
        %vm3919 = vcmp.lt.s32.totalorder %v3407, 18500
        %vm3920 = vcmp.lt.s32.totalorder %v3408, 18500
        %vm3921 = vcmp.lt.s32.totalorder %v3409, 18500
        %vm3922 = vcmp.lt.s32.totalorder %v3410, 18500
        %vm3923 = vcmp.lt.s32.totalorder %v3411, 18500
        %vm3924 = vcmp.lt.s32.totalorder %v3412, 18500
        %vm3925 = vcmp.lt.s32.totalorder %v3413, 18500
        %vm3926 = vcmp.lt.s32.totalorder %v3414, 18500
        %vm3927 = vcmp.lt.s32.totalorder %v3415, 18500
        %vm3928 = vcmp.lt.s32.totalorder %v3416, 18500
        %vm3929 = vcmp.lt.s32.totalorder %v3417, 18500
        %vm3930 = vcmp.lt.s32.totalorder %v3418, 18500
        %vm3931 = vcmp.lt.s32.totalorder %v3419, 18500
        %vm3932 = vcmp.lt.s32.totalorder %v3420, 18500
        %vm3933 = vcmp.lt.s32.totalorder %v3421, 18500
        %vm3934 = vcmp.lt.s32.totalorder %v3422, 18500
        %vm3935 = vcmp.lt.s32.totalorder %v3423, 18500
        %vm3936 = vcmp.lt.s32.totalorder %v3424, 18500
        %vm3937 = vcmp.lt.s32.totalorder %v3425, 18500
        %vm3938 = vcmp.lt.s32.totalorder %v3426, 18500
        %vm3939 = vcmp.lt.s32.totalorder %v3427, 18500
        %vm3940 = vcmp.lt.s32.totalorder %v3428, 18500
        %vm3941 = vcmp.lt.s32.totalorder %v3429, 18500
        %vm3942 = vcmp.lt.s32.totalorder %v3430, 18500
        %vm3943 = vcmp.lt.s32.totalorder %v3431, 18500
        %vm3944 = vcmp.lt.s32.totalorder %v3432, 18500
        %vm3945 = vcmp.lt.s32.totalorder %v3433, 18500
        %vm3946 = vcmp.lt.s32.totalorder %v3434, 18500
        %vm3947 = vcmp.lt.s32.totalorder %v3435, 18500
        %vm3948 = vcmp.lt.s32.totalorder %v3436, 18500
        %vm3949 = vcmp.lt.s32.totalorder %v3437, 18500
        %vm3950 = vcmp.lt.s32.totalorder %v3438, 18500
        %vm3951 = vcmp.lt.s32.totalorder %v3439, 18500
        %vm3952 = vcmp.lt.s32.totalorder %v3440, 18500
        %vm3953 = vcmp.lt.s32.totalorder %v3441, 18500
        %vm3954 = vcmp.lt.s32.totalorder %v3442, 18500
        %vm3955 = vcmp.lt.s32.totalorder %v3443, 18500
        %vm3956 = vcmp.lt.s32.totalorder %v3444, 18500
        %vm3957 = vcmp.lt.s32.totalorder %v3445, 18500
        %vm3958 = vcmp.lt.s32.totalorder %v3446, 18500
        %vm3959 = vcmp.lt.s32.totalorder %v3447, 18500
        %vm3960 = vcmp.lt.s32.totalorder %v3448, 18500
        %vm3961 = vcmp.lt.s32.totalorder %v3449, 18500
        %vm3962 = vcmp.lt.s32.totalorder %v3450, 18500
        %vm3963 = vcmp.lt.s32.totalorder %v3451, 18500
        %vm3964 = vcmp.lt.s32.totalorder %v3452, 18500
        %vm3965 = vcmp.lt.s32.totalorder %v3453, 18500
        %vm3966 = vcmp.lt.s32.totalorder %v3454, 18500
        %vm3967 = vcmp.lt.s32.totalorder %v3455, 18500
        %vm3968 = vcmp.lt.s32.totalorder %v3456, 18500
        %vm3969 = vcmp.lt.s32.totalorder %v3457, 18500
        %vm3970 = vcmp.lt.s32.totalorder %v3458, 18500
        %vm3971 = vcmp.lt.s32.totalorder %v3459, 18500
        %vm3972 = vcmp.lt.s32.totalorder %v3460, 18500
        %vm3973 = vcmp.lt.s32.totalorder %v3461, 18500
        %vm3974 = vcmp.lt.s32.totalorder %v3462, 18500
        %vm3975 = vcmp.lt.s32.totalorder %v3463, 18500
        %vm3976 = vcmp.lt.s32.totalorder %v3464, 18500
        %vm3977 = vcmp.lt.s32.totalorder %v3465, 18500
        %vm3978 = vcmp.lt.s32.totalorder %v3466, 18500
        %vm3979 = vcmp.lt.s32.totalorder %v3467, 18500
        %vm3980 = vcmp.lt.s32.totalorder %v3468, 18500
        %vm3981 = vcmp.lt.s32.totalorder %v3469, 18500
        %vm3982 = vcmp.lt.s32.totalorder %v3470, 18500
        %vm3983 = vcmp.lt.s32.totalorder %v3471, 18500
        %vm3984 = vcmp.lt.s32.totalorder %v3472, 18500
        %vm3985 = vcmp.lt.s32.totalorder %v3473, 18500
        %vm3986 = vcmp.lt.s32.totalorder %v3474, 18500
        %vm3987 = vcmp.lt.s32.totalorder %v3475, 18500
        %vm3988 = vcmp.lt.s32.totalorder %v3476, 18500
        %vm3989 = vcmp.lt.s32.totalorder %v3477, 18500
        %vm3990 = vcmp.lt.s32.totalorder %v3478, 18500
        %vm3991 = vcmp.lt.s32.totalorder %v3479, 18500
        %vm3992 = vcmp.lt.s32.totalorder %v3480, 18500
        %vm3993 = vcmp.lt.s32.totalorder %v3481, 18500
        %vm3994 = vcmp.lt.s32.totalorder %v3482, 18500
        %vm3995 = vcmp.lt.s32.totalorder %v3483, 18500
        %vm3996 = vcmp.lt.s32.totalorder %v3484, 18500
        %vm3997 = vcmp.lt.s32.totalorder %v3485, 18500
        %vm3998 = vcmp.lt.s32.totalorder %v3486, 18500
        %vm3999 = vcmp.lt.s32.totalorder %v3487, 18500
        %vm4000 = vcmp.lt.s32.totalorder %v3488, 18500
        %vm4001 = vcmp.lt.s32.totalorder %v3489, 18500
        %vm4002 = vcmp.lt.s32.totalorder %v3490, 18500
        %vm4003 = vcmp.lt.s32.totalorder %v3491, 18500
        %vm4004 = vcmp.lt.s32.totalorder %v3492, 18500
        %vm4005 = vcmp.lt.s32.totalorder %v3493, 18500
        %vm4006 = vcmp.lt.s32.totalorder %v3494, 18500
        %vm4007 = vcmp.lt.s32.totalorder %v3495, 18500
        %vm4008 = vcmp.lt.s32.totalorder %v3496, 18500
        %vm4009 = vcmp.lt.s32.totalorder %v3497, 18500
        %vm4010 = vcmp.lt.s32.totalorder %v3498, 18500
        %vm4011 = vcmp.lt.s32.totalorder %v3499, 18500
        %vm4012 = vcmp.lt.s32.totalorder %v3500, 18500
        %vm4013 = vcmp.lt.s32.totalorder %v3501, 18500
        %vm4014 = vcmp.lt.s32.totalorder %v3502, 18500
        %vm4015 = vcmp.lt.s32.totalorder %v3503, 18500
        %vm4016 = vcmp.lt.s32.totalorder %v3504, 18500
        %vm4017 = vcmp.lt.s32.totalorder %v3505, 18500
        %vm4018 = vcmp.lt.s32.totalorder %v3506, 18500
        %vm4019 = vcmp.lt.s32.totalorder %v3507, 18500
        %vm4020 = vcmp.lt.s32.totalorder %v3508, 18500
        %vm4021 = vcmp.lt.s32.totalorder %v3509, 18500
        %vm4022 = vcmp.lt.s32.totalorder %v3510, 18500
        %vm4023 = vcmp.lt.s32.totalorder %v3511, 18500
        %vm4024 = vcmp.lt.s32.totalorder %v3512, 18500
        %vm4025 = vcmp.lt.s32.totalorder %v3513, 18500
        %vm4026 = vcmp.lt.s32.totalorder %v3514, 18500
        %vm4027 = vcmp.lt.s32.totalorder %v3515, 18500
        %vm4028 = vcmp.lt.s32.totalorder %v3516, 18500
        %vm4029 = vcmp.lt.s32.totalorder %v3517, 18500
        %vm4030 = vcmp.lt.s32.totalorder %v3518, 18500
        %vm4031 = vcmp.lt.s32.totalorder %v3519, 18500
        %vm4032 = vcmp.lt.s32.totalorder %v3520, 18500
        %vm4033 = vcmp.lt.s32.totalorder %v3521, 18500
        %vm4034 = vcmp.lt.s32.totalorder %v3522, 18500
        %vm4035 = vcmp.lt.s32.totalorder %v3523, 18500
        %vm4036 = vcmp.lt.s32.totalorder %v3524, 18500
        %vm4037 = vcmp.lt.s32.totalorder %v3525, 18500
        %vm4038 = vcmp.lt.s32.totalorder %v3526, 18500
        %vm4039 = vcmp.lt.s32.totalorder %v3527, 18500
        %vm4040 = vcmp.lt.s32.totalorder %v3528, 18500
        %vm4041 = vcmp.lt.s32.totalorder %v3529, 18500
        %vm4042 = vcmp.lt.s32.totalorder %v3530, 18500
        %vm4043 = vcmp.lt.s32.totalorder %v3531, 18500
        %vm4044 = vcmp.lt.s32.totalorder %v3532, 18500
        %vm4045 = vcmp.lt.s32.totalorder %v3533, 18500
        %vm4046 = vcmp.lt.s32.totalorder %v3534, 18500
        %vm4047 = vcmp.lt.s32.totalorder %v3535, 18500
        %vm4048 = vcmp.lt.s32.totalorder %v3536, 18500
        %vm4049 = vcmp.lt.s32.totalorder %v3537, 18500
        %vm4050 = vcmp.lt.s32.totalorder %v3538, 18500
        %vm4051 = vcmp.lt.s32.totalorder %v3539, 18500
        %vm4052 = vcmp.lt.s32.totalorder %v3540, 18500
        %vm4053 = vcmp.lt.s32.totalorder %v3541, 18500
        %vm4054 = vcmp.lt.s32.totalorder %v3542, 18500
        %vm4055 = vcmp.lt.s32.totalorder %v3543, 18500
        %vm4056 = vcmp.lt.s32.totalorder %v3544, 18500
        %vm4057 = vcmp.lt.s32.totalorder %v3545, 18500
        %vm4058 = vcmp.lt.s32.totalorder %v3546, 18500
        %vm4059 = vcmp.lt.s32.totalorder %v3547, 18500
        %vm4060 = vcmp.lt.s32.totalorder %v3548, 18500
        %vm4061 = vcmp.lt.s32.totalorder %v3549, 18500
        %vm4062 = vcmp.lt.s32.totalorder %v3550, 18500
        %vm4063 = vcmp.lt.s32.totalorder %v3551, 18500
        %vm4064 = vcmp.lt.s32.totalorder %v3552, 18500
        %vm4065 = vcmp.lt.s32.totalorder %v3553, 18500
        %vm4066 = vcmp.lt.s32.totalorder %v3554, 18500
        %vm4067 = vcmp.lt.s32.totalorder %v3555, 18500
        %vm4068 = vcmp.lt.s32.totalorder %v3556, 18500
        %vm4069 = vcmp.lt.s32.totalorder %v3557, 18500
        %vm4070 = vcmp.lt.s32.totalorder %v3558, 18500
        %vm4071 = vcmp.lt.s32.totalorder %v3559, 18500
        %vm4072 = vcmp.lt.s32.totalorder %v3560, 18500
        %vm4073 = vcmp.lt.s32.totalorder %v3561, 18500
        %vm4074 = vcmp.lt.s32.totalorder %v3562, 18500
        %vm4075 = vcmp.lt.s32.totalorder %v3563, 18500
        %vm4076 = vcmp.lt.s32.totalorder %v3564, 18500
        %vm4077 = vcmp.lt.s32.totalorder %v3565, 18500
        %vm4078 = vcmp.lt.s32.totalorder %v3566, 18500
        %vm4079 = vcmp.lt.s32.totalorder %v3567, 18500
        %vm4080 = vcmp.lt.s32.totalorder %v3568, 18500
        %vm4081 = vcmp.lt.s32.totalorder %v3569, 18500
        %vm4082 = vcmp.lt.s32.totalorder %v3570, 18500
        %vm4083 = vcmp.lt.s32.totalorder %v3571, 18500
        %vm4084 = vcmp.lt.s32.totalorder %v3572, 18500
        %vm4085 = vcmp.lt.s32.totalorder %v3573, 18500
        %vm4086 = vcmp.lt.s32.totalorder %v3574, 18500
        %vm4087 = vcmp.lt.s32.totalorder %v3575, 18500
        %vm4088 = vcmp.lt.s32.totalorder %v3576, 18500
        %vm4089 = vcmp.lt.s32.totalorder %v3577, 18500
        %vm4090 = vcmp.lt.s32.totalorder %v3578, 18500
        %vm4091 = vcmp.lt.s32.totalorder %v3579, 18500
        %vm4092 = vcmp.lt.s32.totalorder %v3580, 18500
        %vm4093 = vcmp.lt.s32.totalorder %v3581, 18500
        %vm4094 = vcmp.lt.s32.totalorder %v3582, 18500
        %vm4095 = vcmp.lt.s32.totalorder %v3583, 18500
        %vm4096 = vcmp.lt.s32.totalorder %v3584, 18500
        %vm4097 = vcmp.lt.s32.totalorder %v3585, 18500
        %vm4098 = vcmp.lt.s32.totalorder %v3586, 18500
        %vm4099 = vcmp.lt.s32.totalorder %v3587, 18500
        %vm4100 = vcmp.lt.s32.totalorder %v3588, 18500
        %vm4101 = vcmp.lt.s32.totalorder %v3589, 18500
        %vm4102 = vcmp.lt.s32.totalorder %v3590, 18500
        %vm4103 = vcmp.lt.s32.totalorder %v3591, 18500
        %vm4104 = vcmp.lt.s32.totalorder %v3592, 18500
        %vm4105 = vcmp.lt.s32.totalorder %v3593, 18500
        %vm4106 = vcmp.lt.s32.totalorder %v3594, 18500
        %vm4107 = vcmp.lt.s32.totalorder %v3595, 18500
        %vm4108 = vcmp.lt.s32.totalorder %v3596, 18500
        %vm4109 = vcmp.lt.s32.totalorder %v3597, 18500
        %vm4110 = vcmp.lt.s32.totalorder %v3598, 18500
        %vm4111 = vcmp.lt.s32.totalorder %v3599, 18500
        %vm4112 = vcmp.lt.s32.totalorder %v3600, 18500
        %vm4113 = vcmp.lt.s32.totalorder %v3601, 18500
        %vm4114 = vcmp.lt.s32.totalorder %v3602, 18500
        %vm4115 = vcmp.lt.s32.totalorder %v3603, 18500
        %vm4116 = vcmp.lt.s32.totalorder %v3604, 18500
        %vm4117 = vcmp.lt.s32.totalorder %v3605, 18500
        %vm4118 = vcmp.lt.s32.totalorder %v3606, 18500
        %vm4119 = vcmp.lt.s32.totalorder %v3607, 18500
        %vm4120 = vcmp.lt.s32.totalorder %v3608, 18500
        %vm4121 = vcmp.lt.s32.totalorder %v3609, 18500
        %vm4122 = vcmp.lt.s32.totalorder %v3610, 18500
        %vm4123 = vcmp.lt.s32.totalorder %v3611, 18500
        %vm4124 = vcmp.lt.s32.totalorder %v3612, 18500
        %vm4125 = vcmp.lt.s32.totalorder %v3613, 18500
        %vm4126 = vcmp.lt.s32.totalorder %v3614, 18500
        %vm4127 = vcmp.lt.s32.totalorder %v3615, 18500
        %vm4128 = vcmp.lt.s32.totalorder %v3616, 18500
        %vm4129 = vcmp.lt.s32.totalorder %v3617, 18500
        %vm4130 = vcmp.lt.s32.totalorder %v3618, 18500
        %vm4131 = vcmp.lt.s32.totalorder %v3619, 18500
        %vm4132 = vcmp.lt.s32.totalorder %v3620, 18500
        %vm4133 = vcmp.lt.s32.totalorder %v3621, 18500
        %vm4134 = vcmp.lt.s32.totalorder %v3622, 18500
        %vm4135 = vcmp.lt.s32.totalorder %v3623, 18500
        %vm4136 = vcmp.lt.s32.totalorder %v3624, 18500
        %vm4137 = vcmp.lt.s32.totalorder %v3625, 18500
        %vm4138 = vcmp.lt.s32.totalorder %v3626, 18500
        %vm4139 = vcmp.lt.s32.totalorder %v3627, 18500
        %vm4140 = vcmp.lt.s32.totalorder %v3628, 18500
        %vm4141 = vcmp.lt.s32.totalorder %v3629, 18500
        %vm4142 = vcmp.lt.s32.totalorder %v3630, 18500
        %vm4143 = vcmp.lt.s32.totalorder %v3631, 18500
        %vm4144 = vcmp.lt.s32.totalorder %v3632, 18500
        %vm4145 = vcmp.lt.s32.totalorder %v3633, 18500
        %vm4146 = vcmp.lt.s32.totalorder %v3634, 18500
        %vm4147 = vcmp.lt.s32.totalorder %v3635, 18500
        %vm4148 = vcmp.lt.s32.totalorder %v3636, 18500
        %vm4149 = vcmp.lt.s32.totalorder %v3637, 18500
        %vm4150 = vcmp.lt.s32.totalorder %v3638, 18500
        %vm4151 = vcmp.lt.s32.totalorder %v3639, 18500
        %vm4152 = vcmp.lt.s32.totalorder %v3640, 18500
        %vm4153 = vcmp.lt.s32.totalorder %v3641, 18500
        %vm4154 = vcmp.lt.s32.totalorder %v3642, 18500
        %vm4155 = vcmp.lt.s32.totalorder %v3643, 18500
        %vm4156 = vcmp.lt.s32.totalorder %v3644, 18500
        %vm4157 = vcmp.lt.s32.totalorder %v3645, 18500
        %vm4158 = vcmp.lt.s32.totalorder %v3646, 18500
        %vm4159 = vcmp.lt.s32.totalorder %v3647, 18500
        %vm4160 = vcmp.lt.s32.totalorder %v3648, 18500
        %vm4161 = vcmp.lt.s32.totalorder %v3649, 18500
        %vm4162 = vcmp.lt.s32.totalorder %v3650, 18500
        %vm4163 = vcmp.lt.s32.totalorder %v3651, 18500
        %vm4164 = vcmp.lt.s32.totalorder %v3652, 18500
        %vm4165 = vcmp.lt.s32.totalorder %v3653, 18500
        %vm4166 = vcmp.lt.s32.totalorder %v3654, 18500
        %vm4167 = vcmp.lt.s32.totalorder %v3655, 18500
        %vm4168 = vcmp.lt.s32.totalorder %v3656, 18500
        %vm4169 = vcmp.lt.s32.totalorder %v3657, 18500
        %vm4170 = vcmp.lt.s32.totalorder %v3658, 18500
        %vm4171 = vcmp.lt.s32.totalorder %v3659, 18500
        %vm4172 = vcmp.lt.s32.totalorder %v3660, 18500
        %vm4173 = vcmp.lt.s32.totalorder %v3661, 18500
        %vm4174 = vcmp.lt.s32.totalorder %v3662, 18500
        %vm4175 = vcmp.lt.s32.totalorder %v3663, 18500
        %vm4176 = vcmp.lt.s32.totalorder %v3664, 18500
        %vm4177 = vcmp.lt.s32.totalorder %v3665, 18500
        %vm4178 = vcmp.lt.s32.totalorder %v3666, 18500
        %vm4179 = vcmp.lt.s32.totalorder %v3667, 18500
        %vm4180 = vcmp.lt.s32.totalorder %v3668, 18500
        %vm4181 = vcmp.lt.s32.totalorder %v3669, 18500
        %vm4182 = vcmp.lt.s32.totalorder %v3670, 18500
        %vm4183 = vcmp.lt.s32.totalorder %v3671, 18500
        %vm4184 = vcmp.lt.s32.totalorder %v3672, 18500
        %vm4185 = vcmp.lt.s32.totalorder %v3673, 18500
        %vm4186 = vcmp.lt.s32.totalorder %v3674, 18500
        %vm4187 = vcmp.lt.s32.totalorder %v3675, 18500
        %vm4188 = vcmp.lt.s32.totalorder %v3676, 18500
        %vm4189 = vcmp.lt.s32.totalorder %v3677, 18500
        %vm4190 = vcmp.lt.s32.totalorder %v3678, 18500
        %vm4191 = vcmp.lt.s32.totalorder %v3679, 18500
        %vm4192 = vcmp.lt.s32.totalorder %v3680, 18500
        %vm4193 = vcmp.lt.s32.totalorder %v3681, 18500
        %vm4194 = vcmp.lt.s32.totalorder %v3682, 18500
        %vm4195 = vcmp.lt.s32.totalorder %v3683, 18500
        %vm4196 = vcmp.lt.s32.totalorder %v3684, 18500
        %vm4197 = vcmp.lt.s32.totalorder %v3685, 18500
        %vm4198 = vcmp.lt.s32.totalorder %v3686, 18500
        %vm4199 = vcmp.lt.s32.totalorder %v3687, 18500
        %vm4200 = vcmp.lt.s32.totalorder %v3688, 18500
        %vm4201 = vcmp.lt.s32.totalorder %v3689, 18500
        %vm4202 = vcmp.lt.s32.totalorder %v3690, 18500
        %vm4203 = vcmp.lt.s32.totalorder %v3691, 18500
        %vm4204 = vcmp.lt.s32.totalorder %v3692, 18500
        %vm4205 = vcmp.lt.s32.totalorder %v3693, 18500
        %vm4206 = vcmp.lt.s32.totalorder %v3694, 18500
        %vm4207 = vcmp.lt.s32.totalorder %v3695, 18500
        %vm4208 = vcmp.lt.s32.totalorder %v3696, 18500
        %vm4209 = vcmp.lt.s32.totalorder %v3697, 18500
        %vm4210 = vcmp.lt.s32.totalorder %v3698, 18500
        %vm4211 = vcmp.lt.s32.totalorder %v3699, 18500
        %vm4212 = vcmp.lt.s32.totalorder %v3700, 18500
        %vm4213 = vcmp.lt.s32.totalorder %v3701, 18500
        %vm4214 = vcmp.lt.s32.totalorder %v3702, 18500
        %vm4215 = vcmp.lt.s32.totalorder %v3703, 18500
        %vm4216 = vcmp.lt.s32.totalorder %v3704, 18500
        %vm4217 = vcmp.lt.s32.totalorder %v3705, 18500
        %vm4218 = vcmp.lt.s32.totalorder %v3706, 18500
        %vm4219 = vcmp.lt.s32.totalorder %v3707, 18500
        %vm4220 = vcmp.lt.s32.totalorder %v3708, 18500
        %vm4221 = vcmp.lt.s32.totalorder %v3709, 18500
        %vm4222 = vcmp.lt.s32.totalorder %v3710, 18500
        %vm4223 = vcmp.lt.s32.totalorder %v3711, 18500
        %vm4224 = vcmp.lt.s32.totalorder %v3712, 18500
        %vm4225 = vcmp.lt.s32.totalorder %v3713, 18500
        %vm4226 = vcmp.lt.s32.totalorder %v3714, 18500
        %vm4227 = vcmp.lt.s32.totalorder %v3715, 18500
        %vm4228 = vcmp.lt.s32.totalorder %v3716, 18500
        %vm4229 = vcmp.lt.s32.totalorder %v3717, 18500
        %vm4230 = vcmp.lt.s32.totalorder %v3718, 18500
        %vm4231 = vcmp.lt.s32.totalorder %v3719, 18500
        %vm4232 = vcmp.lt.s32.totalorder %v3720, 18500
        %vm4233 = vcmp.lt.s32.totalorder %v3721, 18500
        %vm4234 = vcmp.lt.s32.totalorder %v3722, 18500
        %vm4235 = vcmp.lt.s32.totalorder %v3723, 18500
        %vm4236 = vcmp.lt.s32.totalorder %v3724, 18500
        %vm4237 = vcmp.lt.s32.totalorder %v3725, 18500
        %vm4238 = vcmp.lt.s32.totalorder %v3726, 18500
        %vm4239 = vcmp.lt.s32.totalorder %v3727, 18500
        %vm4240 = vcmp.lt.s32.totalorder %v3728, 18500
        %vm4241 = vcmp.lt.s32.totalorder %v3729, 18500
        %vm4242 = vcmp.lt.s32.totalorder %v3730, 18500
        %vm4243 = vcmp.lt.s32.totalorder %v3731, 18500
        %vm4244 = vcmp.lt.s32.totalorder %v3732, 18500
        %vm4245 = vcmp.lt.s32.totalorder %v3733, 18500
        %vm4246 = vcmp.lt.s32.totalorder %v3734, 18500
        %vm4247 = vcmp.lt.s32.totalorder %v3735, 18500
        %vm4248 = vcmp.lt.s32.totalorder %v3736, 18500
        %vm4249 = vcmp.lt.s32.totalorder %v3737, 18500
        %vm4250 = vcmp.lt.s32.totalorder %v3738, 18500
        %vm4251 = vcmp.lt.s32.totalorder %v3739, 18500
        %vm4252 = vcmp.lt.s32.totalorder %v3740, 18500
        %vm4253 = vcmp.lt.s32.totalorder %v3741, 18500
        %vm4254 = vcmp.lt.s32.totalorder %v3742, 18500
        %vm4255 = vcmp.lt.s32.totalorder %v3743, 18500
        %vm4256 = vcmp.lt.s32.totalorder %v3744, 18500
        %vm4257 = vcmp.lt.s32.totalorder %v3745, 18500
        %vm4258 = vcmp.lt.s32.totalorder %v3746, 18500
        %vm4259 = vcmp.lt.s32.totalorder %v3747, 18500
        %vm4260 = vcmp.lt.s32.totalorder %v3748, 18500
        %vm4261 = vcmp.lt.s32.totalorder %v3749, 18500
        %vm4262 = vcmp.lt.s32.totalorder %v3750, 18500
        %vm4263 = vcmp.lt.s32.totalorder %v3751, 18500
        %vm4264 = vcmp.lt.s32.totalorder %v3752, 18500
        %vm4265 = vcmp.lt.s32.totalorder %v3753, 18500
        %vm4266 = vcmp.lt.s32.totalorder %v3754, 18500
        %vm4267 = vcmp.lt.s32.totalorder %v3755, 18500
        %vm4268 = vcmp.lt.s32.totalorder %v3756, 18500
        %vm4269 = vcmp.lt.s32.totalorder %v3757, 18500
        %vm4270 = vcmp.lt.s32.totalorder %v3758, 18500
        %vm4271 = vcmp.lt.s32.totalorder %v3759, 18500
        %vm4272 = vcmp.lt.s32.totalorder %v3760, 18500
        %vm4273 = vcmp.lt.s32.totalorder %v3761, 18500
        %vm4274 = vcmp.lt.s32.totalorder %v3762, 18500
        %vm4275 = vcmp.lt.s32.totalorder %v3763, 18500
        %vm4276 = vcmp.lt.s32.totalorder %v3764, 18500
        %vm4277 = vcmp.lt.s32.totalorder %v3765, 18500
        %vm4278 = vcmp.lt.s32.totalorder %v3766, 18500
        %vm4279 = vcmp.lt.s32.totalorder %v3767, 18500
        %vm4280 = vcmp.lt.s32.totalorder %v3768, 18500
        %vm4281 = vcmp.lt.s32.totalorder %v3769, 18500
        %vm4282 = vcmp.lt.s32.totalorder %v3770, 18500
        %vm4283 = vcmp.lt.s32.totalorder %v3771, 18500
        %vm4284 = vcmp.lt.s32.totalorder %v3772, 18500
        %vm4285 = vcmp.lt.s32.totalorder %v3773, 18500
        %vm4286 = vcmp.lt.s32.totalorder %v3774, 18500
        %vm4287 = vcmp.lt.s32.totalorder %v3775, 18500
        %vm4288 = vcmp.lt.s32.totalorder %v3776, 18500
        %vm4289 = vcmp.lt.s32.totalorder %v3777, 18500
        %vm4290 = vcmp.lt.s32.totalorder %v3778, 18500
        %vm4291 = vcmp.lt.s32.totalorder %v3779, 18500
        %vm4292 = vcmp.lt.s32.totalorder %v3780, 18500
        %vm4293 = vcmp.lt.s32.totalorder %v3781, 18500
        %vm4294 = vcmp.lt.s32.totalorder %v3782, 18500
        %vm4295 = vcmp.lt.s32.totalorder %v3783, 18500
        %vm4296 = vcmp.lt.s32.totalorder %v3784, 18500
        %vm4297 = vcmp.lt.s32.totalorder %v3785, 18500
        %vm4298 = vcmp.lt.s32.totalorder %v3786, 18500
        %vm4299 = vcmp.lt.s32.totalorder %v3787, 18500
        %vm4300 = vcmp.lt.s32.totalorder %v3788, 18500
        %vm4301 = vcmp.lt.s32.totalorder %v3789, 18500
        %vm4302 = vcmp.lt.s32.totalorder %v3790, 18500
        %vm4303 = vcmp.lt.s32.totalorder %v3791, 18500
        %vm4304 = vcmp.lt.s32.totalorder %v3792, 18500
        %vm4305 = vcmp.lt.s32.totalorder %v3793, 18500
        %vm4306 = vcmp.lt.s32.totalorder %v3794, 18500
        %vm4307 = vcmp.lt.s32.totalorder %v3795, 18500
        %vm4308 = vcmp.lt.s32.totalorder %v3796, 18500
        %vm4309 = vcmp.lt.s32.totalorder %v3797, 18500
        %vm4310 = vcmp.lt.s32.totalorder %v3798, 18500
        %vm4311 = vcmp.lt.s32.totalorder %v3799, 18500
        %vm4312 = vcmp.lt.s32.totalorder %v3800, 18500
        %vm4313 = vcmp.lt.s32.totalorder %v3801, 18500
        %vm4314 = vcmp.lt.s32.totalorder %v3802, 18500
        %vm4315 = vcmp.lt.s32.totalorder %v3803, 18500
        %vm4316 = vcmp.lt.s32.totalorder %v3804, 18500
        %vm4317 = vcmp.lt.s32.totalorder %v3805, 18500
        %vm4318 = vcmp.lt.s32.totalorder %v3806, 18500
        %vm4319 = vcmp.lt.s32.totalorder %v3807, 18500
        %vm4320 = vcmp.lt.s32.totalorder %v3808, 18500
        %vm4321 = vcmp.lt.s32.totalorder %v3809, 18500
        %vm4322 = vcmp.lt.s32.totalorder %v3810, 18500
        %vm4323 = vcmp.lt.s32.totalorder %v3811, 18500
        %vm4324 = vcmp.lt.s32.totalorder %v3812, 18500
        %vm4325 = vcmp.lt.s32.totalorder %v3813, 18500
        %vm4326 = vcmp.lt.s32.totalorder %v3814, 18500
        %vm4327 = vcmp.lt.s32.totalorder %v3815, 18500
        %vm4328 = vcmp.lt.s32.totalorder %v3816, 18500
        %vm4329 = vcmp.lt.s32.totalorder %v3817, 18500
        %vm4330 = vcmp.lt.s32.totalorder %v3818, 18500
        %vm4331 = vcmp.lt.s32.totalorder %v3819, 18500
        %vm4332 = vcmp.lt.s32.totalorder %v3820, 18500
        %vm4333 = vcmp.lt.s32.totalorder %v3821, 18500
        %vm4334 = vcmp.lt.s32.totalorder %v3822, 18500
        %vm4335 = vcmp.lt.s32.totalorder %v3823, 18500
        %vm4336 = vcmp.lt.s32.totalorder %v3824, 18500
        %vm4337 = vcmp.lt.s32.totalorder %v3825, 18500
        %vm4338 = vcmp.lt.s32.totalorder %v3826, 18500
        %vm4339 = vcmp.lt.s32.totalorder %v3827, 18500
        %vm4340 = vcmp.lt.s32.totalorder %v3828, 18500
        %vm4341 = vcmp.lt.s32.totalorder %v3829, 18500
        %vm4342 = vcmp.lt.s32.totalorder %v3830, 18500
        %vm4343 = vcmp.lt.s32.totalorder %v3831, 18500
        %vm4344 = vcmp.lt.s32.totalorder %v3832, 18500
        %vm4345 = vcmp.lt.s32.totalorder %v3833, 18500
        %vm4346 = vcmp.lt.s32.totalorder %v3834, 18500
        %vm4347 = vcmp.lt.s32.totalorder %v3835, 18500
        %vm4348 = vcmp.lt.s32.totalorder %v3836, 18500
        %vm4349 = vcmp.lt.s32.totalorder %v3837, 18500
        %vm4350 = vcmp.lt.s32.totalorder %v3838, 18500
        %vm4351 = vcmp.lt.s32.totalorder %v3839, 18500
        %vm4352 = vcmp.lt.s32.totalorder %v3840, 18500
        %vm4353 = vcmp.lt.s32.totalorder %v3841, 18500
        %vm4354 = vcmp.lt.s32.totalorder %v3842, 18500
        %vm4355 = vcmp.lt.s32.totalorder %v3843, 18500
        %vm4356 = vcmp.lt.s32.totalorder %v3844, 18500
        %vm4357 = vcmp.lt.s32.totalorder %v3845, 18500
        %vm4358 = vcmp.lt.s32.totalorder %v3846, 18500
        %vm4359 = vcmp.lt.s32.totalorder %v3847, 18500
        %vm4360 = vcmp.lt.s32.totalorder %v3848, 18500
        %vm4361 = vcmp.lt.s32.totalorder %v3849, 18500
        %vm4362 = vcmp.lt.s32.totalorder %v3850, 18500
        %vm4363 = vcmp.lt.s32.totalorder %v3851, 18500
        %vm4364 = vcmp.lt.s32.totalorder %v3852, 18500
        %vm4365 = vcmp.lt.s32.totalorder %v3853, 18500
        %vm4366 = vcmp.lt.s32.totalorder %v3854, 18500
        %vm4367 = vcmp.lt.s32.totalorder %v3855, 18500
        %vm4368 = vcmp.lt.s32.totalorder %v3856, 18500
        %vm4369 = vcmp.lt.s32.totalorder %v3857, 18500
        %vm4370 = vcmp.lt.s32.totalorder %v3858, 18500
        %vm4371 = vcmp.lt.s32.totalorder %v3859, 18500
        %v4372 = vsel %vm3860, %v2319, 0.0
        %v4373 = vsel %vm3861, %v2320, 0.0
        %v4374 = vsel %vm3862, %v2321, 0.0
        %v4375 = vsel %vm3863, %v2322, 0.0
        %v4376 = vsel %vm3864, %v2323, 0.0
        %v4377 = vsel %vm3865, %v2324, 0.0
        %v4378 = vsel %vm3866, %v2325, 0.0
        %v4379 = vsel %vm3867, %v2326, 0.0
        %v4380 = vsel %vm3868, %v2327, 0.0
        %v4381 = vsel %vm3869, %v2328, 0.0
        %v4382 = vsel %vm3870, %v2329, 0.0
        %v4383 = vsel %vm3871, %v2330, 0.0
        %v4384 = vsel %vm3872, %v2331, 0.0
        %v4385 = vsel %vm3873, %v2332, 0.0
        %v4386 = vsel %vm3874, %v2333, 0.0
        %v4387 = vsel %vm3875, %v2334, 0.0
        %v4388 = vsel %vm3876, %v2335, 0.0
        %v4389 = vsel %vm3877, %v2336, 0.0
        %v4390 = vsel %vm3878, %v2337, 0.0
        %v4391 = vsel %vm3879, %v2338, 0.0
        %v4392 = vsel %vm3880, %v2339, 0.0
        %v4393 = vsel %vm3881, %v2340, 0.0
        %v4394 = vsel %vm3882, %v2341, 0.0
        %v4395 = vsel %vm3883, %v2342, 0.0
        %v4396 = vsel %vm3884, %v2343, 0.0
        %v4397 = vsel %vm3885, %v2344, 0.0
        %v4398 = vsel %vm3886, %v2345, 0.0
        %v4399 = vsel %vm3887, %v2346, 0.0
        %v4400 = vsel %vm3888, %v2347, 0.0
        %v4401 = vsel %vm3889, %v2348, 0.0
        %v4402 = vsel %vm3890, %v2349, 0.0
        %v4403 = vsel %vm3891, %v2350, 0.0
        %v4404 = vsel %vm3892, %v2351, 0.0
        %v4405 = vsel %vm3893, %v2352, 0.0
        %v4406 = vsel %vm3894, %v2353, 0.0
        %v4407 = vsel %vm3895, %v2354, 0.0
        %v4408 = vsel %vm3896, %v2355, 0.0
        %v4409 = vsel %vm3897, %v2356, 0.0
        %v4410 = vsel %vm3898, %v2357, 0.0
        %v4411 = vsel %vm3899, %v2358, 0.0
        %v4412 = vsel %vm3900, %v2359, 0.0
        %v4413 = vsel %vm3901, %v2360, 0.0
        %v4414 = vsel %vm3902, %v2361, 0.0
        %v4415 = vsel %vm3903, %v2362, 0.0
        %v4416 = vsel %vm3904, %v2363, 0.0
        %v4417 = vsel %vm3905, %v2364, 0.0
        %v4418 = vsel %vm3906, %v2365, 0.0
        %v4419 = vsel %vm3907, %v2366, 0.0
        %v4420 = vsel %vm3908, %v2367, 0.0
        %v4421 = vsel %vm3909, %v2368, 0.0
        %v4422 = vsel %vm3910, %v2369, 0.0
        %v4423 = vsel %vm3911, %v2370, 0.0
        %v4424 = vsel %vm3912, %v2371, 0.0
        %v4425 = vsel %vm3913, %v2372, 0.0
        %v4426 = vsel %vm3914, %v2373, 0.0
        %v4427 = vsel %vm3915, %v2374, 0.0
        %v4428 = vsel %vm3916, %v2375, 0.0
        %v4429 = vsel %vm3917, %v2376, 0.0
        %v4430 = vsel %vm3918, %v2377, 0.0
        %v4431 = vsel %vm3919, %v2378, 0.0
        %v4432 = vsel %vm3920, %v2379, 0.0
        %v4433 = vsel %vm3921, %v2380, 0.0
        %v4434 = vsel %vm3922, %v2381, 0.0
        %v4435 = vsel %vm3923, %v2382, 0.0
        %v4436 = vsel %vm3924, %v2383, 0.0
        %v4437 = vsel %vm3925, %v2384, 0.0
        %v4438 = vsel %vm3926, %v2385, 0.0
        %v4439 = vsel %vm3927, %v2386, 0.0
        %v4440 = vsel %vm3928, %v2387, 0.0
        %v4441 = vsel %vm3929, %v2388, 0.0
        %v4442 = vsel %vm3930, %v2389, 0.0
        %v4443 = vsel %vm3931, %v2390, 0.0
        %v4444 = vsel %vm3932, %v2391, 0.0
        %v4445 = vsel %vm3933, %v2392, 0.0
        %v4446 = vsel %vm3934, %v2393, 0.0
        %v4447 = vsel %vm3935, %v2394, 0.0
        %v4448 = vsel %vm3936, %v2395, 0.0
        %v4449 = vsel %vm3937, %v2396, 0.0
        %v4450 = vsel %vm3938, %v2397, 0.0
        %v4451 = vsel %vm3939, %v2398, 0.0
        %v4452 = vsel %vm3940, %v2399, 0.0
        %v4453 = vsel %vm3941, %v2400, 0.0
        %v4454 = vsel %vm3942, %v2401, 0.0
        %v4455 = vsel %vm3943, %v2402, 0.0
        %v4456 = vsel %vm3944, %v2403, 0.0
        %v4457 = vsel %vm3945, %v2404, 0.0
        %v4458 = vsel %vm3946, %v2405, 0.0
        %v4459 = vsel %vm3947, %v2406, 0.0
        %v4460 = vsel %vm3948, %v2407, 0.0
        %v4461 = vsel %vm3949, %v2408, 0.0
        %v4462 = vsel %vm3950, %v2409, 0.0
        %v4463 = vsel %vm3951, %v2410, 0.0
        %v4464 = vsel %vm3952, %v2411, 0.0
        %v4465 = vsel %vm3953, %v2412, 0.0
        %v4466 = vsel %vm3954, %v2413, 0.0
        %v4467 = vsel %vm3955, %v2414, 0.0
        %v4468 = vsel %vm3956, %v2415, 0.0
        %v4469 = vsel %vm3957, %v2416, 0.0
        %v4470 = vsel %vm3958, %v2417, 0.0
        %v4471 = vsel %vm3959, %v2418, 0.0
        %v4472 = vsel %vm3960, %v2419, 0.0
        %v4473 = vsel %vm3961, %v2420, 0.0
        %v4474 = vsel %vm3962, %v2421, 0.0
        %v4475 = vsel %vm3963, %v2422, 0.0
        %v4476 = vsel %vm3964, %v2423, 0.0
        %v4477 = vsel %vm3965, %v2424, 0.0
        %v4478 = vsel %vm3966, %v2425, 0.0
        %v4479 = vsel %vm3967, %v2426, 0.0
        %v4480 = vsel %vm3968, %v2427, 0.0
        %v4481 = vsel %vm3969, %v2428, 0.0
        %v4482 = vsel %vm3970, %v2429, 0.0
        %v4483 = vsel %vm3971, %v2430, 0.0
        %v4484 = vsel %vm3972, %v2431, 0.0
        %v4485 = vsel %vm3973, %v2432, 0.0
        %v4486 = vsel %vm3974, %v2433, 0.0
        %v4487 = vsel %vm3975, %v2434, 0.0
        %v4488 = vsel %vm3976, %v2435, 0.0
        %v4489 = vsel %vm3977, %v2436, 0.0
        %v4490 = vsel %vm3978, %v2437, 0.0
        %v4491 = vsel %vm3979, %v2438, 0.0
        %v4492 = vsel %vm3980, %v2439, 0.0
        %v4493 = vsel %vm3981, %v2440, 0.0
        %v4494 = vsel %vm3982, %v2441, 0.0
        %v4495 = vsel %vm3983, %v2442, 0.0
        %v4496 = vsel %vm3984, %v2443, 0.0
        %v4497 = vsel %vm3985, %v2444, 0.0
        %v4498 = vsel %vm3986, %v2445, 0.0
        %v4499 = vsel %vm3987, %v2446, 0.0
        %v4500 = vsel %vm3988, %v2447, 0.0
        %v4501 = vsel %vm3989, %v2448, 0.0
        %v4502 = vsel %vm3990, %v2449, 0.0
        %v4503 = vsel %vm3991, %v2450, 0.0
        %v4504 = vsel %vm3992, %v2451, 0.0
        %v4505 = vsel %vm3993, %v2452, 0.0
        %v4506 = vsel %vm3994, %v2453, 0.0
        %v4507 = vsel %vm3995, %v2454, 0.0
        %v4508 = vsel %vm3996, %v2455, 0.0
        %v4509 = vsel %vm3997, %v2456, 0.0
        %v4510 = vsel %vm3998, %v2457, 0.0
        %v4511 = vsel %vm3999, %v2458, 0.0
        %v4512 = vsel %vm4000, %v2459, 0.0
        %v4513 = vsel %vm4001, %v2460, 0.0
        %v4514 = vsel %vm4002, %v2461, 0.0
        %v4515 = vsel %vm4003, %v2462, 0.0
        %v4516 = vsel %vm4004, %v2463, 0.0
        %v4517 = vsel %vm4005, %v2464, 0.0
        %v4518 = vsel %vm4006, %v2465, 0.0
        %v4519 = vsel %vm4007, %v2466, 0.0
        %v4520 = vsel %vm4008, %v2467, 0.0
        %v4521 = vsel %vm4009, %v2468, 0.0
        %v4522 = vsel %vm4010, %v2469, 0.0
        %v4523 = vsel %vm4011, %v2470, 0.0
        %v4524 = vsel %vm4012, %v2471, 0.0
        %v4525 = vsel %vm4013, %v2472, 0.0
        %v4526 = vsel %vm4014, %v2473, 0.0
        %v4527 = vsel %vm4015, %v2474, 0.0
        %v4528 = vsel %vm4016, %v2475, 0.0
        %v4529 = vsel %vm4017, %v2476, 0.0
        %v4530 = vsel %vm4018, %v2477, 0.0
        %v4531 = vsel %vm4019, %v2478, 0.0
        %v4532 = vsel %vm4020, %v2479, 0.0
        %v4533 = vsel %vm4021, %v2480, 0.0
        %v4534 = vsel %vm4022, %v2481, 0.0
        %v4535 = vsel %vm4023, %v2482, 0.0
        %v4536 = vsel %vm4024, %v2483, 0.0
        %v4537 = vsel %vm4025, %v2484, 0.0
        %v4538 = vsel %vm4026, %v2485, 0.0
        %v4539 = vsel %vm4027, %v2486, 0.0
        %v4540 = vsel %vm4028, %v2487, 0.0
        %v4541 = vsel %vm4029, %v2488, 0.0
        %v4542 = vsel %vm4030, %v2489, 0.0
        %v4543 = vsel %vm4031, %v2490, 0.0
        %v4544 = vsel %vm4032, %v2491, 0.0
        %v4545 = vsel %vm4033, %v2492, 0.0
        %v4546 = vsel %vm4034, %v2493, 0.0
        %v4547 = vsel %vm4035, %v2494, 0.0
        %v4548 = vsel %vm4036, %v2495, 0.0
        %v4549 = vsel %vm4037, %v2496, 0.0
        %v4550 = vsel %vm4038, %v2497, 0.0
        %v4551 = vsel %vm4039, %v2498, 0.0
        %v4552 = vsel %vm4040, %v2499, 0.0
        %v4553 = vsel %vm4041, %v2500, 0.0
        %v4554 = vsel %vm4042, %v2501, 0.0
        %v4555 = vsel %vm4043, %v2502, 0.0
        %v4556 = vsel %vm4044, %v2503, 0.0
        %v4557 = vsel %vm4045, %v2504, 0.0
        %v4558 = vsel %vm4046, %v2505, 0.0
        %v4559 = vsel %vm4047, %v2506, 0.0
        %v4560 = vsel %vm4048, %v2507, 0.0
        %v4561 = vsel %vm4049, %v2508, 0.0
        %v4562 = vsel %vm4050, %v2509, 0.0
        %v4563 = vsel %vm4051, %v2510, 0.0
        %v4564 = vsel %vm4052, %v2511, 0.0
        %v4565 = vsel %vm4053, %v2512, 0.0
        %v4566 = vsel %vm4054, %v2513, 0.0
        %v4567 = vsel %vm4055, %v2514, 0.0
        %v4568 = vsel %vm4056, %v2515, 0.0
        %v4569 = vsel %vm4057, %v2516, 0.0
        %v4570 = vsel %vm4058, %v2517, 0.0
        %v4571 = vsel %vm4059, %v2518, 0.0
        %v4572 = vsel %vm4060, %v2519, 0.0
        %v4573 = vsel %vm4061, %v2520, 0.0
        %v4574 = vsel %vm4062, %v2521, 0.0
        %v4575 = vsel %vm4063, %v2522, 0.0
        %v4576 = vsel %vm4064, %v2523, 0.0
        %v4577 = vsel %vm4065, %v2524, 0.0
        %v4578 = vsel %vm4066, %v2525, 0.0
        %v4579 = vsel %vm4067, %v2526, 0.0
        %v4580 = vsel %vm4068, %v2527, 0.0
        %v4581 = vsel %vm4069, %v2528, 0.0
        %v4582 = vsel %vm4070, %v2529, 0.0
        %v4583 = vsel %vm4071, %v2530, 0.0
        %v4584 = vsel %vm4072, %v2531, 0.0
        %v4585 = vsel %vm4073, %v2532, 0.0
        %v4586 = vsel %vm4074, %v2533, 0.0
        %v4587 = vsel %vm4075, %v2534, 0.0
        %v4588 = vsel %vm4076, %v2535, 0.0
        %v4589 = vsel %vm4077, %v2536, 0.0
        %v4590 = vsel %vm4078, %v2537, 0.0
        %v4591 = vsel %vm4079, %v2538, 0.0
        %v4592 = vsel %vm4080, %v2539, 0.0
        %v4593 = vsel %vm4081, %v2540, 0.0
        %v4594 = vsel %vm4082, %v2541, 0.0
        %v4595 = vsel %vm4083, %v2542, 0.0
        %v4596 = vsel %vm4084, %v2543, 0.0
        %v4597 = vsel %vm4085, %v2544, 0.0
        %v4598 = vsel %vm4086, %v2545, 0.0
        %v4599 = vsel %vm4087, %v2546, 0.0
        %v4600 = vsel %vm4088, %v2547, 0.0
        %v4601 = vsel %vm4089, %v2548, 0.0
        %v4602 = vsel %vm4090, %v2549, 0.0
        %v4603 = vsel %vm4091, %v2550, 0.0
        %v4604 = vsel %vm4092, %v2551, 0.0
        %v4605 = vsel %vm4093, %v2552, 0.0
        %v4606 = vsel %vm4094, %v2553, 0.0
        %v4607 = vsel %vm4095, %v2554, 0.0
        %v4608 = vsel %vm4096, %v2555, 0.0
        %v4609 = vsel %vm4097, %v2556, 0.0
        %v4610 = vsel %vm4098, %v2557, 0.0
        %v4611 = vsel %vm4099, %v2558, 0.0
        %v4612 = vsel %vm4100, %v2559, 0.0
        %v4613 = vsel %vm4101, %v2560, 0.0
        %v4614 = vsel %vm4102, %v2561, 0.0
        %v4615 = vsel %vm4103, %v2562, 0.0
        %v4616 = vsel %vm4104, %v2563, 0.0
        %v4617 = vsel %vm4105, %v2564, 0.0
        %v4618 = vsel %vm4106, %v2565, 0.0
        %v4619 = vsel %vm4107, %v2566, 0.0
        %v4620 = vsel %vm4108, %v2567, 0.0
        %v4621 = vsel %vm4109, %v2568, 0.0
        %v4622 = vsel %vm4110, %v2569, 0.0
        %v4623 = vsel %vm4111, %v2570, 0.0
        %v4624 = vsel %vm4112, %v2571, 0.0
        %v4625 = vsel %vm4113, %v2572, 0.0
        %v4626 = vsel %vm4114, %v2573, 0.0
        %v4627 = vsel %vm4115, %v2574, 0.0
        %v4628 = vsel %vm4116, %v2575, 0.0
        %v4629 = vsel %vm4117, %v2576, 0.0
        %v4630 = vsel %vm4118, %v2577, 0.0
        %v4631 = vsel %vm4119, %v2578, 0.0
        %v4632 = vsel %vm4120, %v2579, 0.0
        %v4633 = vsel %vm4121, %v2580, 0.0
        %v4634 = vsel %vm4122, %v2581, 0.0
        %v4635 = vsel %vm4123, %v2582, 0.0
        %v4636 = vsel %vm4124, %v2583, 0.0
        %v4637 = vsel %vm4125, %v2584, 0.0
        %v4638 = vsel %vm4126, %v2585, 0.0
        %v4639 = vsel %vm4127, %v2586, 0.0
        %v4640 = vsel %vm4128, %v2587, 0.0
        %v4641 = vsel %vm4129, %v2588, 0.0
        %v4642 = vsel %vm4130, %v2589, 0.0
        %v4643 = vsel %vm4131, %v2590, 0.0
        %v4644 = vsel %vm4132, %v2591, 0.0
        %v4645 = vsel %vm4133, %v2592, 0.0
        %v4646 = vsel %vm4134, %v2593, 0.0
        %v4647 = vsel %vm4135, %v2594, 0.0
        %v4648 = vsel %vm4136, %v2595, 0.0
        %v4649 = vsel %vm4137, %v2596, 0.0
        %v4650 = vsel %vm4138, %v2597, 0.0
        %v4651 = vsel %vm4139, %v2598, 0.0
        %v4652 = vsel %vm4140, %v2599, 0.0
        %v4653 = vsel %vm4141, %v2600, 0.0
        %v4654 = vsel %vm4142, %v2601, 0.0
        %v4655 = vsel %vm4143, %v2602, 0.0
        %v4656 = vsel %vm4144, %v2603, 0.0
        %v4657 = vsel %vm4145, %v2604, 0.0
        %v4658 = vsel %vm4146, %v2605, 0.0
        %v4659 = vsel %vm4147, %v2606, 0.0
        %v4660 = vsel %vm4148, %v2607, 0.0
        %v4661 = vsel %vm4149, %v2608, 0.0
        %v4662 = vsel %vm4150, %v2609, 0.0
        %v4663 = vsel %vm4151, %v2610, 0.0
        %v4664 = vsel %vm4152, %v2611, 0.0
        %v4665 = vsel %vm4153, %v2612, 0.0
        %v4666 = vsel %vm4154, %v2613, 0.0
        %v4667 = vsel %vm4155, %v2614, 0.0
        %v4668 = vsel %vm4156, %v2615, 0.0
        %v4669 = vsel %vm4157, %v2616, 0.0
        %v4670 = vsel %vm4158, %v2617, 0.0
        %v4671 = vsel %vm4159, %v2618, 0.0
        %v4672 = vsel %vm4160, %v2619, 0.0
        %v4673 = vsel %vm4161, %v2620, 0.0
        %v4674 = vsel %vm4162, %v2621, 0.0
        %v4675 = vsel %vm4163, %v2622, 0.0
        %v4676 = vsel %vm4164, %v2623, 0.0
        %v4677 = vsel %vm4165, %v2624, 0.0
        %v4678 = vsel %vm4166, %v2625, 0.0
        %v4679 = vsel %vm4167, %v2626, 0.0
        %v4680 = vsel %vm4168, %v2627, 0.0
        %v4681 = vsel %vm4169, %v2628, 0.0
        %v4682 = vsel %vm4170, %v2629, 0.0
        %v4683 = vsel %vm4171, %v2630, 0.0
        %v4684 = vsel %vm4172, %v2631, 0.0
        %v4685 = vsel %vm4173, %v2632, 0.0
        %v4686 = vsel %vm4174, %v2633, 0.0
        %v4687 = vsel %vm4175, %v2634, 0.0
        %v4688 = vsel %vm4176, %v2635, 0.0
        %v4689 = vsel %vm4177, %v2636, 0.0
        %v4690 = vsel %vm4178, %v2637, 0.0
        %v4691 = vsel %vm4179, %v2638, 0.0
        %v4692 = vsel %vm4180, %v2639, 0.0
        %v4693 = vsel %vm4181, %v2640, 0.0
        %v4694 = vsel %vm4182, %v2641, 0.0
        %v4695 = vsel %vm4183, %v2642, 0.0
        %v4696 = vsel %vm4184, %v2643, 0.0
        %v4697 = vsel %vm4185, %v2644, 0.0
        %v4698 = vsel %vm4186, %v2645, 0.0
        %v4699 = vsel %vm4187, %v2646, 0.0
        %v4700 = vsel %vm4188, %v2647, 0.0
        %v4701 = vsel %vm4189, %v2648, 0.0
        %v4702 = vsel %vm4190, %v2649, 0.0
        %v4703 = vsel %vm4191, %v2650, 0.0
        %v4704 = vsel %vm4192, %v2651, 0.0
        %v4705 = vsel %vm4193, %v2652, 0.0
        %v4706 = vsel %vm4194, %v2653, 0.0
        %v4707 = vsel %vm4195, %v2654, 0.0
        %v4708 = vsel %vm4196, %v2655, 0.0
        %v4709 = vsel %vm4197, %v2656, 0.0
        %v4710 = vsel %vm4198, %v2657, 0.0
        %v4711 = vsel %vm4199, %v2658, 0.0
        %v4712 = vsel %vm4200, %v2659, 0.0
        %v4713 = vsel %vm4201, %v2660, 0.0
        %v4714 = vsel %vm4202, %v2661, 0.0
        %v4715 = vsel %vm4203, %v2662, 0.0
        %v4716 = vsel %vm4204, %v2663, 0.0
        %v4717 = vsel %vm4205, %v2664, 0.0
        %v4718 = vsel %vm4206, %v2665, 0.0
        %v4719 = vsel %vm4207, %v2666, 0.0
        %v4720 = vsel %vm4208, %v2667, 0.0
        %v4721 = vsel %vm4209, %v2668, 0.0
        %v4722 = vsel %vm4210, %v2669, 0.0
        %v4723 = vsel %vm4211, %v2670, 0.0
        %v4724 = vsel %vm4212, %v2671, 0.0
        %v4725 = vsel %vm4213, %v2672, 0.0
        %v4726 = vsel %vm4214, %v2673, 0.0
        %v4727 = vsel %vm4215, %v2674, 0.0
        %v4728 = vsel %vm4216, %v2675, 0.0
        %v4729 = vsel %vm4217, %v2676, 0.0
        %v4730 = vsel %vm4218, %v2677, 0.0
        %v4731 = vsel %vm4219, %v2678, 0.0
        %v4732 = vsel %vm4220, %v2679, 0.0
        %v4733 = vsel %vm4221, %v2680, 0.0
        %v4734 = vsel %vm4222, %v2681, 0.0
        %v4735 = vsel %vm4223, %v2682, 0.0
        %v4736 = vsel %vm4224, %v2683, 0.0
        %v4737 = vsel %vm4225, %v2684, 0.0
        %v4738 = vsel %vm4226, %v2685, 0.0
        %v4739 = vsel %vm4227, %v2686, 0.0
        %v4740 = vsel %vm4228, %v2687, 0.0
        %v4741 = vsel %vm4229, %v2688, 0.0
        %v4742 = vsel %vm4230, %v2689, 0.0
        %v4743 = vsel %vm4231, %v2690, 0.0
        %v4744 = vsel %vm4232, %v2691, 0.0
        %v4745 = vsel %vm4233, %v2692, 0.0
        %v4746 = vsel %vm4234, %v2693, 0.0
        %v4747 = vsel %vm4235, %v2694, 0.0
        %v4748 = vsel %vm4236, %v2695, 0.0
        %v4749 = vsel %vm4237, %v2696, 0.0
        %v4750 = vsel %vm4238, %v2697, 0.0
        %v4751 = vsel %vm4239, %v2698, 0.0
        %v4752 = vsel %vm4240, %v2699, 0.0
        %v4753 = vsel %vm4241, %v2700, 0.0
        %v4754 = vsel %vm4242, %v2701, 0.0
        %v4755 = vsel %vm4243, %v2702, 0.0
        %v4756 = vsel %vm4244, %v2703, 0.0
        %v4757 = vsel %vm4245, %v2704, 0.0
        %v4758 = vsel %vm4246, %v2705, 0.0
        %v4759 = vsel %vm4247, %v2706, 0.0
        %v4760 = vsel %vm4248, %v2707, 0.0
        %v4761 = vsel %vm4249, %v2708, 0.0
        %v4762 = vsel %vm4250, %v2709, 0.0
        %v4763 = vsel %vm4251, %v2710, 0.0
        %v4764 = vsel %vm4252, %v2711, 0.0
        %v4765 = vsel %vm4253, %v2712, 0.0
        %v4766 = vsel %vm4254, %v2713, 0.0
        %v4767 = vsel %vm4255, %v2714, 0.0
        %v4768 = vsel %vm4256, %v2715, 0.0
        %v4769 = vsel %vm4257, %v2716, 0.0
        %v4770 = vsel %vm4258, %v2717, 0.0
        %v4771 = vsel %vm4259, %v2718, 0.0
        %v4772 = vsel %vm4260, %v2719, 0.0
        %v4773 = vsel %vm4261, %v2720, 0.0
        %v4774 = vsel %vm4262, %v2721, 0.0
        %v4775 = vsel %vm4263, %v2722, 0.0
        %v4776 = vsel %vm4264, %v2723, 0.0
        %v4777 = vsel %vm4265, %v2724, 0.0
        %v4778 = vsel %vm4266, %v2725, 0.0
        %v4779 = vsel %vm4267, %v2726, 0.0
        %v4780 = vsel %vm4268, %v2727, 0.0
        %v4781 = vsel %vm4269, %v2728, 0.0
        %v4782 = vsel %vm4270, %v2729, 0.0
        %v4783 = vsel %vm4271, %v2730, 0.0
        %v4784 = vsel %vm4272, %v2731, 0.0
        %v4785 = vsel %vm4273, %v2732, 0.0
        %v4786 = vsel %vm4274, %v2733, 0.0
        %v4787 = vsel %vm4275, %v2734, 0.0
        %v4788 = vsel %vm4276, %v2735, 0.0
        %v4789 = vsel %vm4277, %v2736, 0.0
        %v4790 = vsel %vm4278, %v2737, 0.0
        %v4791 = vsel %vm4279, %v2738, 0.0
        %v4792 = vsel %vm4280, %v2739, 0.0
        %v4793 = vsel %vm4281, %v2740, 0.0
        %v4794 = vsel %vm4282, %v2741, 0.0
        %v4795 = vsel %vm4283, %v2742, 0.0
        %v4796 = vsel %vm4284, %v2743, 0.0
        %v4797 = vsel %vm4285, %v2744, 0.0
        %v4798 = vsel %vm4286, %v2745, 0.0
        %v4799 = vsel %vm4287, %v2746, 0.0
        %v4800 = vsel %vm4288, %v2747, 0.0
        %v4801 = vsel %vm4289, %v2748, 0.0
        %v4802 = vsel %vm4290, %v2749, 0.0
        %v4803 = vsel %vm4291, %v2750, 0.0
        %v4804 = vsel %vm4292, %v2751, 0.0
        %v4805 = vsel %vm4293, %v2752, 0.0
        %v4806 = vsel %vm4294, %v2753, 0.0
        %v4807 = vsel %vm4295, %v2754, 0.0
        %v4808 = vsel %vm4296, %v2755, 0.0
        %v4809 = vsel %vm4297, %v2756, 0.0
        %v4810 = vsel %vm4298, %v2757, 0.0
        %v4811 = vsel %vm4299, %v2758, 0.0
        %v4812 = vsel %vm4300, %v2759, 0.0
        %v4813 = vsel %vm4301, %v2760, 0.0
        %v4814 = vsel %vm4302, %v2761, 0.0
        %v4815 = vsel %vm4303, %v2762, 0.0
        %v4816 = vsel %vm4304, %v2763, 0.0
        %v4817 = vsel %vm4305, %v2764, 0.0
        %v4818 = vsel %vm4306, %v2765, 0.0
        %v4819 = vsel %vm4307, %v2766, 0.0
        %v4820 = vsel %vm4308, %v2767, 0.0
        %v4821 = vsel %vm4309, %v2768, 0.0
        %v4822 = vsel %vm4310, %v2769, 0.0
        %v4823 = vsel %vm4311, %v2770, 0.0
        %v4824 = vsel %vm4312, %v2771, 0.0
        %v4825 = vsel %vm4313, %v2772, 0.0
        %v4826 = vsel %vm4314, %v2773, 0.0
        %v4827 = vsel %vm4315, %v2774, 0.0
        %v4828 = vsel %vm4316, %v2775, 0.0
        %v4829 = vsel %vm4317, %v2776, 0.0
        %v4830 = vsel %vm4318, %v2777, 0.0
        %v4831 = vsel %vm4319, %v2778, 0.0
        %v4832 = vsel %vm4320, %v2779, 0.0
        %v4833 = vsel %vm4321, %v2780, 0.0
        %v4834 = vsel %vm4322, %v2781, 0.0
        %v4835 = vsel %vm4323, %v2782, 0.0
        %v4836 = vsel %vm4324, %v2783, 0.0
        %v4837 = vsel %vm4325, %v2784, 0.0
        %v4838 = vsel %vm4326, %v2785, 0.0
        %v4839 = vsel %vm4327, %v2786, 0.0
        %v4840 = vsel %vm4328, %v2787, 0.0
        %v4841 = vsel %vm4329, %v2788, 0.0
        %v4842 = vsel %vm4330, %v2789, 0.0
        %v4843 = vsel %vm4331, %v2790, 0.0
        %v4844 = vsel %vm4332, %v2791, 0.0
        %v4845 = vsel %vm4333, %v2792, 0.0
        %v4846 = vsel %vm4334, %v2793, 0.0
        %v4847 = vsel %vm4335, %v2794, 0.0
        %v4848 = vsel %vm4336, %v2795, 0.0
        %v4849 = vsel %vm4337, %v2796, 0.0
        %v4850 = vsel %vm4338, %v2797, 0.0
        %v4851 = vsel %vm4339, %v2798, 0.0
        %v4852 = vsel %vm4340, %v2799, 0.0
        %v4853 = vsel %vm4341, %v2800, 0.0
        %v4854 = vsel %vm4342, %v2801, 0.0
        %v4855 = vsel %vm4343, %v2802, 0.0
        %v4856 = vsel %vm4344, %v2803, 0.0
        %v4857 = vsel %vm4345, %v2804, 0.0
        %v4858 = vsel %vm4346, %v2805, 0.0
        %v4859 = vsel %vm4347, %v2806, 0.0
        %v4860 = vsel %vm4348, %v2807, 0.0
        %v4861 = vsel %vm4349, %v2808, 0.0
        %v4862 = vsel %vm4350, %v2809, 0.0
        %v4863 = vsel %vm4351, %v2810, 0.0
        %v4864 = vsel %vm4352, %v2811, 0.0
        %v4865 = vsel %vm4353, %v2812, 0.0
        %v4866 = vsel %vm4354, %v2813, 0.0
        %v4867 = vsel %vm4355, %v2814, 0.0
        %v4868 = vsel %vm4356, %v2815, 0.0
        %v4869 = vsel %vm4357, %v2816, 0.0
        %v4870 = vsel %vm4358, %v2817, 0.0
        %v4871 = vsel %vm4359, %v2818, 0.0
        %v4872 = vsel %vm4360, %v2819, 0.0
        %v4873 = vsel %vm4361, %v2820, 0.0
        %v4874 = vsel %vm4362, %v2821, 0.0
        %v4875 = vsel %vm4363, %v2822, 0.0
        %v4876 = vsel %vm4364, %v2823, 0.0
        %v4877 = vsel %vm4365, %v2824, 0.0
        %v4878 = vsel %vm4366, %v2825, 0.0
        %v4879 = vsel %vm4367, %v2826, 0.0
        %v4880 = vsel %vm4368, %v2827, 0.0
        %v4881 = vsel %vm4369, %v2828, 0.0
        %v4882 = vsel %vm4370, %v2829, 0.0
        %v4883 = vsel %vm4371, %v2830, 0.0
        %v4884 = vld [vmem:[#allocation2] sm:$0xff]
        %v4885 = vld [vmem:[#allocation2 + $0x8] sm:$0xff]
        %v4886 = vld [vmem:[#allocation2 + $0x10] sm:$0xff]
        %v4887 = vld [vmem:[#allocation2 + $0x18] sm:$0xff]
        %v4888 = vld [vmem:[#allocation2 + $0x20] sm:$0xff]
        %v4889 = vld [vmem:[#allocation2 + $0x28] sm:$0xff]
        %v4890 = vld [vmem:[#allocation2 + $0x30] sm:$0xff]
        %v4891 = vld [vmem:[#allocation2 + $0x38] sm:$0xff]
        %v4892 = vld [vmem:[#allocation2 + $0x40] sm:$0xff]
        %v4893 = vld [vmem:[#allocation2 + $0x48] sm:$0xff]
        %v4894 = vld [vmem:[#allocation2 + $0x50] sm:$0xff]
        %v4895 = vld [vmem:[#allocation2 + $0x58] sm:$0xff]
        %v4896 = vld [vmem:[#allocation2 + $0x60] sm:$0xff]
        %v4897 = vld [vmem:[#allocation2 + $0x68] sm:$0xff]
        %v4898 = vld [vmem:[#allocation2 + $0x70] sm:$0xff]
        %v4899 = vld [vmem:[#allocation2 + $0x78] sm:$0xff]
        %v4900 = vld [vmem:[#allocation2 + $0x80] sm:$0xff]
        %v4901 = vld [vmem:[#allocation2 + $0x88] sm:$0xff]
        %v4902 = vld [vmem:[#allocation2 + $0x90] sm:$0xff]
        %v4903 = vld [vmem:[#allocation2 + $0x98] sm:$0xff]
        %v4904 = vld [vmem:[#allocation2 + $0xa0] sm:$0xff]
        %v4905 = vld [vmem:[#allocation2 + $0xa8] sm:$0xff]
        %v4906 = vld [vmem:[#allocation2 + $0xb0] sm:$0xff]
        %v4907 = vld [vmem:[#allocation2 + $0xb8] sm:$0xff]
        %v4908 = vld [vmem:[#allocation2 + $0xc0] sm:$0xff]
        %v4909 = vld [vmem:[#allocation2 + $0xc8] sm:$0xff]
        %v4910 = vld [vmem:[#allocation2 + $0xd0] sm:$0xff]
        %v4911 = vld [vmem:[#allocation2 + $0xd8] sm:$0xff]
        %v4912 = vld [vmem:[#allocation2 + $0xe0] sm:$0xff]
        %v4913 = vld [vmem:[#allocation2 + $0xe8] sm:$0xff]
        %v4914 = vld [vmem:[#allocation2 + $0xf0] sm:$0xff]
        %v4915 = vld [vmem:[#allocation2 + $0xf8] sm:$0xff]
        %v4916 = vld [vmem:[#allocation2 + $0x100] sm:$0xff]
        %v4917 = vld [vmem:[#allocation2 + $0x108] sm:$0xff]
        %v4918 = vld [vmem:[#allocation2 + $0x110] sm:$0xff]
        %v4919 = vld [vmem:[#allocation2 + $0x118] sm:$0xff]
        %v4920 = vld [vmem:[#allocation2 + $0x120] sm:$0xff]
        %v4921 = vld [vmem:[#allocation2 + $0x128] sm:$0xff]
        %v4922 = vld [vmem:[#allocation2 + $0x130] sm:$0xff]
        %v4923 = vld [vmem:[#allocation2 + $0x138] sm:$0xff]
        %v4924 = vld [vmem:[#allocation2 + $0x140] sm:$0xff]
        %v4925 = vld [vmem:[#allocation2 + $0x148] sm:$0xff]
        %v4926 = vld [vmem:[#allocation2 + $0x150] sm:$0xff]
        %v4927 = vld [vmem:[#allocation2 + $0x158] sm:$0xff]
        %v4928 = vld [vmem:[#allocation2 + $0x160] sm:$0xff]
        %v4929 = vld [vmem:[#allocation2 + $0x168] sm:$0xff]
        %v4930 = vld [vmem:[#allocation2 + $0x170] sm:$0xff]
        %v4931 = vld [vmem:[#allocation2 + $0x178] sm:$0xff]
        %v4932 = vld [vmem:[#allocation2 + $0x180] sm:$0xff]
        %v4933 = vld [vmem:[#allocation2 + $0x188] sm:$0xff]
        %v4934 = vld [vmem:[#allocation2 + $0x190] sm:$0xff]
        %v4935 = vld [vmem:[#allocation2 + $0x198] sm:$0xff]
        %v4936 = vld [vmem:[#allocation2 + $0x1a0] sm:$0xff]
        %v4937 = vld [vmem:[#allocation2 + $0x1a8] sm:$0xff]
        %v4938 = vld [vmem:[#allocation2 + $0x1b0] sm:$0xff]
        %v4939 = vld [vmem:[#allocation2 + $0x1b8] sm:$0xff]
        %v4940 = vld [vmem:[#allocation2 + $0x1c0] sm:$0xff]
        %v4941 = vld [vmem:[#allocation2 + $0x1c8] sm:$0xff]
        %v4942 = vld [vmem:[#allocation2 + $0x1d0] sm:$0xff]
        %v4943 = vld [vmem:[#allocation2 + $0x1d8] sm:$0xff]
        %v4944 = vld [vmem:[#allocation2 + $0x1e0] sm:$0xff]
        %v4945 = vld [vmem:[#allocation2 + $0x1e8] sm:$0xff]
        %v4946 = vld [vmem:[#allocation2 + $0x1f0] sm:$0xff]
        %v4947 = vld [vmem:[#allocation2 + $0x1f8] sm:$0xff]
        %v4948 = vld [vmem:[#allocation2 + $0x200] sm:$0xff]
        %v4949 = vld [vmem:[#allocation2 + $0x208] sm:$0xff]
        %v4950 = vld [vmem:[#allocation2 + $0x210] sm:$0xff]
        %v4951 = vld [vmem:[#allocation2 + $0x218] sm:$0xff]
        %v4952 = vld [vmem:[#allocation2 + $0x220] sm:$0xff]
        %v4953 = vld [vmem:[#allocation2 + $0x228] sm:$0xff]
        %v4954 = vld [vmem:[#allocation2 + $0x230] sm:$0xff]
        %v4955 = vld [vmem:[#allocation2 + $0x238] sm:$0xff]
        %v4956 = vld [vmem:[#allocation2 + $0x240] sm:$0xff]
        %v4957 = vld [vmem:[#allocation2 + $0x248] sm:$0xff]
        %v4958 = vld [vmem:[#allocation2 + $0x250] sm:$0xff]
        %v4959 = vld [vmem:[#allocation2 + $0x258] sm:$0xff]
        %v4960 = vld [vmem:[#allocation2 + $0x260] sm:$0xff]
        %v4961 = vld [vmem:[#allocation2 + $0x268] sm:$0xff]
        %v4962 = vld [vmem:[#allocation2 + $0x270] sm:$0xff]
        %v4963 = vld [vmem:[#allocation2 + $0x278] sm:$0xff]
        %v4964 = vld [vmem:[#allocation2 + $0x280] sm:$0xff]
        %v4965 = vld [vmem:[#allocation2 + $0x288] sm:$0xff]
        %v4966 = vld [vmem:[#allocation2 + $0x290] sm:$0xff]
        %v4967 = vld [vmem:[#allocation2 + $0x298] sm:$0xff]
        %v4968 = vld [vmem:[#allocation2 + $0x2a0] sm:$0xff]
        %v4969 = vld [vmem:[#allocation2 + $0x2a8] sm:$0xff]
        %v4970 = vld [vmem:[#allocation2 + $0x2b0] sm:$0xff]
        %v4971 = vld [vmem:[#allocation2 + $0x2b8] sm:$0xff]
        %v4972 = vld [vmem:[#allocation2 + $0x2c0] sm:$0xff]
        %v4973 = vld [vmem:[#allocation2 + $0x2c8] sm:$0xff]
        %v4974 = vld [vmem:[#allocation2 + $0x2d0] sm:$0xff]
        %v4975 = vld [vmem:[#allocation2 + $0x2d8] sm:$0xff]
        %v4976 = vld [vmem:[#allocation2 + $0x2e0] sm:$0xff]
        %v4977 = vld [vmem:[#allocation2 + $0x2e8] sm:$0xff]
        %v4978 = vld [vmem:[#allocation2 + $0x2f0] sm:$0xff]
        %v4979 = vld [vmem:[#allocation2 + $0x2f8] sm:$0xff]
        %v4980 = vld [vmem:[#allocation2 + $0x300] sm:$0xff]
        %v4981 = vld [vmem:[#allocation2 + $0x308] sm:$0xff]
        %v4982 = vld [vmem:[#allocation2 + $0x310] sm:$0xff]
        %v4983 = vld [vmem:[#allocation2 + $0x318] sm:$0xff]
        %v4984 = vld [vmem:[#allocation2 + $0x320] sm:$0xff]
        %v4985 = vld [vmem:[#allocation2 + $0x328] sm:$0xff]
        %v4986 = vld [vmem:[#allocation2 + $0x330] sm:$0xff]
        %v4987 = vld [vmem:[#allocation2 + $0x338] sm:$0xff]
        %v4988 = vld [vmem:[#allocation2 + $0x340] sm:$0xff]
        %v4989 = vld [vmem:[#allocation2 + $0x348] sm:$0xff]
        %v4990 = vld [vmem:[#allocation2 + $0x350] sm:$0xff]
        %v4991 = vld [vmem:[#allocation2 + $0x358] sm:$0xff]
        %v4992 = vld [vmem:[#allocation2 + $0x360] sm:$0xff]
        %v4993 = vld [vmem:[#allocation2 + $0x368] sm:$0xff]
        %v4994 = vld [vmem:[#allocation2 + $0x370] sm:$0xff]
        %v4995 = vld [vmem:[#allocation2 + $0x378] sm:$0xff]
        %v4996 = vld [vmem:[#allocation2 + $0x380] sm:$0xff]
        %v4997 = vld [vmem:[#allocation2 + $0x388] sm:$0xff]
        %v4998 = vld [vmem:[#allocation2 + $0x390] sm:$0xff]
        %v4999 = vld [vmem:[#allocation2 + $0x398] sm:$0xff]
        %v5000 = vld [vmem:[#allocation2 + $0x3a0] sm:$0xff]
        %v5001 = vld [vmem:[#allocation2 + $0x3a8] sm:$0xff]
        %v5002 = vld [vmem:[#allocation2 + $0x3b0] sm:$0xff]
        %v5003 = vld [vmem:[#allocation2 + $0x3b8] sm:$0xff]
        %v5004 = vld [vmem:[#allocation2 + $0x3c0] sm:$0xff]
        %v5005 = vld [vmem:[#allocation2 + $0x3c8] sm:$0xff]
        %v5006 = vld [vmem:[#allocation2 + $0x3d0] sm:$0xff]
        %v5007 = vld [vmem:[#allocation2 + $0x3d8] sm:$0xff]
        %v5008 = vld [vmem:[#allocation2 + $0x3e0] sm:$0xff]
        %v5009 = vld [vmem:[#allocation2 + $0x3e8] sm:$0xff]
        %v5010 = vld [vmem:[#allocation2 + $0x3f0] sm:$0xff]
        %v5011 = vld [vmem:[#allocation2 + $0x3f8] sm:$0xff]
        %v5012 = vld [vmem:[#allocation2 + $0x400] sm:$0xff]
        %v5013 = vld [vmem:[#allocation2 + $0x408] sm:$0xff]
        %v5014 = vld [vmem:[#allocation2 + $0x410] sm:$0xff]
        %v5015 = vld [vmem:[#allocation2 + $0x418] sm:$0xff]
        %v5016 = vld [vmem:[#allocation2 + $0x420] sm:$0xff]
        %v5017 = vld [vmem:[#allocation2 + $0x428] sm:$0xff]
        %v5018 = vld [vmem:[#allocation2 + $0x430] sm:$0xff]
        %v5019 = vld [vmem:[#allocation2 + $0x438] sm:$0xff]
        %v5020 = vld [vmem:[#allocation2 + $0x440] sm:$0xff]
        %v5021 = vld [vmem:[#allocation2 + $0x448] sm:$0xff]
        %v5022 = vld [vmem:[#allocation2 + $0x450] sm:$0xff]
        %v5023 = vld [vmem:[#allocation2 + $0x458] sm:$0xff]
        %v5024 = vld [vmem:[#allocation2 + $0x460] sm:$0xff]
        %v5025 = vld [vmem:[#allocation2 + $0x468] sm:$0xff]
        %v5026 = vld [vmem:[#allocation2 + $0x470] sm:$0xff]
        %v5027 = vld [vmem:[#allocation2 + $0x478] sm:$0xff]
        %v5028 = vld [vmem:[#allocation2 + $0x480] sm:$0xff]
        %v5029 = vld [vmem:[#allocation2 + $0x488] sm:$0xff]
        %v5030 = vld [vmem:[#allocation2 + $0x490] sm:$0xff]
        %v5031 = vld [vmem:[#allocation2 + $0x498] sm:$0xff]
        %v5032 = vld [vmem:[#allocation2 + $0x4a0] sm:$0xff]
        %v5033 = vld [vmem:[#allocation2 + $0x4a8] sm:$0xff]
        %v5034 = vld [vmem:[#allocation2 + $0x4b0] sm:$0xff]
        %v5035 = vld [vmem:[#allocation2 + $0x4b8] sm:$0xff]
        %v5036 = vld [vmem:[#allocation2 + $0x4c0] sm:$0xff]
        %v5037 = vld [vmem:[#allocation2 + $0x4c8] sm:$0xff]
        %v5038 = vld [vmem:[#allocation2 + $0x4d0] sm:$0xff]
        %v5039 = vld [vmem:[#allocation2 + $0x4d8] sm:$0xff]
        %v5040 = vld [vmem:[#allocation2 + $0x4e0] sm:$0xff]
        %v5041 = vld [vmem:[#allocation2 + $0x4e8] sm:$0xff]
        %v5042 = vld [vmem:[#allocation2 + $0x4f0] sm:$0xff]
        %v5043 = vld [vmem:[#allocation2 + $0x4f8] sm:$0xff]
        %v5044 = vld [vmem:[#allocation2 + $0x500] sm:$0xff]
        %v5045 = vld [vmem:[#allocation2 + $0x508] sm:$0xff]
        %v5046 = vld [vmem:[#allocation2 + $0x510] sm:$0xff]
        %v5047 = vld [vmem:[#allocation2 + $0x518] sm:$0xff]
        %v5048 = vld [vmem:[#allocation2 + $0x520] sm:$0xff]
        %v5049 = vld [vmem:[#allocation2 + $0x528] sm:$0xff]
        %v5050 = vld [vmem:[#allocation2 + $0x530] sm:$0xff]
        %v5051 = vld [vmem:[#allocation2 + $0x538] sm:$0xff]
        %v5052 = vld [vmem:[#allocation2 + $0x540] sm:$0xff]
        %v5053 = vld [vmem:[#allocation2 + $0x548] sm:$0xff]
        %v5054 = vld [vmem:[#allocation2 + $0x550] sm:$0xff]
        %v5055 = vld [vmem:[#allocation2 + $0x558] sm:$0xff]
        %v5056 = vld [vmem:[#allocation2 + $0x560] sm:$0xff]
        %v5057 = vld [vmem:[#allocation2 + $0x568] sm:$0xff]
        %v5058 = vld [vmem:[#allocation2 + $0x570] sm:$0xff]
        %v5059 = vld [vmem:[#allocation2 + $0x578] sm:$0xff]
        %v5060 = vld [vmem:[#allocation2 + $0x580] sm:$0xff]
        %v5061 = vld [vmem:[#allocation2 + $0x588] sm:$0xff]
        %v5062 = vld [vmem:[#allocation2 + $0x590] sm:$0xff]
        %v5063 = vld [vmem:[#allocation2 + $0x598] sm:$0xff]
        %v5064 = vld [vmem:[#allocation2 + $0x5a0] sm:$0xff]
        %v5065 = vld [vmem:[#allocation2 + $0x5a8] sm:$0xff]
        %v5066 = vld [vmem:[#allocation2 + $0x5b0] sm:$0xff]
        %v5067 = vld [vmem:[#allocation2 + $0x5b8] sm:$0xff]
        %v5068 = vld [vmem:[#allocation2 + $0x5c0] sm:$0xff]
        %v5069 = vld [vmem:[#allocation2 + $0x5c8] sm:$0xff]
        %v5070 = vld [vmem:[#allocation2 + $0x5d0] sm:$0xff]
        %v5071 = vld [vmem:[#allocation2 + $0x5d8] sm:$0xff]
        %v5072 = vld [vmem:[#allocation2 + $0x5e0] sm:$0xff]
        %v5073 = vld [vmem:[#allocation2 + $0x5e8] sm:$0xff]
        %v5074 = vld [vmem:[#allocation2 + $0x5f0] sm:$0xff]
        %v5075 = vld [vmem:[#allocation2 + $0x5f8] sm:$0xff]
        %v5076 = vld [vmem:[#allocation2 + $0x600] sm:$0xff]
        %v5077 = vld [vmem:[#allocation2 + $0x608] sm:$0xff]
        %v5078 = vld [vmem:[#allocation2 + $0x610] sm:$0xff]
        %v5079 = vld [vmem:[#allocation2 + $0x618] sm:$0xff]
        %v5080 = vld [vmem:[#allocation2 + $0x620] sm:$0xff]
        %v5081 = vld [vmem:[#allocation2 + $0x628] sm:$0xff]
        %v5082 = vld [vmem:[#allocation2 + $0x630] sm:$0xff]
        %v5083 = vld [vmem:[#allocation2 + $0x638] sm:$0xff]
        %v5084 = vld [vmem:[#allocation2 + $0x640] sm:$0xff]
        %v5085 = vld [vmem:[#allocation2 + $0x648] sm:$0xff]
        %v5086 = vld [vmem:[#allocation2 + $0x650] sm:$0xff]
        %v5087 = vld [vmem:[#allocation2 + $0x658] sm:$0xff]
        %v5088 = vld [vmem:[#allocation2 + $0x660] sm:$0xff]
        %v5089 = vld [vmem:[#allocation2 + $0x668] sm:$0xff]
        %v5090 = vld [vmem:[#allocation2 + $0x670] sm:$0xff]
        %v5091 = vld [vmem:[#allocation2 + $0x678] sm:$0xff]
        %v5092 = vld [vmem:[#allocation2 + $0x680] sm:$0xff]
        %v5093 = vld [vmem:[#allocation2 + $0x688] sm:$0xff]
        %v5094 = vld [vmem:[#allocation2 + $0x690] sm:$0xff]
        %v5095 = vld [vmem:[#allocation2 + $0x698] sm:$0xff]
        %v5096 = vld [vmem:[#allocation2 + $0x6a0] sm:$0xff]
        %v5097 = vld [vmem:[#allocation2 + $0x6a8] sm:$0xff]
        %v5098 = vld [vmem:[#allocation2 + $0x6b0] sm:$0xff]
        %v5099 = vld [vmem:[#allocation2 + $0x6b8] sm:$0xff]
        %v5100 = vld [vmem:[#allocation2 + $0x6c0] sm:$0xff]
        %v5101 = vld [vmem:[#allocation2 + $0x6c8] sm:$0xff]
        %v5102 = vld [vmem:[#allocation2 + $0x6d0] sm:$0xff]
        %v5103 = vld [vmem:[#allocation2 + $0x6d8] sm:$0xff]
        %v5104 = vld [vmem:[#allocation2 + $0x6e0] sm:$0xff]
        %v5105 = vld [vmem:[#allocation2 + $0x6e8] sm:$0xff]
        %v5106 = vld [vmem:[#allocation2 + $0x6f0] sm:$0xff]
        %v5107 = vld [vmem:[#allocation2 + $0x6f8] sm:$0xff]
        %v5108 = vld [vmem:[#allocation2 + $0x700] sm:$0xff]
        %v5109 = vld [vmem:[#allocation2 + $0x708] sm:$0xff]
        %v5110 = vld [vmem:[#allocation2 + $0x710] sm:$0xff]
        %v5111 = vld [vmem:[#allocation2 + $0x718] sm:$0xff]
        %v5112 = vld [vmem:[#allocation2 + $0x720] sm:$0xff]
        %v5113 = vld [vmem:[#allocation2 + $0x728] sm:$0xff]
        %v5114 = vld [vmem:[#allocation2 + $0x730] sm:$0xff]
        %v5115 = vld [vmem:[#allocation2 + $0x738] sm:$0xff]
        %v5116 = vld [vmem:[#allocation2 + $0x740] sm:$0xff]
        %v5117 = vld [vmem:[#allocation2 + $0x748] sm:$0xff]
        %v5118 = vld [vmem:[#allocation2 + $0x750] sm:$0xff]
        %v5119 = vld [vmem:[#allocation2 + $0x758] sm:$0xff]
        %v5120 = vld [vmem:[#allocation2 + $0x760] sm:$0xff]
        %v5121 = vld [vmem:[#allocation2 + $0x768] sm:$0xff]
        %v5122 = vld [vmem:[#allocation2 + $0x770] sm:$0xff]
        %v5123 = vld [vmem:[#allocation2 + $0x778] sm:$0xff]
        %v5124 = vld [vmem:[#allocation2 + $0x780] sm:$0xff]
        %v5125 = vld [vmem:[#allocation2 + $0x788] sm:$0xff]
        %v5126 = vld [vmem:[#allocation2 + $0x790] sm:$0xff]
        %v5127 = vld [vmem:[#allocation2 + $0x798] sm:$0xff]
        %v5128 = vld [vmem:[#allocation2 + $0x7a0] sm:$0xff]
        %v5129 = vld [vmem:[#allocation2 + $0x7a8] sm:$0xff]
        %v5130 = vld [vmem:[#allocation2 + $0x7b0] sm:$0xff]
        %v5131 = vld [vmem:[#allocation2 + $0x7b8] sm:$0xff]
        %v5132 = vld [vmem:[#allocation2 + $0x7c0] sm:$0xff]
        %v5133 = vld [vmem:[#allocation2 + $0x7c8] sm:$0xff]
        %v5134 = vld [vmem:[#allocation2 + $0x7d0] sm:$0xff]
        %v5135 = vld [vmem:[#allocation2 + $0x7d8] sm:$0xff]
        %v5136 = vld [vmem:[#allocation2 + $0x7e0] sm:$0xff]
        %v5137 = vld [vmem:[#allocation2 + $0x7e8] sm:$0xff]
        %v5138 = vld [vmem:[#allocation2 + $0x7f0] sm:$0xff]
        %v5139 = vld [vmem:[#allocation2 + $0x7f8] sm:$0xff]
        %v5140 = vld [vmem:[#allocation2 + $0x800] sm:$0xff]
        %v5141 = vld [vmem:[#allocation2 + $0x808] sm:$0xff]
        %v5142 = vld [vmem:[#allocation2 + $0x810] sm:$0xff]
        %v5143 = vld [vmem:[#allocation2 + $0x818] sm:$0xff]
        %v5144 = vld [vmem:[#allocation2 + $0x820] sm:$0xff]
        %v5145 = vld [vmem:[#allocation2 + $0x828] sm:$0xff]
        %v5146 = vld [vmem:[#allocation2 + $0x830] sm:$0xff]
        %v5147 = vld [vmem:[#allocation2 + $0x838] sm:$0xff]
        %v5148 = vld [vmem:[#allocation2 + $0x840] sm:$0xff]
        %v5149 = vld [vmem:[#allocation2 + $0x848] sm:$0xff]
        %v5150 = vld [vmem:[#allocation2 + $0x850] sm:$0xff]
        %v5151 = vld [vmem:[#allocation2 + $0x858] sm:$0xff]
        %v5152 = vld [vmem:[#allocation2 + $0x860] sm:$0xff]
        %v5153 = vld [vmem:[#allocation2 + $0x868] sm:$0xff]
        %v5154 = vld [vmem:[#allocation2 + $0x870] sm:$0xff]
        %v5155 = vld [vmem:[#allocation2 + $0x878] sm:$0xff]
        %v5156 = vld [vmem:[#allocation2 + $0x880] sm:$0xff]
        %v5157 = vld [vmem:[#allocation2 + $0x888] sm:$0xff]
        %v5158 = vld [vmem:[#allocation2 + $0x890] sm:$0xff]
        %v5159 = vld [vmem:[#allocation2 + $0x898] sm:$0xff]
        %v5160 = vld [vmem:[#allocation2 + $0x8a0] sm:$0xff]
        %v5161 = vld [vmem:[#allocation2 + $0x8a8] sm:$0xff]
        %v5162 = vld [vmem:[#allocation2 + $0x8b0] sm:$0xff]
        %v5163 = vld [vmem:[#allocation2 + $0x8b8] sm:$0xff]
        %v5164 = vld [vmem:[#allocation2 + $0x8c0] sm:$0xff]
        %v5165 = vld [vmem:[#allocation2 + $0x8c8] sm:$0xff]
        %v5166 = vld [vmem:[#allocation2 + $0x8d0] sm:$0xff]
        %v5167 = vld [vmem:[#allocation2 + $0x8d8] sm:$0xff]
        %v5168 = vld [vmem:[#allocation2 + $0x8e0] sm:$0xff]
        %v5169 = vld [vmem:[#allocation2 + $0x8e8] sm:$0xff]
        %v5170 = vld [vmem:[#allocation2 + $0x8f0] sm:$0xff]
        %v5171 = vld [vmem:[#allocation2 + $0x8f8] sm:$0xff]
        %v5172 = vld [vmem:[#allocation2 + $0x900] sm:$0xff]
        %v5173 = vld [vmem:[#allocation2 + $0x908] sm:$0xff]
        %v5174 = vld [vmem:[#allocation2 + $0x910] sm:$0xff]
        %v5175 = vld [vmem:[#allocation2 + $0x918] sm:$0xff]
        %v5176 = vld [vmem:[#allocation2 + $0x920] sm:$0xff]
        %v5177 = vld [vmem:[#allocation2 + $0x928] sm:$0xff]
        %v5178 = vld [vmem:[#allocation2 + $0x930] sm:$0xff]
        %v5179 = vld [vmem:[#allocation2 + $0x938] sm:$0xff]
        %v5180 = vld [vmem:[#allocation2 + $0x940] sm:$0xff]
        %v5181 = vld [vmem:[#allocation2 + $0x948] sm:$0xff]
        %v5182 = vld [vmem:[#allocation2 + $0x950] sm:$0xff]
        %v5183 = vld [vmem:[#allocation2 + $0x958] sm:$0xff]
        %v5184 = vld [vmem:[#allocation2 + $0x960] sm:$0xff]
        %v5185 = vld [vmem:[#allocation2 + $0x968] sm:$0xff]
        %v5186 = vld [vmem:[#allocation2 + $0x970] sm:$0xff]
        %v5187 = vld [vmem:[#allocation2 + $0x978] sm:$0xff]
        %v5188 = vld [vmem:[#allocation2 + $0x980] sm:$0xff]
        %v5189 = vld [vmem:[#allocation2 + $0x988] sm:$0xff]
        %v5190 = vld [vmem:[#allocation2 + $0x990] sm:$0xff]
        %v5191 = vld [vmem:[#allocation2 + $0x998] sm:$0xff]
        %v5192 = vld [vmem:[#allocation2 + $0x9a0] sm:$0xff]
        %v5193 = vld [vmem:[#allocation2 + $0x9a8] sm:$0xff]
        %v5194 = vld [vmem:[#allocation2 + $0x9b0] sm:$0xff]
        %v5195 = vld [vmem:[#allocation2 + $0x9b8] sm:$0xff]
        %v5196 = vld [vmem:[#allocation2 + $0x9c0] sm:$0xff]
        %v5197 = vld [vmem:[#allocation2 + $0x9c8] sm:$0xff]
        %v5198 = vld [vmem:[#allocation2 + $0x9d0] sm:$0xff]
        %v5199 = vld [vmem:[#allocation2 + $0x9d8] sm:$0xff]
        %v5200 = vld [vmem:[#allocation2 + $0x9e0] sm:$0xff]
        %v5201 = vld [vmem:[#allocation2 + $0x9e8] sm:$0xff]
        %v5202 = vld [vmem:[#allocation2 + $0x9f0] sm:$0xff]
        %v5203 = vld [vmem:[#allocation2 + $0x9f8] sm:$0xff]
        %v5204 = vld [vmem:[#allocation2 + $0xa00] sm:$0xff]
        %v5205 = vld [vmem:[#allocation2 + $0xa08] sm:$0xff]
        %v5206 = vld [vmem:[#allocation2 + $0xa10] sm:$0xff]
        %v5207 = vld [vmem:[#allocation2 + $0xa18] sm:$0xff]
        %v5208 = vld [vmem:[#allocation2 + $0xa20] sm:$0xff]
        %v5209 = vld [vmem:[#allocation2 + $0xa28] sm:$0xff]
        %v5210 = vld [vmem:[#allocation2 + $0xa30] sm:$0xff]
        %v5211 = vld [vmem:[#allocation2 + $0xa38] sm:$0xff]
        %v5212 = vld [vmem:[#allocation2 + $0xa40] sm:$0xff]
        %v5213 = vld [vmem:[#allocation2 + $0xa48] sm:$0xff]
        %v5214 = vld [vmem:[#allocation2 + $0xa50] sm:$0xff]
        %v5215 = vld [vmem:[#allocation2 + $0xa58] sm:$0xff]
        %v5216 = vld [vmem:[#allocation2 + $0xa60] sm:$0xff]
        %v5217 = vld [vmem:[#allocation2 + $0xa68] sm:$0xff]
        %v5218 = vld [vmem:[#allocation2 + $0xa70] sm:$0xff]
        %v5219 = vld [vmem:[#allocation2 + $0xa78] sm:$0xff]
        %v5220 = vld [vmem:[#allocation2 + $0xa80] sm:$0xff]
        %v5221 = vld [vmem:[#allocation2 + $0xa88] sm:$0xff]
        %v5222 = vld [vmem:[#allocation2 + $0xa90] sm:$0xff]
        %v5223 = vld [vmem:[#allocation2 + $0xa98] sm:$0xff]
        %v5224 = vld [vmem:[#allocation2 + $0xaa0] sm:$0xff]
        %v5225 = vld [vmem:[#allocation2 + $0xaa8] sm:$0xff]
        %v5226 = vld [vmem:[#allocation2 + $0xab0] sm:$0xff]
        %v5227 = vld [vmem:[#allocation2 + $0xab8] sm:$0xff]
        %v5228 = vld [vmem:[#allocation2 + $0xac0] sm:$0xff]
        %v5229 = vld [vmem:[#allocation2 + $0xac8] sm:$0xff]
        %v5230 = vld [vmem:[#allocation2 + $0xad0] sm:$0xff]
        %v5231 = vld [vmem:[#allocation2 + $0xad8] sm:$0xff]
        %v5232 = vld [vmem:[#allocation2 + $0xae0] sm:$0xff]
        %v5233 = vld [vmem:[#allocation2 + $0xae8] sm:$0xff]
        %v5234 = vld [vmem:[#allocation2 + $0xaf0] sm:$0xff]
        %v5235 = vld [vmem:[#allocation2 + $0xaf8] sm:$0xff]
        %v5236 = vld [vmem:[#allocation2 + $0xb00] sm:$0xff]
        %v5237 = vld [vmem:[#allocation2 + $0xb08] sm:$0xff]
        %v5238 = vld [vmem:[#allocation2 + $0xb10] sm:$0xff]
        %v5239 = vld [vmem:[#allocation2 + $0xb18] sm:$0xff]
        %v5240 = vld [vmem:[#allocation2 + $0xb20] sm:$0xff]
        %v5241 = vld [vmem:[#allocation2 + $0xb28] sm:$0xff]
        %v5242 = vld [vmem:[#allocation2 + $0xb30] sm:$0xff]
        %v5243 = vld [vmem:[#allocation2 + $0xb38] sm:$0xff]
        %v5244 = vld [vmem:[#allocation2 + $0xb40] sm:$0xff]
        %v5245 = vld [vmem:[#allocation2 + $0xb48] sm:$0xff]
        %v5246 = vld [vmem:[#allocation2 + $0xb50] sm:$0xff]
        %v5247 = vld [vmem:[#allocation2 + $0xb58] sm:$0xff]
        %v5248 = vld [vmem:[#allocation2 + $0xb60] sm:$0xff]
        %v5249 = vld [vmem:[#allocation2 + $0xb68] sm:$0xff]
        %v5250 = vld [vmem:[#allocation2 + $0xb70] sm:$0xff]
        %v5251 = vld [vmem:[#allocation2 + $0xb78] sm:$0xff]
        %v5252 = vld [vmem:[#allocation2 + $0xb80] sm:$0xff]
        %v5253 = vld [vmem:[#allocation2 + $0xb88] sm:$0xff]
        %v5254 = vld [vmem:[#allocation2 + $0xb90] sm:$0xff]
        %v5255 = vld [vmem:[#allocation2 + $0xb98] sm:$0xff]
        %v5256 = vld [vmem:[#allocation2 + $0xba0] sm:$0xff]
        %v5257 = vld [vmem:[#allocation2 + $0xba8] sm:$0xff]
        %v5258 = vld [vmem:[#allocation2 + $0xbb0] sm:$0xff]
        %v5259 = vld [vmem:[#allocation2 + $0xbb8] sm:$0xff]
        %v5260 = vld [vmem:[#allocation2 + $0xbc0] sm:$0xff]
        %v5261 = vld [vmem:[#allocation2 + $0xbc8] sm:$0xff]
        %v5262 = vld [vmem:[#allocation2 + $0xbd0] sm:$0xff]
        %v5263 = vld [vmem:[#allocation2 + $0xbd8] sm:$0xff]
        %v5264 = vld [vmem:[#allocation2 + $0xbe0] sm:$0xff]
        %v5265 = vld [vmem:[#allocation2 + $0xbe8] sm:$0xff]
        %v5266 = vld [vmem:[#allocation2 + $0xbf0] sm:$0xff]
        %v5267 = vld [vmem:[#allocation2 + $0xbf8] sm:$0xff]
        %v5268 = vld [vmem:[#allocation2 + $0xc00] sm:$0xff]
        %v5269 = vld [vmem:[#allocation2 + $0xc08] sm:$0xff]
        %v5270 = vld [vmem:[#allocation2 + $0xc10] sm:$0xff]
        %v5271 = vld [vmem:[#allocation2 + $0xc18] sm:$0xff]
        %v5272 = vld [vmem:[#allocation2 + $0xc20] sm:$0xff]
        %v5273 = vld [vmem:[#allocation2 + $0xc28] sm:$0xff]
        %v5274 = vld [vmem:[#allocation2 + $0xc30] sm:$0xff]
        %v5275 = vld [vmem:[#allocation2 + $0xc38] sm:$0xff]
        %v5276 = vld [vmem:[#allocation2 + $0xc40] sm:$0xff]
        %v5277 = vld [vmem:[#allocation2 + $0xc48] sm:$0xff]
        %v5278 = vld [vmem:[#allocation2 + $0xc50] sm:$0xff]
        %v5279 = vld [vmem:[#allocation2 + $0xc58] sm:$0xff]
        %v5280 = vld [vmem:[#allocation2 + $0xc60] sm:$0xff]
        %v5281 = vld [vmem:[#allocation2 + $0xc68] sm:$0xff]
        %v5282 = vld [vmem:[#allocation2 + $0xc70] sm:$0xff]
        %v5283 = vld [vmem:[#allocation2 + $0xc78] sm:$0xff]
        %v5284 = vld [vmem:[#allocation2 + $0xc80] sm:$0xff]
        %v5285 = vld [vmem:[#allocation2 + $0xc88] sm:$0xff]
        %v5286 = vld [vmem:[#allocation2 + $0xc90] sm:$0xff]
        %v5287 = vld [vmem:[#allocation2 + $0xc98] sm:$0xff]
        %v5288 = vld [vmem:[#allocation2 + $0xca0] sm:$0xff]
        %v5289 = vld [vmem:[#allocation2 + $0xca8] sm:$0xff]
        %v5290 = vld [vmem:[#allocation2 + $0xcb0] sm:$0xff]
        %v5291 = vld [vmem:[#allocation2 + $0xcb8] sm:$0xff]
        %v5292 = vld [vmem:[#allocation2 + $0xcc0] sm:$0xff]
        %v5293 = vld [vmem:[#allocation2 + $0xcc8] sm:$0xff]
        %v5294 = vld [vmem:[#allocation2 + $0xcd0] sm:$0xff]
        %v5295 = vld [vmem:[#allocation2 + $0xcd8] sm:$0xff]
        %v5296 = vld [vmem:[#allocation2 + $0xce0] sm:$0xff]
        %v5297 = vld [vmem:[#allocation2 + $0xce8] sm:$0xff]
        %v5298 = vld [vmem:[#allocation2 + $0xcf0] sm:$0xff]
        %v5299 = vld [vmem:[#allocation2 + $0xcf8] sm:$0xff]
        %v5300 = vld [vmem:[#allocation2 + $0xd00] sm:$0xff]
        %v5301 = vld [vmem:[#allocation2 + $0xd08] sm:$0xff]
        %v5302 = vld [vmem:[#allocation2 + $0xd10] sm:$0xff]
        %v5303 = vld [vmem:[#allocation2 + $0xd18] sm:$0xff]
        %v5304 = vld [vmem:[#allocation2 + $0xd20] sm:$0xff]
        %v5305 = vld [vmem:[#allocation2 + $0xd28] sm:$0xff]
        %v5306 = vld [vmem:[#allocation2 + $0xd30] sm:$0xff]
        %v5307 = vld [vmem:[#allocation2 + $0xd38] sm:$0xff]
        %v5308 = vld [vmem:[#allocation2 + $0xd40] sm:$0xff]
        %v5309 = vld [vmem:[#allocation2 + $0xd48] sm:$0xff]
        %v5310 = vld [vmem:[#allocation2 + $0xd50] sm:$0xff]
        %v5311 = vld [vmem:[#allocation2 + $0xd58] sm:$0xff]
        %v5312 = vld [vmem:[#allocation2 + $0xd60] sm:$0xff]
        %v5313 = vld [vmem:[#allocation2 + $0xd68] sm:$0xff]
        %v5314 = vld [vmem:[#allocation2 + $0xd70] sm:$0xff]
        %v5315 = vld [vmem:[#allocation2 + $0xd78] sm:$0xff]
        %v5316 = vld [vmem:[#allocation2 + $0xd80] sm:$0xff]
        %v5317 = vld [vmem:[#allocation2 + $0xd88] sm:$0xff]
        %v5318 = vld [vmem:[#allocation2 + $0xd90] sm:$0xff]
        %v5319 = vld [vmem:[#allocation2 + $0xd98] sm:$0xff]
        %v5320 = vld [vmem:[#allocation2 + $0xda0] sm:$0xff]
        %v5321 = vld [vmem:[#allocation2 + $0xda8] sm:$0xff]
        %v5322 = vld [vmem:[#allocation2 + $0xdb0] sm:$0xff]
        %v5323 = vld [vmem:[#allocation2 + $0xdb8] sm:$0xff]
        %v5324 = vld [vmem:[#allocation2 + $0xdc0] sm:$0xff]
        %v5325 = vld [vmem:[#allocation2 + $0xdc8] sm:$0xff]
        %v5326 = vld [vmem:[#allocation2 + $0xdd0] sm:$0xff]
        %v5327 = vld [vmem:[#allocation2 + $0xdd8] sm:$0xff]
        %v5328 = vld [vmem:[#allocation2 + $0xde0] sm:$0xff]
        %v5329 = vld [vmem:[#allocation2 + $0xde8] sm:$0xff]
        %v5330 = vld [vmem:[#allocation2 + $0xdf0] sm:$0xff]
        %v5331 = vld [vmem:[#allocation2 + $0xdf8] sm:$0xff]
        %v5332 = vld [vmem:[#allocation2 + $0xe00] sm:$0xff]
        %v5333 = vld [vmem:[#allocation2 + $0xe08] sm:$0xff]
        %v5334 = vld [vmem:[#allocation2 + $0xe10] sm:$0xff]
        %v5335 = vld [vmem:[#allocation2 + $0xe18] sm:$0xff]
        %v5336 = vld [vmem:[#allocation2 + $0xe20] sm:$0xff]
        %v5337 = vld [vmem:[#allocation2 + $0xe28] sm:$0xff]
        %v5338 = vld [vmem:[#allocation2 + $0xe30] sm:$0xff]
        %v5339 = vld [vmem:[#allocation2 + $0xe38] sm:$0xff]
        %v5340 = vld [vmem:[#allocation2 + $0xe40] sm:$0xff]
        %v5341 = vld [vmem:[#allocation2 + $0xe48] sm:$0xff]
        %v5342 = vld [vmem:[#allocation2 + $0xe50] sm:$0xff]
        %v5343 = vld [vmem:[#allocation2 + $0xe58] sm:$0xff]
        %v5344 = vld [vmem:[#allocation2 + $0xe60] sm:$0xff]
        %v5345 = vld [vmem:[#allocation2 + $0xe68] sm:$0xff]
        %v5346 = vld [vmem:[#allocation2 + $0xe70] sm:$0xff]
        %v5347 = vld [vmem:[#allocation2 + $0xe78] sm:$0xff]
        %v5348 = vld [vmem:[#allocation2 + $0xe80] sm:$0xff]
        %v5349 = vld [vmem:[#allocation2 + $0xe88] sm:$0xff]
        %v5350 = vld [vmem:[#allocation2 + $0xe90] sm:$0xff]
        %v5351 = vld [vmem:[#allocation2 + $0xe98] sm:$0xff]
        %v5352 = vld [vmem:[#allocation2 + $0xea0] sm:$0xff]
        %v5353 = vld [vmem:[#allocation2 + $0xea8] sm:$0xff]
        %v5354 = vld [vmem:[#allocation2 + $0xeb0] sm:$0xff]
        %v5355 = vld [vmem:[#allocation2 + $0xeb8] sm:$0xff]
        %v5356 = vld [vmem:[#allocation2 + $0xec0] sm:$0xff]
        %v5357 = vld [vmem:[#allocation2 + $0xec8] sm:$0xff]
        %v5358 = vld [vmem:[#allocation2 + $0xed0] sm:$0xff]
        %v5359 = vld [vmem:[#allocation2 + $0xed8] sm:$0xff]
        %v5360 = vld [vmem:[#allocation2 + $0xee0] sm:$0xff]
        %v5361 = vld [vmem:[#allocation2 + $0xee8] sm:$0xff]
        %v5362 = vld [vmem:[#allocation2 + $0xef0] sm:$0xff]
        %v5363 = vld [vmem:[#allocation2 + $0xef8] sm:$0xff]
        %v5364 = vld [vmem:[#allocation2 + $0xf00] sm:$0xff]
        %v5365 = vld [vmem:[#allocation2 + $0xf08] sm:$0xff]
        %v5366 = vld [vmem:[#allocation2 + $0xf10] sm:$0xff]
        %v5367 = vld [vmem:[#allocation2 + $0xf18] sm:$0xff]
        %v5368 = vld [vmem:[#allocation2 + $0xf20] sm:$0xff]
        %v5369 = vld [vmem:[#allocation2 + $0xf28] sm:$0xff]
        %v5370 = vld [vmem:[#allocation2 + $0xf30] sm:$0xff]
        %v5371 = vld [vmem:[#allocation2 + $0xf38] sm:$0xff]
        %v5372 = vld [vmem:[#allocation2 + $0xf40] sm:$0xff]
        %v5373 = vld [vmem:[#allocation2 + $0xf48] sm:$0xff]
        %v5374 = vld [vmem:[#allocation2 + $0xf50] sm:$0xff]
        %v5375 = vld [vmem:[#allocation2 + $0xf58] sm:$0xff]
        %v5376 = vld [vmem:[#allocation2 + $0xf60] sm:$0xff]
        %v5377 = vld [vmem:[#allocation2 + $0xf68] sm:$0xff]
        %v5378 = vld [vmem:[#allocation2 + $0xf70] sm:$0xff]
        %v5379 = vld [vmem:[#allocation2 + $0xf78] sm:$0xff]
        %v5380 = vld [vmem:[#allocation2 + $0xf80] sm:$0xff]
        %v5381 = vld [vmem:[#allocation2 + $0xf88] sm:$0xff]
        %v5382 = vld [vmem:[#allocation2 + $0xf90] sm:$0xff]
        %v5383 = vld [vmem:[#allocation2 + $0xf98] sm:$0xff]
        %v5384 = vld [vmem:[#allocation2 + $0xfa0] sm:$0xff]
        %v5385 = vld [vmem:[#allocation2 + $0xfa8] sm:$0xff]
        %v5386 = vld [vmem:[#allocation2 + $0xfb0] sm:$0xff]
        %v5387 = vld [vmem:[#allocation2 + $0xfb8] sm:$0xff]
        %v5388 = vld [vmem:[#allocation2 + $0xfc0] sm:$0xff]
        %v5389 = vld [vmem:[#allocation2 + $0xfc8] sm:$0xff]
        %v5390 = vld [vmem:[#allocation2 + $0xfd0] sm:$0xff]
        %v5391 = vld [vmem:[#allocation2 + $0xfd8] sm:$0xff]
        %v5392 = vld [vmem:[#allocation2 + $0xfe0] sm:$0xff]
        %v5393 = vld [vmem:[#allocation2 + $0xfe8] sm:$0xff]
        %v5394 = vld [vmem:[#allocation2 + $0xff0] sm:$0xff]
        %v5395 = vld [vmem:[#allocation2 + $0xff8] sm:$0xff]
        %v5396 = vadd.f32 %v4884, %v4372
        %v5397 = vadd.f32 %v4885, %v4373
        %v5398 = vadd.f32 %v4886, %v4374
        %v5399 = vadd.f32 %v4887, %v4375
        %v5400 = vadd.f32 %v4888, %v4376
        %v5401 = vadd.f32 %v4889, %v4377
        %v5402 = vadd.f32 %v4890, %v4378
        %v5403 = vadd.f32 %v4891, %v4379
        %v5404 = vadd.f32 %v4892, %v4380
        %v5405 = vadd.f32 %v4893, %v4381
        %v5406 = vadd.f32 %v4894, %v4382
        %v5407 = vadd.f32 %v4895, %v4383
        %v5408 = vadd.f32 %v4896, %v4384
        %v5409 = vadd.f32 %v4897, %v4385
        %v5410 = vadd.f32 %v4898, %v4386
        %v5411 = vadd.f32 %v4899, %v4387
        %v5412 = vadd.f32 %v4900, %v4388
        %v5413 = vadd.f32 %v4901, %v4389
        %v5414 = vadd.f32 %v4902, %v4390
        %v5415 = vadd.f32 %v4903, %v4391
        %v5416 = vadd.f32 %v4904, %v4392
        %v5417 = vadd.f32 %v4905, %v4393
        %v5418 = vadd.f32 %v4906, %v4394
        %v5419 = vadd.f32 %v4907, %v4395
        %v5420 = vadd.f32 %v4908, %v4396
        %v5421 = vadd.f32 %v4909, %v4397
        %v5422 = vadd.f32 %v4910, %v4398
        %v5423 = vadd.f32 %v4911, %v4399
        %v5424 = vadd.f32 %v4912, %v4400
        %v5425 = vadd.f32 %v4913, %v4401
        %v5426 = vadd.f32 %v4914, %v4402
        %v5427 = vadd.f32 %v4915, %v4403
        %v5428 = vadd.f32 %v4916, %v4404
        %v5429 = vadd.f32 %v4917, %v4405
        %v5430 = vadd.f32 %v4918, %v4406
        %v5431 = vadd.f32 %v4919, %v4407
        %v5432 = vadd.f32 %v4920, %v4408
        %v5433 = vadd.f32 %v4921, %v4409
        %v5434 = vadd.f32 %v4922, %v4410
        %v5435 = vadd.f32 %v4923, %v4411
        %v5436 = vadd.f32 %v4924, %v4412
        %v5437 = vadd.f32 %v4925, %v4413
        %v5438 = vadd.f32 %v4926, %v4414
        %v5439 = vadd.f32 %v4927, %v4415
        %v5440 = vadd.f32 %v4928, %v4416
        %v5441 = vadd.f32 %v4929, %v4417
        %v5442 = vadd.f32 %v4930, %v4418
        %v5443 = vadd.f32 %v4931, %v4419
        %v5444 = vadd.f32 %v4932, %v4420
        %v5445 = vadd.f32 %v4933, %v4421
        %v5446 = vadd.f32 %v4934, %v4422
        %v5447 = vadd.f32 %v4935, %v4423
        %v5448 = vadd.f32 %v4936, %v4424
        %v5449 = vadd.f32 %v4937, %v4425
        %v5450 = vadd.f32 %v4938, %v4426
        %v5451 = vadd.f32 %v4939, %v4427
        %v5452 = vadd.f32 %v4940, %v4428
        %v5453 = vadd.f32 %v4941, %v4429
        %v5454 = vadd.f32 %v4942, %v4430
        %v5455 = vadd.f32 %v4943, %v4431
        %v5456 = vadd.f32 %v4944, %v4432
        %v5457 = vadd.f32 %v4945, %v4433
        %v5458 = vadd.f32 %v4946, %v4434
        %v5459 = vadd.f32 %v4947, %v4435
        %v5460 = vadd.f32 %v4948, %v4436
        %v5461 = vadd.f32 %v4949, %v4437
        %v5462 = vadd.f32 %v4950, %v4438
        %v5463 = vadd.f32 %v4951, %v4439
        %v5464 = vadd.f32 %v4952, %v4440
        %v5465 = vadd.f32 %v4953, %v4441
        %v5466 = vadd.f32 %v4954, %v4442
        %v5467 = vadd.f32 %v4955, %v4443
        %v5468 = vadd.f32 %v4956, %v4444
        %v5469 = vadd.f32 %v4957, %v4445
        %v5470 = vadd.f32 %v4958, %v4446
        %v5471 = vadd.f32 %v4959, %v4447
        %v5472 = vadd.f32 %v4960, %v4448
        %v5473 = vadd.f32 %v4961, %v4449
        %v5474 = vadd.f32 %v4962, %v4450
        %v5475 = vadd.f32 %v4963, %v4451
        %v5476 = vadd.f32 %v4964, %v4452
        %v5477 = vadd.f32 %v4965, %v4453
        %v5478 = vadd.f32 %v4966, %v4454
        %v5479 = vadd.f32 %v4967, %v4455
        %v5480 = vadd.f32 %v4968, %v4456
        %v5481 = vadd.f32 %v4969, %v4457
        %v5482 = vadd.f32 %v4970, %v4458
        %v5483 = vadd.f32 %v4971, %v4459
        %v5484 = vadd.f32 %v4972, %v4460
        %v5485 = vadd.f32 %v4973, %v4461
        %v5486 = vadd.f32 %v4974, %v4462
        %v5487 = vadd.f32 %v4975, %v4463
        %v5488 = vadd.f32 %v4976, %v4464
        %v5489 = vadd.f32 %v4977, %v4465
        %v5490 = vadd.f32 %v4978, %v4466
        %v5491 = vadd.f32 %v4979, %v4467
        %v5492 = vadd.f32 %v4980, %v4468
        %v5493 = vadd.f32 %v4981, %v4469
        %v5494 = vadd.f32 %v4982, %v4470
        %v5495 = vadd.f32 %v4983, %v4471
        %v5496 = vadd.f32 %v4984, %v4472
        %v5497 = vadd.f32 %v4985, %v4473
        %v5498 = vadd.f32 %v4986, %v4474
        %v5499 = vadd.f32 %v4987, %v4475
        %v5500 = vadd.f32 %v4988, %v4476
        %v5501 = vadd.f32 %v4989, %v4477
        %v5502 = vadd.f32 %v4990, %v4478
        %v5503 = vadd.f32 %v4991, %v4479
        %v5504 = vadd.f32 %v4992, %v4480
        %v5505 = vadd.f32 %v4993, %v4481
        %v5506 = vadd.f32 %v4994, %v4482
        %v5507 = vadd.f32 %v4995, %v4483
        %v5508 = vadd.f32 %v4996, %v4484
        %v5509 = vadd.f32 %v4997, %v4485
        %v5510 = vadd.f32 %v4998, %v4486
        %v5511 = vadd.f32 %v4999, %v4487
        %v5512 = vadd.f32 %v5000, %v4488
        %v5513 = vadd.f32 %v5001, %v4489
        %v5514 = vadd.f32 %v5002, %v4490
        %v5515 = vadd.f32 %v5003, %v4491
        %v5516 = vadd.f32 %v5004, %v4492
        %v5517 = vadd.f32 %v5005, %v4493
        %v5518 = vadd.f32 %v5006, %v4494
        %v5519 = vadd.f32 %v5007, %v4495
        %v5520 = vadd.f32 %v5008, %v4496
        %v5521 = vadd.f32 %v5009, %v4497
        %v5522 = vadd.f32 %v5010, %v4498
        %v5523 = vadd.f32 %v5011, %v4499
        %v5524 = vadd.f32 %v5012, %v4500
        %v5525 = vadd.f32 %v5013, %v4501
        %v5526 = vadd.f32 %v5014, %v4502
        %v5527 = vadd.f32 %v5015, %v4503
        %v5528 = vadd.f32 %v5016, %v4504
        %v5529 = vadd.f32 %v5017, %v4505
        %v5530 = vadd.f32 %v5018, %v4506
        %v5531 = vadd.f32 %v5019, %v4507
        %v5532 = vadd.f32 %v5020, %v4508
        %v5533 = vadd.f32 %v5021, %v4509
        %v5534 = vadd.f32 %v5022, %v4510
        %v5535 = vadd.f32 %v5023, %v4511
        %v5536 = vadd.f32 %v5024, %v4512
        %v5537 = vadd.f32 %v5025, %v4513
        %v5538 = vadd.f32 %v5026, %v4514
        %v5539 = vadd.f32 %v5027, %v4515
        %v5540 = vadd.f32 %v5028, %v4516
        %v5541 = vadd.f32 %v5029, %v4517
        %v5542 = vadd.f32 %v5030, %v4518
        %v5543 = vadd.f32 %v5031, %v4519
        %v5544 = vadd.f32 %v5032, %v4520
        %v5545 = vadd.f32 %v5033, %v4521
        %v5546 = vadd.f32 %v5034, %v4522
        %v5547 = vadd.f32 %v5035, %v4523
        %v5548 = vadd.f32 %v5036, %v4524
        %v5549 = vadd.f32 %v5037, %v4525
        %v5550 = vadd.f32 %v5038, %v4526
        %v5551 = vadd.f32 %v5039, %v4527
        %v5552 = vadd.f32 %v5040, %v4528
        %v5553 = vadd.f32 %v5041, %v4529
        %v5554 = vadd.f32 %v5042, %v4530
        %v5555 = vadd.f32 %v5043, %v4531
        %v5556 = vadd.f32 %v5044, %v4532
        %v5557 = vadd.f32 %v5045, %v4533
        %v5558 = vadd.f32 %v5046, %v4534
        %v5559 = vadd.f32 %v5047, %v4535
        %v5560 = vadd.f32 %v5048, %v4536
        %v5561 = vadd.f32 %v5049, %v4537
        %v5562 = vadd.f32 %v5050, %v4538
        %v5563 = vadd.f32 %v5051, %v4539
        %v5564 = vadd.f32 %v5052, %v4540
        %v5565 = vadd.f32 %v5053, %v4541
        %v5566 = vadd.f32 %v5054, %v4542
        %v5567 = vadd.f32 %v5055, %v4543
        %v5568 = vadd.f32 %v5056, %v4544
        %v5569 = vadd.f32 %v5057, %v4545
        %v5570 = vadd.f32 %v5058, %v4546
        %v5571 = vadd.f32 %v5059, %v4547
        %v5572 = vadd.f32 %v5060, %v4548
        %v5573 = vadd.f32 %v5061, %v4549
        %v5574 = vadd.f32 %v5062, %v4550
        %v5575 = vadd.f32 %v5063, %v4551
        %v5576 = vadd.f32 %v5064, %v4552
        %v5577 = vadd.f32 %v5065, %v4553
        %v5578 = vadd.f32 %v5066, %v4554
        %v5579 = vadd.f32 %v5067, %v4555
        %v5580 = vadd.f32 %v5068, %v4556
        %v5581 = vadd.f32 %v5069, %v4557
        %v5582 = vadd.f32 %v5070, %v4558
        %v5583 = vadd.f32 %v5071, %v4559
        %v5584 = vadd.f32 %v5072, %v4560
        %v5585 = vadd.f32 %v5073, %v4561
        %v5586 = vadd.f32 %v5074, %v4562
        %v5587 = vadd.f32 %v5075, %v4563
        %v5588 = vadd.f32 %v5076, %v4564
        %v5589 = vadd.f32 %v5077, %v4565
        %v5590 = vadd.f32 %v5078, %v4566
        %v5591 = vadd.f32 %v5079, %v4567
        %v5592 = vadd.f32 %v5080, %v4568
        %v5593 = vadd.f32 %v5081, %v4569
        %v5594 = vadd.f32 %v5082, %v4570
        %v5595 = vadd.f32 %v5083, %v4571
        %v5596 = vadd.f32 %v5084, %v4572
        %v5597 = vadd.f32 %v5085, %v4573
        %v5598 = vadd.f32 %v5086, %v4574
        %v5599 = vadd.f32 %v5087, %v4575
        %v5600 = vadd.f32 %v5088, %v4576
        %v5601 = vadd.f32 %v5089, %v4577
        %v5602 = vadd.f32 %v5090, %v4578
        %v5603 = vadd.f32 %v5091, %v4579
        %v5604 = vadd.f32 %v5092, %v4580
        %v5605 = vadd.f32 %v5093, %v4581
        %v5606 = vadd.f32 %v5094, %v4582
        %v5607 = vadd.f32 %v5095, %v4583
        %v5608 = vadd.f32 %v5096, %v4584
        %v5609 = vadd.f32 %v5097, %v4585
        %v5610 = vadd.f32 %v5098, %v4586
        %v5611 = vadd.f32 %v5099, %v4587
        %v5612 = vadd.f32 %v5100, %v4588
        %v5613 = vadd.f32 %v5101, %v4589
        %v5614 = vadd.f32 %v5102, %v4590
        %v5615 = vadd.f32 %v5103, %v4591
        %v5616 = vadd.f32 %v5104, %v4592
        %v5617 = vadd.f32 %v5105, %v4593
        %v5618 = vadd.f32 %v5106, %v4594
        %v5619 = vadd.f32 %v5107, %v4595
        %v5620 = vadd.f32 %v5108, %v4596
        %v5621 = vadd.f32 %v5109, %v4597
        %v5622 = vadd.f32 %v5110, %v4598
        %v5623 = vadd.f32 %v5111, %v4599
        %v5624 = vadd.f32 %v5112, %v4600
        %v5625 = vadd.f32 %v5113, %v4601
        %v5626 = vadd.f32 %v5114, %v4602
        %v5627 = vadd.f32 %v5115, %v4603
        %v5628 = vadd.f32 %v5116, %v4604
        %v5629 = vadd.f32 %v5117, %v4605
        %v5630 = vadd.f32 %v5118, %v4606
        %v5631 = vadd.f32 %v5119, %v4607
        %v5632 = vadd.f32 %v5120, %v4608
        %v5633 = vadd.f32 %v5121, %v4609
        %v5634 = vadd.f32 %v5122, %v4610
        %v5635 = vadd.f32 %v5123, %v4611
        %v5636 = vadd.f32 %v5124, %v4612
        %v5637 = vadd.f32 %v5125, %v4613
        %v5638 = vadd.f32 %v5126, %v4614
        %v5639 = vadd.f32 %v5127, %v4615
        %v5640 = vadd.f32 %v5128, %v4616
        %v5641 = vadd.f32 %v5129, %v4617
        %v5642 = vadd.f32 %v5130, %v4618
        %v5643 = vadd.f32 %v5131, %v4619
        %v5644 = vadd.f32 %v5132, %v4620
        %v5645 = vadd.f32 %v5133, %v4621
        %v5646 = vadd.f32 %v5134, %v4622
        %v5647 = vadd.f32 %v5135, %v4623
        %v5648 = vadd.f32 %v5136, %v4624
        %v5649 = vadd.f32 %v5137, %v4625
        %v5650 = vadd.f32 %v5138, %v4626
        %v5651 = vadd.f32 %v5139, %v4627
        %v5652 = vadd.f32 %v5140, %v4628
        %v5653 = vadd.f32 %v5141, %v4629
        %v5654 = vadd.f32 %v5142, %v4630
        %v5655 = vadd.f32 %v5143, %v4631
        %v5656 = vadd.f32 %v5144, %v4632
        %v5657 = vadd.f32 %v5145, %v4633
        %v5658 = vadd.f32 %v5146, %v4634
        %v5659 = vadd.f32 %v5147, %v4635
        %v5660 = vadd.f32 %v5148, %v4636
        %v5661 = vadd.f32 %v5149, %v4637
        %v5662 = vadd.f32 %v5150, %v4638
        %v5663 = vadd.f32 %v5151, %v4639
        %v5664 = vadd.f32 %v5152, %v4640
        %v5665 = vadd.f32 %v5153, %v4641
        %v5666 = vadd.f32 %v5154, %v4642
        %v5667 = vadd.f32 %v5155, %v4643
        %v5668 = vadd.f32 %v5156, %v4644
        %v5669 = vadd.f32 %v5157, %v4645
        %v5670 = vadd.f32 %v5158, %v4646
        %v5671 = vadd.f32 %v5159, %v4647
        %v5672 = vadd.f32 %v5160, %v4648
        %v5673 = vadd.f32 %v5161, %v4649
        %v5674 = vadd.f32 %v5162, %v4650
        %v5675 = vadd.f32 %v5163, %v4651
        %v5676 = vadd.f32 %v5164, %v4652
        %v5677 = vadd.f32 %v5165, %v4653
        %v5678 = vadd.f32 %v5166, %v4654
        %v5679 = vadd.f32 %v5167, %v4655
        %v5680 = vadd.f32 %v5168, %v4656
        %v5681 = vadd.f32 %v5169, %v4657
        %v5682 = vadd.f32 %v5170, %v4658
        %v5683 = vadd.f32 %v5171, %v4659
        %v5684 = vadd.f32 %v5172, %v4660
        %v5685 = vadd.f32 %v5173, %v4661
        %v5686 = vadd.f32 %v5174, %v4662
        %v5687 = vadd.f32 %v5175, %v4663
        %v5688 = vadd.f32 %v5176, %v4664
        %v5689 = vadd.f32 %v5177, %v4665
        %v5690 = vadd.f32 %v5178, %v4666
        %v5691 = vadd.f32 %v5179, %v4667
        %v5692 = vadd.f32 %v5180, %v4668
        %v5693 = vadd.f32 %v5181, %v4669
        %v5694 = vadd.f32 %v5182, %v4670
        %v5695 = vadd.f32 %v5183, %v4671
        %v5696 = vadd.f32 %v5184, %v4672
        %v5697 = vadd.f32 %v5185, %v4673
        %v5698 = vadd.f32 %v5186, %v4674
        %v5699 = vadd.f32 %v5187, %v4675
        %v5700 = vadd.f32 %v5188, %v4676
        %v5701 = vadd.f32 %v5189, %v4677
        %v5702 = vadd.f32 %v5190, %v4678
        %v5703 = vadd.f32 %v5191, %v4679
        %v5704 = vadd.f32 %v5192, %v4680
        %v5705 = vadd.f32 %v5193, %v4681
        %v5706 = vadd.f32 %v5194, %v4682
        %v5707 = vadd.f32 %v5195, %v4683
        %v5708 = vadd.f32 %v5196, %v4684
        %v5709 = vadd.f32 %v5197, %v4685
        %v5710 = vadd.f32 %v5198, %v4686
        %v5711 = vadd.f32 %v5199, %v4687
        %v5712 = vadd.f32 %v5200, %v4688
        %v5713 = vadd.f32 %v5201, %v4689
        %v5714 = vadd.f32 %v5202, %v4690
        %v5715 = vadd.f32 %v5203, %v4691
        %v5716 = vadd.f32 %v5204, %v4692
        %v5717 = vadd.f32 %v5205, %v4693
        %v5718 = vadd.f32 %v5206, %v4694
        %v5719 = vadd.f32 %v5207, %v4695
        %v5720 = vadd.f32 %v5208, %v4696
        %v5721 = vadd.f32 %v5209, %v4697
        %v5722 = vadd.f32 %v5210, %v4698
        %v5723 = vadd.f32 %v5211, %v4699
        %v5724 = vadd.f32 %v5212, %v4700
        %v5725 = vadd.f32 %v5213, %v4701
        %v5726 = vadd.f32 %v5214, %v4702
        %v5727 = vadd.f32 %v5215, %v4703
        %v5728 = vadd.f32 %v5216, %v4704
        %v5729 = vadd.f32 %v5217, %v4705
        %v5730 = vadd.f32 %v5218, %v4706
        %v5731 = vadd.f32 %v5219, %v4707
        %v5732 = vadd.f32 %v5220, %v4708
        %v5733 = vadd.f32 %v5221, %v4709
        %v5734 = vadd.f32 %v5222, %v4710
        %v5735 = vadd.f32 %v5223, %v4711
        %v5736 = vadd.f32 %v5224, %v4712
        %v5737 = vadd.f32 %v5225, %v4713
        %v5738 = vadd.f32 %v5226, %v4714
        %v5739 = vadd.f32 %v5227, %v4715
        %v5740 = vadd.f32 %v5228, %v4716
        %v5741 = vadd.f32 %v5229, %v4717
        %v5742 = vadd.f32 %v5230, %v4718
        %v5743 = vadd.f32 %v5231, %v4719
        %v5744 = vadd.f32 %v5232, %v4720
        %v5745 = vadd.f32 %v5233, %v4721
        %v5746 = vadd.f32 %v5234, %v4722
        %v5747 = vadd.f32 %v5235, %v4723
        %v5748 = vadd.f32 %v5236, %v4724
        %v5749 = vadd.f32 %v5237, %v4725
        %v5750 = vadd.f32 %v5238, %v4726
        %v5751 = vadd.f32 %v5239, %v4727
        %v5752 = vadd.f32 %v5240, %v4728
        %v5753 = vadd.f32 %v5241, %v4729
        %v5754 = vadd.f32 %v5242, %v4730
        %v5755 = vadd.f32 %v5243, %v4731
        %v5756 = vadd.f32 %v5244, %v4732
        %v5757 = vadd.f32 %v5245, %v4733
        %v5758 = vadd.f32 %v5246, %v4734
        %v5759 = vadd.f32 %v5247, %v4735
        %v5760 = vadd.f32 %v5248, %v4736
        %v5761 = vadd.f32 %v5249, %v4737
        %v5762 = vadd.f32 %v5250, %v4738
        %v5763 = vadd.f32 %v5251, %v4739
        %v5764 = vadd.f32 %v5252, %v4740
        %v5765 = vadd.f32 %v5253, %v4741
        %v5766 = vadd.f32 %v5254, %v4742
        %v5767 = vadd.f32 %v5255, %v4743
        %v5768 = vadd.f32 %v5256, %v4744
        %v5769 = vadd.f32 %v5257, %v4745
        %v5770 = vadd.f32 %v5258, %v4746
        %v5771 = vadd.f32 %v5259, %v4747
        %v5772 = vadd.f32 %v5260, %v4748
        %v5773 = vadd.f32 %v5261, %v4749
        %v5774 = vadd.f32 %v5262, %v4750
        %v5775 = vadd.f32 %v5263, %v4751
        %v5776 = vadd.f32 %v5264, %v4752
        %v5777 = vadd.f32 %v5265, %v4753
        %v5778 = vadd.f32 %v5266, %v4754
        %v5779 = vadd.f32 %v5267, %v4755
        %v5780 = vadd.f32 %v5268, %v4756
        %v5781 = vadd.f32 %v5269, %v4757
        %v5782 = vadd.f32 %v5270, %v4758
        %v5783 = vadd.f32 %v5271, %v4759
        %v5784 = vadd.f32 %v5272, %v4760
        %v5785 = vadd.f32 %v5273, %v4761
        %v5786 = vadd.f32 %v5274, %v4762
        %v5787 = vadd.f32 %v5275, %v4763
        %v5788 = vadd.f32 %v5276, %v4764
        %v5789 = vadd.f32 %v5277, %v4765
        %v5790 = vadd.f32 %v5278, %v4766
        %v5791 = vadd.f32 %v5279, %v4767
        %v5792 = vadd.f32 %v5280, %v4768
        %v5793 = vadd.f32 %v5281, %v4769
        %v5794 = vadd.f32 %v5282, %v4770
        %v5795 = vadd.f32 %v5283, %v4771
        %v5796 = vadd.f32 %v5284, %v4772
        %v5797 = vadd.f32 %v5285, %v4773
        %v5798 = vadd.f32 %v5286, %v4774
        %v5799 = vadd.f32 %v5287, %v4775
        %v5800 = vadd.f32 %v5288, %v4776
        %v5801 = vadd.f32 %v5289, %v4777
        %v5802 = vadd.f32 %v5290, %v4778
        %v5803 = vadd.f32 %v5291, %v4779
        %v5804 = vadd.f32 %v5292, %v4780
        %v5805 = vadd.f32 %v5293, %v4781
        %v5806 = vadd.f32 %v5294, %v4782
        %v5807 = vadd.f32 %v5295, %v4783
        %v5808 = vadd.f32 %v5296, %v4784
        %v5809 = vadd.f32 %v5297, %v4785
        %v5810 = vadd.f32 %v5298, %v4786
        %v5811 = vadd.f32 %v5299, %v4787
        %v5812 = vadd.f32 %v5300, %v4788
        %v5813 = vadd.f32 %v5301, %v4789
        %v5814 = vadd.f32 %v5302, %v4790
        %v5815 = vadd.f32 %v5303, %v4791
        %v5816 = vadd.f32 %v5304, %v4792
        %v5817 = vadd.f32 %v5305, %v4793
        %v5818 = vadd.f32 %v5306, %v4794
        %v5819 = vadd.f32 %v5307, %v4795
        %v5820 = vadd.f32 %v5308, %v4796
        %v5821 = vadd.f32 %v5309, %v4797
        %v5822 = vadd.f32 %v5310, %v4798
        %v5823 = vadd.f32 %v5311, %v4799
        %v5824 = vadd.f32 %v5312, %v4800
        %v5825 = vadd.f32 %v5313, %v4801
        %v5826 = vadd.f32 %v5314, %v4802
        %v5827 = vadd.f32 %v5315, %v4803
        %v5828 = vadd.f32 %v5316, %v4804
        %v5829 = vadd.f32 %v5317, %v4805
        %v5830 = vadd.f32 %v5318, %v4806
        %v5831 = vadd.f32 %v5319, %v4807
        %v5832 = vadd.f32 %v5320, %v4808
        %v5833 = vadd.f32 %v5321, %v4809
        %v5834 = vadd.f32 %v5322, %v4810
        %v5835 = vadd.f32 %v5323, %v4811
        %v5836 = vadd.f32 %v5324, %v4812
        %v5837 = vadd.f32 %v5325, %v4813
        %v5838 = vadd.f32 %v5326, %v4814
        %v5839 = vadd.f32 %v5327, %v4815
        %v5840 = vadd.f32 %v5328, %v4816
        %v5841 = vadd.f32 %v5329, %v4817
        %v5842 = vadd.f32 %v5330, %v4818
        %v5843 = vadd.f32 %v5331, %v4819
        %v5844 = vadd.f32 %v5332, %v4820
        %v5845 = vadd.f32 %v5333, %v4821
        %v5846 = vadd.f32 %v5334, %v4822
        %v5847 = vadd.f32 %v5335, %v4823
        %v5848 = vadd.f32 %v5336, %v4824
        %v5849 = vadd.f32 %v5337, %v4825
        %v5850 = vadd.f32 %v5338, %v4826
        %v5851 = vadd.f32 %v5339, %v4827
        %v5852 = vadd.f32 %v5340, %v4828
        %v5853 = vadd.f32 %v5341, %v4829
        %v5854 = vadd.f32 %v5342, %v4830
        %v5855 = vadd.f32 %v5343, %v4831
        %v5856 = vadd.f32 %v5344, %v4832
        %v5857 = vadd.f32 %v5345, %v4833
        %v5858 = vadd.f32 %v5346, %v4834
        %v5859 = vadd.f32 %v5347, %v4835
        %v5860 = vadd.f32 %v5348, %v4836
        %v5861 = vadd.f32 %v5349, %v4837
        %v5862 = vadd.f32 %v5350, %v4838
        %v5863 = vadd.f32 %v5351, %v4839
        %v5864 = vadd.f32 %v5352, %v4840
        %v5865 = vadd.f32 %v5353, %v4841
        %v5866 = vadd.f32 %v5354, %v4842
        %v5867 = vadd.f32 %v5355, %v4843
        %v5868 = vadd.f32 %v5356, %v4844
        %v5869 = vadd.f32 %v5357, %v4845
        %v5870 = vadd.f32 %v5358, %v4846
        %v5871 = vadd.f32 %v5359, %v4847
        %v5872 = vadd.f32 %v5360, %v4848
        %v5873 = vadd.f32 %v5361, %v4849
        %v5874 = vadd.f32 %v5362, %v4850
        %v5875 = vadd.f32 %v5363, %v4851
        %v5876 = vadd.f32 %v5364, %v4852
        %v5877 = vadd.f32 %v5365, %v4853
        %v5878 = vadd.f32 %v5366, %v4854
        %v5879 = vadd.f32 %v5367, %v4855
        %v5880 = vadd.f32 %v5368, %v4856
        %v5881 = vadd.f32 %v5369, %v4857
        %v5882 = vadd.f32 %v5370, %v4858
        %v5883 = vadd.f32 %v5371, %v4859
        %v5884 = vadd.f32 %v5372, %v4860
        %v5885 = vadd.f32 %v5373, %v4861
        %v5886 = vadd.f32 %v5374, %v4862
        %v5887 = vadd.f32 %v5375, %v4863
        %v5888 = vadd.f32 %v5376, %v4864
        %v5889 = vadd.f32 %v5377, %v4865
        %v5890 = vadd.f32 %v5378, %v4866
        %v5891 = vadd.f32 %v5379, %v4867
        %v5892 = vadd.f32 %v5380, %v4868
        %v5893 = vadd.f32 %v5381, %v4869
        %v5894 = vadd.f32 %v5382, %v4870
        %v5895 = vadd.f32 %v5383, %v4871
        %v5896 = vadd.f32 %v5384, %v4872
        %v5897 = vadd.f32 %v5385, %v4873
        %v5898 = vadd.f32 %v5386, %v4874
        %v5899 = vadd.f32 %v5387, %v4875
        %v5900 = vadd.f32 %v5388, %v4876
        %v5901 = vadd.f32 %v5389, %v4877
        %v5902 = vadd.f32 %v5390, %v4878
        %v5903 = vadd.f32 %v5391, %v4879
        %v5904 = vadd.f32 %v5392, %v4880
        %v5905 = vadd.f32 %v5393, %v4881
        %v5906 = vadd.f32 %v5394, %v4882
        %v5907 = vadd.f32 %v5395, %v4883
        %5908 = vst [vmem:[#allocation2] sm:$0xff] %v5396
        %5909 = vst [vmem:[#allocation2 + $0x8] sm:$0xff] %v5397
        %5910 = vst [vmem:[#allocation2 + $0x10] sm:$0xff] %v5398
        %5911 = vst [vmem:[#allocation2 + $0x18] sm:$0xff] %v5399
        %5912 = vst [vmem:[#allocation2 + $0x20] sm:$0xff] %v5400
        %5913 = vst [vmem:[#allocation2 + $0x28] sm:$0xff] %v5401
        %5914 = vst [vmem:[#allocation2 + $0x30] sm:$0xff] %v5402
        %5915 = vst [vmem:[#allocation2 + $0x38] sm:$0xff] %v5403
        %5916 = vst [vmem:[#allocation2 + $0x40] sm:$0xff] %v5404
        %5917 = vst [vmem:[#allocation2 + $0x48] sm:$0xff] %v5405
        %5918 = vst [vmem:[#allocation2 + $0x50] sm:$0xff] %v5406
        %5919 = vst [vmem:[#allocation2 + $0x58] sm:$0xff] %v5407
        %5920 = vst [vmem:[#allocation2 + $0x60] sm:$0xff] %v5408
        %5921 = vst [vmem:[#allocation2 + $0x68] sm:$0xff] %v5409
        %5922 = vst [vmem:[#allocation2 + $0x70] sm:$0xff] %v5410
        %5923 = vst [vmem:[#allocation2 + $0x78] sm:$0xff] %v5411
        %5924 = vst [vmem:[#allocation2 + $0x80] sm:$0xff] %v5412
        %5925 = vst [vmem:[#allocation2 + $0x88] sm:$0xff] %v5413
        %5926 = vst [vmem:[#allocation2 + $0x90] sm:$0xff] %v5414
        %5927 = vst [vmem:[#allocation2 + $0x98] sm:$0xff] %v5415
        %5928 = vst [vmem:[#allocation2 + $0xa0] sm:$0xff] %v5416
        %5929 = vst [vmem:[#allocation2 + $0xa8] sm:$0xff] %v5417
        %5930 = vst [vmem:[#allocation2 + $0xb0] sm:$0xff] %v5418
        %5931 = vst [vmem:[#allocation2 + $0xb8] sm:$0xff] %v5419
        %5932 = vst [vmem:[#allocation2 + $0xc0] sm:$0xff] %v5420
        %5933 = vst [vmem:[#allocation2 + $0xc8] sm:$0xff] %v5421
        %5934 = vst [vmem:[#allocation2 + $0xd0] sm:$0xff] %v5422
        %5935 = vst [vmem:[#allocation2 + $0xd8] sm:$0xff] %v5423
        %5936 = vst [vmem:[#allocation2 + $0xe0] sm:$0xff] %v5424
        %5937 = vst [vmem:[#allocation2 + $0xe8] sm:$0xff] %v5425
        %5938 = vst [vmem:[#allocation2 + $0xf0] sm:$0xff] %v5426
        %5939 = vst [vmem:[#allocation2 + $0xf8] sm:$0xff] %v5427
        %5940 = vst [vmem:[#allocation2 + $0x100] sm:$0xff] %v5428
        %5941 = vst [vmem:[#allocation2 + $0x108] sm:$0xff] %v5429
        %5942 = vst [vmem:[#allocation2 + $0x110] sm:$0xff] %v5430
        %5943 = vst [vmem:[#allocation2 + $0x118] sm:$0xff] %v5431
        %5944 = vst [vmem:[#allocation2 + $0x120] sm:$0xff] %v5432
        %5945 = vst [vmem:[#allocation2 + $0x128] sm:$0xff] %v5433
        %5946 = vst [vmem:[#allocation2 + $0x130] sm:$0xff] %v5434
        %5947 = vst [vmem:[#allocation2 + $0x138] sm:$0xff] %v5435
        %5948 = vst [vmem:[#allocation2 + $0x140] sm:$0xff] %v5436
        %5949 = vst [vmem:[#allocation2 + $0x148] sm:$0xff] %v5437
        %5950 = vst [vmem:[#allocation2 + $0x150] sm:$0xff] %v5438
        %5951 = vst [vmem:[#allocation2 + $0x158] sm:$0xff] %v5439
        %5952 = vst [vmem:[#allocation2 + $0x160] sm:$0xff] %v5440
        %5953 = vst [vmem:[#allocation2 + $0x168] sm:$0xff] %v5441
        %5954 = vst [vmem:[#allocation2 + $0x170] sm:$0xff] %v5442
        %5955 = vst [vmem:[#allocation2 + $0x178] sm:$0xff] %v5443
        %5956 = vst [vmem:[#allocation2 + $0x180] sm:$0xff] %v5444
        %5957 = vst [vmem:[#allocation2 + $0x188] sm:$0xff] %v5445
        %5958 = vst [vmem:[#allocation2 + $0x190] sm:$0xff] %v5446
        %5959 = vst [vmem:[#allocation2 + $0x198] sm:$0xff] %v5447
        %5960 = vst [vmem:[#allocation2 + $0x1a0] sm:$0xff] %v5448
        %5961 = vst [vmem:[#allocation2 + $0x1a8] sm:$0xff] %v5449
        %5962 = vst [vmem:[#allocation2 + $0x1b0] sm:$0xff] %v5450
        %5963 = vst [vmem:[#allocation2 + $0x1b8] sm:$0xff] %v5451
        %5964 = vst [vmem:[#allocation2 + $0x1c0] sm:$0xff] %v5452
        %5965 = vst [vmem:[#allocation2 + $0x1c8] sm:$0xff] %v5453
        %5966 = vst [vmem:[#allocation2 + $0x1d0] sm:$0xff] %v5454
        %5967 = vst [vmem:[#allocation2 + $0x1d8] sm:$0xff] %v5455
        %5968 = vst [vmem:[#allocation2 + $0x1e0] sm:$0xff] %v5456
        %5969 = vst [vmem:[#allocation2 + $0x1e8] sm:$0xff] %v5457
        %5970 = vst [vmem:[#allocation2 + $0x1f0] sm:$0xff] %v5458
        %5971 = vst [vmem:[#allocation2 + $0x1f8] sm:$0xff] %v5459
        %5972 = vst [vmem:[#allocation2 + $0x200] sm:$0xff] %v5460
        %5973 = vst [vmem:[#allocation2 + $0x208] sm:$0xff] %v5461
        %5974 = vst [vmem:[#allocation2 + $0x210] sm:$0xff] %v5462
        %5975 = vst [vmem:[#allocation2 + $0x218] sm:$0xff] %v5463
        %5976 = vst [vmem:[#allocation2 + $0x220] sm:$0xff] %v5464
        %5977 = vst [vmem:[#allocation2 + $0x228] sm:$0xff] %v5465
        %5978 = vst [vmem:[#allocation2 + $0x230] sm:$0xff] %v5466
        %5979 = vst [vmem:[#allocation2 + $0x238] sm:$0xff] %v5467
        %5980 = vst [vmem:[#allocation2 + $0x240] sm:$0xff] %v5468
        %5981 = vst [vmem:[#allocation2 + $0x248] sm:$0xff] %v5469
        %5982 = vst [vmem:[#allocation2 + $0x250] sm:$0xff] %v5470
        %5983 = vst [vmem:[#allocation2 + $0x258] sm:$0xff] %v5471
        %5984 = vst [vmem:[#allocation2 + $0x260] sm:$0xff] %v5472
        %5985 = vst [vmem:[#allocation2 + $0x268] sm:$0xff] %v5473
        %5986 = vst [vmem:[#allocation2 + $0x270] sm:$0xff] %v5474
        %5987 = vst [vmem:[#allocation2 + $0x278] sm:$0xff] %v5475
        %5988 = vst [vmem:[#allocation2 + $0x280] sm:$0xff] %v5476
        %5989 = vst [vmem:[#allocation2 + $0x288] sm:$0xff] %v5477
        %5990 = vst [vmem:[#allocation2 + $0x290] sm:$0xff] %v5478
        %5991 = vst [vmem:[#allocation2 + $0x298] sm:$0xff] %v5479
        %5992 = vst [vmem:[#allocation2 + $0x2a0] sm:$0xff] %v5480
        %5993 = vst [vmem:[#allocation2 + $0x2a8] sm:$0xff] %v5481
        %5994 = vst [vmem:[#allocation2 + $0x2b0] sm:$0xff] %v5482
        %5995 = vst [vmem:[#allocation2 + $0x2b8] sm:$0xff] %v5483
        %5996 = vst [vmem:[#allocation2 + $0x2c0] sm:$0xff] %v5484
        %5997 = vst [vmem:[#allocation2 + $0x2c8] sm:$0xff] %v5485
        %5998 = vst [vmem:[#allocation2 + $0x2d0] sm:$0xff] %v5486
        %5999 = vst [vmem:[#allocation2 + $0x2d8] sm:$0xff] %v5487
        %6000 = vst [vmem:[#allocation2 + $0x2e0] sm:$0xff] %v5488
        %6001 = vst [vmem:[#allocation2 + $0x2e8] sm:$0xff] %v5489
        %6002 = vst [vmem:[#allocation2 + $0x2f0] sm:$0xff] %v5490
        %6003 = vst [vmem:[#allocation2 + $0x2f8] sm:$0xff] %v5491
        %6004 = vst [vmem:[#allocation2 + $0x300] sm:$0xff] %v5492
        %6005 = vst [vmem:[#allocation2 + $0x308] sm:$0xff] %v5493
        %6006 = vst [vmem:[#allocation2 + $0x310] sm:$0xff] %v5494
        %6007 = vst [vmem:[#allocation2 + $0x318] sm:$0xff] %v5495
        %6008 = vst [vmem:[#allocation2 + $0x320] sm:$0xff] %v5496
        %6009 = vst [vmem:[#allocation2 + $0x328] sm:$0xff] %v5497
        %6010 = vst [vmem:[#allocation2 + $0x330] sm:$0xff] %v5498
        %6011 = vst [vmem:[#allocation2 + $0x338] sm:$0xff] %v5499
        %6012 = vst [vmem:[#allocation2 + $0x340] sm:$0xff] %v5500
        %6013 = vst [vmem:[#allocation2 + $0x348] sm:$0xff] %v5501
        %6014 = vst [vmem:[#allocation2 + $0x350] sm:$0xff] %v5502
        %6015 = vst [vmem:[#allocation2 + $0x358] sm:$0xff] %v5503
        %6016 = vst [vmem:[#allocation2 + $0x360] sm:$0xff] %v5504
        %6017 = vst [vmem:[#allocation2 + $0x368] sm:$0xff] %v5505
        %6018 = vst [vmem:[#allocation2 + $0x370] sm:$0xff] %v5506
        %6019 = vst [vmem:[#allocation2 + $0x378] sm:$0xff] %v5507
        %6020 = vst [vmem:[#allocation2 + $0x380] sm:$0xff] %v5508
        %6021 = vst [vmem:[#allocation2 + $0x388] sm:$0xff] %v5509
        %6022 = vst [vmem:[#allocation2 + $0x390] sm:$0xff] %v5510
        %6023 = vst [vmem:[#allocation2 + $0x398] sm:$0xff] %v5511
        %6024 = vst [vmem:[#allocation2 + $0x3a0] sm:$0xff] %v5512
        %6025 = vst [vmem:[#allocation2 + $0x3a8] sm:$0xff] %v5513
        %6026 = vst [vmem:[#allocation2 + $0x3b0] sm:$0xff] %v5514
        %6027 = vst [vmem:[#allocation2 + $0x3b8] sm:$0xff] %v5515
        %6028 = vst [vmem:[#allocation2 + $0x3c0] sm:$0xff] %v5516
        %6029 = vst [vmem:[#allocation2 + $0x3c8] sm:$0xff] %v5517
        %6030 = vst [vmem:[#allocation2 + $0x3d0] sm:$0xff] %v5518
        %6031 = vst [vmem:[#allocation2 + $0x3d8] sm:$0xff] %v5519
        %6032 = vst [vmem:[#allocation2 + $0x3e0] sm:$0xff] %v5520
        %6033 = vst [vmem:[#allocation2 + $0x3e8] sm:$0xff] %v5521
        %6034 = vst [vmem:[#allocation2 + $0x3f0] sm:$0xff] %v5522
        %6035 = vst [vmem:[#allocation2 + $0x3f8] sm:$0xff] %v5523
        %6036 = vst [vmem:[#allocation2 + $0x400] sm:$0xff] %v5524
        %6037 = vst [vmem:[#allocation2 + $0x408] sm:$0xff] %v5525
        %6038 = vst [vmem:[#allocation2 + $0x410] sm:$0xff] %v5526
        %6039 = vst [vmem:[#allocation2 + $0x418] sm:$0xff] %v5527
        %6040 = vst [vmem:[#allocation2 + $0x420] sm:$0xff] %v5528
        %6041 = vst [vmem:[#allocation2 + $0x428] sm:$0xff] %v5529
        %6042 = vst [vmem:[#allocation2 + $0x430] sm:$0xff] %v5530
        %6043 = vst [vmem:[#allocation2 + $0x438] sm:$0xff] %v5531
        %6044 = vst [vmem:[#allocation2 + $0x440] sm:$0xff] %v5532
        %6045 = vst [vmem:[#allocation2 + $0x448] sm:$0xff] %v5533
        %6046 = vst [vmem:[#allocation2 + $0x450] sm:$0xff] %v5534
        %6047 = vst [vmem:[#allocation2 + $0x458] sm:$0xff] %v5535
        %6048 = vst [vmem:[#allocation2 + $0x460] sm:$0xff] %v5536
        %6049 = vst [vmem:[#allocation2 + $0x468] sm:$0xff] %v5537
        %6050 = vst [vmem:[#allocation2 + $0x470] sm:$0xff] %v5538
        %6051 = vst [vmem:[#allocation2 + $0x478] sm:$0xff] %v5539
        %6052 = vst [vmem:[#allocation2 + $0x480] sm:$0xff] %v5540
        %6053 = vst [vmem:[#allocation2 + $0x488] sm:$0xff] %v5541
        %6054 = vst [vmem:[#allocation2 + $0x490] sm:$0xff] %v5542
        %6055 = vst [vmem:[#allocation2 + $0x498] sm:$0xff] %v5543
        %6056 = vst [vmem:[#allocation2 + $0x4a0] sm:$0xff] %v5544
        %6057 = vst [vmem:[#allocation2 + $0x4a8] sm:$0xff] %v5545
        %6058 = vst [vmem:[#allocation2 + $0x4b0] sm:$0xff] %v5546
        %6059 = vst [vmem:[#allocation2 + $0x4b8] sm:$0xff] %v5547
        %6060 = vst [vmem:[#allocation2 + $0x4c0] sm:$0xff] %v5548
        %6061 = vst [vmem:[#allocation2 + $0x4c8] sm:$0xff] %v5549
        %6062 = vst [vmem:[#allocation2 + $0x4d0] sm:$0xff] %v5550
        %6063 = vst [vmem:[#allocation2 + $0x4d8] sm:$0xff] %v5551
        %6064 = vst [vmem:[#allocation2 + $0x4e0] sm:$0xff] %v5552
        %6065 = vst [vmem:[#allocation2 + $0x4e8] sm:$0xff] %v5553
        %6066 = vst [vmem:[#allocation2 + $0x4f0] sm:$0xff] %v5554
        %6067 = vst [vmem:[#allocation2 + $0x4f8] sm:$0xff] %v5555
        %6068 = vst [vmem:[#allocation2 + $0x500] sm:$0xff] %v5556
        %6069 = vst [vmem:[#allocation2 + $0x508] sm:$0xff] %v5557
        %6070 = vst [vmem:[#allocation2 + $0x510] sm:$0xff] %v5558
        %6071 = vst [vmem:[#allocation2 + $0x518] sm:$0xff] %v5559
        %6072 = vst [vmem:[#allocation2 + $0x520] sm:$0xff] %v5560
        %6073 = vst [vmem:[#allocation2 + $0x528] sm:$0xff] %v5561
        %6074 = vst [vmem:[#allocation2 + $0x530] sm:$0xff] %v5562
        %6075 = vst [vmem:[#allocation2 + $0x538] sm:$0xff] %v5563
        %6076 = vst [vmem:[#allocation2 + $0x540] sm:$0xff] %v5564
        %6077 = vst [vmem:[#allocation2 + $0x548] sm:$0xff] %v5565
        %6078 = vst [vmem:[#allocation2 + $0x550] sm:$0xff] %v5566
        %6079 = vst [vmem:[#allocation2 + $0x558] sm:$0xff] %v5567
        %6080 = vst [vmem:[#allocation2 + $0x560] sm:$0xff] %v5568
        %6081 = vst [vmem:[#allocation2 + $0x568] sm:$0xff] %v5569
        %6082 = vst [vmem:[#allocation2 + $0x570] sm:$0xff] %v5570
        %6083 = vst [vmem:[#allocation2 + $0x578] sm:$0xff] %v5571
        %6084 = vst [vmem:[#allocation2 + $0x580] sm:$0xff] %v5572
        %6085 = vst [vmem:[#allocation2 + $0x588] sm:$0xff] %v5573
        %6086 = vst [vmem:[#allocation2 + $0x590] sm:$0xff] %v5574
        %6087 = vst [vmem:[#allocation2 + $0x598] sm:$0xff] %v5575
        %6088 = vst [vmem:[#allocation2 + $0x5a0] sm:$0xff] %v5576
        %6089 = vst [vmem:[#allocation2 + $0x5a8] sm:$0xff] %v5577
        %6090 = vst [vmem:[#allocation2 + $0x5b0] sm:$0xff] %v5578
        %6091 = vst [vmem:[#allocation2 + $0x5b8] sm:$0xff] %v5579
        %6092 = vst [vmem:[#allocation2 + $0x5c0] sm:$0xff] %v5580
        %6093 = vst [vmem:[#allocation2 + $0x5c8] sm:$0xff] %v5581
        %6094 = vst [vmem:[#allocation2 + $0x5d0] sm:$0xff] %v5582
        %6095 = vst [vmem:[#allocation2 + $0x5d8] sm:$0xff] %v5583
        %6096 = vst [vmem:[#allocation2 + $0x5e0] sm:$0xff] %v5584
        %6097 = vst [vmem:[#allocation2 + $0x5e8] sm:$0xff] %v5585
        %6098 = vst [vmem:[#allocation2 + $0x5f0] sm:$0xff] %v5586
        %6099 = vst [vmem:[#allocation2 + $0x5f8] sm:$0xff] %v5587
        %6100 = vst [vmem:[#allocation2 + $0x600] sm:$0xff] %v5588
        %6101 = vst [vmem:[#allocation2 + $0x608] sm:$0xff] %v5589
        %6102 = vst [vmem:[#allocation2 + $0x610] sm:$0xff] %v5590
        %6103 = vst [vmem:[#allocation2 + $0x618] sm:$0xff] %v5591
        %6104 = vst [vmem:[#allocation2 + $0x620] sm:$0xff] %v5592
        %6105 = vst [vmem:[#allocation2 + $0x628] sm:$0xff] %v5593
        %6106 = vst [vmem:[#allocation2 + $0x630] sm:$0xff] %v5594
        %6107 = vst [vmem:[#allocation2 + $0x638] sm:$0xff] %v5595
        %6108 = vst [vmem:[#allocation2 + $0x640] sm:$0xff] %v5596
        %6109 = vst [vmem:[#allocation2 + $0x648] sm:$0xff] %v5597
        %6110 = vst [vmem:[#allocation2 + $0x650] sm:$0xff] %v5598
        %6111 = vst [vmem:[#allocation2 + $0x658] sm:$0xff] %v5599
        %6112 = vst [vmem:[#allocation2 + $0x660] sm:$0xff] %v5600
        %6113 = vst [vmem:[#allocation2 + $0x668] sm:$0xff] %v5601
        %6114 = vst [vmem:[#allocation2 + $0x670] sm:$0xff] %v5602
        %6115 = vst [vmem:[#allocation2 + $0x678] sm:$0xff] %v5603
        %6116 = vst [vmem:[#allocation2 + $0x680] sm:$0xff] %v5604
        %6117 = vst [vmem:[#allocation2 + $0x688] sm:$0xff] %v5605
        %6118 = vst [vmem:[#allocation2 + $0x690] sm:$0xff] %v5606
        %6119 = vst [vmem:[#allocation2 + $0x698] sm:$0xff] %v5607
        %6120 = vst [vmem:[#allocation2 + $0x6a0] sm:$0xff] %v5608
        %6121 = vst [vmem:[#allocation2 + $0x6a8] sm:$0xff] %v5609
        %6122 = vst [vmem:[#allocation2 + $0x6b0] sm:$0xff] %v5610
        %6123 = vst [vmem:[#allocation2 + $0x6b8] sm:$0xff] %v5611
        %6124 = vst [vmem:[#allocation2 + $0x6c0] sm:$0xff] %v5612
        %6125 = vst [vmem:[#allocation2 + $0x6c8] sm:$0xff] %v5613
        %6126 = vst [vmem:[#allocation2 + $0x6d0] sm:$0xff] %v5614
        %6127 = vst [vmem:[#allocation2 + $0x6d8] sm:$0xff] %v5615
        %6128 = vst [vmem:[#allocation2 + $0x6e0] sm:$0xff] %v5616
        %6129 = vst [vmem:[#allocation2 + $0x6e8] sm:$0xff] %v5617
        %6130 = vst [vmem:[#allocation2 + $0x6f0] sm:$0xff] %v5618
        %6131 = vst [vmem:[#allocation2 + $0x6f8] sm:$0xff] %v5619
        %6132 = vst [vmem:[#allocation2 + $0x700] sm:$0xff] %v5620
        %6133 = vst [vmem:[#allocation2 + $0x708] sm:$0xff] %v5621
        %6134 = vst [vmem:[#allocation2 + $0x710] sm:$0xff] %v5622
        %6135 = vst [vmem:[#allocation2 + $0x718] sm:$0xff] %v5623
        %6136 = vst [vmem:[#allocation2 + $0x720] sm:$0xff] %v5624
        %6137 = vst [vmem:[#allocation2 + $0x728] sm:$0xff] %v5625
        %6138 = vst [vmem:[#allocation2 + $0x730] sm:$0xff] %v5626
        %6139 = vst [vmem:[#allocation2 + $0x738] sm:$0xff] %v5627
        %6140 = vst [vmem:[#allocation2 + $0x740] sm:$0xff] %v5628
        %6141 = vst [vmem:[#allocation2 + $0x748] sm:$0xff] %v5629
        %6142 = vst [vmem:[#allocation2 + $0x750] sm:$0xff] %v5630
        %6143 = vst [vmem:[#allocation2 + $0x758] sm:$0xff] %v5631
        %6144 = vst [vmem:[#allocation2 + $0x760] sm:$0xff] %v5632
        %6145 = vst [vmem:[#allocation2 + $0x768] sm:$0xff] %v5633
        %6146 = vst [vmem:[#allocation2 + $0x770] sm:$0xff] %v5634
        %6147 = vst [vmem:[#allocation2 + $0x778] sm:$0xff] %v5635
        %6148 = vst [vmem:[#allocation2 + $0x780] sm:$0xff] %v5636
        %6149 = vst [vmem:[#allocation2 + $0x788] sm:$0xff] %v5637
        %6150 = vst [vmem:[#allocation2 + $0x790] sm:$0xff] %v5638
        %6151 = vst [vmem:[#allocation2 + $0x798] sm:$0xff] %v5639
        %6152 = vst [vmem:[#allocation2 + $0x7a0] sm:$0xff] %v5640
        %6153 = vst [vmem:[#allocation2 + $0x7a8] sm:$0xff] %v5641
        %6154 = vst [vmem:[#allocation2 + $0x7b0] sm:$0xff] %v5642
        %6155 = vst [vmem:[#allocation2 + $0x7b8] sm:$0xff] %v5643
        %6156 = vst [vmem:[#allocation2 + $0x7c0] sm:$0xff] %v5644
        %6157 = vst [vmem:[#allocation2 + $0x7c8] sm:$0xff] %v5645
        %6158 = vst [vmem:[#allocation2 + $0x7d0] sm:$0xff] %v5646
        %6159 = vst [vmem:[#allocation2 + $0x7d8] sm:$0xff] %v5647
        %6160 = vst [vmem:[#allocation2 + $0x7e0] sm:$0xff] %v5648
        %6161 = vst [vmem:[#allocation2 + $0x7e8] sm:$0xff] %v5649
        %6162 = vst [vmem:[#allocation2 + $0x7f0] sm:$0xff] %v5650
        %6163 = vst [vmem:[#allocation2 + $0x7f8] sm:$0xff] %v5651
        %6164 = vst [vmem:[#allocation2 + $0x800] sm:$0xff] %v5652
        %6165 = vst [vmem:[#allocation2 + $0x808] sm:$0xff] %v5653
        %6166 = vst [vmem:[#allocation2 + $0x810] sm:$0xff] %v5654
        %6167 = vst [vmem:[#allocation2 + $0x818] sm:$0xff] %v5655
        %6168 = vst [vmem:[#allocation2 + $0x820] sm:$0xff] %v5656
        %6169 = vst [vmem:[#allocation2 + $0x828] sm:$0xff] %v5657
        %6170 = vst [vmem:[#allocation2 + $0x830] sm:$0xff] %v5658
        %6171 = vst [vmem:[#allocation2 + $0x838] sm:$0xff] %v5659
        %6172 = vst [vmem:[#allocation2 + $0x840] sm:$0xff] %v5660
        %6173 = vst [vmem:[#allocation2 + $0x848] sm:$0xff] %v5661
        %6174 = vst [vmem:[#allocation2 + $0x850] sm:$0xff] %v5662
        %6175 = vst [vmem:[#allocation2 + $0x858] sm:$0xff] %v5663
        %6176 = vst [vmem:[#allocation2 + $0x860] sm:$0xff] %v5664
        %6177 = vst [vmem:[#allocation2 + $0x868] sm:$0xff] %v5665
        %6178 = vst [vmem:[#allocation2 + $0x870] sm:$0xff] %v5666
        %6179 = vst [vmem:[#allocation2 + $0x878] sm:$0xff] %v5667
        %6180 = vst [vmem:[#allocation2 + $0x880] sm:$0xff] %v5668
        %6181 = vst [vmem:[#allocation2 + $0x888] sm:$0xff] %v5669
        %6182 = vst [vmem:[#allocation2 + $0x890] sm:$0xff] %v5670
        %6183 = vst [vmem:[#allocation2 + $0x898] sm:$0xff] %v5671
        %6184 = vst [vmem:[#allocation2 + $0x8a0] sm:$0xff] %v5672
        %6185 = vst [vmem:[#allocation2 + $0x8a8] sm:$0xff] %v5673
        %6186 = vst [vmem:[#allocation2 + $0x8b0] sm:$0xff] %v5674
        %6187 = vst [vmem:[#allocation2 + $0x8b8] sm:$0xff] %v5675
        %6188 = vst [vmem:[#allocation2 + $0x8c0] sm:$0xff] %v5676
        %6189 = vst [vmem:[#allocation2 + $0x8c8] sm:$0xff] %v5677
        %6190 = vst [vmem:[#allocation2 + $0x8d0] sm:$0xff] %v5678
        %6191 = vst [vmem:[#allocation2 + $0x8d8] sm:$0xff] %v5679
        %6192 = vst [vmem:[#allocation2 + $0x8e0] sm:$0xff] %v5680
        %6193 = vst [vmem:[#allocation2 + $0x8e8] sm:$0xff] %v5681
        %6194 = vst [vmem:[#allocation2 + $0x8f0] sm:$0xff] %v5682
        %6195 = vst [vmem:[#allocation2 + $0x8f8] sm:$0xff] %v5683
        %6196 = vst [vmem:[#allocation2 + $0x900] sm:$0xff] %v5684
        %6197 = vst [vmem:[#allocation2 + $0x908] sm:$0xff] %v5685
        %6198 = vst [vmem:[#allocation2 + $0x910] sm:$0xff] %v5686
        %6199 = vst [vmem:[#allocation2 + $0x918] sm:$0xff] %v5687
        %6200 = vst [vmem:[#allocation2 + $0x920] sm:$0xff] %v5688
        %6201 = vst [vmem:[#allocation2 + $0x928] sm:$0xff] %v5689
        %6202 = vst [vmem:[#allocation2 + $0x930] sm:$0xff] %v5690
        %6203 = vst [vmem:[#allocation2 + $0x938] sm:$0xff] %v5691
        %6204 = vst [vmem:[#allocation2 + $0x940] sm:$0xff] %v5692
        %6205 = vst [vmem:[#allocation2 + $0x948] sm:$0xff] %v5693
        %6206 = vst [vmem:[#allocation2 + $0x950] sm:$0xff] %v5694
        %6207 = vst [vmem:[#allocation2 + $0x958] sm:$0xff] %v5695
        %6208 = vst [vmem:[#allocation2 + $0x960] sm:$0xff] %v5696
        %6209 = vst [vmem:[#allocation2 + $0x968] sm:$0xff] %v5697
        %6210 = vst [vmem:[#allocation2 + $0x970] sm:$0xff] %v5698
        %6211 = vst [vmem:[#allocation2 + $0x978] sm:$0xff] %v5699
        %6212 = vst [vmem:[#allocation2 + $0x980] sm:$0xff] %v5700
        %6213 = vst [vmem:[#allocation2 + $0x988] sm:$0xff] %v5701
        %6214 = vst [vmem:[#allocation2 + $0x990] sm:$0xff] %v5702
        %6215 = vst [vmem:[#allocation2 + $0x998] sm:$0xff] %v5703
        %6216 = vst [vmem:[#allocation2 + $0x9a0] sm:$0xff] %v5704
        %6217 = vst [vmem:[#allocation2 + $0x9a8] sm:$0xff] %v5705
        %6218 = vst [vmem:[#allocation2 + $0x9b0] sm:$0xff] %v5706
        %6219 = vst [vmem:[#allocation2 + $0x9b8] sm:$0xff] %v5707
        %6220 = vst [vmem:[#allocation2 + $0x9c0] sm:$0xff] %v5708
        %6221 = vst [vmem:[#allocation2 + $0x9c8] sm:$0xff] %v5709
        %6222 = vst [vmem:[#allocation2 + $0x9d0] sm:$0xff] %v5710
        %6223 = vst [vmem:[#allocation2 + $0x9d8] sm:$0xff] %v5711
        %6224 = vst [vmem:[#allocation2 + $0x9e0] sm:$0xff] %v5712
        %6225 = vst [vmem:[#allocation2 + $0x9e8] sm:$0xff] %v5713
        %6226 = vst [vmem:[#allocation2 + $0x9f0] sm:$0xff] %v5714
        %6227 = vst [vmem:[#allocation2 + $0x9f8] sm:$0xff] %v5715
        %6228 = vst [vmem:[#allocation2 + $0xa00] sm:$0xff] %v5716
        %6229 = vst [vmem:[#allocation2 + $0xa08] sm:$0xff] %v5717
        %6230 = vst [vmem:[#allocation2 + $0xa10] sm:$0xff] %v5718
        %6231 = vst [vmem:[#allocation2 + $0xa18] sm:$0xff] %v5719
        %6232 = vst [vmem:[#allocation2 + $0xa20] sm:$0xff] %v5720
        %6233 = vst [vmem:[#allocation2 + $0xa28] sm:$0xff] %v5721
        %6234 = vst [vmem:[#allocation2 + $0xa30] sm:$0xff] %v5722
        %6235 = vst [vmem:[#allocation2 + $0xa38] sm:$0xff] %v5723
        %6236 = vst [vmem:[#allocation2 + $0xa40] sm:$0xff] %v5724
        %6237 = vst [vmem:[#allocation2 + $0xa48] sm:$0xff] %v5725
        %6238 = vst [vmem:[#allocation2 + $0xa50] sm:$0xff] %v5726
        %6239 = vst [vmem:[#allocation2 + $0xa58] sm:$0xff] %v5727
        %6240 = vst [vmem:[#allocation2 + $0xa60] sm:$0xff] %v5728
        %6241 = vst [vmem:[#allocation2 + $0xa68] sm:$0xff] %v5729
        %6242 = vst [vmem:[#allocation2 + $0xa70] sm:$0xff] %v5730
        %6243 = vst [vmem:[#allocation2 + $0xa78] sm:$0xff] %v5731
        %6244 = vst [vmem:[#allocation2 + $0xa80] sm:$0xff] %v5732
        %6245 = vst [vmem:[#allocation2 + $0xa88] sm:$0xff] %v5733
        %6246 = vst [vmem:[#allocation2 + $0xa90] sm:$0xff] %v5734
        %6247 = vst [vmem:[#allocation2 + $0xa98] sm:$0xff] %v5735
        %6248 = vst [vmem:[#allocation2 + $0xaa0] sm:$0xff] %v5736
        %6249 = vst [vmem:[#allocation2 + $0xaa8] sm:$0xff] %v5737
        %6250 = vst [vmem:[#allocation2 + $0xab0] sm:$0xff] %v5738
        %6251 = vst [vmem:[#allocation2 + $0xab8] sm:$0xff] %v5739
        %6252 = vst [vmem:[#allocation2 + $0xac0] sm:$0xff] %v5740
        %6253 = vst [vmem:[#allocation2 + $0xac8] sm:$0xff] %v5741
        %6254 = vst [vmem:[#allocation2 + $0xad0] sm:$0xff] %v5742
        %6255 = vst [vmem:[#allocation2 + $0xad8] sm:$0xff] %v5743
        %6256 = vst [vmem:[#allocation2 + $0xae0] sm:$0xff] %v5744
        %6257 = vst [vmem:[#allocation2 + $0xae8] sm:$0xff] %v5745
        %6258 = vst [vmem:[#allocation2 + $0xaf0] sm:$0xff] %v5746
        %6259 = vst [vmem:[#allocation2 + $0xaf8] sm:$0xff] %v5747
        %6260 = vst [vmem:[#allocation2 + $0xb00] sm:$0xff] %v5748
        %6261 = vst [vmem:[#allocation2 + $0xb08] sm:$0xff] %v5749
        %6262 = vst [vmem:[#allocation2 + $0xb10] sm:$0xff] %v5750
        %6263 = vst [vmem:[#allocation2 + $0xb18] sm:$0xff] %v5751
        %6264 = vst [vmem:[#allocation2 + $0xb20] sm:$0xff] %v5752
        %6265 = vst [vmem:[#allocation2 + $0xb28] sm:$0xff] %v5753
        %6266 = vst [vmem:[#allocation2 + $0xb30] sm:$0xff] %v5754
        %6267 = vst [vmem:[#allocation2 + $0xb38] sm:$0xff] %v5755
        %6268 = vst [vmem:[#allocation2 + $0xb40] sm:$0xff] %v5756
        %6269 = vst [vmem:[#allocation2 + $0xb48] sm:$0xff] %v5757
        %6270 = vst [vmem:[#allocation2 + $0xb50] sm:$0xff] %v5758
        %6271 = vst [vmem:[#allocation2 + $0xb58] sm:$0xff] %v5759
        %6272 = vst [vmem:[#allocation2 + $0xb60] sm:$0xff] %v5760
        %6273 = vst [vmem:[#allocation2 + $0xb68] sm:$0xff] %v5761
        %6274 = vst [vmem:[#allocation2 + $0xb70] sm:$0xff] %v5762
        %6275 = vst [vmem:[#allocation2 + $0xb78] sm:$0xff] %v5763
        %6276 = vst [vmem:[#allocation2 + $0xb80] sm:$0xff] %v5764
        %6277 = vst [vmem:[#allocation2 + $0xb88] sm:$0xff] %v5765
        %6278 = vst [vmem:[#allocation2 + $0xb90] sm:$0xff] %v5766
        %6279 = vst [vmem:[#allocation2 + $0xb98] sm:$0xff] %v5767
        %6280 = vst [vmem:[#allocation2 + $0xba0] sm:$0xff] %v5768
        %6281 = vst [vmem:[#allocation2 + $0xba8] sm:$0xff] %v5769
        %6282 = vst [vmem:[#allocation2 + $0xbb0] sm:$0xff] %v5770
        %6283 = vst [vmem:[#allocation2 + $0xbb8] sm:$0xff] %v5771
        %6284 = vst [vmem:[#allocation2 + $0xbc0] sm:$0xff] %v5772
        %6285 = vst [vmem:[#allocation2 + $0xbc8] sm:$0xff] %v5773
        %6286 = vst [vmem:[#allocation2 + $0xbd0] sm:$0xff] %v5774
        %6287 = vst [vmem:[#allocation2 + $0xbd8] sm:$0xff] %v5775
        %6288 = vst [vmem:[#allocation2 + $0xbe0] sm:$0xff] %v5776
        %6289 = vst [vmem:[#allocation2 + $0xbe8] sm:$0xff] %v5777
        %6290 = vst [vmem:[#allocation2 + $0xbf0] sm:$0xff] %v5778
        %6291 = vst [vmem:[#allocation2 + $0xbf8] sm:$0xff] %v5779
        %6292 = vst [vmem:[#allocation2 + $0xc00] sm:$0xff] %v5780
        %6293 = vst [vmem:[#allocation2 + $0xc08] sm:$0xff] %v5781
        %6294 = vst [vmem:[#allocation2 + $0xc10] sm:$0xff] %v5782
        %6295 = vst [vmem:[#allocation2 + $0xc18] sm:$0xff] %v5783
        %6296 = vst [vmem:[#allocation2 + $0xc20] sm:$0xff] %v5784
        %6297 = vst [vmem:[#allocation2 + $0xc28] sm:$0xff] %v5785
        %6298 = vst [vmem:[#allocation2 + $0xc30] sm:$0xff] %v5786
        %6299 = vst [vmem:[#allocation2 + $0xc38] sm:$0xff] %v5787
        %6300 = vst [vmem:[#allocation2 + $0xc40] sm:$0xff] %v5788
        %6301 = vst [vmem:[#allocation2 + $0xc48] sm:$0xff] %v5789
        %6302 = vst [vmem:[#allocation2 + $0xc50] sm:$0xff] %v5790
        %6303 = vst [vmem:[#allocation2 + $0xc58] sm:$0xff] %v5791
        %6304 = vst [vmem:[#allocation2 + $0xc60] sm:$0xff] %v5792
        %6305 = vst [vmem:[#allocation2 + $0xc68] sm:$0xff] %v5793
        %6306 = vst [vmem:[#allocation2 + $0xc70] sm:$0xff] %v5794
        %6307 = vst [vmem:[#allocation2 + $0xc78] sm:$0xff] %v5795
        %6308 = vst [vmem:[#allocation2 + $0xc80] sm:$0xff] %v5796
        %6309 = vst [vmem:[#allocation2 + $0xc88] sm:$0xff] %v5797
        %6310 = vst [vmem:[#allocation2 + $0xc90] sm:$0xff] %v5798
        %6311 = vst [vmem:[#allocation2 + $0xc98] sm:$0xff] %v5799
        %6312 = vst [vmem:[#allocation2 + $0xca0] sm:$0xff] %v5800
        %6313 = vst [vmem:[#allocation2 + $0xca8] sm:$0xff] %v5801
        %6314 = vst [vmem:[#allocation2 + $0xcb0] sm:$0xff] %v5802
        %6315 = vst [vmem:[#allocation2 + $0xcb8] sm:$0xff] %v5803
        %6316 = vst [vmem:[#allocation2 + $0xcc0] sm:$0xff] %v5804
        %6317 = vst [vmem:[#allocation2 + $0xcc8] sm:$0xff] %v5805
        %6318 = vst [vmem:[#allocation2 + $0xcd0] sm:$0xff] %v5806
        %6319 = vst [vmem:[#allocation2 + $0xcd8] sm:$0xff] %v5807
        %6320 = vst [vmem:[#allocation2 + $0xce0] sm:$0xff] %v5808
        %6321 = vst [vmem:[#allocation2 + $0xce8] sm:$0xff] %v5809
        %6322 = vst [vmem:[#allocation2 + $0xcf0] sm:$0xff] %v5810
        %6323 = vst [vmem:[#allocation2 + $0xcf8] sm:$0xff] %v5811
        %6324 = vst [vmem:[#allocation2 + $0xd00] sm:$0xff] %v5812
        %6325 = vst [vmem:[#allocation2 + $0xd08] sm:$0xff] %v5813
        %6326 = vst [vmem:[#allocation2 + $0xd10] sm:$0xff] %v5814
        %6327 = vst [vmem:[#allocation2 + $0xd18] sm:$0xff] %v5815
        %6328 = vst [vmem:[#allocation2 + $0xd20] sm:$0xff] %v5816
        %6329 = vst [vmem:[#allocation2 + $0xd28] sm:$0xff] %v5817
        %6330 = vst [vmem:[#allocation2 + $0xd30] sm:$0xff] %v5818
        %6331 = vst [vmem:[#allocation2 + $0xd38] sm:$0xff] %v5819
        %6332 = vst [vmem:[#allocation2 + $0xd40] sm:$0xff] %v5820
        %6333 = vst [vmem:[#allocation2 + $0xd48] sm:$0xff] %v5821
        %6334 = vst [vmem:[#allocation2 + $0xd50] sm:$0xff] %v5822
        %6335 = vst [vmem:[#allocation2 + $0xd58] sm:$0xff] %v5823
        %6336 = vst [vmem:[#allocation2 + $0xd60] sm:$0xff] %v5824
        %6337 = vst [vmem:[#allocation2 + $0xd68] sm:$0xff] %v5825
        %6338 = vst [vmem:[#allocation2 + $0xd70] sm:$0xff] %v5826
        %6339 = vst [vmem:[#allocation2 + $0xd78] sm:$0xff] %v5827
        %6340 = vst [vmem:[#allocation2 + $0xd80] sm:$0xff] %v5828
        %6341 = vst [vmem:[#allocation2 + $0xd88] sm:$0xff] %v5829
        %6342 = vst [vmem:[#allocation2 + $0xd90] sm:$0xff] %v5830
        %6343 = vst [vmem:[#allocation2 + $0xd98] sm:$0xff] %v5831
        %6344 = vst [vmem:[#allocation2 + $0xda0] sm:$0xff] %v5832
        %6345 = vst [vmem:[#allocation2 + $0xda8] sm:$0xff] %v5833
        %6346 = vst [vmem:[#allocation2 + $0xdb0] sm:$0xff] %v5834
        %6347 = vst [vmem:[#allocation2 + $0xdb8] sm:$0xff] %v5835
        %6348 = vst [vmem:[#allocation2 + $0xdc0] sm:$0xff] %v5836
        %6349 = vst [vmem:[#allocation2 + $0xdc8] sm:$0xff] %v5837
        %6350 = vst [vmem:[#allocation2 + $0xdd0] sm:$0xff] %v5838
        %6351 = vst [vmem:[#allocation2 + $0xdd8] sm:$0xff] %v5839
        %6352 = vst [vmem:[#allocation2 + $0xde0] sm:$0xff] %v5840
        %6353 = vst [vmem:[#allocation2 + $0xde8] sm:$0xff] %v5841
        %6354 = vst [vmem:[#allocation2 + $0xdf0] sm:$0xff] %v5842
        %6355 = vst [vmem:[#allocation2 + $0xdf8] sm:$0xff] %v5843
        %6356 = vst [vmem:[#allocation2 + $0xe00] sm:$0xff] %v5844
        %6357 = vst [vmem:[#allocation2 + $0xe08] sm:$0xff] %v5845
        %6358 = vst [vmem:[#allocation2 + $0xe10] sm:$0xff] %v5846
        %6359 = vst [vmem:[#allocation2 + $0xe18] sm:$0xff] %v5847
        %6360 = vst [vmem:[#allocation2 + $0xe20] sm:$0xff] %v5848
        %6361 = vst [vmem:[#allocation2 + $0xe28] sm:$0xff] %v5849
        %6362 = vst [vmem:[#allocation2 + $0xe30] sm:$0xff] %v5850
        %6363 = vst [vmem:[#allocation2 + $0xe38] sm:$0xff] %v5851
        %6364 = vst [vmem:[#allocation2 + $0xe40] sm:$0xff] %v5852
        %6365 = vst [vmem:[#allocation2 + $0xe48] sm:$0xff] %v5853
        %6366 = vst [vmem:[#allocation2 + $0xe50] sm:$0xff] %v5854
        %6367 = vst [vmem:[#allocation2 + $0xe58] sm:$0xff] %v5855
        %6368 = vst [vmem:[#allocation2 + $0xe60] sm:$0xff] %v5856
        %6369 = vst [vmem:[#allocation2 + $0xe68] sm:$0xff] %v5857
        %6370 = vst [vmem:[#allocation2 + $0xe70] sm:$0xff] %v5858
        %6371 = vst [vmem:[#allocation2 + $0xe78] sm:$0xff] %v5859
        %6372 = vst [vmem:[#allocation2 + $0xe80] sm:$0xff] %v5860
        %6373 = vst [vmem:[#allocation2 + $0xe88] sm:$0xff] %v5861
        %6374 = vst [vmem:[#allocation2 + $0xe90] sm:$0xff] %v5862
        %6375 = vst [vmem:[#allocation2 + $0xe98] sm:$0xff] %v5863
        %6376 = vst [vmem:[#allocation2 + $0xea0] sm:$0xff] %v5864
        %6377 = vst [vmem:[#allocation2 + $0xea8] sm:$0xff] %v5865
        %6378 = vst [vmem:[#allocation2 + $0xeb0] sm:$0xff] %v5866
        %6379 = vst [vmem:[#allocation2 + $0xeb8] sm:$0xff] %v5867
        %6380 = vst [vmem:[#allocation2 + $0xec0] sm:$0xff] %v5868
        %6381 = vst [vmem:[#allocation2 + $0xec8] sm:$0xff] %v5869
        %6382 = vst [vmem:[#allocation2 + $0xed0] sm:$0xff] %v5870
        %6383 = vst [vmem:[#allocation2 + $0xed8] sm:$0xff] %v5871
        %6384 = vst [vmem:[#allocation2 + $0xee0] sm:$0xff] %v5872
        %6385 = vst [vmem:[#allocation2 + $0xee8] sm:$0xff] %v5873
        %6386 = vst [vmem:[#allocation2 + $0xef0] sm:$0xff] %v5874
        %6387 = vst [vmem:[#allocation2 + $0xef8] sm:$0xff] %v5875
        %6388 = vst [vmem:[#allocation2 + $0xf00] sm:$0xff] %v5876
        %6389 = vst [vmem:[#allocation2 + $0xf08] sm:$0xff] %v5877
        %6390 = vst [vmem:[#allocation2 + $0xf10] sm:$0xff] %v5878
        %6391 = vst [vmem:[#allocation2 + $0xf18] sm:$0xff] %v5879
        %6392 = vst [vmem:[#allocation2 + $0xf20] sm:$0xff] %v5880
        %6393 = vst [vmem:[#allocation2 + $0xf28] sm:$0xff] %v5881
        %6394 = vst [vmem:[#allocation2 + $0xf30] sm:$0xff] %v5882
        %6395 = vst [vmem:[#allocation2 + $0xf38] sm:$0xff] %v5883
        %6396 = vst [vmem:[#allocation2 + $0xf40] sm:$0xff] %v5884
        %6397 = vst [vmem:[#allocation2 + $0xf48] sm:$0xff] %v5885
        %6398 = vst [vmem:[#allocation2 + $0xf50] sm:$0xff] %v5886
        %6399 = vst [vmem:[#allocation2 + $0xf58] sm:$0xff] %v5887
        %6400 = vst [vmem:[#allocation2 + $0xf60] sm:$0xff] %v5888
        %6401 = vst [vmem:[#allocation2 + $0xf68] sm:$0xff] %v5889
        %6402 = vst [vmem:[#allocation2 + $0xf70] sm:$0xff] %v5890
        %6403 = vst [vmem:[#allocation2 + $0xf78] sm:$0xff] %v5891
        %6404 = vst [vmem:[#allocation2 + $0xf80] sm:$0xff] %v5892
        %6405 = vst [vmem:[#allocation2 + $0xf88] sm:$0xff] %v5893
        %6406 = vst [vmem:[#allocation2 + $0xf90] sm:$0xff] %v5894
        %6407 = vst [vmem:[#allocation2 + $0xf98] sm:$0xff] %v5895
        %6408 = vst [vmem:[#allocation2 + $0xfa0] sm:$0xff] %v5896
        %6409 = vst [vmem:[#allocation2 + $0xfa8] sm:$0xff] %v5897
        %6410 = vst [vmem:[#allocation2 + $0xfb0] sm:$0xff] %v5898
        %6411 = vst [vmem:[#allocation2 + $0xfb8] sm:$0xff] %v5899
        %6412 = vst [vmem:[#allocation2 + $0xfc0] sm:$0xff] %v5900
        %6413 = vst [vmem:[#allocation2 + $0xfc8] sm:$0xff] %v5901
        %6414 = vst [vmem:[#allocation2 + $0xfd0] sm:$0xff] %v5902
        %6415 = vst [vmem:[#allocation2 + $0xfd8] sm:$0xff] %v5903
        %6416 = vst [vmem:[#allocation2 + $0xfe0] sm:$0xff] %v5904
        %6417 = vst [vmem:[#allocation2 + $0xfe8] sm:$0xff] %v5905
        %6418 = vst [vmem:[#allocation2 + $0xff0] sm:$0xff] %v5906
        %6419 = vst [vmem:[#allocation2 + $0xff8] sm:$0xff] %v5907
        %p6420 = scmp.eq.s32.totalorder %s27, 2
        // Predicated region
        $region41: #{tpu_custom_call.1} parent=27 // pred_check
          %p6421 = pneg %p6420
        $region42: #{tpu_custom_call.1} parent=27 // pred_check_branch
          %6423 = sbr.rel (%p6421) target = $region44
        $region43: #{tpu_custom_call.1} parent=27 // pred_region
          %v6424 = vld [vmem:[#allocation2] sm:$0xff]
          %v6425 = vld [vmem:[#allocation2 + $0x8] sm:$0xff]
          %v6426 = vld [vmem:[#allocation2 + $0x10] sm:$0xff]
          %v6427 = vld [vmem:[#allocation2 + $0x18] sm:$0xff]
          %v6428 = vld [vmem:[#allocation2 + $0x20] sm:$0xff]
          %v6429 = vld [vmem:[#allocation2 + $0x28] sm:$0xff]
          %v6430 = vld [vmem:[#allocation2 + $0x30] sm:$0xff]
          %v6431 = vld [vmem:[#allocation2 + $0x38] sm:$0xff]
          %v6432 = vld [vmem:[#allocation2 + $0x40] sm:$0xff]
          %v6433 = vld [vmem:[#allocation2 + $0x48] sm:$0xff]
          %v6434 = vld [vmem:[#allocation2 + $0x50] sm:$0xff]
          %v6435 = vld [vmem:[#allocation2 + $0x58] sm:$0xff]
          %v6436 = vld [vmem:[#allocation2 + $0x60] sm:$0xff]
          %v6437 = vld [vmem:[#allocation2 + $0x68] sm:$0xff]
          %v6438 = vld [vmem:[#allocation2 + $0x70] sm:$0xff]
          %v6439 = vld [vmem:[#allocation2 + $0x78] sm:$0xff]
          %v6440 = vld [vmem:[#allocation2 + $0x80] sm:$0xff]
          %v6441 = vld [vmem:[#allocation2 + $0x88] sm:$0xff]
          %v6442 = vld [vmem:[#allocation2 + $0x90] sm:$0xff]
          %v6443 = vld [vmem:[#allocation2 + $0x98] sm:$0xff]
          %v6444 = vld [vmem:[#allocation2 + $0xa0] sm:$0xff]
          %v6445 = vld [vmem:[#allocation2 + $0xa8] sm:$0xff]
          %v6446 = vld [vmem:[#allocation2 + $0xb0] sm:$0xff]
          %v6447 = vld [vmem:[#allocation2 + $0xb8] sm:$0xff]
          %v6448 = vld [vmem:[#allocation2 + $0xc0] sm:$0xff]
          %v6449 = vld [vmem:[#allocation2 + $0xc8] sm:$0xff]
          %v6450 = vld [vmem:[#allocation2 + $0xd0] sm:$0xff]
          %v6451 = vld [vmem:[#allocation2 + $0xd8] sm:$0xff]
          %v6452 = vld [vmem:[#allocation2 + $0xe0] sm:$0xff]
          %v6453 = vld [vmem:[#allocation2 + $0xe8] sm:$0xff]
          %v6454 = vld [vmem:[#allocation2 + $0xf0] sm:$0xff]
          %v6455 = vld [vmem:[#allocation2 + $0xf8] sm:$0xff]
          %v6456 = vld [vmem:[#allocation2 + $0x100] sm:$0xff]
          %v6457 = vld [vmem:[#allocation2 + $0x108] sm:$0xff]
          %v6458 = vld [vmem:[#allocation2 + $0x110] sm:$0xff]
          %v6459 = vld [vmem:[#allocation2 + $0x118] sm:$0xff]
          %v6460 = vld [vmem:[#allocation2 + $0x120] sm:$0xff]
          %v6461 = vld [vmem:[#allocation2 + $0x128] sm:$0xff]
          %v6462 = vld [vmem:[#allocation2 + $0x130] sm:$0xff]
          %v6463 = vld [vmem:[#allocation2 + $0x138] sm:$0xff]
          %v6464 = vld [vmem:[#allocation2 + $0x140] sm:$0xff]
          %v6465 = vld [vmem:[#allocation2 + $0x148] sm:$0xff]
          %v6466 = vld [vmem:[#allocation2 + $0x150] sm:$0xff]
          %v6467 = vld [vmem:[#allocation2 + $0x158] sm:$0xff]
          %v6468 = vld [vmem:[#allocation2 + $0x160] sm:$0xff]
          %v6469 = vld [vmem:[#allocation2 + $0x168] sm:$0xff]
          %v6470 = vld [vmem:[#allocation2 + $0x170] sm:$0xff]
          %v6471 = vld [vmem:[#allocation2 + $0x178] sm:$0xff]
          %v6472 = vld [vmem:[#allocation2 + $0x180] sm:$0xff]
          %v6473 = vld [vmem:[#allocation2 + $0x188] sm:$0xff]
          %v6474 = vld [vmem:[#allocation2 + $0x190] sm:$0xff]
          %v6475 = vld [vmem:[#allocation2 + $0x198] sm:$0xff]
          %v6476 = vld [vmem:[#allocation2 + $0x1a0] sm:$0xff]
          %v6477 = vld [vmem:[#allocation2 + $0x1a8] sm:$0xff]
          %v6478 = vld [vmem:[#allocation2 + $0x1b0] sm:$0xff]
          %v6479 = vld [vmem:[#allocation2 + $0x1b8] sm:$0xff]
          %v6480 = vld [vmem:[#allocation2 + $0x1c0] sm:$0xff]
          %v6481 = vld [vmem:[#allocation2 + $0x1c8] sm:$0xff]
          %v6482 = vld [vmem:[#allocation2 + $0x1d0] sm:$0xff]
          %v6483 = vld [vmem:[#allocation2 + $0x1d8] sm:$0xff]
          %v6484 = vld [vmem:[#allocation2 + $0x1e0] sm:$0xff]
          %v6485 = vld [vmem:[#allocation2 + $0x1e8] sm:$0xff]
          %v6486 = vld [vmem:[#allocation2 + $0x1f0] sm:$0xff]
          %v6487 = vld [vmem:[#allocation2 + $0x1f8] sm:$0xff]
          %v6488 = vld [vmem:[#allocation2 + $0x200] sm:$0xff]
          %v6489 = vld [vmem:[#allocation2 + $0x208] sm:$0xff]
          %v6490 = vld [vmem:[#allocation2 + $0x210] sm:$0xff]
          %v6491 = vld [vmem:[#allocation2 + $0x218] sm:$0xff]
          %v6492 = vld [vmem:[#allocation2 + $0x220] sm:$0xff]
          %v6493 = vld [vmem:[#allocation2 + $0x228] sm:$0xff]
          %v6494 = vld [vmem:[#allocation2 + $0x230] sm:$0xff]
          %v6495 = vld [vmem:[#allocation2 + $0x238] sm:$0xff]
          %v6496 = vld [vmem:[#allocation2 + $0x240] sm:$0xff]
          %v6497 = vld [vmem:[#allocation2 + $0x248] sm:$0xff]
          %v6498 = vld [vmem:[#allocation2 + $0x250] sm:$0xff]
          %v6499 = vld [vmem:[#allocation2 + $0x258] sm:$0xff]
          %v6500 = vld [vmem:[#allocation2 + $0x260] sm:$0xff]
          %v6501 = vld [vmem:[#allocation2 + $0x268] sm:$0xff]
          %v6502 = vld [vmem:[#allocation2 + $0x270] sm:$0xff]
          %v6503 = vld [vmem:[#allocation2 + $0x278] sm:$0xff]
          %v6504 = vld [vmem:[#allocation2 + $0x280] sm:$0xff]
          %v6505 = vld [vmem:[#allocation2 + $0x288] sm:$0xff]
          %v6506 = vld [vmem:[#allocation2 + $0x290] sm:$0xff]
          %v6507 = vld [vmem:[#allocation2 + $0x298] sm:$0xff]
          %v6508 = vld [vmem:[#allocation2 + $0x2a0] sm:$0xff]
          %v6509 = vld [vmem:[#allocation2 + $0x2a8] sm:$0xff]
          %v6510 = vld [vmem:[#allocation2 + $0x2b0] sm:$0xff]
          %v6511 = vld [vmem:[#allocation2 + $0x2b8] sm:$0xff]
          %v6512 = vld [vmem:[#allocation2 + $0x2c0] sm:$0xff]
          %v6513 = vld [vmem:[#allocation2 + $0x2c8] sm:$0xff]
          %v6514 = vld [vmem:[#allocation2 + $0x2d0] sm:$0xff]
          %v6515 = vld [vmem:[#allocation2 + $0x2d8] sm:$0xff]
          %v6516 = vld [vmem:[#allocation2 + $0x2e0] sm:$0xff]
          %v6517 = vld [vmem:[#allocation2 + $0x2e8] sm:$0xff]
          %v6518 = vld [vmem:[#allocation2 + $0x2f0] sm:$0xff]
          %v6519 = vld [vmem:[#allocation2 + $0x2f8] sm:$0xff]
          %v6520 = vld [vmem:[#allocation2 + $0x300] sm:$0xff]
          %v6521 = vld [vmem:[#allocation2 + $0x308] sm:$0xff]
          %v6522 = vld [vmem:[#allocation2 + $0x310] sm:$0xff]
          %v6523 = vld [vmem:[#allocation2 + $0x318] sm:$0xff]
          %v6524 = vld [vmem:[#allocation2 + $0x320] sm:$0xff]
          %v6525 = vld [vmem:[#allocation2 + $0x328] sm:$0xff]
          %v6526 = vld [vmem:[#allocation2 + $0x330] sm:$0xff]
          %v6527 = vld [vmem:[#allocation2 + $0x338] sm:$0xff]
          %v6528 = vld [vmem:[#allocation2 + $0x340] sm:$0xff]
          %v6529 = vld [vmem:[#allocation2 + $0x348] sm:$0xff]
          %v6530 = vld [vmem:[#allocation2 + $0x350] sm:$0xff]
          %v6531 = vld [vmem:[#allocation2 + $0x358] sm:$0xff]
          %v6532 = vld [vmem:[#allocation2 + $0x360] sm:$0xff]
          %v6533 = vld [vmem:[#allocation2 + $0x368] sm:$0xff]
          %v6534 = vld [vmem:[#allocation2 + $0x370] sm:$0xff]
          %v6535 = vld [vmem:[#allocation2 + $0x378] sm:$0xff]
          %v6536 = vld [vmem:[#allocation2 + $0x380] sm:$0xff]
          %v6537 = vld [vmem:[#allocation2 + $0x388] sm:$0xff]
          %v6538 = vld [vmem:[#allocation2 + $0x390] sm:$0xff]
          %v6539 = vld [vmem:[#allocation2 + $0x398] sm:$0xff]
          %v6540 = vld [vmem:[#allocation2 + $0x3a0] sm:$0xff]
          %v6541 = vld [vmem:[#allocation2 + $0x3a8] sm:$0xff]
          %v6542 = vld [vmem:[#allocation2 + $0x3b0] sm:$0xff]
          %v6543 = vld [vmem:[#allocation2 + $0x3b8] sm:$0xff]
          %v6544 = vld [vmem:[#allocation2 + $0x3c0] sm:$0xff]
          %v6545 = vld [vmem:[#allocation2 + $0x3c8] sm:$0xff]
          %v6546 = vld [vmem:[#allocation2 + $0x3d0] sm:$0xff]
          %v6547 = vld [vmem:[#allocation2 + $0x3d8] sm:$0xff]
          %v6548 = vld [vmem:[#allocation2 + $0x3e0] sm:$0xff]
          %v6549 = vld [vmem:[#allocation2 + $0x3e8] sm:$0xff]
          %v6550 = vld [vmem:[#allocation2 + $0x3f0] sm:$0xff]
          %v6551 = vld [vmem:[#allocation2 + $0x3f8] sm:$0xff]
          %v6552 = vld [vmem:[#allocation2 + $0x400] sm:$0xff]
          %v6553 = vld [vmem:[#allocation2 + $0x408] sm:$0xff]
          %v6554 = vld [vmem:[#allocation2 + $0x410] sm:$0xff]
          %v6555 = vld [vmem:[#allocation2 + $0x418] sm:$0xff]
          %v6556 = vld [vmem:[#allocation2 + $0x420] sm:$0xff]
          %v6557 = vld [vmem:[#allocation2 + $0x428] sm:$0xff]
          %v6558 = vld [vmem:[#allocation2 + $0x430] sm:$0xff]
          %v6559 = vld [vmem:[#allocation2 + $0x438] sm:$0xff]
          %v6560 = vld [vmem:[#allocation2 + $0x440] sm:$0xff]
          %v6561 = vld [vmem:[#allocation2 + $0x448] sm:$0xff]
          %v6562 = vld [vmem:[#allocation2 + $0x450] sm:$0xff]
          %v6563 = vld [vmem:[#allocation2 + $0x458] sm:$0xff]
          %v6564 = vld [vmem:[#allocation2 + $0x460] sm:$0xff]
          %v6565 = vld [vmem:[#allocation2 + $0x468] sm:$0xff]
          %v6566 = vld [vmem:[#allocation2 + $0x470] sm:$0xff]
          %v6567 = vld [vmem:[#allocation2 + $0x478] sm:$0xff]
          %v6568 = vld [vmem:[#allocation2 + $0x480] sm:$0xff]
          %v6569 = vld [vmem:[#allocation2 + $0x488] sm:$0xff]
          %v6570 = vld [vmem:[#allocation2 + $0x490] sm:$0xff]
          %v6571 = vld [vmem:[#allocation2 + $0x498] sm:$0xff]
          %v6572 = vld [vmem:[#allocation2 + $0x4a0] sm:$0xff]
          %v6573 = vld [vmem:[#allocation2 + $0x4a8] sm:$0xff]
          %v6574 = vld [vmem:[#allocation2 + $0x4b0] sm:$0xff]
          %v6575 = vld [vmem:[#allocation2 + $0x4b8] sm:$0xff]
          %v6576 = vld [vmem:[#allocation2 + $0x4c0] sm:$0xff]
          %v6577 = vld [vmem:[#allocation2 + $0x4c8] sm:$0xff]
          %v6578 = vld [vmem:[#allocation2 + $0x4d0] sm:$0xff]
          %v6579 = vld [vmem:[#allocation2 + $0x4d8] sm:$0xff]
          %v6580 = vld [vmem:[#allocation2 + $0x4e0] sm:$0xff]
          %v6581 = vld [vmem:[#allocation2 + $0x4e8] sm:$0xff]
          %v6582 = vld [vmem:[#allocation2 + $0x4f0] sm:$0xff]
          %v6583 = vld [vmem:[#allocation2 + $0x4f8] sm:$0xff]
          %v6584 = vld [vmem:[#allocation2 + $0x500] sm:$0xff]
          %v6585 = vld [vmem:[#allocation2 + $0x508] sm:$0xff]
          %v6586 = vld [vmem:[#allocation2 + $0x510] sm:$0xff]
          %v6587 = vld [vmem:[#allocation2 + $0x518] sm:$0xff]
          %v6588 = vld [vmem:[#allocation2 + $0x520] sm:$0xff]
          %v6589 = vld [vmem:[#allocation2 + $0x528] sm:$0xff]
          %v6590 = vld [vmem:[#allocation2 + $0x530] sm:$0xff]
          %v6591 = vld [vmem:[#allocation2 + $0x538] sm:$0xff]
          %v6592 = vld [vmem:[#allocation2 + $0x540] sm:$0xff]
          %v6593 = vld [vmem:[#allocation2 + $0x548] sm:$0xff]
          %v6594 = vld [vmem:[#allocation2 + $0x550] sm:$0xff]
          %v6595 = vld [vmem:[#allocation2 + $0x558] sm:$0xff]
          %v6596 = vld [vmem:[#allocation2 + $0x560] sm:$0xff]
          %v6597 = vld [vmem:[#allocation2 + $0x568] sm:$0xff]
          %v6598 = vld [vmem:[#allocation2 + $0x570] sm:$0xff]
          %v6599 = vld [vmem:[#allocation2 + $0x578] sm:$0xff]
          %v6600 = vld [vmem:[#allocation2 + $0x580] sm:$0xff]
          %v6601 = vld [vmem:[#allocation2 + $0x588] sm:$0xff]
          %v6602 = vld [vmem:[#allocation2 + $0x590] sm:$0xff]
          %v6603 = vld [vmem:[#allocation2 + $0x598] sm:$0xff]
          %v6604 = vld [vmem:[#allocation2 + $0x5a0] sm:$0xff]
          %v6605 = vld [vmem:[#allocation2 + $0x5a8] sm:$0xff]
          %v6606 = vld [vmem:[#allocation2 + $0x5b0] sm:$0xff]
          %v6607 = vld [vmem:[#allocation2 + $0x5b8] sm:$0xff]
          %v6608 = vld [vmem:[#allocation2 + $0x5c0] sm:$0xff]
          %v6609 = vld [vmem:[#allocation2 + $0x5c8] sm:$0xff]
          %v6610 = vld [vmem:[#allocation2 + $0x5d0] sm:$0xff]
          %v6611 = vld [vmem:[#allocation2 + $0x5d8] sm:$0xff]
          %v6612 = vld [vmem:[#allocation2 + $0x5e0] sm:$0xff]
          %v6613 = vld [vmem:[#allocation2 + $0x5e8] sm:$0xff]
          %v6614 = vld [vmem:[#allocation2 + $0x5f0] sm:$0xff]
          %v6615 = vld [vmem:[#allocation2 + $0x5f8] sm:$0xff]
          %v6616 = vld [vmem:[#allocation2 + $0x600] sm:$0xff]
          %v6617 = vld [vmem:[#allocation2 + $0x608] sm:$0xff]
          %v6618 = vld [vmem:[#allocation2 + $0x610] sm:$0xff]
          %v6619 = vld [vmem:[#allocation2 + $0x618] sm:$0xff]
          %v6620 = vld [vmem:[#allocation2 + $0x620] sm:$0xff]
          %v6621 = vld [vmem:[#allocation2 + $0x628] sm:$0xff]
          %v6622 = vld [vmem:[#allocation2 + $0x630] sm:$0xff]
          %v6623 = vld [vmem:[#allocation2 + $0x638] sm:$0xff]
          %v6624 = vld [vmem:[#allocation2 + $0x640] sm:$0xff]
          %v6625 = vld [vmem:[#allocation2 + $0x648] sm:$0xff]
          %v6626 = vld [vmem:[#allocation2 + $0x650] sm:$0xff]
          %v6627 = vld [vmem:[#allocation2 + $0x658] sm:$0xff]
          %v6628 = vld [vmem:[#allocation2 + $0x660] sm:$0xff]
          %v6629 = vld [vmem:[#allocation2 + $0x668] sm:$0xff]
          %v6630 = vld [vmem:[#allocation2 + $0x670] sm:$0xff]
          %v6631 = vld [vmem:[#allocation2 + $0x678] sm:$0xff]
          %v6632 = vld [vmem:[#allocation2 + $0x680] sm:$0xff]
          %v6633 = vld [vmem:[#allocation2 + $0x688] sm:$0xff]
          %v6634 = vld [vmem:[#allocation2 + $0x690] sm:$0xff]
          %v6635 = vld [vmem:[#allocation2 + $0x698] sm:$0xff]
          %v6636 = vld [vmem:[#allocation2 + $0x6a0] sm:$0xff]
          %v6637 = vld [vmem:[#allocation2 + $0x6a8] sm:$0xff]
          %v6638 = vld [vmem:[#allocation2 + $0x6b0] sm:$0xff]
          %v6639 = vld [vmem:[#allocation2 + $0x6b8] sm:$0xff]
          %v6640 = vld [vmem:[#allocation2 + $0x6c0] sm:$0xff]
          %v6641 = vld [vmem:[#allocation2 + $0x6c8] sm:$0xff]
          %v6642 = vld [vmem:[#allocation2 + $0x6d0] sm:$0xff]
          %v6643 = vld [vmem:[#allocation2 + $0x6d8] sm:$0xff]
          %v6644 = vld [vmem:[#allocation2 + $0x6e0] sm:$0xff]
          %v6645 = vld [vmem:[#allocation2 + $0x6e8] sm:$0xff]
          %v6646 = vld [vmem:[#allocation2 + $0x6f0] sm:$0xff]
          %v6647 = vld [vmem:[#allocation2 + $0x6f8] sm:$0xff]
          %v6648 = vld [vmem:[#allocation2 + $0x700] sm:$0xff]
          %v6649 = vld [vmem:[#allocation2 + $0x708] sm:$0xff]
          %v6650 = vld [vmem:[#allocation2 + $0x710] sm:$0xff]
          %v6651 = vld [vmem:[#allocation2 + $0x718] sm:$0xff]
          %v6652 = vld [vmem:[#allocation2 + $0x720] sm:$0xff]
          %v6653 = vld [vmem:[#allocation2 + $0x728] sm:$0xff]
          %v6654 = vld [vmem:[#allocation2 + $0x730] sm:$0xff]
          %v6655 = vld [vmem:[#allocation2 + $0x738] sm:$0xff]
          %v6656 = vld [vmem:[#allocation2 + $0x740] sm:$0xff]
          %v6657 = vld [vmem:[#allocation2 + $0x748] sm:$0xff]
          %v6658 = vld [vmem:[#allocation2 + $0x750] sm:$0xff]
          %v6659 = vld [vmem:[#allocation2 + $0x758] sm:$0xff]
          %v6660 = vld [vmem:[#allocation2 + $0x760] sm:$0xff]
          %v6661 = vld [vmem:[#allocation2 + $0x768] sm:$0xff]
          %v6662 = vld [vmem:[#allocation2 + $0x770] sm:$0xff]
          %v6663 = vld [vmem:[#allocation2 + $0x778] sm:$0xff]
          %v6664 = vld [vmem:[#allocation2 + $0x780] sm:$0xff]
          %v6665 = vld [vmem:[#allocation2 + $0x788] sm:$0xff]
          %v6666 = vld [vmem:[#allocation2 + $0x790] sm:$0xff]
          %v6667 = vld [vmem:[#allocation2 + $0x798] sm:$0xff]
          %v6668 = vld [vmem:[#allocation2 + $0x7a0] sm:$0xff]
          %v6669 = vld [vmem:[#allocation2 + $0x7a8] sm:$0xff]
          %v6670 = vld [vmem:[#allocation2 + $0x7b0] sm:$0xff]
          %v6671 = vld [vmem:[#allocation2 + $0x7b8] sm:$0xff]
          %v6672 = vld [vmem:[#allocation2 + $0x7c0] sm:$0xff]
          %v6673 = vld [vmem:[#allocation2 + $0x7c8] sm:$0xff]
          %v6674 = vld [vmem:[#allocation2 + $0x7d0] sm:$0xff]
          %v6675 = vld [vmem:[#allocation2 + $0x7d8] sm:$0xff]
          %v6676 = vld [vmem:[#allocation2 + $0x7e0] sm:$0xff]
          %v6677 = vld [vmem:[#allocation2 + $0x7e8] sm:$0xff]
          %v6678 = vld [vmem:[#allocation2 + $0x7f0] sm:$0xff]
          %v6679 = vld [vmem:[#allocation2 + $0x7f8] sm:$0xff]
          %v6680 = vld [vmem:[#allocation2 + $0x800] sm:$0xff]
          %v6681 = vld [vmem:[#allocation2 + $0x808] sm:$0xff]
          %v6682 = vld [vmem:[#allocation2 + $0x810] sm:$0xff]
          %v6683 = vld [vmem:[#allocation2 + $0x818] sm:$0xff]
          %v6684 = vld [vmem:[#allocation2 + $0x820] sm:$0xff]
          %v6685 = vld [vmem:[#allocation2 + $0x828] sm:$0xff]
          %v6686 = vld [vmem:[#allocation2 + $0x830] sm:$0xff]
          %v6687 = vld [vmem:[#allocation2 + $0x838] sm:$0xff]
          %v6688 = vld [vmem:[#allocation2 + $0x840] sm:$0xff]
          %v6689 = vld [vmem:[#allocation2 + $0x848] sm:$0xff]
          %v6690 = vld [vmem:[#allocation2 + $0x850] sm:$0xff]
          %v6691 = vld [vmem:[#allocation2 + $0x858] sm:$0xff]
          %v6692 = vld [vmem:[#allocation2 + $0x860] sm:$0xff]
          %v6693 = vld [vmem:[#allocation2 + $0x868] sm:$0xff]
          %v6694 = vld [vmem:[#allocation2 + $0x870] sm:$0xff]
          %v6695 = vld [vmem:[#allocation2 + $0x878] sm:$0xff]
          %v6696 = vld [vmem:[#allocation2 + $0x880] sm:$0xff]
          %v6697 = vld [vmem:[#allocation2 + $0x888] sm:$0xff]
          %v6698 = vld [vmem:[#allocation2 + $0x890] sm:$0xff]
          %v6699 = vld [vmem:[#allocation2 + $0x898] sm:$0xff]
          %v6700 = vld [vmem:[#allocation2 + $0x8a0] sm:$0xff]
          %v6701 = vld [vmem:[#allocation2 + $0x8a8] sm:$0xff]
          %v6702 = vld [vmem:[#allocation2 + $0x8b0] sm:$0xff]
          %v6703 = vld [vmem:[#allocation2 + $0x8b8] sm:$0xff]
          %v6704 = vld [vmem:[#allocation2 + $0x8c0] sm:$0xff]
          %v6705 = vld [vmem:[#allocation2 + $0x8c8] sm:$0xff]
          %v6706 = vld [vmem:[#allocation2 + $0x8d0] sm:$0xff]
          %v6707 = vld [vmem:[#allocation2 + $0x8d8] sm:$0xff]
          %v6708 = vld [vmem:[#allocation2 + $0x8e0] sm:$0xff]
          %v6709 = vld [vmem:[#allocation2 + $0x8e8] sm:$0xff]
          %v6710 = vld [vmem:[#allocation2 + $0x8f0] sm:$0xff]
          %v6711 = vld [vmem:[#allocation2 + $0x8f8] sm:$0xff]
          %v6712 = vld [vmem:[#allocation2 + $0x900] sm:$0xff]
          %v6713 = vld [vmem:[#allocation2 + $0x908] sm:$0xff]
          %v6714 = vld [vmem:[#allocation2 + $0x910] sm:$0xff]
          %v6715 = vld [vmem:[#allocation2 + $0x918] sm:$0xff]
          %v6716 = vld [vmem:[#allocation2 + $0x920] sm:$0xff]
          %v6717 = vld [vmem:[#allocation2 + $0x928] sm:$0xff]
          %v6718 = vld [vmem:[#allocation2 + $0x930] sm:$0xff]
          %v6719 = vld [vmem:[#allocation2 + $0x938] sm:$0xff]
          %v6720 = vld [vmem:[#allocation2 + $0x940] sm:$0xff]
          %v6721 = vld [vmem:[#allocation2 + $0x948] sm:$0xff]
          %v6722 = vld [vmem:[#allocation2 + $0x950] sm:$0xff]
          %v6723 = vld [vmem:[#allocation2 + $0x958] sm:$0xff]
          %v6724 = vld [vmem:[#allocation2 + $0x960] sm:$0xff]
          %v6725 = vld [vmem:[#allocation2 + $0x968] sm:$0xff]
          %v6726 = vld [vmem:[#allocation2 + $0x970] sm:$0xff]
          %v6727 = vld [vmem:[#allocation2 + $0x978] sm:$0xff]
          %v6728 = vld [vmem:[#allocation2 + $0x980] sm:$0xff]
          %v6729 = vld [vmem:[#allocation2 + $0x988] sm:$0xff]
          %v6730 = vld [vmem:[#allocation2 + $0x990] sm:$0xff]
          %v6731 = vld [vmem:[#allocation2 + $0x998] sm:$0xff]
          %v6732 = vld [vmem:[#allocation2 + $0x9a0] sm:$0xff]
          %v6733 = vld [vmem:[#allocation2 + $0x9a8] sm:$0xff]
          %v6734 = vld [vmem:[#allocation2 + $0x9b0] sm:$0xff]
          %v6735 = vld [vmem:[#allocation2 + $0x9b8] sm:$0xff]
          %v6736 = vld [vmem:[#allocation2 + $0x9c0] sm:$0xff]
          %v6737 = vld [vmem:[#allocation2 + $0x9c8] sm:$0xff]
          %v6738 = vld [vmem:[#allocation2 + $0x9d0] sm:$0xff]
          %v6739 = vld [vmem:[#allocation2 + $0x9d8] sm:$0xff]
          %v6740 = vld [vmem:[#allocation2 + $0x9e0] sm:$0xff]
          %v6741 = vld [vmem:[#allocation2 + $0x9e8] sm:$0xff]
          %v6742 = vld [vmem:[#allocation2 + $0x9f0] sm:$0xff]
          %v6743 = vld [vmem:[#allocation2 + $0x9f8] sm:$0xff]
          %v6744 = vld [vmem:[#allocation2 + $0xa00] sm:$0xff]
          %v6745 = vld [vmem:[#allocation2 + $0xa08] sm:$0xff]
          %v6746 = vld [vmem:[#allocation2 + $0xa10] sm:$0xff]
          %v6747 = vld [vmem:[#allocation2 + $0xa18] sm:$0xff]
          %v6748 = vld [vmem:[#allocation2 + $0xa20] sm:$0xff]
          %v6749 = vld [vmem:[#allocation2 + $0xa28] sm:$0xff]
          %v6750 = vld [vmem:[#allocation2 + $0xa30] sm:$0xff]
          %v6751 = vld [vmem:[#allocation2 + $0xa38] sm:$0xff]
          %v6752 = vld [vmem:[#allocation2 + $0xa40] sm:$0xff]
          %v6753 = vld [vmem:[#allocation2 + $0xa48] sm:$0xff]
          %v6754 = vld [vmem:[#allocation2 + $0xa50] sm:$0xff]
          %v6755 = vld [vmem:[#allocation2 + $0xa58] sm:$0xff]
          %v6756 = vld [vmem:[#allocation2 + $0xa60] sm:$0xff]
          %v6757 = vld [vmem:[#allocation2 + $0xa68] sm:$0xff]
          %v6758 = vld [vmem:[#allocation2 + $0xa70] sm:$0xff]
          %v6759 = vld [vmem:[#allocation2 + $0xa78] sm:$0xff]
          %v6760 = vld [vmem:[#allocation2 + $0xa80] sm:$0xff]
          %v6761 = vld [vmem:[#allocation2 + $0xa88] sm:$0xff]
          %v6762 = vld [vmem:[#allocation2 + $0xa90] sm:$0xff]
          %v6763 = vld [vmem:[#allocation2 + $0xa98] sm:$0xff]
          %v6764 = vld [vmem:[#allocation2 + $0xaa0] sm:$0xff]
          %v6765 = vld [vmem:[#allocation2 + $0xaa8] sm:$0xff]
          %v6766 = vld [vmem:[#allocation2 + $0xab0] sm:$0xff]
          %v6767 = vld [vmem:[#allocation2 + $0xab8] sm:$0xff]
          %v6768 = vld [vmem:[#allocation2 + $0xac0] sm:$0xff]
          %v6769 = vld [vmem:[#allocation2 + $0xac8] sm:$0xff]
          %v6770 = vld [vmem:[#allocation2 + $0xad0] sm:$0xff]
          %v6771 = vld [vmem:[#allocation2 + $0xad8] sm:$0xff]
          %v6772 = vld [vmem:[#allocation2 + $0xae0] sm:$0xff]
          %v6773 = vld [vmem:[#allocation2 + $0xae8] sm:$0xff]
          %v6774 = vld [vmem:[#allocation2 + $0xaf0] sm:$0xff]
          %v6775 = vld [vmem:[#allocation2 + $0xaf8] sm:$0xff]
          %v6776 = vld [vmem:[#allocation2 + $0xb00] sm:$0xff]
          %v6777 = vld [vmem:[#allocation2 + $0xb08] sm:$0xff]
          %v6778 = vld [vmem:[#allocation2 + $0xb10] sm:$0xff]
          %v6779 = vld [vmem:[#allocation2 + $0xb18] sm:$0xff]
          %v6780 = vld [vmem:[#allocation2 + $0xb20] sm:$0xff]
          %v6781 = vld [vmem:[#allocation2 + $0xb28] sm:$0xff]
          %v6782 = vld [vmem:[#allocation2 + $0xb30] sm:$0xff]
          %v6783 = vld [vmem:[#allocation2 + $0xb38] sm:$0xff]
          %v6784 = vld [vmem:[#allocation2 + $0xb40] sm:$0xff]
          %v6785 = vld [vmem:[#allocation2 + $0xb48] sm:$0xff]
          %v6786 = vld [vmem:[#allocation2 + $0xb50] sm:$0xff]
          %v6787 = vld [vmem:[#allocation2 + $0xb58] sm:$0xff]
          %v6788 = vld [vmem:[#allocation2 + $0xb60] sm:$0xff]
          %v6789 = vld [vmem:[#allocation2 + $0xb68] sm:$0xff]
          %v6790 = vld [vmem:[#allocation2 + $0xb70] sm:$0xff]
          %v6791 = vld [vmem:[#allocation2 + $0xb78] sm:$0xff]
          %v6792 = vld [vmem:[#allocation2 + $0xb80] sm:$0xff]
          %v6793 = vld [vmem:[#allocation2 + $0xb88] sm:$0xff]
          %v6794 = vld [vmem:[#allocation2 + $0xb90] sm:$0xff]
          %v6795 = vld [vmem:[#allocation2 + $0xb98] sm:$0xff]
          %v6796 = vld [vmem:[#allocation2 + $0xba0] sm:$0xff]
          %v6797 = vld [vmem:[#allocation2 + $0xba8] sm:$0xff]
          %v6798 = vld [vmem:[#allocation2 + $0xbb0] sm:$0xff]
          %v6799 = vld [vmem:[#allocation2 + $0xbb8] sm:$0xff]
          %v6800 = vld [vmem:[#allocation2 + $0xbc0] sm:$0xff]
          %v6801 = vld [vmem:[#allocation2 + $0xbc8] sm:$0xff]
          %v6802 = vld [vmem:[#allocation2 + $0xbd0] sm:$0xff]
          %v6803 = vld [vmem:[#allocation2 + $0xbd8] sm:$0xff]
          %v6804 = vld [vmem:[#allocation2 + $0xbe0] sm:$0xff]
          %v6805 = vld [vmem:[#allocation2 + $0xbe8] sm:$0xff]
          %v6806 = vld [vmem:[#allocation2 + $0xbf0] sm:$0xff]
          %v6807 = vld [vmem:[#allocation2 + $0xbf8] sm:$0xff]
          %v6808 = vld [vmem:[#allocation2 + $0xc00] sm:$0xff]
          %v6809 = vld [vmem:[#allocation2 + $0xc08] sm:$0xff]
          %v6810 = vld [vmem:[#allocation2 + $0xc10] sm:$0xff]
          %v6811 = vld [vmem:[#allocation2 + $0xc18] sm:$0xff]
          %v6812 = vld [vmem:[#allocation2 + $0xc20] sm:$0xff]
          %v6813 = vld [vmem:[#allocation2 + $0xc28] sm:$0xff]
          %v6814 = vld [vmem:[#allocation2 + $0xc30] sm:$0xff]
          %v6815 = vld [vmem:[#allocation2 + $0xc38] sm:$0xff]
          %v6816 = vld [vmem:[#allocation2 + $0xc40] sm:$0xff]
          %v6817 = vld [vmem:[#allocation2 + $0xc48] sm:$0xff]
          %v6818 = vld [vmem:[#allocation2 + $0xc50] sm:$0xff]
          %v6819 = vld [vmem:[#allocation2 + $0xc58] sm:$0xff]
          %v6820 = vld [vmem:[#allocation2 + $0xc60] sm:$0xff]
          %v6821 = vld [vmem:[#allocation2 + $0xc68] sm:$0xff]
          %v6822 = vld [vmem:[#allocation2 + $0xc70] sm:$0xff]
          %v6823 = vld [vmem:[#allocation2 + $0xc78] sm:$0xff]
          %v6824 = vld [vmem:[#allocation2 + $0xc80] sm:$0xff]
          %v6825 = vld [vmem:[#allocation2 + $0xc88] sm:$0xff]
          %v6826 = vld [vmem:[#allocation2 + $0xc90] sm:$0xff]
          %v6827 = vld [vmem:[#allocation2 + $0xc98] sm:$0xff]
          %v6828 = vld [vmem:[#allocation2 + $0xca0] sm:$0xff]
          %v6829 = vld [vmem:[#allocation2 + $0xca8] sm:$0xff]
          %v6830 = vld [vmem:[#allocation2 + $0xcb0] sm:$0xff]
          %v6831 = vld [vmem:[#allocation2 + $0xcb8] sm:$0xff]
          %v6832 = vld [vmem:[#allocation2 + $0xcc0] sm:$0xff]
          %v6833 = vld [vmem:[#allocation2 + $0xcc8] sm:$0xff]
          %v6834 = vld [vmem:[#allocation2 + $0xcd0] sm:$0xff]
          %v6835 = vld [vmem:[#allocation2 + $0xcd8] sm:$0xff]
          %v6836 = vld [vmem:[#allocation2 + $0xce0] sm:$0xff]
          %v6837 = vld [vmem:[#allocation2 + $0xce8] sm:$0xff]
          %v6838 = vld [vmem:[#allocation2 + $0xcf0] sm:$0xff]
          %v6839 = vld [vmem:[#allocation2 + $0xcf8] sm:$0xff]
          %v6840 = vld [vmem:[#allocation2 + $0xd00] sm:$0xff]
          %v6841 = vld [vmem:[#allocation2 + $0xd08] sm:$0xff]
          %v6842 = vld [vmem:[#allocation2 + $0xd10] sm:$0xff]
          %v6843 = vld [vmem:[#allocation2 + $0xd18] sm:$0xff]
          %v6844 = vld [vmem:[#allocation2 + $0xd20] sm:$0xff]
          %v6845 = vld [vmem:[#allocation2 + $0xd28] sm:$0xff]
          %v6846 = vld [vmem:[#allocation2 + $0xd30] sm:$0xff]
          %v6847 = vld [vmem:[#allocation2 + $0xd38] sm:$0xff]
          %v6848 = vld [vmem:[#allocation2 + $0xd40] sm:$0xff]
          %v6849 = vld [vmem:[#allocation2 + $0xd48] sm:$0xff]
          %v6850 = vld [vmem:[#allocation2 + $0xd50] sm:$0xff]
          %v6851 = vld [vmem:[#allocation2 + $0xd58] sm:$0xff]
          %v6852 = vld [vmem:[#allocation2 + $0xd60] sm:$0xff]
          %v6853 = vld [vmem:[#allocation2 + $0xd68] sm:$0xff]
          %v6854 = vld [vmem:[#allocation2 + $0xd70] sm:$0xff]
          %v6855 = vld [vmem:[#allocation2 + $0xd78] sm:$0xff]
          %v6856 = vld [vmem:[#allocation2 + $0xd80] sm:$0xff]
          %v6857 = vld [vmem:[#allocation2 + $0xd88] sm:$0xff]
          %v6858 = vld [vmem:[#allocation2 + $0xd90] sm:$0xff]
          %v6859 = vld [vmem:[#allocation2 + $0xd98] sm:$0xff]
          %v6860 = vld [vmem:[#allocation2 + $0xda0] sm:$0xff]
          %v6861 = vld [vmem:[#allocation2 + $0xda8] sm:$0xff]
          %v6862 = vld [vmem:[#allocation2 + $0xdb0] sm:$0xff]
          %v6863 = vld [vmem:[#allocation2 + $0xdb8] sm:$0xff]
          %v6864 = vld [vmem:[#allocation2 + $0xdc0] sm:$0xff]
          %v6865 = vld [vmem:[#allocation2 + $0xdc8] sm:$0xff]
          %v6866 = vld [vmem:[#allocation2 + $0xdd0] sm:$0xff]
          %v6867 = vld [vmem:[#allocation2 + $0xdd8] sm:$0xff]
          %v6868 = vld [vmem:[#allocation2 + $0xde0] sm:$0xff]
          %v6869 = vld [vmem:[#allocation2 + $0xde8] sm:$0xff]
          %v6870 = vld [vmem:[#allocation2 + $0xdf0] sm:$0xff]
          %v6871 = vld [vmem:[#allocation2 + $0xdf8] sm:$0xff]
          %v6872 = vld [vmem:[#allocation2 + $0xe00] sm:$0xff]
          %v6873 = vld [vmem:[#allocation2 + $0xe08] sm:$0xff]
          %v6874 = vld [vmem:[#allocation2 + $0xe10] sm:$0xff]
          %v6875 = vld [vmem:[#allocation2 + $0xe18] sm:$0xff]
          %v6876 = vld [vmem:[#allocation2 + $0xe20] sm:$0xff]
          %v6877 = vld [vmem:[#allocation2 + $0xe28] sm:$0xff]
          %v6878 = vld [vmem:[#allocation2 + $0xe30] sm:$0xff]
          %v6879 = vld [vmem:[#allocation2 + $0xe38] sm:$0xff]
          %v6880 = vld [vmem:[#allocation2 + $0xe40] sm:$0xff]
          %v6881 = vld [vmem:[#allocation2 + $0xe48] sm:$0xff]
          %v6882 = vld [vmem:[#allocation2 + $0xe50] sm:$0xff]
          %v6883 = vld [vmem:[#allocation2 + $0xe58] sm:$0xff]
          %v6884 = vld [vmem:[#allocation2 + $0xe60] sm:$0xff]
          %v6885 = vld [vmem:[#allocation2 + $0xe68] sm:$0xff]
          %v6886 = vld [vmem:[#allocation2 + $0xe70] sm:$0xff]
          %v6887 = vld [vmem:[#allocation2 + $0xe78] sm:$0xff]
          %v6888 = vld [vmem:[#allocation2 + $0xe80] sm:$0xff]
          %v6889 = vld [vmem:[#allocation2 + $0xe88] sm:$0xff]
          %v6890 = vld [vmem:[#allocation2 + $0xe90] sm:$0xff]
          %v6891 = vld [vmem:[#allocation2 + $0xe98] sm:$0xff]
          %v6892 = vld [vmem:[#allocation2 + $0xea0] sm:$0xff]
          %v6893 = vld [vmem:[#allocation2 + $0xea8] sm:$0xff]
          %v6894 = vld [vmem:[#allocation2 + $0xeb0] sm:$0xff]
          %v6895 = vld [vmem:[#allocation2 + $0xeb8] sm:$0xff]
          %v6896 = vld [vmem:[#allocation2 + $0xec0] sm:$0xff]
          %v6897 = vld [vmem:[#allocation2 + $0xec8] sm:$0xff]
          %v6898 = vld [vmem:[#allocation2 + $0xed0] sm:$0xff]
          %v6899 = vld [vmem:[#allocation2 + $0xed8] sm:$0xff]
          %v6900 = vld [vmem:[#allocation2 + $0xee0] sm:$0xff]
          %v6901 = vld [vmem:[#allocation2 + $0xee8] sm:$0xff]
          %v6902 = vld [vmem:[#allocation2 + $0xef0] sm:$0xff]
          %v6903 = vld [vmem:[#allocation2 + $0xef8] sm:$0xff]
          %v6904 = vld [vmem:[#allocation2 + $0xf00] sm:$0xff]
          %v6905 = vld [vmem:[#allocation2 + $0xf08] sm:$0xff]
          %v6906 = vld [vmem:[#allocation2 + $0xf10] sm:$0xff]
          %v6907 = vld [vmem:[#allocation2 + $0xf18] sm:$0xff]
          %v6908 = vld [vmem:[#allocation2 + $0xf20] sm:$0xff]
          %v6909 = vld [vmem:[#allocation2 + $0xf28] sm:$0xff]
          %v6910 = vld [vmem:[#allocation2 + $0xf30] sm:$0xff]
          %v6911 = vld [vmem:[#allocation2 + $0xf38] sm:$0xff]
          %v6912 = vld [vmem:[#allocation2 + $0xf40] sm:$0xff]
          %v6913 = vld [vmem:[#allocation2 + $0xf48] sm:$0xff]
          %v6914 = vld [vmem:[#allocation2 + $0xf50] sm:$0xff]
          %v6915 = vld [vmem:[#allocation2 + $0xf58] sm:$0xff]
          %v6916 = vld [vmem:[#allocation2 + $0xf60] sm:$0xff]
          %v6917 = vld [vmem:[#allocation2 + $0xf68] sm:$0xff]
          %v6918 = vld [vmem:[#allocation2 + $0xf70] sm:$0xff]
          %v6919 = vld [vmem:[#allocation2 + $0xf78] sm:$0xff]
          %v6920 = vld [vmem:[#allocation2 + $0xf80] sm:$0xff]
          %v6921 = vld [vmem:[#allocation2 + $0xf88] sm:$0xff]
          %v6922 = vld [vmem:[#allocation2 + $0xf90] sm:$0xff]
          %v6923 = vld [vmem:[#allocation2 + $0xf98] sm:$0xff]
          %v6924 = vld [vmem:[#allocation2 + $0xfa0] sm:$0xff]
          %v6925 = vld [vmem:[#allocation2 + $0xfa8] sm:$0xff]
          %v6926 = vld [vmem:[#allocation2 + $0xfb0] sm:$0xff]
          %v6927 = vld [vmem:[#allocation2 + $0xfb8] sm:$0xff]
          %v6928 = vld [vmem:[#allocation2 + $0xfc0] sm:$0xff]
          %v6929 = vld [vmem:[#allocation2 + $0xfc8] sm:$0xff]
          %v6930 = vld [vmem:[#allocation2 + $0xfd0] sm:$0xff]
          %v6931 = vld [vmem:[#allocation2 + $0xfd8] sm:$0xff]
          %v6932 = vld [vmem:[#allocation2 + $0xfe0] sm:$0xff]
          %v6933 = vld [vmem:[#allocation2 + $0xfe8] sm:$0xff]
          %v6934 = vld [vmem:[#allocation2 + $0xff0] sm:$0xff]
          %v6935 = vld [vmem:[#allocation2 + $0xff8] sm:$0xff]
          %v6936 = vadd.f32 %v6424, %v6425
          %v6937 = vadd.f32 %v6936, %v6426
          %v6938 = vadd.f32 %v6937, %v6427
          %v6939 = vadd.f32 %v6938, %v6428
          %v6940 = vadd.f32 %v6939, %v6429
          %v6941 = vadd.f32 %v6940, %v6430
          %v6942 = vadd.f32 %v6941, %v6431
          %v6943 = vadd.f32 %v6942, %v6432
          %v6944 = vadd.f32 %v6943, %v6433
          %v6945 = vadd.f32 %v6944, %v6434
          %v6946 = vadd.f32 %v6945, %v6435
          %v6947 = vadd.f32 %v6946, %v6436
          %v6948 = vadd.f32 %v6947, %v6437
          %v6949 = vadd.f32 %v6948, %v6438
          %v6950 = vadd.f32 %v6949, %v6439
          %v6951 = vadd.f32 %v6950, %v6440
          %v6952 = vadd.f32 %v6951, %v6441
          %v6953 = vadd.f32 %v6952, %v6442
          %v6954 = vadd.f32 %v6953, %v6443
          %v6955 = vadd.f32 %v6954, %v6444
          %v6956 = vadd.f32 %v6955, %v6445
          %v6957 = vadd.f32 %v6956, %v6446
          %v6958 = vadd.f32 %v6957, %v6447
          %v6959 = vadd.f32 %v6958, %v6448
          %v6960 = vadd.f32 %v6959, %v6449
          %v6961 = vadd.f32 %v6960, %v6450
          %v6962 = vadd.f32 %v6961, %v6451
          %v6963 = vadd.f32 %v6962, %v6452
          %v6964 = vadd.f32 %v6963, %v6453
          %v6965 = vadd.f32 %v6964, %v6454
          %v6966 = vadd.f32 %v6965, %v6455
          %v6967 = vadd.f32 %v6966, %v6456
          %v6968 = vadd.f32 %v6967, %v6457
          %v6969 = vadd.f32 %v6968, %v6458
          %v6970 = vadd.f32 %v6969, %v6459
          %v6971 = vadd.f32 %v6970, %v6460
          %v6972 = vadd.f32 %v6971, %v6461
          %v6973 = vadd.f32 %v6972, %v6462
          %v6974 = vadd.f32 %v6973, %v6463
          %v6975 = vadd.f32 %v6974, %v6464
          %v6976 = vadd.f32 %v6975, %v6465
          %v6977 = vadd.f32 %v6976, %v6466
          %v6978 = vadd.f32 %v6977, %v6467
          %v6979 = vadd.f32 %v6978, %v6468
          %v6980 = vadd.f32 %v6979, %v6469
          %v6981 = vadd.f32 %v6980, %v6470
          %v6982 = vadd.f32 %v6981, %v6471
          %v6983 = vadd.f32 %v6982, %v6472
          %v6984 = vadd.f32 %v6983, %v6473
          %v6985 = vadd.f32 %v6984, %v6474
          %v6986 = vadd.f32 %v6985, %v6475
          %v6987 = vadd.f32 %v6986, %v6476
          %v6988 = vadd.f32 %v6987, %v6477
          %v6989 = vadd.f32 %v6988, %v6478
          %v6990 = vadd.f32 %v6989, %v6479
          %v6991 = vadd.f32 %v6990, %v6480
          %v6992 = vadd.f32 %v6991, %v6481
          %v6993 = vadd.f32 %v6992, %v6482
          %v6994 = vadd.f32 %v6993, %v6483
          %v6995 = vadd.f32 %v6994, %v6484
          %v6996 = vadd.f32 %v6995, %v6485
          %v6997 = vadd.f32 %v6996, %v6486
          %v6998 = vadd.f32 %v6997, %v6487
          %v6999 = vadd.f32 %v6998, %v6488
          %v7000 = vadd.f32 %v6999, %v6489
          %v7001 = vadd.f32 %v7000, %v6490
          %v7002 = vadd.f32 %v7001, %v6491
          %v7003 = vadd.f32 %v7002, %v6492
          %v7004 = vadd.f32 %v7003, %v6493
          %v7005 = vadd.f32 %v7004, %v6494
          %v7006 = vadd.f32 %v7005, %v6495
          %v7007 = vadd.f32 %v7006, %v6496
          %v7008 = vadd.f32 %v7007, %v6497
          %v7009 = vadd.f32 %v7008, %v6498
          %v7010 = vadd.f32 %v7009, %v6499
          %v7011 = vadd.f32 %v7010, %v6500
          %v7012 = vadd.f32 %v7011, %v6501
          %v7013 = vadd.f32 %v7012, %v6502
          %v7014 = vadd.f32 %v7013, %v6503
          %v7015 = vadd.f32 %v7014, %v6504
          %v7016 = vadd.f32 %v7015, %v6505
          %v7017 = vadd.f32 %v7016, %v6506
          %v7018 = vadd.f32 %v7017, %v6507
          %v7019 = vadd.f32 %v7018, %v6508
          %v7020 = vadd.f32 %v7019, %v6509
          %v7021 = vadd.f32 %v7020, %v6510
          %v7022 = vadd.f32 %v7021, %v6511
          %v7023 = vadd.f32 %v7022, %v6512
          %v7024 = vadd.f32 %v7023, %v6513
          %v7025 = vadd.f32 %v7024, %v6514
          %v7026 = vadd.f32 %v7025, %v6515
          %v7027 = vadd.f32 %v7026, %v6516
          %v7028 = vadd.f32 %v7027, %v6517
          %v7029 = vadd.f32 %v7028, %v6518
          %v7030 = vadd.f32 %v7029, %v6519
          %v7031 = vadd.f32 %v7030, %v6520
          %v7032 = vadd.f32 %v7031, %v6521
          %v7033 = vadd.f32 %v7032, %v6522
          %v7034 = vadd.f32 %v7033, %v6523
          %v7035 = vadd.f32 %v7034, %v6524
          %v7036 = vadd.f32 %v7035, %v6525
          %v7037 = vadd.f32 %v7036, %v6526
          %v7038 = vadd.f32 %v7037, %v6527
          %v7039 = vadd.f32 %v7038, %v6528
          %v7040 = vadd.f32 %v7039, %v6529
          %v7041 = vadd.f32 %v7040, %v6530
          %v7042 = vadd.f32 %v7041, %v6531
          %v7043 = vadd.f32 %v7042, %v6532
          %v7044 = vadd.f32 %v7043, %v6533
          %v7045 = vadd.f32 %v7044, %v6534
          %v7046 = vadd.f32 %v7045, %v6535
          %v7047 = vadd.f32 %v7046, %v6536
          %v7048 = vadd.f32 %v7047, %v6537
          %v7049 = vadd.f32 %v7048, %v6538
          %v7050 = vadd.f32 %v7049, %v6539
          %v7051 = vadd.f32 %v7050, %v6540
          %v7052 = vadd.f32 %v7051, %v6541
          %v7053 = vadd.f32 %v7052, %v6542
          %v7054 = vadd.f32 %v7053, %v6543
          %v7055 = vadd.f32 %v7054, %v6544
          %v7056 = vadd.f32 %v7055, %v6545
          %v7057 = vadd.f32 %v7056, %v6546
          %v7058 = vadd.f32 %v7057, %v6547
          %v7059 = vadd.f32 %v7058, %v6548
          %v7060 = vadd.f32 %v7059, %v6549
          %v7061 = vadd.f32 %v7060, %v6550
          %v7062 = vadd.f32 %v7061, %v6551
          %v7063 = vadd.f32 %v7062, %v6552
          %v7064 = vadd.f32 %v7063, %v6553
          %v7065 = vadd.f32 %v7064, %v6554
          %v7066 = vadd.f32 %v7065, %v6555
          %v7067 = vadd.f32 %v7066, %v6556
          %v7068 = vadd.f32 %v7067, %v6557
          %v7069 = vadd.f32 %v7068, %v6558
          %v7070 = vadd.f32 %v7069, %v6559
          %v7071 = vadd.f32 %v7070, %v6560
          %v7072 = vadd.f32 %v7071, %v6561
          %v7073 = vadd.f32 %v7072, %v6562
          %v7074 = vadd.f32 %v7073, %v6563
          %v7075 = vadd.f32 %v7074, %v6564
          %v7076 = vadd.f32 %v7075, %v6565
          %v7077 = vadd.f32 %v7076, %v6566
          %v7078 = vadd.f32 %v7077, %v6567
          %v7079 = vadd.f32 %v7078, %v6568
          %v7080 = vadd.f32 %v7079, %v6569
          %v7081 = vadd.f32 %v7080, %v6570
          %v7082 = vadd.f32 %v7081, %v6571
          %v7083 = vadd.f32 %v7082, %v6572
          %v7084 = vadd.f32 %v7083, %v6573
          %v7085 = vadd.f32 %v7084, %v6574
          %v7086 = vadd.f32 %v7085, %v6575
          %v7087 = vadd.f32 %v7086, %v6576
          %v7088 = vadd.f32 %v7087, %v6577
          %v7089 = vadd.f32 %v7088, %v6578
          %v7090 = vadd.f32 %v7089, %v6579
          %v7091 = vadd.f32 %v7090, %v6580
          %v7092 = vadd.f32 %v7091, %v6581
          %v7093 = vadd.f32 %v7092, %v6582
          %v7094 = vadd.f32 %v7093, %v6583
          %v7095 = vadd.f32 %v7094, %v6584
          %v7096 = vadd.f32 %v7095, %v6585
          %v7097 = vadd.f32 %v7096, %v6586
          %v7098 = vadd.f32 %v7097, %v6587
          %v7099 = vadd.f32 %v7098, %v6588
          %v7100 = vadd.f32 %v7099, %v6589
          %v7101 = vadd.f32 %v7100, %v6590
          %v7102 = vadd.f32 %v7101, %v6591
          %v7103 = vadd.f32 %v7102, %v6592
          %v7104 = vadd.f32 %v7103, %v6593
          %v7105 = vadd.f32 %v7104, %v6594
          %v7106 = vadd.f32 %v7105, %v6595
          %v7107 = vadd.f32 %v7106, %v6596
          %v7108 = vadd.f32 %v7107, %v6597
          %v7109 = vadd.f32 %v7108, %v6598
          %v7110 = vadd.f32 %v7109, %v6599
          %v7111 = vadd.f32 %v7110, %v6600
          %v7112 = vadd.f32 %v7111, %v6601
          %v7113 = vadd.f32 %v7112, %v6602
          %v7114 = vadd.f32 %v7113, %v6603
          %v7115 = vadd.f32 %v7114, %v6604
          %v7116 = vadd.f32 %v7115, %v6605
          %v7117 = vadd.f32 %v7116, %v6606
          %v7118 = vadd.f32 %v7117, %v6607
          %v7119 = vadd.f32 %v7118, %v6608
          %v7120 = vadd.f32 %v7119, %v6609
          %v7121 = vadd.f32 %v7120, %v6610
          %v7122 = vadd.f32 %v7121, %v6611
          %v7123 = vadd.f32 %v7122, %v6612
          %v7124 = vadd.f32 %v7123, %v6613
          %v7125 = vadd.f32 %v7124, %v6614
          %v7126 = vadd.f32 %v7125, %v6615
          %v7127 = vadd.f32 %v7126, %v6616
          %v7128 = vadd.f32 %v7127, %v6617
          %v7129 = vadd.f32 %v7128, %v6618
          %v7130 = vadd.f32 %v7129, %v6619
          %v7131 = vadd.f32 %v7130, %v6620
          %v7132 = vadd.f32 %v7131, %v6621
          %v7133 = vadd.f32 %v7132, %v6622
          %v7134 = vadd.f32 %v7133, %v6623
          %v7135 = vadd.f32 %v7134, %v6624
          %v7136 = vadd.f32 %v7135, %v6625
          %v7137 = vadd.f32 %v7136, %v6626
          %v7138 = vadd.f32 %v7137, %v6627
          %v7139 = vadd.f32 %v7138, %v6628
          %v7140 = vadd.f32 %v7139, %v6629
          %v7141 = vadd.f32 %v7140, %v6630
          %v7142 = vadd.f32 %v7141, %v6631
          %v7143 = vadd.f32 %v7142, %v6632
          %v7144 = vadd.f32 %v7143, %v6633
          %v7145 = vadd.f32 %v7144, %v6634
          %v7146 = vadd.f32 %v7145, %v6635
          %v7147 = vadd.f32 %v7146, %v6636
          %v7148 = vadd.f32 %v7147, %v6637
          %v7149 = vadd.f32 %v7148, %v6638
          %v7150 = vadd.f32 %v7149, %v6639
          %v7151 = vadd.f32 %v7150, %v6640
          %v7152 = vadd.f32 %v7151, %v6641
          %v7153 = vadd.f32 %v7152, %v6642
          %v7154 = vadd.f32 %v7153, %v6643
          %v7155 = vadd.f32 %v7154, %v6644
          %v7156 = vadd.f32 %v7155, %v6645
          %v7157 = vadd.f32 %v7156, %v6646
          %v7158 = vadd.f32 %v7157, %v6647
          %v7159 = vadd.f32 %v7158, %v6648
          %v7160 = vadd.f32 %v7159, %v6649
          %v7161 = vadd.f32 %v7160, %v6650
          %v7162 = vadd.f32 %v7161, %v6651
          %v7163 = vadd.f32 %v7162, %v6652
          %v7164 = vadd.f32 %v7163, %v6653
          %v7165 = vadd.f32 %v7164, %v6654
          %v7166 = vadd.f32 %v7165, %v6655
          %v7167 = vadd.f32 %v7166, %v6656
          %v7168 = vadd.f32 %v7167, %v6657
          %v7169 = vadd.f32 %v7168, %v6658
          %v7170 = vadd.f32 %v7169, %v6659
          %v7171 = vadd.f32 %v7170, %v6660
          %v7172 = vadd.f32 %v7171, %v6661
          %v7173 = vadd.f32 %v7172, %v6662
          %v7174 = vadd.f32 %v7173, %v6663
          %v7175 = vadd.f32 %v7174, %v6664
          %v7176 = vadd.f32 %v7175, %v6665
          %v7177 = vadd.f32 %v7176, %v6666
          %v7178 = vadd.f32 %v7177, %v6667
          %v7179 = vadd.f32 %v7178, %v6668
          %v7180 = vadd.f32 %v7179, %v6669
          %v7181 = vadd.f32 %v7180, %v6670
          %v7182 = vadd.f32 %v7181, %v6671
          %v7183 = vadd.f32 %v7182, %v6672
          %v7184 = vadd.f32 %v7183, %v6673
          %v7185 = vadd.f32 %v7184, %v6674
          %v7186 = vadd.f32 %v7185, %v6675
          %v7187 = vadd.f32 %v7186, %v6676
          %v7188 = vadd.f32 %v7187, %v6677
          %v7189 = vadd.f32 %v7188, %v6678
          %v7190 = vadd.f32 %v7189, %v6679
          %v7191 = vadd.f32 %v7190, %v6680
          %v7192 = vadd.f32 %v7191, %v6681
          %v7193 = vadd.f32 %v7192, %v6682
          %v7194 = vadd.f32 %v7193, %v6683
          %v7195 = vadd.f32 %v7194, %v6684
          %v7196 = vadd.f32 %v7195, %v6685
          %v7197 = vadd.f32 %v7196, %v6686
          %v7198 = vadd.f32 %v7197, %v6687
          %v7199 = vadd.f32 %v7198, %v6688
          %v7200 = vadd.f32 %v7199, %v6689
          %v7201 = vadd.f32 %v7200, %v6690
          %v7202 = vadd.f32 %v7201, %v6691
          %v7203 = vadd.f32 %v7202, %v6692
          %v7204 = vadd.f32 %v7203, %v6693
          %v7205 = vadd.f32 %v7204, %v6694
          %v7206 = vadd.f32 %v7205, %v6695
          %v7207 = vadd.f32 %v7206, %v6696
          %v7208 = vadd.f32 %v7207, %v6697
          %v7209 = vadd.f32 %v7208, %v6698
          %v7210 = vadd.f32 %v7209, %v6699
          %v7211 = vadd.f32 %v7210, %v6700
          %v7212 = vadd.f32 %v7211, %v6701
          %v7213 = vadd.f32 %v7212, %v6702
          %v7214 = vadd.f32 %v7213, %v6703
          %v7215 = vadd.f32 %v7214, %v6704
          %v7216 = vadd.f32 %v7215, %v6705
          %v7217 = vadd.f32 %v7216, %v6706
          %v7218 = vadd.f32 %v7217, %v6707
          %v7219 = vadd.f32 %v7218, %v6708
          %v7220 = vadd.f32 %v7219, %v6709
          %v7221 = vadd.f32 %v7220, %v6710
          %v7222 = vadd.f32 %v7221, %v6711
          %v7223 = vadd.f32 %v7222, %v6712
          %v7224 = vadd.f32 %v7223, %v6713
          %v7225 = vadd.f32 %v7224, %v6714
          %v7226 = vadd.f32 %v7225, %v6715
          %v7227 = vadd.f32 %v7226, %v6716
          %v7228 = vadd.f32 %v7227, %v6717
          %v7229 = vadd.f32 %v7228, %v6718
          %v7230 = vadd.f32 %v7229, %v6719
          %v7231 = vadd.f32 %v7230, %v6720
          %v7232 = vadd.f32 %v7231, %v6721
          %v7233 = vadd.f32 %v7232, %v6722
          %v7234 = vadd.f32 %v7233, %v6723
          %v7235 = vadd.f32 %v7234, %v6724
          %v7236 = vadd.f32 %v7235, %v6725
          %v7237 = vadd.f32 %v7236, %v6726
          %v7238 = vadd.f32 %v7237, %v6727
          %v7239 = vadd.f32 %v7238, %v6728
          %v7240 = vadd.f32 %v7239, %v6729
          %v7241 = vadd.f32 %v7240, %v6730
          %v7242 = vadd.f32 %v7241, %v6731
          %v7243 = vadd.f32 %v7242, %v6732
          %v7244 = vadd.f32 %v7243, %v6733
          %v7245 = vadd.f32 %v7244, %v6734
          %v7246 = vadd.f32 %v7245, %v6735
          %v7247 = vadd.f32 %v7246, %v6736
          %v7248 = vadd.f32 %v7247, %v6737
          %v7249 = vadd.f32 %v7248, %v6738
          %v7250 = vadd.f32 %v7249, %v6739
          %v7251 = vadd.f32 %v7250, %v6740
          %v7252 = vadd.f32 %v7251, %v6741
          %v7253 = vadd.f32 %v7252, %v6742
          %v7254 = vadd.f32 %v7253, %v6743
          %v7255 = vadd.f32 %v7254, %v6744
          %v7256 = vadd.f32 %v7255, %v6745
          %v7257 = vadd.f32 %v7256, %v6746
          %v7258 = vadd.f32 %v7257, %v6747
          %v7259 = vadd.f32 %v7258, %v6748
          %v7260 = vadd.f32 %v7259, %v6749
          %v7261 = vadd.f32 %v7260, %v6750
          %v7262 = vadd.f32 %v7261, %v6751
          %v7263 = vadd.f32 %v7262, %v6752
          %v7264 = vadd.f32 %v7263, %v6753
          %v7265 = vadd.f32 %v7264, %v6754
          %v7266 = vadd.f32 %v7265, %v6755
          %v7267 = vadd.f32 %v7266, %v6756
          %v7268 = vadd.f32 %v7267, %v6757
          %v7269 = vadd.f32 %v7268, %v6758
          %v7270 = vadd.f32 %v7269, %v6759
          %v7271 = vadd.f32 %v7270, %v6760
          %v7272 = vadd.f32 %v7271, %v6761
          %v7273 = vadd.f32 %v7272, %v6762
          %v7274 = vadd.f32 %v7273, %v6763
          %v7275 = vadd.f32 %v7274, %v6764
          %v7276 = vadd.f32 %v7275, %v6765
          %v7277 = vadd.f32 %v7276, %v6766
          %v7278 = vadd.f32 %v7277, %v6767
          %v7279 = vadd.f32 %v7278, %v6768
          %v7280 = vadd.f32 %v7279, %v6769
          %v7281 = vadd.f32 %v7280, %v6770
          %v7282 = vadd.f32 %v7281, %v6771
          %v7283 = vadd.f32 %v7282, %v6772
          %v7284 = vadd.f32 %v7283, %v6773
          %v7285 = vadd.f32 %v7284, %v6774
          %v7286 = vadd.f32 %v7285, %v6775
          %v7287 = vadd.f32 %v7286, %v6776
          %v7288 = vadd.f32 %v7287, %v6777
          %v7289 = vadd.f32 %v7288, %v6778
          %v7290 = vadd.f32 %v7289, %v6779
          %v7291 = vadd.f32 %v7290, %v6780
          %v7292 = vadd.f32 %v7291, %v6781
          %v7293 = vadd.f32 %v7292, %v6782
          %v7294 = vadd.f32 %v7293, %v6783
          %v7295 = vadd.f32 %v7294, %v6784
          %v7296 = vadd.f32 %v7295, %v6785
          %v7297 = vadd.f32 %v7296, %v6786
          %v7298 = vadd.f32 %v7297, %v6787
          %v7299 = vadd.f32 %v7298, %v6788
          %v7300 = vadd.f32 %v7299, %v6789
          %v7301 = vadd.f32 %v7300, %v6790
          %v7302 = vadd.f32 %v7301, %v6791
          %v7303 = vadd.f32 %v7302, %v6792
          %v7304 = vadd.f32 %v7303, %v6793
          %v7305 = vadd.f32 %v7304, %v6794
          %v7306 = vadd.f32 %v7305, %v6795
          %v7307 = vadd.f32 %v7306, %v6796
          %v7308 = vadd.f32 %v7307, %v6797
          %v7309 = vadd.f32 %v7308, %v6798
          %v7310 = vadd.f32 %v7309, %v6799
          %v7311 = vadd.f32 %v7310, %v6800
          %v7312 = vadd.f32 %v7311, %v6801
          %v7313 = vadd.f32 %v7312, %v6802
          %v7314 = vadd.f32 %v7313, %v6803
          %v7315 = vadd.f32 %v7314, %v6804
          %v7316 = vadd.f32 %v7315, %v6805
          %v7317 = vadd.f32 %v7316, %v6806
          %v7318 = vadd.f32 %v7317, %v6807
          %v7319 = vadd.f32 %v7318, %v6808
          %v7320 = vadd.f32 %v7319, %v6809
          %v7321 = vadd.f32 %v7320, %v6810
          %v7322 = vadd.f32 %v7321, %v6811
          %v7323 = vadd.f32 %v7322, %v6812
          %v7324 = vadd.f32 %v7323, %v6813
          %v7325 = vadd.f32 %v7324, %v6814
          %v7326 = vadd.f32 %v7325, %v6815
          %v7327 = vadd.f32 %v7326, %v6816
          %v7328 = vadd.f32 %v7327, %v6817
          %v7329 = vadd.f32 %v7328, %v6818
          %v7330 = vadd.f32 %v7329, %v6819
          %v7331 = vadd.f32 %v7330, %v6820
          %v7332 = vadd.f32 %v7331, %v6821
          %v7333 = vadd.f32 %v7332, %v6822
          %v7334 = vadd.f32 %v7333, %v6823
          %v7335 = vadd.f32 %v7334, %v6824
          %v7336 = vadd.f32 %v7335, %v6825
          %v7337 = vadd.f32 %v7336, %v6826
          %v7338 = vadd.f32 %v7337, %v6827
          %v7339 = vadd.f32 %v7338, %v6828
          %v7340 = vadd.f32 %v7339, %v6829
          %v7341 = vadd.f32 %v7340, %v6830
          %v7342 = vadd.f32 %v7341, %v6831
          %v7343 = vadd.f32 %v7342, %v6832
          %v7344 = vadd.f32 %v7343, %v6833
          %v7345 = vadd.f32 %v7344, %v6834
          %v7346 = vadd.f32 %v7345, %v6835
          %v7347 = vadd.f32 %v7346, %v6836
          %v7348 = vadd.f32 %v7347, %v6837
          %v7349 = vadd.f32 %v7348, %v6838
          %v7350 = vadd.f32 %v7349, %v6839
          %v7351 = vadd.f32 %v7350, %v6840
          %v7352 = vadd.f32 %v7351, %v6841
          %v7353 = vadd.f32 %v7352, %v6842
          %v7354 = vadd.f32 %v7353, %v6843
          %v7355 = vadd.f32 %v7354, %v6844
          %v7356 = vadd.f32 %v7355, %v6845
          %v7357 = vadd.f32 %v7356, %v6846
          %v7358 = vadd.f32 %v7357, %v6847
          %v7359 = vadd.f32 %v7358, %v6848
          %v7360 = vadd.f32 %v7359, %v6849
          %v7361 = vadd.f32 %v7360, %v6850
          %v7362 = vadd.f32 %v7361, %v6851
          %v7363 = vadd.f32 %v7362, %v6852
          %v7364 = vadd.f32 %v7363, %v6853
          %v7365 = vadd.f32 %v7364, %v6854
          %v7366 = vadd.f32 %v7365, %v6855
          %v7367 = vadd.f32 %v7366, %v6856
          %v7368 = vadd.f32 %v7367, %v6857
          %v7369 = vadd.f32 %v7368, %v6858
          %v7370 = vadd.f32 %v7369, %v6859
          %v7371 = vadd.f32 %v7370, %v6860
          %v7372 = vadd.f32 %v7371, %v6861
          %v7373 = vadd.f32 %v7372, %v6862
          %v7374 = vadd.f32 %v7373, %v6863
          %v7375 = vadd.f32 %v7374, %v6864
          %v7376 = vadd.f32 %v7375, %v6865
          %v7377 = vadd.f32 %v7376, %v6866
          %v7378 = vadd.f32 %v7377, %v6867
          %v7379 = vadd.f32 %v7378, %v6868
          %v7380 = vadd.f32 %v7379, %v6869
          %v7381 = vadd.f32 %v7380, %v6870
          %v7382 = vadd.f32 %v7381, %v6871
          %v7383 = vadd.f32 %v7382, %v6872
          %v7384 = vadd.f32 %v7383, %v6873
          %v7385 = vadd.f32 %v7384, %v6874
          %v7386 = vadd.f32 %v7385, %v6875
          %v7387 = vadd.f32 %v7386, %v6876
          %v7388 = vadd.f32 %v7387, %v6877
          %v7389 = vadd.f32 %v7388, %v6878
          %v7390 = vadd.f32 %v7389, %v6879
          %v7391 = vadd.f32 %v7390, %v6880
          %v7392 = vadd.f32 %v7391, %v6881
          %v7393 = vadd.f32 %v7392, %v6882
          %v7394 = vadd.f32 %v7393, %v6883
          %v7395 = vadd.f32 %v7394, %v6884
          %v7396 = vadd.f32 %v7395, %v6885
          %v7397 = vadd.f32 %v7396, %v6886
          %v7398 = vadd.f32 %v7397, %v6887
          %v7399 = vadd.f32 %v7398, %v6888
          %v7400 = vadd.f32 %v7399, %v6889
          %v7401 = vadd.f32 %v7400, %v6890
          %v7402 = vadd.f32 %v7401, %v6891
          %v7403 = vadd.f32 %v7402, %v6892
          %v7404 = vadd.f32 %v7403, %v6893
          %v7405 = vadd.f32 %v7404, %v6894
          %v7406 = vadd.f32 %v7405, %v6895
          %v7407 = vadd.f32 %v7406, %v6896
          %v7408 = vadd.f32 %v7407, %v6897
          %v7409 = vadd.f32 %v7408, %v6898
          %v7410 = vadd.f32 %v7409, %v6899
          %v7411 = vadd.f32 %v7410, %v6900
          %v7412 = vadd.f32 %v7411, %v6901
          %v7413 = vadd.f32 %v7412, %v6902
          %v7414 = vadd.f32 %v7413, %v6903
          %v7415 = vadd.f32 %v7414, %v6904
          %v7416 = vadd.f32 %v7415, %v6905
          %v7417 = vadd.f32 %v7416, %v6906
          %v7418 = vadd.f32 %v7417, %v6907
          %v7419 = vadd.f32 %v7418, %v6908
          %v7420 = vadd.f32 %v7419, %v6909
          %v7421 = vadd.f32 %v7420, %v6910
          %v7422 = vadd.f32 %v7421, %v6911
          %v7423 = vadd.f32 %v7422, %v6912
          %v7424 = vadd.f32 %v7423, %v6913
          %v7425 = vadd.f32 %v7424, %v6914
          %v7426 = vadd.f32 %v7425, %v6915
          %v7427 = vadd.f32 %v7426, %v6916
          %v7428 = vadd.f32 %v7427, %v6917
          %v7429 = vadd.f32 %v7428, %v6918
          %v7430 = vadd.f32 %v7429, %v6919
          %v7431 = vadd.f32 %v7430, %v6920
          %v7432 = vadd.f32 %v7431, %v6921
          %v7433 = vadd.f32 %v7432, %v6922
          %v7434 = vadd.f32 %v7433, %v6923
          %v7435 = vadd.f32 %v7434, %v6924
          %v7436 = vadd.f32 %v7435, %v6925
          %v7437 = vadd.f32 %v7436, %v6926
          %v7438 = vadd.f32 %v7437, %v6927
          %v7439 = vadd.f32 %v7438, %v6928
          %v7440 = vadd.f32 %v7439, %v6929
          %v7441 = vadd.f32 %v7440, %v6930
          %v7442 = vadd.f32 %v7441, %v6931
          %v7443 = vadd.f32 %v7442, %v6932
          %v7444 = vadd.f32 %v7443, %v6933
          %v7445 = vadd.f32 %v7444, %v6934
          %v7446 = vadd.f32 %v7445, %v6935
          %v7447 = vrot.slane %v7446, 4
          %v7448 = vadd.f32 %v7446, %v7447
          %v7449 = vrot.slane %v7448, 2
          %v7450 = vadd.f32 %v7448, %v7449
          %v7451 = vrot.slane %v7450, 1
          %v7452 = vadd.f32 %v7450, %v7451
          %7453 = vst [vmem:[%s248] sm:$0x1] %v7452
        $region44: #{tpu_custom_call.1} parent=27 // pred_fallthru
          _
        %s7454 = sand.u32 %s110, 1
        %s7455 = scalar_lea.sflag [#allocation5], %s7454
        %s7456 = sand.u32 %s110, 1
        %s7457 = scalar_lea.vmem [#allocation8], %s7456
        // Predicated region
        $region45: #{tpu_custom_call.1} parent=27 // pred_check
          %p7458 = pneg %p120
        $region46: #{tpu_custom_call.1} parent=27 // pred_check_branch
          %7460 = sbr.rel (%p7458) target = $region48
        $region47: #{tpu_custom_call.1} parent=27 // pred_region
          %s7462 = ssub.s32 16, 16
          %7463 = vsyncadd %s7455, %s7462
          %s7464 = smul.addr %s26, 16
          %s7465 = scalar_lea.hbm %s2, %s7464
          %s7467 = sshll.u32 %s7457, 4
          %s7468 = int_to_ptr.vmem [resolvable:$true] %s7467
          %7470 = dma.vmem_to_hbm [thread:$0]  %s7468, 16, %s7465, %s7455
        $region48: #{tpu_custom_call.1} parent=27 // pred_fallthru
          _
      $region28: #{tpu_custom_call.1} parent=5 // pred_fallthru
        _
      %p7471 = scmp.le.s32.totalorder 2, %s17
      // Predicated region
      $region49: #{tpu_custom_call.1} parent=5 // pred_check
        %p7472 = pneg %p7471
      $region50: #{tpu_custom_call.1} parent=5 // pred_check_branch
        %7474 = sbr.rel (%p7472) target = $region52
      $region51: #{tpu_custom_call.1} parent=5 // pred_region
        %s7475 = ssub.s32 %s17, 2
        // Predicated region
        $region53: #{tpu_custom_call.1} parent=51 // pred_check
          %p7476 = pneg %p126
        $region54: #{tpu_custom_call.1} parent=51 // pred_check_branch
          %7478 = sbr.rel (%p7476) target = $region56
        $region55: #{tpu_custom_call.1} parent=51 // pred_region
          %s7479 = sand.u32 %s111, 1
          %s7480 = scalar_lea.sflag [#allocation5], %s7479
          %s7481 = sand.u32 %s111, 1
          %s7482 = scalar_lea.vmem [#allocation8], %s7481
          %7483 = dma.done %s7480, 16
        $region56: #{tpu_custom_call.1} parent=51 // pred_fallthru
          _
      $region52: #{tpu_custom_call.1} parent=5 // pred_fallthru
        _
    $region6: #{tpu_custom_call.1} parent=1 // loop_footer
      %s21 = sadd.s32 1, %s17
    $region7: #{tpu_custom_call.1} parent=1 // loop_footer_branch
      %16 = sbr.rel target = $region3
    $region8: #{tpu_custom_call.1} parent=1 // loop_exit
      _
    %7484 = vsyncpa [#allocation4], 1
    %s7485 = scalar_lea.sflag [#allocation4], 1
    %7486 = vsyncpa %s7485, 1
    %7487 = vsyncpa [#allocation7], 1
    %s7488 = scalar_lea.sflag [#allocation7], 1
    %7489 = vsyncpa %s7488, 1
    %7490 = vsyncpa [#allocation5], 1
    %s7491 = scalar_lea.sflag [#allocation5], 1
    %7492 = vsyncpa %s7491, 1

</llo_original>
